<compile_context>
chip_gen: v6e
topology: v6e:2x2x1
jax: 0.10.0
libtpu: 0.0.40
codegen_flags: <defaults>
</compile_context>

<pallas_src>
import functools
import numpy as np
import jax
import jax.numpy as jnp
from jax import lax
from jax.experimental import pallas as pl
from jax.experimental.pallas import tpu as pltpu


# ---------------------------------------------------------------------------
# Fused conv-stack + attention + FC kernel (grid over batch)
# ---------------------------------------------------------------------------
def _fused_kernel(xpad_ref, w1_ref, b1_ref, s1_ref, t1_ref,
                  w2_ref, b2_ref, w3_ref, b3_ref, w4_ref, b4_ref,
                  sel1_ref, sel2_ref, sel3_ref,
                  wa_ref, ba_ref, wp_ref, wf1_ref, bf1_ref, wf2_ref, bf2_ref,
                  conv_ref, x1g_ref, logit_ref,
                  p2, p3, p4, *, H, W):
    f32 = jnp.float32
    bf16 = jnp.bfloat16

    def conv3x3(src_ref, hh, ww, w_ref, b_ref):
        # 3x3 conv as 9 per-tap lane-dense matmuls, f32 accumulation, + bias + ReLU.
        acc = None
        t = 0
        for kh in range(3):
            for kw in range(3):
                sl = (src_ref[kh:kh + hh, kw:kw + ww, :]
                      .reshape(hh * ww, 128).astype(bf16))
                d = jnp.dot(sl, w_ref[t * 128:(t + 1) * 128, :],
                            preferred_element_type=f32)
                acc = d if acc is None else acc + d
                t += 1
        return jnp.maximum(acc + b_ref[...], 0.0)

    def pool2x2(y, sel_ref, w):
        # 2x2 max-pool of y:(h*w, 128): max of 4 row-shifted slices (VPU) then
        # a 0/1 bf16 row-selection matmul (MXU).
        n = y.shape[0]
        m = n - w - 1
        comb = jnp.maximum(jnp.maximum(y[0:m, :], y[1:m + 1, :]),
                           jnp.maximum(y[w:w + m, :], y[w + 1:w + 1 + m, :]))
        return jnp.dot(sel_ref[...], comb.astype(bf16), preferred_element_type=f32)

    def write_padded(dst_ref, y, hh, ww):
        # halo-only zeroing (megacore-safe, re-done every iteration) + one
        # interior store.
        zrow = jnp.zeros((1, ww + 2, 128), f32)
        zcol = jnp.zeros((hh, 1, 128), f32)
        dst_ref[0:1, :, :] = zrow
        dst_ref[hh + 1:hh + 2, :, :] = zrow
        dst_ref[1:hh + 1, 0:1, :] = zcol
        dst_ref[1:hh + 1, ww + 1:ww + 2, :] = zcol
        dst_ref[1:hh + 1, 1:ww + 1, :] = y.reshape(hh, ww, 128)

    # ---- layer 1: conv + bias + ReLU + BatchNorm(eval affine) + maxpool 2x2
    y = conv3x3(xpad_ref, H, W, w1_ref, b1_ref)
    y = y * s1_ref[...] + t1_ref[...]
    y = pool2x2(y, sel1_ref, W)                       # (H/2*W/2, 128)

    # ---- layer 2: conv + bias + ReLU + maxpool
    h, w = H // 2, W // 2
    write_padded(p2, y, h, w)
    y = pool2x2(conv3x3(p2, h, w, w2_ref, b2_ref), sel2_ref, w)

    # ---- layer 3: conv + bias + ReLU + maxpool
    h, w = h // 2, w // 2
    write_padded(p3, y, h, w)
    y = pool2x2(conv3x3(p3, h, w, w3_ref, b3_ref), sel3_ref, w)

    # ---- layer 4: conv + bias + ReLU (output channels zero-padded 70 -> 128)
    h, w = h // 2, w // 2
    write_padded(p4, y, h, w)
    y4 = conv3x3(p4, h, w, w4_ref, b4_ref)            # (P, 128), P = h*w

    # ---- fused attention + FC head (row-major / zero-padded coordinates)
    P = h * w
    # lane-dense flatten: x1[p*128 + c] = y4[p, c]  (128-aligned lane concat)
    x1 = jnp.concatenate([y4[p:p + 1, :] for p in range(P)], axis=1)   # (1, 128*P)
    conv_ref[0] = x1

    a = jnp.dot(x1.astype(bf16), wa_ref[...], preferred_element_type=f32) + ba_ref[...]
    a = jnp.maximum(a, 0.0)                           # attention Linear + ReLU
    gate = jax.nn.sigmoid(wp_ref[...] * a)            # Sigmoid(weight * attention(x1))
    x1g = gate * x1                                   # attention_out * x1
    x1g_ref[0] = x1g

    hfc = jnp.dot(x1g.astype(bf16), wf1_ref[...],
                  preferred_element_type=f32) + bf1_ref[...]
    hfc = jnp.maximum(hfc, 0.0)
    # TODO(synk): nn.Dropout(p=drop_prob) is eval-mode identity here (inference semantics).
    logit_ref[0] = jnp.dot(hfc.astype(bf16), wf2_ref[...],
                           preferred_element_type=f32) + bf2_ref[...]


def _pool_select_matrix(h, w):
    """0/1 matrix selecting the top-left corner of every 2x2 window."""
    n = h * w
    m = n - w - 1
    sel = np.zeros((n // 4, m), np.float32)
    for i in range(h // 2):
        for j in range(w // 2):
            sel[i * (w // 2) + j, (2 * i) * w + 2 * j] = 1.0
    return jnp.asarray(sel)


def _fused_call(xpad, kp, H, W):
    B = xpad.shape[0]
    s = H // 8
    P = s * s
    Fp = 128 * P

    def fullspec(shape):
        n = len(shape)
        return pl.BlockSpec(shape, lambda b, n=n: (0,) * n)

    kern = functools.partial(_fused_kernel, H=H, W=W)
    return pl.pallas_call(
        kern,
        out_shape=(jax.ShapeDtypeStruct((B, 1, Fp), jnp.float32),   # conv4 (row-major flat)
                   jax.ShapeDtypeStruct((B, 1, Fp), jnp.float32),   # gated x1 (row-major flat)
                   jax.ShapeDtypeStruct((B, 1, 128), jnp.float32)), # logits (padded)
        grid=(B,),
        in_specs=[
            pl.BlockSpec((None, H + 2, W + 2, 128), lambda b: (b, 0, 0, 0)),
            fullspec(kp["w1"].shape), fullspec(kp["b1"].shape),
            fullspec(kp["bn_scale"].shape), fullspec(kp["bn_shift"].shape),
            fullspec(kp["w2"].shape), fullspec(kp["b2"].shape),
            fullspec(kp["w3"].shape), fullspec(kp["b3"].shape),
            fullspec(kp["w4"].shape), fullspec(kp["b4"].shape),
            fullspec(kp["sel1"].shape), fullspec(kp["sel2"].shape),
            fullspec(kp["sel3"].shape),
            fullspec(kp["wa"].shape), fullspec(kp["ba"].shape),
            fullspec(kp["wp"].shape),
            fullspec(kp["wf1"].shape), fullspec(kp["bf1"].shape),
            fullspec(kp["wf2"].shape), fullspec(kp["bf2"].shape),
        ],
        out_specs=(pl.BlockSpec((1, 1, Fp), lambda b: (b, 0, 0)),
                   pl.BlockSpec((1, 1, Fp), lambda b: (b, 0, 0)),
                   pl.BlockSpec((1, 1, 128), lambda b: (b, 0, 0))),
        scratch_shapes=[
            pltpu.VMEM((H // 2 + 2, W // 2 + 2, 128), jnp.float32),
            pltpu.VMEM((H // 4 + 2, W // 4 + 2, 128), jnp.float32),
            pltpu.VMEM((s + 2, s + 2, 128), jnp.float32),
        ],
        compiler_params=pltpu.CompilerParams(
            dimension_semantics=("parallel",)),
    )(xpad, kp["w1"], kp["b1"], kp["bn_scale"], kp["bn_shift"],
      kp["w2"], kp["b2"], kp["w3"], kp["b3"], kp["w4"], kp["b4"],
      kp["sel1"], kp["sel2"], kp["sel3"],
      kp["wa"], kp["ba"], kp["wp"], kp["wf1"], kp["bf1"], kp["wf2"], kp["bf2"])


# ---------------------------------------------------------------------------
# Parameters (torch-equivalent layout) and kernel-layout preparation
# ---------------------------------------------------------------------------
def init_params(key, image_depth, image_size, num_classes):
    s = image_size // 8
    F = s * s * 70
    ks = jax.random.split(key, 8)

    def xavier(k, shape, fan_in, fan_out):
        bound = float(np.sqrt(6.0 / (fan_in + fan_out)))
        return jax.random.uniform(k, shape, jnp.float32, -bound, bound)

    return {
        "w1": xavier(ks[0], (3, 3, image_depth, 128), image_depth * 9, 128 * 9),
        "b1": jnp.full((128,), 0.01, jnp.float32),
        "w2": xavier(ks[1], (3, 3, 128, 128), 128 * 9, 128 * 9),
        "b2": jnp.full((128,), 0.01, jnp.float32),
        "w3": xavier(ks[2], (3, 3, 128, 128), 128 * 9, 128 * 9),
        "b3": jnp.full((128,), 0.01, jnp.float32),
        "w4": xavier(ks[3], (3, 3, 128, 70), 128 * 9, 70 * 9),
        "b4": jnp.full((70,), 0.01, jnp.float32),
        # BatchNorm2d(128) eval-mode parameters / running stats (defaults).
        "bn_gamma": jnp.ones((128,), jnp.float32),
        "bn_beta": jnp.zeros((128,), jnp.float32),
        "bn_mean": jnp.zeros((128,), jnp.float32),
        "bn_var": jnp.ones((128,), jnp.float32),
        # attention / fc weights stored (in, out) so forward computes x @ W.
        "wa": xavier(ks[4], (F, F), F, F),
        "ba": jnp.full((F,), 0.01, jnp.float32),
        "wp": jax.random.normal(ks[5], (1, F), jnp.float32) * 0.05,
        "wf1": xavier(ks[6], (F, 256), F, 256),
        "bf1": jnp.full((256,), 0.01, jnp.float32),
        "wf2": xavier(ks[7], (256, num_classes), 256, num_classes),
        "bf2": jnp.full((num_classes,), 0.01, jnp.float32),
    }


def prepare_kernel_params(p, image_depth, image_size, num_classes):
    """Derive kernel-layout parameters: bf16 matmul weights, zero-padded lanes,
    and attention/FC weights permuted into the kernel's row-major coordinates
    (index p*128 + c instead of the torch flatten's c*P + p)."""
    s = image_size // 8
    P = s * s
    Fp = 128 * P
    F = 70 * P
    bf16 = jnp.bfloat16
    eps = 1e-5

    def conv_w(w_hwio):
        cin, cout = w_hwio.shape[2], w_hwio.shape[3]
        w = jnp.zeros((3, 3, 128, 128), jnp.float32)
        w = w.at[:, :, :cin, :cout].set(w_hwio)
        return w.reshape(9 * 128, 128).astype(bf16)

    def pad_chan(v):
        return jnp.pad(v, (0, 128 - v.shape[0])).reshape(1, 128)

    def rm_rows(w):   # (F, K) -> (Fp, K): row index c*P+p -> p*128+c
        K = w.shape[1]
        w = w.reshape(70, P, K).transpose(1, 0, 2)
        w = jnp.pad(w, ((0, 0), (0, 128 - 70), (0, 0)))
        return w.reshape(Fp, K)

    def rm_cols(w):   # (K, F) -> (K, Fp)
        K = w.shape[0]
        w = w.reshape(K, 70, P).transpose(0, 2, 1)
        w = jnp.pad(w, ((0, 0), (0, 0), (0, 128 - 70)))
        return w.reshape(K, Fp)

    def rm_vec(v):    # (F,) -> (1, Fp)
        v = v.reshape(70, P).T
        v = jnp.pad(v, ((0, 0), (0, 128 - 70)))
        return v.reshape(1, Fp)

    scale = p["bn_gamma"] / jnp.sqrt(p["bn_var"] + eps)
    shift = p["bn_beta"] - p["bn_mean"] * scale

    return {
        "w1": conv_w(p["w1"]), "b1": pad_chan(p["b1"]),
        "w2": conv_w(p["w2"]), "b2": pad_chan(p["b2"]),
        "w3": conv_w(p["w3"]), "b3": pad_chan(p["b3"]),
        "w4": conv_w(p["w4"]), "b4": pad_chan(p["b4"]),
        "bn_scale": scale.reshape(1, 128), "bn_shift": shift.reshape(1, 128),
        "sel1": _pool_select_matrix(image_size, image_size).astype(bf16),
        "sel2": _pool_select_matrix(image_size // 2, image_size // 2).astype(bf16),
        "sel3": _pool_select_matrix(image_size // 4, image_size // 4).astype(bf16),
        "wa": rm_rows(rm_cols(p["wa"])).astype(bf16),       # (Fp, Fp)
        "ba": rm_vec(p["ba"]),                               # (1, Fp) f32
        "wp": rm_vec(p["wp"].reshape(F)),                    # (1, Fp) f32
        "wf1": rm_rows(p["wf1"]).astype(bf16),                # (Fp, 256)
        "bf1": p["bf1"].reshape(1, 256),
        "wf2": jnp.pad(p["wf2"], ((0, 0), (0, 128 - num_classes))).astype(bf16),
        "bf2": jnp.pad(p["bf2"], (0, 128 - num_classes)).reshape(1, 128),
    }


# ---------------------------------------------------------------------------
# Forward pass
# ---------------------------------------------------------------------------
def attention_cnn_forward(x_nchw, kp, num_classes=10):
    B, C0, H, W = x_nchw.shape
    s = H // 8
    P = s * s
    # NCHW -> NHWC, +1 spatial halo, channels zero-padded C0 -> 128 (one tiny XLA op).
    x = jnp.transpose(x_nchw, (0, 2, 3, 1))
    xpad = jnp.pad(x, ((0, 0), (1, 1), (1, 1), (0, 128 - C0)))

    conv_flat, x1g_flat, logits_pad = _fused_call(xpad, kp, H, W)

    def unflat(v):  # (B, 1, 128*P) row-major -> (B, 70, s, s) channel-major
        return jnp.transpose(v.reshape(B, P, 128), (0, 2, 1))[:, :70, :].reshape(B, 70, s, s)

    conv_out = unflat(conv_flat)
    reshaped_filters = unflat(x1g_flat)
    logits = logits_pad.reshape(B, 128)[:, :num_classes]
    return reshaped_filters, conv_out, logits


# ---------------------------------------------------------------------------
# Pure-JAX reference (same bf16-at-matmul-input math) for validation
# ---------------------------------------------------------------------------
def ref_forward(x_nchw, p):
    bf16 = jnp.bfloat16
    eps = 1e-5
    x = jnp.transpose(x_nchw, (0, 2, 3, 1))
    B = x.shape[0]
    s = x.shape[1] // 8

    def conv(z, w, b):
        y = lax.conv_general_dilated(z.astype(bf16), w.astype(bf16), (1, 1), "SAME",
                                     dimension_numbers=("NHWC", "HWIO", "NHWC"),
                                     preferred_element_type=jnp.float32)
        return y + b.reshape(1, 1, 1, -1)

    def pool(z):
        b_, h_, w_, c_ = z.shape
        return jnp.max(z.reshape(b_, h_ // 2, 2, w_ // 2, 2, c_), axis=(2, 4))

    y = jnp.maximum(conv(x, p["w1"], p["b1"]), 0.0)
    scale = p["bn_gamma"] / jnp.sqrt(p["bn_var"] + eps)
    shift = p["bn_beta"] - p["bn_mean"] * scale
    y = y * scale + shift
    y = pool(y)
    y = pool(jnp.maximum(conv(y, p["w2"], p["b2"]), 0.0))
    y = pool(jnp.maximum(conv(y, p["w3"], p["b3"]), 0.0))
    y = jnp.maximum(conv(y, p["w4"], p["b4"]), 0.0)
    conv_out = jnp.transpose(y, (0, 3, 1, 2))               # (B, 70, s, s)
    x1 = conv_out.reshape(B, -1)
    a = jnp.maximum(jnp.dot(x1.astype(bf16), p["wa"].astype(bf16),
                            preferred_element_type=jnp.float32) + p["ba"], 0.0)
    x1g = jax.nn.sigmoid(p["wp"] * a) * x1
    rf = x1g.reshape(B, 70, s, s)
    h = jnp.maximum(jnp.dot(x1g.astype(bf16), p["wf1"].astype(bf16),
                            preferred_element_type=jnp.float32) + p["bf1"], 0.0)
    logits = jnp.dot(h.astype(bf16), p["wf2"].astype(bf16),
                     preferred_element_type=jnp.float32) + p["bf2"]
    return rf, conv_out, logits


if __name__ == "__main__":
    key = jax.random.PRNGKey(0)
    kx, kw = jax.random.split(key)
    B, image_size, image_depth, num_classes = 2, 16, 4, 10

    x = jax.random.normal(kx, (B, image_depth, image_size, image_size), jnp.float32)
    params = init_params(kw, image_depth, image_size, num_classes)
    kparams = prepare_kernel_params(params, image_depth, image_size, num_classes)

    fwd = jax.jit(functools.partial(attention_cnn_forward, num_classes=num_classes))
    reshaped_filters, conv_out, logits = fwd(x, kparams)
    jax.block_until_ready((reshaped_filters, conv_out, logits))

    rf_r, conv_r, log_r = ref_forward(x, params)
    s = image_size // 8
    assert reshaped_filters.shape == (B, 70, s, s)
    assert conv_out.shape == (B, 70, s, s)
    assert logits.shape == (B, num_classes)
    assert np.allclose(np.asarray(conv_out), np.asarray(conv_r), atol=2e-2, rtol=2e-2)
    assert np.allclose(np.asarray(reshaped_filters), np.asarray(rf_r), atol=2e-2, rtol=2e-2)
    assert np.allclose(np.asarray(logits), np.asarray(log_r), atol=2e-2, rtol=2e-2)

    print("KERNEL_OK")
</pallas_src>

<mosaic_0001>
module attributes {stable_mosaic.version = 11 : i64} {
  func.func @_fused_kernel(%arg0: i32, %arg1: memref<1x18x18x128xf32, #tpu.memory_space<vmem>>, %arg2: memref<1152x128xbf16, #tpu.memory_space<vmem>>, %arg3: memref<1x128xf32, #tpu.memory_space<vmem>>, %arg4: memref<1x128xf32, #tpu.memory_space<vmem>>, %arg5: memref<1x128xf32, #tpu.memory_space<vmem>>, %arg6: memref<1152x128xbf16, #tpu.memory_space<vmem>>, %arg7: memref<1x128xf32, #tpu.memory_space<vmem>>, %arg8: memref<1152x128xbf16, #tpu.memory_space<vmem>>, %arg9: memref<1x128xf32, #tpu.memory_space<vmem>>, %arg10: memref<1152x128xbf16, #tpu.memory_space<vmem>>, %arg11: memref<1x128xf32, #tpu.memory_space<vmem>>, %arg12: memref<64x239xbf16, #tpu.memory_space<vmem>>, %arg13: memref<16x55xbf16, #tpu.memory_space<vmem>>, %arg14: memref<4x11xbf16, #tpu.memory_space<vmem>>, %arg15: memref<512x512xbf16, #tpu.memory_space<vmem>>, %arg16: memref<1x512xf32, #tpu.memory_space<vmem>>, %arg17: memref<1x512xf32, #tpu.memory_space<vmem>>, %arg18: memref<512x256xbf16, #tpu.memory_space<vmem>>, %arg19: memref<1x256xf32, #tpu.memory_space<vmem>>, %arg20: memref<256x128xbf16, #tpu.memory_space<vmem>>, %arg21: memref<1x128xf32, #tpu.memory_space<vmem>>, %arg22: memref<1x1x512xf32, #tpu.memory_space<vmem>>, %arg23: memref<1x1x512xf32, #tpu.memory_space<vmem>>, %arg24: memref<1x1x128xf32, #tpu.memory_space<vmem>>, %arg25: memref<10x10x128xf32, #tpu.memory_space<vmem>>, %arg26: memref<6x6x128xf32, #tpu.memory_space<vmem>>, %arg27: memref<4x4x128xf32, #tpu.memory_space<vmem>>) attributes {dimension_semantics = [#tpu.dimension_semantics<parallel>], iteration_bounds = array<i64: 2>, scalar_prefetch = 0 : i64, scratch_operands = 3 : i64, tpu.core_type = #tpu.core_type<tc>, window_params = [{transform_indices = @transform_0, window_bounds = array<i64: 1, 18, 18, 128>}, {pipeline_mode = #tpu.pipeline_mode<synchronous>, transform_indices = @transform_1, window_bounds = array<i64: 1152, 128>}, {pipeline_mode = #tpu.pipeline_mode<synchronous>, transform_indices = @transform_2, window_bounds = array<i64: 1, 128>}, {pipeline_mode = #tpu.pipeline_mode<synchronous>, transform_indices = @transform_3, window_bounds = array<i64: 1, 128>}, {pipeline_mode = #tpu.pipeline_mode<synchronous>, transform_indices = @transform_4, window_bounds = array<i64: 1, 128>}, {pipeline_mode = #tpu.pipeline_mode<synchronous>, transform_indices = @transform_5, window_bounds = array<i64: 1152, 128>}, {pipeline_mode = #tpu.pipeline_mode<synchronous>, transform_indices = @transform_6, window_bounds = array<i64: 1, 128>}, {pipeline_mode = #tpu.pipeline_mode<synchronous>, transform_indices = @transform_7, window_bounds = array<i64: 1152, 128>}, {pipeline_mode = #tpu.pipeline_mode<synchronous>, transform_indices = @transform_8, window_bounds = array<i64: 1, 128>}, {pipeline_mode = #tpu.pipeline_mode<synchronous>, transform_indices = @transform_9, window_bounds = array<i64: 1152, 128>}, {pipeline_mode = #tpu.pipeline_mode<synchronous>, transform_indices = @transform_10, window_bounds = array<i64: 1, 128>}, {pipeline_mode = #tpu.pipeline_mode<synchronous>, transform_indices = @transform_11, window_bounds = array<i64: 64, 239>}, {pipeline_mode = #tpu.pipeline_mode<synchronous>, transform_indices = @transform_12, window_bounds = array<i64: 16, 55>}, {pipeline_mode = #tpu.pipeline_mode<synchronous>, transform_indices = @transform_13, window_bounds = array<i64: 4, 11>}, {pipeline_mode = #tpu.pipeline_mode<synchronous>, transform_indices = @transform_14, window_bounds = array<i64: 512, 512>}, {pipeline_mode = #tpu.pipeline_mode<synchronous>, transform_indices = @transform_15, window_bounds = array<i64: 1, 512>}, {pipeline_mode = #tpu.pipeline_mode<synchronous>, transform_indices = @transform_16, window_bounds = array<i64: 1, 512>}, {pipeline_mode = #tpu.pipeline_mode<synchronous>, transform_indices = @transform_17, window_bounds = array<i64: 512, 256>}, {pipeline_mode = #tpu.pipeline_mode<synchronous>, transform_indices = @transform_18, window_bounds = array<i64: 1, 256>}, {pipeline_mode = #tpu.pipeline_mode<synchronous>, transform_indices = @transform_19, window_bounds = array<i64: 256, 128>}, {pipeline_mode = #tpu.pipeline_mode<synchronous>, transform_indices = @transform_20, window_bounds = array<i64: 1, 128>}, {transform_indices = @transform_21, window_bounds = array<i64: 1, 1, 512>}, {transform_indices = @transform_22, window_bounds = array<i64: 1, 1, 512>}, {transform_indices = @transform_23, window_bounds = array<i64: 1, 1, 128>}]} {
    %c0 = arith.constant 0 : index
    %c0_0 = arith.constant 0 : index
    %c0_1 = arith.constant 0 : index
    %c0_2 = arith.constant 0 : index
    %0 = vector.load %arg1[%c0, %c0_0, %c0_1, %c0_2] : memref<1x18x18x128xf32, #tpu.memory_space<vmem>>, vector<1x16x16x128xf32>
    %1 = vector.shape_cast %0 : vector<1x16x16x128xf32> to vector<16x16x128xf32>
    %2 = vector.shape_cast %1 : vector<16x16x128xf32> to vector<256x128xf32>
    %3 = arith.truncf %2 : vector<256x128xf32> to vector<256x128xbf16>
    %c0_3 = arith.constant 0 : index
    %c0_4 = arith.constant 0 : index
    %4 = vector.load %arg2[%c0_3, %c0_4] : memref<1152x128xbf16, #tpu.memory_space<vmem>>, vector<128x128xbf16>
    %cst = arith.constant dense<0.000000e+00> : vector<256x128xf32>
    %5 = tpu.matmul %3, %4, %cst {dimension_numbers = #tpu.dot_dimension_numbers<[1], [0], [0], [1], [0, 0, 1, 1], [], []>} : vector<256x128xbf16>, vector<128x128xbf16>, vector<256x128xf32> -> vector<256x128xf32>
    %c0_5 = arith.constant 0 : index
    %c0_6 = arith.constant 0 : index
    %c1 = arith.constant 1 : index
    %c0_7 = arith.constant 0 : index
    %6 = vector.load %arg1[%c0_5, %c0_6, %c1, %c0_7] : memref<1x18x18x128xf32, #tpu.memory_space<vmem>>, vector<1x16x16x128xf32>
    %7 = vector.shape_cast %6 : vector<1x16x16x128xf32> to vector<16x16x128xf32>
    %8 = vector.shape_cast %7 : vector<16x16x128xf32> to vector<256x128xf32>
    %9 = arith.truncf %8 : vector<256x128xf32> to vector<256x128xbf16>
    %c128 = arith.constant 128 : index
    %c0_8 = arith.constant 0 : index
    %10 = vector.load %arg2[%c128, %c0_8] : memref<1152x128xbf16, #tpu.memory_space<vmem>>, vector<128x128xbf16>
    %cst_9 = arith.constant dense<0.000000e+00> : vector<256x128xf32>
    %11 = tpu.matmul %9, %10, %cst_9 {dimension_numbers = #tpu.dot_dimension_numbers<[1], [0], [0], [1], [0, 0, 1, 1], [], []>} : vector<256x128xbf16>, vector<128x128xbf16>, vector<256x128xf32> -> vector<256x128xf32>
    %12 = arith.addf %5, %11 : vector<256x128xf32>
    %c0_10 = arith.constant 0 : index
    %c0_11 = arith.constant 0 : index
    %c2 = arith.constant 2 : index
    %c0_12 = arith.constant 0 : index
    %13 = vector.load %arg1[%c0_10, %c0_11, %c2, %c0_12] : memref<1x18x18x128xf32, #tpu.memory_space<vmem>>, vector<1x16x16x128xf32>
    %14 = vector.shape_cast %13 : vector<1x16x16x128xf32> to vector<16x16x128xf32>
    %15 = vector.shape_cast %14 : vector<16x16x128xf32> to vector<256x128xf32>
    %16 = arith.truncf %15 : vector<256x128xf32> to vector<256x128xbf16>
    %c256 = arith.constant 256 : index
    %c0_13 = arith.constant 0 : index
    %17 = vector.load %arg2[%c256, %c0_13] : memref<1152x128xbf16, #tpu.memory_space<vmem>>, vector<128x128xbf16>
    %cst_14 = arith.constant dense<0.000000e+00> : vector<256x128xf32>
    %18 = tpu.matmul %16, %17, %cst_14 {dimension_numbers = #tpu.dot_dimension_numbers<[1], [0], [0], [1], [0, 0, 1, 1], [], []>} : vector<256x128xbf16>, vector<128x128xbf16>, vector<256x128xf32> -> vector<256x128xf32>
    %19 = arith.addf %12, %18 : vector<256x128xf32>
    %c0_15 = arith.constant 0 : index
    %c1_16 = arith.constant 1 : index
    %c0_17 = arith.constant 0 : index
    %c0_18 = arith.constant 0 : index
    %20 = vector.load %arg1[%c0_15, %c1_16, %c0_17, %c0_18] : memref<1x18x18x128xf32, #tpu.memory_space<vmem>>, vector<1x16x16x128xf32>
    %21 = vector.shape_cast %20 : vector<1x16x16x128xf32> to vector<16x16x128xf32>
    %22 = vector.shape_cast %21 : vector<16x16x128xf32> to vector<256x128xf32>
    %23 = arith.truncf %22 : vector<256x128xf32> to vector<256x128xbf16>
    %c384 = arith.constant 384 : index
    %c0_19 = arith.constant 0 : index
    %24 = vector.load %arg2[%c384, %c0_19] : memref<1152x128xbf16, #tpu.memory_space<vmem>>, vector<128x128xbf16>
    %cst_20 = arith.constant dense<0.000000e+00> : vector<256x128xf32>
    %25 = tpu.matmul %23, %24, %cst_20 {dimension_numbers = #tpu.dot_dimension_numbers<[1], [0], [0], [1], [0, 0, 1, 1], [], []>} : vector<256x128xbf16>, vector<128x128xbf16>, vector<256x128xf32> -> vector<256x128xf32>
    %26 = arith.addf %19, %25 : vector<256x128xf32>
    %c0_21 = arith.constant 0 : index
    %c1_22 = arith.constant 1 : index
    %c1_23 = arith.constant 1 : index
    %c0_24 = arith.constant 0 : index
    %27 = vector.load %arg1[%c0_21, %c1_22, %c1_23, %c0_24] : memref<1x18x18x128xf32, #tpu.memory_space<vmem>>, vector<1x16x16x128xf32>
    %28 = vector.shape_cast %27 : vector<1x16x16x128xf32> to vector<16x16x128xf32>
    %29 = vector.shape_cast %28 : vector<16x16x128xf32> to vector<256x128xf32>
    %30 = arith.truncf %29 : vector<256x128xf32> to vector<256x128xbf16>
    %c512 = arith.constant 512 : index
    %c0_25 = arith.constant 0 : index
    %31 = vector.load %arg2[%c512, %c0_25] : memref<1152x128xbf16, #tpu.memory_space<vmem>>, vector<128x128xbf16>
    %cst_26 = arith.constant dense<0.000000e+00> : vector<256x128xf32>
    %32 = tpu.matmul %30, %31, %cst_26 {dimension_numbers = #tpu.dot_dimension_numbers<[1], [0], [0], [1], [0, 0, 1, 1], [], []>} : vector<256x128xbf16>, vector<128x128xbf16>, vector<256x128xf32> -> vector<256x128xf32>
    %33 = arith.addf %26, %32 : vector<256x128xf32>
    %c0_27 = arith.constant 0 : index
    %c1_28 = arith.constant 1 : index
    %c2_29 = arith.constant 2 : index
    %c0_30 = arith.constant 0 : index
    %34 = vector.load %arg1[%c0_27, %c1_28, %c2_29, %c0_30] : memref<1x18x18x128xf32, #tpu.memory_space<vmem>>, vector<1x16x16x128xf32>
    %35 = vector.shape_cast %34 : vector<1x16x16x128xf32> to vector<16x16x128xf32>
    %36 = vector.shape_cast %35 : vector<16x16x128xf32> to vector<256x128xf32>
    %37 = arith.truncf %36 : vector<256x128xf32> to vector<256x128xbf16>
    %c640 = arith.constant 640 : index
    %c0_31 = arith.constant 0 : index
    %38 = vector.load %arg2[%c640, %c0_31] : memref<1152x128xbf16, #tpu.memory_space<vmem>>, vector<128x128xbf16>
    %cst_32 = arith.constant dense<0.000000e+00> : vector<256x128xf32>
    %39 = tpu.matmul %37, %38, %cst_32 {dimension_numbers = #tpu.dot_dimension_numbers<[1], [0], [0], [1], [0, 0, 1, 1], [], []>} : vector<256x128xbf16>, vector<128x128xbf16>, vector<256x128xf32> -> vector<256x128xf32>
    %40 = arith.addf %33, %39 : vector<256x128xf32>
    %c0_33 = arith.constant 0 : index
    %c2_34 = arith.constant 2 : index
    %c0_35 = arith.constant 0 : index
    %c0_36 = arith.constant 0 : index
    %41 = vector.load %arg1[%c0_33, %c2_34, %c0_35, %c0_36] : memref<1x18x18x128xf32, #tpu.memory_space<vmem>>, vector<1x16x16x128xf32>
    %42 = vector.shape_cast %41 : vector<1x16x16x128xf32> to vector<16x16x128xf32>
    %43 = vector.shape_cast %42 : vector<16x16x128xf32> to vector<256x128xf32>
    %44 = arith.truncf %43 : vector<256x128xf32> to vector<256x128xbf16>
    %c768 = arith.constant 768 : index
    %c0_37 = arith.constant 0 : index
    %45 = vector.load %arg2[%c768, %c0_37] : memref<1152x128xbf16, #tpu.memory_space<vmem>>, vector<128x128xbf16>
    %cst_38 = arith.constant dense<0.000000e+00> : vector<256x128xf32>
    %46 = tpu.matmul %44, %45, %cst_38 {dimension_numbers = #tpu.dot_dimension_numbers<[1], [0], [0], [1], [0, 0, 1, 1], [], []>} : vector<256x128xbf16>, vector<128x128xbf16>, vector<256x128xf32> -> vector<256x128xf32>
    %47 = arith.addf %40, %46 : vector<256x128xf32>
    %c0_39 = arith.constant 0 : index
    %c2_40 = arith.constant 2 : index
    %c1_41 = arith.constant 1 : index
    %c0_42 = arith.constant 0 : index
    %48 = vector.load %arg1[%c0_39, %c2_40, %c1_41, %c0_42] : memref<1x18x18x128xf32, #tpu.memory_space<vmem>>, vector<1x16x16x128xf32>
    %49 = vector.shape_cast %48 : vector<1x16x16x128xf32> to vector<16x16x128xf32>
    %50 = vector.shape_cast %49 : vector<16x16x128xf32> to vector<256x128xf32>
    %51 = arith.truncf %50 : vector<256x128xf32> to vector<256x128xbf16>
    %c896 = arith.constant 896 : index
    %c0_43 = arith.constant 0 : index
    %52 = vector.load %arg2[%c896, %c0_43] : memref<1152x128xbf16, #tpu.memory_space<vmem>>, vector<128x128xbf16>
    %cst_44 = arith.constant dense<0.000000e+00> : vector<256x128xf32>
    %53 = tpu.matmul %51, %52, %cst_44 {dimension_numbers = #tpu.dot_dimension_numbers<[1], [0], [0], [1], [0, 0, 1, 1], [], []>} : vector<256x128xbf16>, vector<128x128xbf16>, vector<256x128xf32> -> vector<256x128xf32>
    %54 = arith.addf %47, %53 : vector<256x128xf32>
    %c0_45 = arith.constant 0 : index
    %c2_46 = arith.constant 2 : index
    %c2_47 = arith.constant 2 : index
    %c0_48 = arith.constant 0 : index
    %55 = vector.load %arg1[%c0_45, %c2_46, %c2_47, %c0_48] : memref<1x18x18x128xf32, #tpu.memory_space<vmem>>, vector<1x16x16x128xf32>
    %56 = vector.shape_cast %55 : vector<1x16x16x128xf32> to vector<16x16x128xf32>
    %57 = vector.shape_cast %56 : vector<16x16x128xf32> to vector<256x128xf32>
    %58 = arith.truncf %57 : vector<256x128xf32> to vector<256x128xbf16>
    %c1024 = arith.constant 1024 : index
    %c0_49 = arith.constant 0 : index
    %59 = vector.load %arg2[%c1024, %c0_49] : memref<1152x128xbf16, #tpu.memory_space<vmem>>, vector<128x128xbf16>
    %cst_50 = arith.constant dense<0.000000e+00> : vector<256x128xf32>
    %60 = tpu.matmul %58, %59, %cst_50 {dimension_numbers = #tpu.dot_dimension_numbers<[1], [0], [0], [1], [0, 0, 1, 1], [], []>} : vector<256x128xbf16>, vector<128x128xbf16>, vector<256x128xf32> -> vector<256x128xf32>
    %61 = arith.addf %54, %60 : vector<256x128xf32>
    %c0_51 = arith.constant 0 : index
    %c0_52 = arith.constant 0 : index
    %62 = vector.load %arg3[%c0_51, %c0_52] : memref<1x128xf32, #tpu.memory_space<vmem>>, vector<1x128xf32>
    %63 = vector.broadcast %62 : vector<1x128xf32> to vector<256x128xf32>
    %64 = arith.addf %61, %63 : vector<256x128xf32>
    %cst_53 = arith.constant 0.000000e+00 : f32
    %65 = vector.broadcast %cst_53 : f32 to vector<256x128xf32>
    %66 = arith.maximumf %64, %65 : vector<256x128xf32>
    %c0_54 = arith.constant 0 : index
    %c0_55 = arith.constant 0 : index
    %67 = vector.load %arg4[%c0_54, %c0_55] : memref<1x128xf32, #tpu.memory_space<vmem>>, vector<1x128xf32>
    %68 = vector.broadcast %67 : vector<1x128xf32> to vector<256x128xf32>
    %69 = arith.mulf %66, %68 : vector<256x128xf32>
    %c0_56 = arith.constant 0 : index
    %c0_57 = arith.constant 0 : index
    %70 = vector.load %arg5[%c0_56, %c0_57] : memref<1x128xf32, #tpu.memory_space<vmem>>, vector<1x128xf32>
    %71 = vector.broadcast %70 : vector<1x128xf32> to vector<256x128xf32>
    %72 = arith.addf %69, %71 : vector<256x128xf32>
    %73 = vector.extract_strided_slice %72 {offsets = [0, 0], sizes = [239, 128], strides = [1, 1]} : vector<256x128xf32> to vector<239x128xf32>
    %74 = vector.extract_strided_slice %72 {offsets = [1, 0], sizes = [239, 128], strides = [1, 1]} : vector<256x128xf32> to vector<239x128xf32>
    %75 = arith.maximumf %73, %74 : vector<239x128xf32>
    %76 = vector.extract_strided_slice %72 {offsets = [16, 0], sizes = [239, 128], strides = [1, 1]} : vector<256x128xf32> to vector<239x128xf32>
    %77 = vector.extract_strided_slice %72 {offsets = [17, 0], sizes = [239, 128], strides = [1, 1]} : vector<256x128xf32> to vector<239x128xf32>
    %78 = arith.maximumf %76, %77 : vector<239x128xf32>
    %79 = arith.maximumf %75, %78 : vector<239x128xf32>
    %c0_58 = arith.constant 0 : index
    %c0_59 = arith.constant 0 : index
    %80 = vector.load %arg12[%c0_58, %c0_59] : memref<64x239xbf16, #tpu.memory_space<vmem>>, vector<64x239xbf16>
    %81 = arith.truncf %79 : vector<239x128xf32> to vector<239x128xbf16>
    %cst_60 = arith.constant dense<0.000000e+00> : vector<64x128xf32>
    %82 = tpu.matmul %80, %81, %cst_60 {dimension_numbers = #tpu.dot_dimension_numbers<[1], [0], [0], [1], [0, 0, 1, 1], [], []>} : vector<64x239xbf16>, vector<239x128xbf16>, vector<64x128xf32> -> vector<64x128xf32>
    %cst_61 = arith.constant 0.000000e+00 : f32
    %83 = vector.broadcast %cst_61 : f32 to vector<1x10x128xf32>
    %cst_62 = arith.constant 0.000000e+00 : f32
    %84 = vector.broadcast %cst_62 : f32 to vector<8x1x128xf32>
    %c0_63 = arith.constant 0 : index
    %c0_64 = arith.constant 0 : index
    %c0_65 = arith.constant 0 : index
    %85 = vector.load %arg25[%c0_63, %c0_64, %c0_65] : memref<10x10x128xf32, #tpu.memory_space<vmem>>, vector<1x10x128xf32>
    tpu.vector_store %arg25[%c0_63, %c0_64, %c0_65], %83 {strides = array<i32>} : memref<10x10x128xf32, #tpu.memory_space<vmem>>, vector<1x10x128xf32>,
    %c9 = arith.constant 9 : index
    %c0_66 = arith.constant 0 : index
    %c0_67 = arith.constant 0 : index
    %86 = vector.load %arg25[%c9, %c0_66, %c0_67] : memref<10x10x128xf32, #tpu.memory_space<vmem>>, vector<1x10x128xf32>
    tpu.vector_store %arg25[%c9, %c0_66, %c0_67], %83 {strides = array<i32>} : memref<10x10x128xf32, #tpu.memory_space<vmem>>, vector<1x10x128xf32>,
    %c1_68 = arith.constant 1 : index
    %c0_69 = arith.constant 0 : index
    %c0_70 = arith.constant 0 : index
    %87 = vector.load %arg25[%c1_68, %c0_69, %c0_70] : memref<10x10x128xf32, #tpu.memory_space<vmem>>, vector<8x1x128xf32>
    tpu.vector_store %arg25[%c1_68, %c0_69, %c0_70], %84 {strides = array<i32>} : memref<10x10x128xf32, #tpu.memory_space<vmem>>, vector<8x1x128xf32>,
    %c1_71 = arith.constant 1 : index
    %c9_72 = arith.constant 9 : index
    %c0_73 = arith.constant 0 : index
    %88 = vector.load %arg25[%c1_71, %c9_72, %c0_73] : memref<10x10x128xf32, #tpu.memory_space<vmem>>, vector<8x1x128xf32>
    tpu.vector_store %arg25[%c1_71, %c9_72, %c0_73], %84 {strides = array<i32>} : memref<10x10x128xf32, #tpu.memory_space<vmem>>, vector<8x1x128xf32>,
    %89 = vector.shape_cast %82 : vector<64x128xf32> to vector<8x8x128xf32>
    %c1_74 = arith.constant 1 : index
    %c1_75 = arith.constant 1 : index
    %c0_76 = arith.constant 0 : index
    %90 = vector.load %arg25[%c1_74, %c1_75, %c0_76] : memref<10x10x128xf32, #tpu.memory_space<vmem>>, vector<8x8x128xf32>
    tpu.vector_store %arg25[%c1_74, %c1_75, %c0_76], %89 {strides = array<i32>} : memref<10x10x128xf32, #tpu.memory_space<vmem>>, vector<8x8x128xf32>,
    %c0_77 = arith.constant 0 : index
    %c0_78 = arith.constant 0 : index
    %c0_79 = arith.constant 0 : index
    %91 = vector.load %arg25[%c0_77, %c0_78, %c0_79] : memref<10x10x128xf32, #tpu.memory_space<vmem>>, vector<8x8x128xf32>
    %92 = vector.shape_cast %91 : vector<8x8x128xf32> to vector<64x128xf32>
    %93 = arith.truncf %92 : vector<64x128xf32> to vector<64x128xbf16>
    %c0_80 = arith.constant 0 : index
    %c0_81 = arith.constant 0 : index
    %94 = vector.load %arg6[%c0_80, %c0_81] : memref<1152x128xbf16, #tpu.memory_space<vmem>>, vector<128x128xbf16>
    %cst_82 = arith.constant dense<0.000000e+00> : vector<64x128xf32>
    %95 = tpu.matmul %93, %94, %cst_82 {dimension_numbers = #tpu.dot_dimension_numbers<[1], [0], [0], [1], [0, 0, 1, 1], [], []>} : vector<64x128xbf16>, vector<128x128xbf16>, vector<64x128xf32> -> vector<64x128xf32>
    %c0_83 = arith.constant 0 : index
    %c1_84 = arith.constant 1 : index
    %c0_85 = arith.constant 0 : index
    %96 = vector.load %arg25[%c0_83, %c1_84, %c0_85] : memref<10x10x128xf32, #tpu.memory_space<vmem>>, vector<8x8x128xf32>
    %97 = vector.shape_cast %96 : vector<8x8x128xf32> to vector<64x128xf32>
    %98 = arith.truncf %97 : vector<64x128xf32> to vector<64x128xbf16>
    %c128_86 = arith.constant 128 : index
    %c0_87 = arith.constant 0 : index
    %99 = vector.load %arg6[%c128_86, %c0_87] : memref<1152x128xbf16, #tpu.memory_space<vmem>>, vector<128x128xbf16>
    %cst_88 = arith.constant dense<0.000000e+00> : vector<64x128xf32>
    %100 = tpu.matmul %98, %99, %cst_88 {dimension_numbers = #tpu.dot_dimension_numbers<[1], [0], [0], [1], [0, 0, 1, 1], [], []>} : vector<64x128xbf16>, vector<128x128xbf16>, vector<64x128xf32> -> vector<64x128xf32>
    %101 = arith.addf %95, %100 : vector<64x128xf32>
    %c0_89 = arith.constant 0 : index
    %c2_90 = arith.constant 2 : index
    %c0_91 = arith.constant 0 : index
    %102 = vector.load %arg25[%c0_89, %c2_90, %c0_91] : memref<10x10x128xf32, #tpu.memory_space<vmem>>, vector<8x8x128xf32>
    %103 = vector.shape_cast %102 : vector<8x8x128xf32> to vector<64x128xf32>
    %104 = arith.truncf %103 : vector<64x128xf32> to vector<64x128xbf16>
    %c256_92 = arith.constant 256 : index
    %c0_93 = arith.constant 0 : index
    %105 = vector.load %arg6[%c256_92, %c0_93] : memref<1152x128xbf16, #tpu.memory_space<vmem>>, vector<128x128xbf16>
    %cst_94 = arith.constant dense<0.000000e+00> : vector<64x128xf32>
    %106 = tpu.matmul %104, %105, %cst_94 {dimension_numbers = #tpu.dot_dimension_numbers<[1], [0], [0], [1], [0, 0, 1, 1], [], []>} : vector<64x128xbf16>, vector<128x128xbf16>, vector<64x128xf32> -> vector<64x128xf32>
    %107 = arith.addf %101, %106 : vector<64x128xf32>
    %c1_95 = arith.constant 1 : index
    %c0_96 = arith.constant 0 : index
    %c0_97 = arith.constant 0 : index
    %108 = vector.load %arg25[%c1_95, %c0_96, %c0_97] : memref<10x10x128xf32, #tpu.memory_space<vmem>>, vector<8x8x128xf32>
    %109 = vector.shape_cast %108 : vector<8x8x128xf32> to vector<64x128xf32>
    %110 = arith.truncf %109 : vector<64x128xf32> to vector<64x128xbf16>
    %c384_98 = arith.constant 384 : index
    %c0_99 = arith.constant 0 : index
    %111 = vector.load %arg6[%c384_98, %c0_99] : memref<1152x128xbf16, #tpu.memory_space<vmem>>, vector<128x128xbf16>
    %cst_100 = arith.constant dense<0.000000e+00> : vector<64x128xf32>
    %112 = tpu.matmul %110, %111, %cst_100 {dimension_numbers = #tpu.dot_dimension_numbers<[1], [0], [0], [1], [0, 0, 1, 1], [], []>} : vector<64x128xbf16>, vector<128x128xbf16>, vector<64x128xf32> -> vector<64x128xf32>
    %113 = arith.addf %107, %112 : vector<64x128xf32>
    %c1_101 = arith.constant 1 : index
    %c1_102 = arith.constant 1 : index
    %c0_103 = arith.constant 0 : index
    %114 = vector.load %arg25[%c1_101, %c1_102, %c0_103] : memref<10x10x128xf32, #tpu.memory_space<vmem>>, vector<8x8x128xf32>
    %115 = vector.shape_cast %114 : vector<8x8x128xf32> to vector<64x128xf32>
    %116 = arith.truncf %115 : vector<64x128xf32> to vector<64x128xbf16>
    %c512_104 = arith.constant 512 : index
    %c0_105 = arith.constant 0 : index
    %117 = vector.load %arg6[%c512_104, %c0_105] : memref<1152x128xbf16, #tpu.memory_space<vmem>>, vector<128x128xbf16>
    %cst_106 = arith.constant dense<0.000000e+00> : vector<64x128xf32>
    %118 = tpu.matmul %116, %117, %cst_106 {dimension_numbers = #tpu.dot_dimension_numbers<[1], [0], [0], [1], [0, 0, 1, 1], [], []>} : vector<64x128xbf16>, vector<128x128xbf16>, vector<64x128xf32> -> vector<64x128xf32>
    %119 = arith.addf %113, %118 : vector<64x128xf32>
    %c1_107 = arith.constant 1 : index
    %c2_108 = arith.constant 2 : index
    %c0_109 = arith.constant 0 : index
    %120 = vector.load %arg25[%c1_107, %c2_108, %c0_109] : memref<10x10x128xf32, #tpu.memory_space<vmem>>, vector<8x8x128xf32>
    %121 = vector.shape_cast %120 : vector<8x8x128xf32> to vector<64x128xf32>
    %122 = arith.truncf %121 : vector<64x128xf32> to vector<64x128xbf16>
    %c640_110 = arith.constant 640 : index
    %c0_111 = arith.constant 0 : index
    %123 = vector.load %arg6[%c640_110, %c0_111] : memref<1152x128xbf16, #tpu.memory_space<vmem>>, vector<128x128xbf16>
    %cst_112 = arith.constant dense<0.000000e+00> : vector<64x128xf32>
    %124 = tpu.matmul %122, %123, %cst_112 {dimension_numbers = #tpu.dot_dimension_numbers<[1], [0], [0], [1], [0, 0, 1, 1], [], []>} : vector<64x128xbf16>, vector<128x128xbf16>, vector<64x128xf32> -> vector<64x128xf32>
    %125 = arith.addf %119, %124 : vector<64x128xf32>
    %c2_113 = arith.constant 2 : index
    %c0_114 = arith.constant 0 : index
    %c0_115 = arith.constant 0 : index
    %126 = vector.load %arg25[%c2_113, %c0_114, %c0_115] : memref<10x10x128xf32, #tpu.memory_space<vmem>>, vector<8x8x128xf32>
    %127 = vector.shape_cast %126 : vector<8x8x128xf32> to vector<64x128xf32>
    %128 = arith.truncf %127 : vector<64x128xf32> to vector<64x128xbf16>
    %c768_116 = arith.constant 768 : index
    %c0_117 = arith.constant 0 : index
    %129 = vector.load %arg6[%c768_116, %c0_117] : memref<1152x128xbf16, #tpu.memory_space<vmem>>, vector<128x128xbf16>
    %cst_118 = arith.constant dense<0.000000e+00> : vector<64x128xf32>
    %130 = tpu.matmul %128, %129, %cst_118 {dimension_numbers = #tpu.dot_dimension_numbers<[1], [0], [0], [1], [0, 0, 1, 1], [], []>} : vector<64x128xbf16>, vector<128x128xbf16>, vector<64x128xf32> -> vector<64x128xf32>
    %131 = arith.addf %125, %130 : vector<64x128xf32>
    %c2_119 = arith.constant 2 : index
    %c1_120 = arith.constant 1 : index
    %c0_121 = arith.constant 0 : index
    %132 = vector.load %arg25[%c2_119, %c1_120, %c0_121] : memref<10x10x128xf32, #tpu.memory_space<vmem>>, vector<8x8x128xf32>
    %133 = vector.shape_cast %132 : vector<8x8x128xf32> to vector<64x128xf32>
    %134 = arith.truncf %133 : vector<64x128xf32> to vector<64x128xbf16>
    %c896_122 = arith.constant 896 : index
    %c0_123 = arith.constant 0 : index
    %135 = vector.load %arg6[%c896_122, %c0_123] : memref<1152x128xbf16, #tpu.memory_space<vmem>>, vector<128x128xbf16>
    %cst_124 = arith.constant dense<0.000000e+00> : vector<64x128xf32>
    %136 = tpu.matmul %134, %135, %cst_124 {dimension_numbers = #tpu.dot_dimension_numbers<[1], [0], [0], [1], [0, 0, 1, 1], [], []>} : vector<64x128xbf16>, vector<128x128xbf16>, vector<64x128xf32> -> vector<64x128xf32>
    %137 = arith.addf %131, %136 : vector<64x128xf32>
    %c2_125 = arith.constant 2 : index
    %c2_126 = arith.constant 2 : index
    %c0_127 = arith.constant 0 : index
    %138 = vector.load %arg25[%c2_125, %c2_126, %c0_127] : memref<10x10x128xf32, #tpu.memory_space<vmem>>, vector<8x8x128xf32>
    %139 = vector.shape_cast %138 : vector<8x8x128xf32> to vector<64x128xf32>
    %140 = arith.truncf %139 : vector<64x128xf32> to vector<64x128xbf16>
    %c1024_128 = arith.constant 1024 : index
    %c0_129 = arith.constant 0 : index
    %141 = vector.load %arg6[%c1024_128, %c0_129] : memref<1152x128xbf16, #tpu.memory_space<vmem>>, vector<128x128xbf16>
    %cst_130 = arith.constant dense<0.000000e+00> : vector<64x128xf32>
    %142 = tpu.matmul %140, %141, %cst_130 {dimension_numbers = #tpu.dot_dimension_numbers<[1], [0], [0], [1], [0, 0, 1, 1], [], []>} : vector<64x128xbf16>, vector<128x128xbf16>, vector<64x128xf32> -> vector<64x128xf32>
    %143 = arith.addf %137, %142 : vector<64x128xf32>
    %c0_131 = arith.constant 0 : index
    %c0_132 = arith.constant 0 : index
    %144 = vector.load %arg7[%c0_131, %c0_132] : memref<1x128xf32, #tpu.memory_space<vmem>>, vector<1x128xf32>
    %145 = vector.broadcast %144 : vector<1x128xf32> to vector<64x128xf32>
    %146 = arith.addf %143, %145 : vector<64x128xf32>
    %cst_133 = arith.constant 0.000000e+00 : f32
    %147 = vector.broadcast %cst_133 : f32 to vector<64x128xf32>
    %148 = arith.maximumf %146, %147 : vector<64x128xf32>
    %149 = vector.extract_strided_slice %148 {offsets = [0, 0], sizes = [55, 128], strides = [1, 1]} : vector<64x128xf32> to vector<55x128xf32>
    %150 = vector.extract_strided_slice %148 {offsets = [1, 0], sizes = [55, 128], strides = [1, 1]} : vector<64x128xf32> to vector<55x128xf32>
    %151 = arith.maximumf %149, %150 : vector<55x128xf32>
    %152 = vector.extract_strided_slice %148 {offsets = [8, 0], sizes = [55, 128], strides = [1, 1]} : vector<64x128xf32> to vector<55x128xf32>
    %153 = vector.extract_strided_slice %148 {offsets = [9, 0], sizes = [55, 128], strides = [1, 1]} : vector<64x128xf32> to vector<55x128xf32>
    %154 = arith.maximumf %152, %153 : vector<55x128xf32>
    %155 = arith.maximumf %151, %154 : vector<55x128xf32>
    %c0_134 = arith.constant 0 : index
    %c0_135 = arith.constant 0 : index
    %156 = vector.load %arg13[%c0_134, %c0_135] : memref<16x55xbf16, #tpu.memory_space<vmem>>, vector<16x55xbf16>
    %157 = arith.truncf %155 : vector<55x128xf32> to vector<55x128xbf16>
    %cst_136 = arith.constant dense<0.000000e+00> : vector<16x128xf32>
    %158 = tpu.matmul %156, %157, %cst_136 {dimension_numbers = #tpu.dot_dimension_numbers<[1], [0], [0], [1], [0, 0, 1, 1], [], []>} : vector<16x55xbf16>, vector<55x128xbf16>, vector<16x128xf32> -> vector<16x128xf32>
    %cst_137 = arith.constant 0.000000e+00 : f32
    %159 = vector.broadcast %cst_137 : f32 to vector<1x6x128xf32>
    %cst_138 = arith.constant 0.000000e+00 : f32
    %160 = vector.broadcast %cst_138 : f32 to vector<4x1x128xf32>
    %c0_139 = arith.constant 0 : index
    %c0_140 = arith.constant 0 : index
    %c0_141 = arith.constant 0 : index
    %161 = vector.load %arg26[%c0_139, %c0_140, %c0_141] : memref<6x6x128xf32, #tpu.memory_space<vmem>>, vector<1x6x128xf32>
    tpu.vector_store %arg26[%c0_139, %c0_140, %c0_141], %159 {strides = array<i32>} : memref<6x6x128xf32, #tpu.memory_space<vmem>>, vector<1x6x128xf32>,
    %c5 = arith.constant 5 : index
    %c0_142 = arith.constant 0 : index
    %c0_143 = arith.constant 0 : index
    %162 = vector.load %arg26[%c5, %c0_142, %c0_143] : memref<6x6x128xf32, #tpu.memory_space<vmem>>, vector<1x6x128xf32>
    tpu.vector_store %arg26[%c5, %c0_142, %c0_143], %159 {strides = array<i32>} : memref<6x6x128xf32, #tpu.memory_space<vmem>>, vector<1x6x128xf32>,
    %c1_144 = arith.constant 1 : index
    %c0_145 = arith.constant 0 : index
    %c0_146 = arith.constant 0 : index
    %163 = vector.load %arg26[%c1_144, %c0_145, %c0_146] : memref<6x6x128xf32, #tpu.memory_space<vmem>>, vector<4x1x128xf32>
    tpu.vector_store %arg26[%c1_144, %c0_145, %c0_146], %160 {strides = array<i32>} : memref<6x6x128xf32, #tpu.memory_space<vmem>>, vector<4x1x128xf32>,
    %c1_147 = arith.constant 1 : index
    %c5_148 = arith.constant 5 : index
    %c0_149 = arith.constant 0 : index
    %164 = vector.load %arg26[%c1_147, %c5_148, %c0_149] : memref<6x6x128xf32, #tpu.memory_space<vmem>>, vector<4x1x128xf32>
    tpu.vector_store %arg26[%c1_147, %c5_148, %c0_149], %160 {strides = array<i32>} : memref<6x6x128xf32, #tpu.memory_space<vmem>>, vector<4x1x128xf32>,
    %165 = vector.shape_cast %158 : vector<16x128xf32> to vector<4x4x128xf32>
    %c1_150 = arith.constant 1 : index
    %c1_151 = arith.constant 1 : index
    %c0_152 = arith.constant 0 : index
    %166 = vector.load %arg26[%c1_150, %c1_151, %c0_152] : memref<6x6x128xf32, #tpu.memory_space<vmem>>, vector<4x4x128xf32>
    tpu.vector_store %arg26[%c1_150, %c1_151, %c0_152], %165 {strides = array<i32>} : memref<6x6x128xf32, #tpu.memory_space<vmem>>, vector<4x4x128xf32>,
    %c0_153 = arith.constant 0 : index
    %c0_154 = arith.constant 0 : index
    %c0_155 = arith.constant 0 : index
    %167 = vector.load %arg26[%c0_153, %c0_154, %c0_155] : memref<6x6x128xf32, #tpu.memory_space<vmem>>, vector<4x4x128xf32>
    %168 = vector.shape_cast %167 : vector<4x4x128xf32> to vector<16x128xf32>
    %169 = arith.truncf %168 : vector<16x128xf32> to vector<16x128xbf16>
    %c0_156 = arith.constant 0 : index
    %c0_157 = arith.constant 0 : index
    %170 = vector.load %arg8[%c0_156, %c0_157] : memref<1152x128xbf16, #tpu.memory_space<vmem>>, vector<128x128xbf16>
    %cst_158 = arith.constant dense<0.000000e+00> : vector<16x128xf32>
    %171 = tpu.matmul %169, %170, %cst_158 {dimension_numbers = #tpu.dot_dimension_numbers<[1], [0], [0], [1], [0, 0, 1, 1], [], []>} : vector<16x128xbf16>, vector<128x128xbf16>, vector<16x128xf32> -> vector<16x128xf32>
    %c0_159 = arith.constant 0 : index
    %c1_160 = arith.constant 1 : index
    %c0_161 = arith.constant 0 : index
    %172 = vector.load %arg26[%c0_159, %c1_160, %c0_161] : memref<6x6x128xf32, #tpu.memory_space<vmem>>, vector<4x4x128xf32>
    %173 = vector.shape_cast %172 : vector<4x4x128xf32> to vector<16x128xf32>
    %174 = arith.truncf %173 : vector<16x128xf32> to vector<16x128xbf16>
    %c128_162 = arith.constant 128 : index
    %c0_163 = arith.constant 0 : index
    %175 = vector.load %arg8[%c128_162, %c0_163] : memref<1152x128xbf16, #tpu.memory_space<vmem>>, vector<128x128xbf16>
    %cst_164 = arith.constant dense<0.000000e+00> : vector<16x128xf32>
    %176 = tpu.matmul %174, %175, %cst_164 {dimension_numbers = #tpu.dot_dimension_numbers<[1], [0], [0], [1], [0, 0, 1, 1], [], []>} : vector<16x128xbf16>, vector<128x128xbf16>, vector<16x128xf32> -> vector<16x128xf32>
    %177 = arith.addf %171, %176 : vector<16x128xf32>
    %c0_165 = arith.constant 0 : index
    %c2_166 = arith.constant 2 : index
    %c0_167 = arith.constant 0 : index
    %178 = vector.load %arg26[%c0_165, %c2_166, %c0_167] : memref<6x6x128xf32, #tpu.memory_space<vmem>>, vector<4x4x128xf32>
    %179 = vector.shape_cast %178 : vector<4x4x128xf32> to vector<16x128xf32>
    %180 = arith.truncf %179 : vector<16x128xf32> to vector<16x128xbf16>
    %c256_168 = arith.constant 256 : index
    %c0_169 = arith.constant 0 : index
    %181 = vector.load %arg8[%c256_168, %c0_169] : memref<1152x128xbf16, #tpu.memory_space<vmem>>, vector<128x128xbf16>
    %cst_170 = arith.constant dense<0.000000e+00> : vector<16x128xf32>
    %182 = tpu.matmul %180, %181, %cst_170 {dimension_numbers = #tpu.dot_dimension_numbers<[1], [0], [0], [1], [0, 0, 1, 1], [], []>} : vector<16x128xbf16>, vector<128x128xbf16>, vector<16x128xf32> -> vector<16x128xf32>
    %183 = arith.addf %177, %182 : vector<16x128xf32>
    %c1_171 = arith.constant 1 : index
    %c0_172 = arith.constant 0 : index
    %c0_173 = arith.constant 0 : index
    %184 = vector.load %arg26[%c1_171, %c0_172, %c0_173] : memref<6x6x128xf32, #tpu.memory_space<vmem>>, vector<4x4x128xf32>
    %185 = vector.shape_cast %184 : vector<4x4x128xf32> to vector<16x128xf32>
    %186 = arith.truncf %185 : vector<16x128xf32> to vector<16x128xbf16>
    %c384_174 = arith.constant 384 : index
    %c0_175 = arith.constant 0 : index
    %187 = vector.load %arg8[%c384_174, %c0_175] : memref<1152x128xbf16, #tpu.memory_space<vmem>>, vector<128x128xbf16>
    %cst_176 = arith.constant dense<0.000000e+00> : vector<16x128xf32>
    %188 = tpu.matmul %186, %187, %cst_176 {dimension_numbers = #tpu.dot_dimension_numbers<[1], [0], [0], [1], [0, 0, 1, 1], [], []>} : vector<16x128xbf16>, vector<128x128xbf16>, vector<16x128xf32> -> vector<16x128xf32>
    %189 = arith.addf %183, %188 : vector<16x128xf32>
    %c1_177 = arith.constant 1 : index
    %c1_178 = arith.constant 1 : index
    %c0_179 = arith.constant 0 : index
    %190 = vector.load %arg26[%c1_177, %c1_178, %c0_179] : memref<6x6x128xf32, #tpu.memory_space<vmem>>, vector<4x4x128xf32>
    %191 = vector.shape_cast %190 : vector<4x4x128xf32> to vector<16x128xf32>
    %192 = arith.truncf %191 : vector<16x128xf32> to vector<16x128xbf16>
    %c512_180 = arith.constant 512 : index
    %c0_181 = arith.constant 0 : index
    %193 = vector.load %arg8[%c512_180, %c0_181] : memref<1152x128xbf16, #tpu.memory_space<vmem>>, vector<128x128xbf16>
    %cst_182 = arith.constant dense<0.000000e+00> : vector<16x128xf32>
    %194 = tpu.matmul %192, %193, %cst_182 {dimension_numbers = #tpu.dot_dimension_numbers<[1], [0], [0], [1], [0, 0, 1, 1], [], []>} : vector<16x128xbf16>, vector<128x128xbf16>, vector<16x128xf32> -> vector<16x128xf32>
    %195 = arith.addf %189, %194 : vector<16x128xf32>
    %c1_183 = arith.constant 1 : index
    %c2_184 = arith.constant 2 : index
    %c0_185 = arith.constant 0 : index
    %196 = vector.load %arg26[%c1_183, %c2_184, %c0_185] : memref<6x6x128xf32, #tpu.memory_space<vmem>>, vector<4x4x128xf32>
    %197 = vector.shape_cast %196 : vector<4x4x128xf32> to vector<16x128xf32>
    %198 = arith.truncf %197 : vector<16x128xf32> to vector<16x128xbf16>
    %c640_186 = arith.constant 640 : index
    %c0_187 = arith.constant 0 : index
    %199 = vector.load %arg8[%c640_186, %c0_187] : memref<1152x128xbf16, #tpu.memory_space<vmem>>, vector<128x128xbf16>
    %cst_188 = arith.constant dense<0.000000e+00> : vector<16x128xf32>
    %200 = tpu.matmul %198, %199, %cst_188 {dimension_numbers = #tpu.dot_dimension_numbers<[1], [0], [0], [1], [0, 0, 1, 1], [], []>} : vector<16x128xbf16>, vector<128x128xbf16>, vector<16x128xf32> -> vector<16x128xf32>
    %201 = arith.addf %195, %200 : vector<16x128xf32>
    %c2_189 = arith.constant 2 : index
    %c0_190 = arith.constant 0 : index
    %c0_191 = arith.constant 0 : index
    %202 = vector.load %arg26[%c2_189, %c0_190, %c0_191] : memref<6x6x128xf32, #tpu.memory_space<vmem>>, vector<4x4x128xf32>
    %203 = vector.shape_cast %202 : vector<4x4x128xf32> to vector<16x128xf32>
    %204 = arith.truncf %203 : vector<16x128xf32> to vector<16x128xbf16>
    %c768_192 = arith.constant 768 : index
    %c0_193 = arith.constant 0 : index
    %205 = vector.load %arg8[%c768_192, %c0_193] : memref<1152x128xbf16, #tpu.memory_space<vmem>>, vector<128x128xbf16>
    %cst_194 = arith.constant dense<0.000000e+00> : vector<16x128xf32>
    %206 = tpu.matmul %204, %205, %cst_194 {dimension_numbers = #tpu.dot_dimension_numbers<[1], [0], [0], [1], [0, 0, 1, 1], [], []>} : vector<16x128xbf16>, vector<128x128xbf16>, vector<16x128xf32> -> vector<16x128xf32>
    %207 = arith.addf %201, %206 : vector<16x128xf32>
    %c2_195 = arith.constant 2 : index
    %c1_196 = arith.constant 1 : index
    %c0_197 = arith.constant 0 : index
    %208 = vector.load %arg26[%c2_195, %c1_196, %c0_197] : memref<6x6x128xf32, #tpu.memory_space<vmem>>, vector<4x4x128xf32>
    %209 = vector.shape_cast %208 : vector<4x4x128xf32> to vector<16x128xf32>
    %210 = arith.truncf %209 : vector<16x128xf32> to vector<16x128xbf16>
    %c896_198 = arith.constant 896 : index
    %c0_199 = arith.constant 0 : index
    %211 = vector.load %arg8[%c896_198, %c0_199] : memref<1152x128xbf16, #tpu.memory_space<vmem>>, vector<128x128xbf16>
    %cst_200 = arith.constant dense<0.000000e+00> : vector<16x128xf32>
    %212 = tpu.matmul %210, %211, %cst_200 {dimension_numbers = #tpu.dot_dimension_numbers<[1], [0], [0], [1], [0, 0, 1, 1], [], []>} : vector<16x128xbf16>, vector<128x128xbf16>, vector<16x128xf32> -> vector<16x128xf32>
    %213 = arith.addf %207, %212 : vector<16x128xf32>
    %c2_201 = arith.constant 2 : index
    %c2_202 = arith.constant 2 : index
    %c0_203 = arith.constant 0 : index
    %214 = vector.load %arg26[%c2_201, %c2_202, %c0_203] : memref<6x6x128xf32, #tpu.memory_space<vmem>>, vector<4x4x128xf32>
    %215 = vector.shape_cast %214 : vector<4x4x128xf32> to vector<16x128xf32>
    %216 = arith.truncf %215 : vector<16x128xf32> to vector<16x128xbf16>
    %c1024_204 = arith.constant 1024 : index
    %c0_205 = arith.constant 0 : index
    %217 = vector.load %arg8[%c1024_204, %c0_205] : memref<1152x128xbf16, #tpu.memory_space<vmem>>, vector<128x128xbf16>
    %cst_206 = arith.constant dense<0.000000e+00> : vector<16x128xf32>
    %218 = tpu.matmul %216, %217, %cst_206 {dimension_numbers = #tpu.dot_dimension_numbers<[1], [0], [0], [1], [0, 0, 1, 1], [], []>} : vector<16x128xbf16>, vector<128x128xbf16>, vector<16x128xf32> -> vector<16x128xf32>
    %219 = arith.addf %213, %218 : vector<16x128xf32>
    %c0_207 = arith.constant 0 : index
    %c0_208 = arith.constant 0 : index
    %220 = vector.load %arg9[%c0_207, %c0_208] : memref<1x128xf32, #tpu.memory_space<vmem>>, vector<1x128xf32>
    %221 = vector.broadcast %220 : vector<1x128xf32> to vector<16x128xf32>
    %222 = arith.addf %219, %221 : vector<16x128xf32>
    %cst_209 = arith.constant 0.000000e+00 : f32
    %223 = vector.broadcast %cst_209 : f32 to vector<16x128xf32>
    %224 = arith.maximumf %222, %223 : vector<16x128xf32>
    %225 = vector.extract_strided_slice %224 {offsets = [0, 0], sizes = [11, 128], strides = [1, 1]} : vector<16x128xf32> to vector<11x128xf32>
    %226 = vector.extract_strided_slice %224 {offsets = [1, 0], sizes = [11, 128], strides = [1, 1]} : vector<16x128xf32> to vector<11x128xf32>
    %227 = arith.maximumf %225, %226 : vector<11x128xf32>
    %228 = vector.extract_strided_slice %224 {offsets = [4, 0], sizes = [11, 128], strides = [1, 1]} : vector<16x128xf32> to vector<11x128xf32>
    %229 = vector.extract_strided_slice %224 {offsets = [5, 0], sizes = [11, 128], strides = [1, 1]} : vector<16x128xf32> to vector<11x128xf32>
    %230 = arith.maximumf %228, %229 : vector<11x128xf32>
    %231 = arith.maximumf %227, %230 : vector<11x128xf32>
    %c0_210 = arith.constant 0 : index
    %c0_211 = arith.constant 0 : index
    %232 = vector.load %arg14[%c0_210, %c0_211] : memref<4x11xbf16, #tpu.memory_space<vmem>>, vector<4x11xbf16>
    %233 = arith.truncf %231 : vector<11x128xf32> to vector<11x128xbf16>
    %cst_212 = arith.constant dense<0.000000e+00> : vector<4x128xf32>
    %234 = tpu.matmul %232, %233, %cst_212 {dimension_numbers = #tpu.dot_dimension_numbers<[1], [0], [0], [1], [0, 0, 1, 1], [], []>} : vector<4x11xbf16>, vector<11x128xbf16>, vector<4x128xf32> -> vector<4x128xf32>
    %cst_213 = arith.constant 0.000000e+00 : f32
    %235 = vector.broadcast %cst_213 : f32 to vector<1x4x128xf32>
    %cst_214 = arith.constant 0.000000e+00 : f32
    %236 = vector.broadcast %cst_214 : f32 to vector<2x1x128xf32>
    %c0_215 = arith.constant 0 : index
    %c0_216 = arith.constant 0 : index
    %c0_217 = arith.constant 0 : index
    %237 = vector.load %arg27[%c0_215, %c0_216, %c0_217] : memref<4x4x128xf32, #tpu.memory_space<vmem>>, vector<1x4x128xf32>
    tpu.vector_store %arg27[%c0_215, %c0_216, %c0_217], %235 {strides = array<i32>} : memref<4x4x128xf32, #tpu.memory_space<vmem>>, vector<1x4x128xf32>,
    %c3 = arith.constant 3 : index
    %c0_218 = arith.constant 0 : index
    %c0_219 = arith.constant 0 : index
    %238 = vector.load %arg27[%c3, %c0_218, %c0_219] : memref<4x4x128xf32, #tpu.memory_space<vmem>>, vector<1x4x128xf32>
    tpu.vector_store %arg27[%c3, %c0_218, %c0_219], %235 {strides = array<i32>} : memref<4x4x128xf32, #tpu.memory_space<vmem>>, vector<1x4x128xf32>,
    %c1_220 = arith.constant 1 : index
    %c0_221 = arith.constant 0 : index
    %c0_222 = arith.constant 0 : index
    %239 = vector.load %arg27[%c1_220, %c0_221, %c0_222] : memref<4x4x128xf32, #tpu.memory_space<vmem>>, vector<2x1x128xf32>
    tpu.vector_store %arg27[%c1_220, %c0_221, %c0_222], %236 {strides = array<i32>} : memref<4x4x128xf32, #tpu.memory_space<vmem>>, vector<2x1x128xf32>,
    %c1_223 = arith.constant 1 : index
    %c3_224 = arith.constant 3 : index
    %c0_225 = arith.constant 0 : index
    %240 = vector.load %arg27[%c1_223, %c3_224, %c0_225] : memref<4x4x128xf32, #tpu.memory_space<vmem>>, vector<2x1x128xf32>
    tpu.vector_store %arg27[%c1_223, %c3_224, %c0_225], %236 {strides = array<i32>} : memref<4x4x128xf32, #tpu.memory_space<vmem>>, vector<2x1x128xf32>,
    %241 = vector.shape_cast %234 : vector<4x128xf32> to vector<2x2x128xf32>
    %c1_226 = arith.constant 1 : index
    %c1_227 = arith.constant 1 : index
    %c0_228 = arith.constant 0 : index
    %242 = vector.load %arg27[%c1_226, %c1_227, %c0_228] : memref<4x4x128xf32, #tpu.memory_space<vmem>>, vector<2x2x128xf32>
    tpu.vector_store %arg27[%c1_226, %c1_227, %c0_228], %241 {strides = array<i32>} : memref<4x4x128xf32, #tpu.memory_space<vmem>>, vector<2x2x128xf32>,
    %c0_229 = arith.constant 0 : index
    %c0_230 = arith.constant 0 : index
    %c0_231 = arith.constant 0 : index
    %243 = vector.load %arg27[%c0_229, %c0_230, %c0_231] : memref<4x4x128xf32, #tpu.memory_space<vmem>>, vector<2x2x128xf32>
    %244 = vector.shape_cast %243 : vector<2x2x128xf32> to vector<4x128xf32>
    %245 = arith.truncf %244 : vector<4x128xf32> to vector<4x128xbf16>
    %c0_232 = arith.constant 0 : index
    %c0_233 = arith.constant 0 : index
    %246 = vector.load %arg10[%c0_232, %c0_233] : memref<1152x128xbf16, #tpu.memory_space<vmem>>, vector<128x128xbf16>
    %cst_234 = arith.constant dense<0.000000e+00> : vector<4x128xf32>
    %247 = tpu.matmul %245, %246, %cst_234 {dimension_numbers = #tpu.dot_dimension_numbers<[1], [0], [0], [1], [0, 0, 1, 1], [], []>} : vector<4x128xbf16>, vector<128x128xbf16>, vector<4x128xf32> -> vector<4x128xf32>
    %c0_235 = arith.constant 0 : index
    %c1_236 = arith.constant 1 : index
    %c0_237 = arith.constant 0 : index
    %248 = vector.load %arg27[%c0_235, %c1_236, %c0_237] : memref<4x4x128xf32, #tpu.memory_space<vmem>>, vector<2x2x128xf32>
    %249 = vector.shape_cast %248 : vector<2x2x128xf32> to vector<4x128xf32>
    %250 = arith.truncf %249 : vector<4x128xf32> to vector<4x128xbf16>
    %c128_238 = arith.constant 128 : index
    %c0_239 = arith.constant 0 : index
    %251 = vector.load %arg10[%c128_238, %c0_239] : memref<1152x128xbf16, #tpu.memory_space<vmem>>, vector<128x128xbf16>
    %cst_240 = arith.constant dense<0.000000e+00> : vector<4x128xf32>
    %252 = tpu.matmul %250, %251, %cst_240 {dimension_numbers = #tpu.dot_dimension_numbers<[1], [0], [0], [1], [0, 0, 1, 1], [], []>} : vector<4x128xbf16>, vector<128x128xbf16>, vector<4x128xf32> -> vector<4x128xf32>
    %253 = arith.addf %247, %252 : vector<4x128xf32>
    %c0_241 = arith.constant 0 : index
    %c2_242 = arith.constant 2 : index
    %c0_243 = arith.constant 0 : index
    %254 = vector.load %arg27[%c0_241, %c2_242, %c0_243] : memref<4x4x128xf32, #tpu.memory_space<vmem>>, vector<2x2x128xf32>
    %255 = vector.shape_cast %254 : vector<2x2x128xf32> to vector<4x128xf32>
    %256 = arith.truncf %255 : vector<4x128xf32> to vector<4x128xbf16>
    %c256_244 = arith.constant 256 : index
    %c0_245 = arith.constant 0 : index
    %257 = vector.load %arg10[%c256_244, %c0_245] : memref<1152x128xbf16, #tpu.memory_space<vmem>>, vector<128x128xbf16>
    %cst_246 = arith.constant dense<0.000000e+00> : vector<4x128xf32>
    %258 = tpu.matmul %256, %257, %cst_246 {dimension_numbers = #tpu.dot_dimension_numbers<[1], [0], [0], [1], [0, 0, 1, 1], [], []>} : vector<4x128xbf16>, vector<128x128xbf16>, vector<4x128xf32> -> vector<4x128xf32>
    %259 = arith.addf %253, %258 : vector<4x128xf32>
    %c1_247 = arith.constant 1 : index
    %c0_248 = arith.constant 0 : index
    %c0_249 = arith.constant 0 : index
    %260 = vector.load %arg27[%c1_247, %c0_248, %c0_249] : memref<4x4x128xf32, #tpu.memory_space<vmem>>, vector<2x2x128xf32>
    %261 = vector.shape_cast %260 : vector<2x2x128xf32> to vector<4x128xf32>
    %262 = arith.truncf %261 : vector<4x128xf32> to vector<4x128xbf16>
    %c384_250 = arith.constant 384 : index
    %c0_251 = arith.constant 0 : index
    %263 = vector.load %arg10[%c384_250, %c0_251] : memref<1152x128xbf16, #tpu.memory_space<vmem>>, vector<128x128xbf16>
    %cst_252 = arith.constant dense<0.000000e+00> : vector<4x128xf32>
    %264 = tpu.matmul %262, %263, %cst_252 {dimension_numbers = #tpu.dot_dimension_numbers<[1], [0], [0], [1], [0, 0, 1, 1], [], []>} : vector<4x128xbf16>, vector<128x128xbf16>, vector<4x128xf32> -> vector<4x128xf32>
    %265 = arith.addf %259, %264 : vector<4x128xf32>
    %c1_253 = arith.constant 1 : index
    %c1_254 = arith.constant 1 : index
    %c0_255 = arith.constant 0 : index
    %266 = vector.load %arg27[%c1_253, %c1_254, %c0_255] : memref<4x4x128xf32, #tpu.memory_space<vmem>>, vector<2x2x128xf32>
    %267 = vector.shape_cast %266 : vector<2x2x128xf32> to vector<4x128xf32>
    %268 = arith.truncf %267 : vector<4x128xf32> to vector<4x128xbf16>
    %c512_256 = arith.constant 512 : index
    %c0_257 = arith.constant 0 : index
    %269 = vector.load %arg10[%c512_256, %c0_257] : memref<1152x128xbf16, #tpu.memory_space<vmem>>, vector<128x128xbf16>
    %cst_258 = arith.constant dense<0.000000e+00> : vector<4x128xf32>
    %270 = tpu.matmul %268, %269, %cst_258 {dimension_numbers = #tpu.dot_dimension_numbers<[1], [0], [0], [1], [0, 0, 1, 1], [], []>} : vector<4x128xbf16>, vector<128x128xbf16>, vector<4x128xf32> -> vector<4x128xf32>
    %271 = arith.addf %265, %270 : vector<4x128xf32>
    %c1_259 = arith.constant 1 : index
    %c2_260 = arith.constant 2 : index
    %c0_261 = arith.constant 0 : index
    %272 = vector.load %arg27[%c1_259, %c2_260, %c0_261] : memref<4x4x128xf32, #tpu.memory_space<vmem>>, vector<2x2x128xf32>
    %273 = vector.shape_cast %272 : vector<2x2x128xf32> to vector<4x128xf32>
    %274 = arith.truncf %273 : vector<4x128xf32> to vector<4x128xbf16>
    %c640_262 = arith.constant 640 : index
    %c0_263 = arith.constant 0 : index
    %275 = vector.load %arg10[%c640_262, %c0_263] : memref<1152x128xbf16, #tpu.memory_space<vmem>>, vector<128x128xbf16>
    %cst_264 = arith.constant dense<0.000000e+00> : vector<4x128xf32>
    %276 = tpu.matmul %274, %275, %cst_264 {dimension_numbers = #tpu.dot_dimension_numbers<[1], [0], [0], [1], [0, 0, 1, 1], [], []>} : vector<4x128xbf16>, vector<128x128xbf16>, vector<4x128xf32> -> vector<4x128xf32>
    %277 = arith.addf %271, %276 : vector<4x128xf32>
    %c2_265 = arith.constant 2 : index
    %c0_266 = arith.constant 0 : index
    %c0_267 = arith.constant 0 : index
    %278 = vector.load %arg27[%c2_265, %c0_266, %c0_267] : memref<4x4x128xf32, #tpu.memory_space<vmem>>, vector<2x2x128xf32>
    %279 = vector.shape_cast %278 : vector<2x2x128xf32> to vector<4x128xf32>
    %280 = arith.truncf %279 : vector<4x128xf32> to vector<4x128xbf16>
    %c768_268 = arith.constant 768 : index
    %c0_269 = arith.constant 0 : index
    %281 = vector.load %arg10[%c768_268, %c0_269] : memref<1152x128xbf16, #tpu.memory_space<vmem>>, vector<128x128xbf16>
    %cst_270 = arith.constant dense<0.000000e+00> : vector<4x128xf32>
    %282 = tpu.matmul %280, %281, %cst_270 {dimension_numbers = #tpu.dot_dimension_numbers<[1], [0], [0], [1], [0, 0, 1, 1], [], []>} : vector<4x128xbf16>, vector<128x128xbf16>, vector<4x128xf32> -> vector<4x128xf32>
    %283 = arith.addf %277, %282 : vector<4x128xf32>
    %c2_271 = arith.constant 2 : index
    %c1_272 = arith.constant 1 : index
    %c0_273 = arith.constant 0 : index
    %284 = vector.load %arg27[%c2_271, %c1_272, %c0_273] : memref<4x4x128xf32, #tpu.memory_space<vmem>>, vector<2x2x128xf32>
    %285 = vector.shape_cast %284 : vector<2x2x128xf32> to vector<4x128xf32>
    %286 = arith.truncf %285 : vector<4x128xf32> to vector<4x128xbf16>
    %c896_274 = arith.constant 896 : index
    %c0_275 = arith.constant 0 : index
    %287 = vector.load %arg10[%c896_274, %c0_275] : memref<1152x128xbf16, #tpu.memory_space<vmem>>, vector<128x128xbf16>
    %cst_276 = arith.constant dense<0.000000e+00> : vector<4x128xf32>
    %288 = tpu.matmul %286, %287, %cst_276 {dimension_numbers = #tpu.dot_dimension_numbers<[1], [0], [0], [1], [0, 0, 1, 1], [], []>} : vector<4x128xbf16>, vector<128x128xbf16>, vector<4x128xf32> -> vector<4x128xf32>
    %289 = arith.addf %283, %288 : vector<4x128xf32>
    %c2_277 = arith.constant 2 : index
    %c2_278 = arith.constant 2 : index
    %c0_279 = arith.constant 0 : index
    %290 = vector.load %arg27[%c2_277, %c2_278, %c0_279] : memref<4x4x128xf32, #tpu.memory_space<vmem>>, vector<2x2x128xf32>
    %291 = vector.shape_cast %290 : vector<2x2x128xf32> to vector<4x128xf32>
    %292 = arith.truncf %291 : vector<4x128xf32> to vector<4x128xbf16>
    %c1024_280 = arith.constant 1024 : index
    %c0_281 = arith.constant 0 : index
    %293 = vector.load %arg10[%c1024_280, %c0_281] : memref<1152x128xbf16, #tpu.memory_space<vmem>>, vector<128x128xbf16>
    %cst_282 = arith.constant dense<0.000000e+00> : vector<4x128xf32>
    %294 = tpu.matmul %292, %293, %cst_282 {dimension_numbers = #tpu.dot_dimension_numbers<[1], [0], [0], [1], [0, 0, 1, 1], [], []>} : vector<4x128xbf16>, vector<128x128xbf16>, vector<4x128xf32> -> vector<4x128xf32>
    %295 = arith.addf %289, %294 : vector<4x128xf32>
    %c0_283 = arith.constant 0 : index
    %c0_284 = arith.constant 0 : index
    %296 = vector.load %arg11[%c0_283, %c0_284] : memref<1x128xf32, #tpu.memory_space<vmem>>, vector<1x128xf32>
    %297 = vector.broadcast %296 : vector<1x128xf32> to vector<4x128xf32>
    %298 = arith.addf %295, %297 : vector<4x128xf32>
    %cst_285 = arith.constant 0.000000e+00 : f32
    %299 = vector.broadcast %cst_285 : f32 to vector<4x128xf32>
    %300 = arith.maximumf %298, %299 : vector<4x128xf32>
    %301 = vector.extract_strided_slice %300 {offsets = [0, 0], sizes = [1, 128], strides = [1, 1]} : vector<4x128xf32> to vector<1x128xf32>
    %302 = vector.extract_strided_slice %300 {offsets = [1, 0], sizes = [1, 128], strides = [1, 1]} : vector<4x128xf32> to vector<1x128xf32>
    %303 = vector.extract_strided_slice %300 {offsets = [2, 0], sizes = [1, 128], strides = [1, 1]} : vector<4x128xf32> to vector<1x128xf32>
    %304 = vector.extract_strided_slice %300 {offsets = [3, 0], sizes = [1, 128], strides = [1, 1]} : vector<4x128xf32> to vector<1x128xf32>
    %305 = tpu.concatenate %301, %302, %303, %304 in 1 : vector<1x128xf32>, vector<1x128xf32>, vector<1x128xf32>, vector<1x128xf32> -> vector<1x512xf32>
    %c0_286 = arith.constant 0 : index
    %c0_287 = arith.constant 0 : index
    %c0_288 = arith.constant 0 : index
    %306 = vector.load %arg22[%c0_286, %c0_287, %c0_288] : memref<1x1x512xf32, #tpu.memory_space<vmem>>, vector<1x1x512xf32>
    %307 = vector.shape_cast %306 : vector<1x1x512xf32> to vector<1x512xf32>
    %308 = vector.shape_cast %305 : vector<1x512xf32> to vector<1x1x512xf32>
    tpu.vector_store %arg22[%c0_286, %c0_287, %c0_288], %308 {strides = array<i32>} : memref<1x1x512xf32, #tpu.memory_space<vmem>>, vector<1x1x512xf32>,
    %309 = arith.truncf %305 : vector<1x512xf32> to vector<1x512xbf16>
    %c0_289 = arith.constant 0 : index
    %c0_290 = arith.constant 0 : index
    %310 = vector.load %arg15[%c0_289, %c0_290] : memref<512x512xbf16, #tpu.memory_space<vmem>>, vector<512x512xbf16>
    %cst_291 = arith.constant dense<0.000000e+00> : vector<1x512xf32>
    %311 = tpu.matmul %309, %310, %cst_291 {dimension_numbers = #tpu.dot_dimension_numbers<[1], [0], [0], [1], [0, 0, 1, 1], [], []>} : vector<1x512xbf16>, vector<512x512xbf16>, vector<1x512xf32> -> vector<1x512xf32>
    %c0_292 = arith.constant 0 : index
    %c0_293 = arith.constant 0 : index
    %312 = vector.load %arg16[%c0_292, %c0_293] : memref<1x512xf32, #tpu.memory_space<vmem>>, vector<1x512xf32>
    %313 = arith.addf %311, %312 : vector<1x512xf32>
    %cst_294 = arith.constant 0.000000e+00 : f32
    %314 = vector.broadcast %cst_294 : f32 to vector<1x512xf32>
    %315 = arith.maximumf %313, %314 : vector<1x512xf32>
    %c0_295 = arith.constant 0 : index
    %c0_296 = arith.constant 0 : index
    %316 = vector.load %arg17[%c0_295, %c0_296] : memref<1x512xf32, #tpu.memory_space<vmem>>, vector<1x512xf32>
    %317 = arith.mulf %316, %315 : vector<1x512xf32>
    %318 = arith.negf %317 : vector<1x512xf32>
    %319 = math.exp %318 : vector<1x512xf32>
    %cst_297 = arith.constant 1.000000e+00 : f32
    %320 = vector.broadcast %cst_297 : f32 to vector<1x512xf32>
    %321 = arith.addf %320, %319 : vector<1x512xf32>
    %322 = arith.divf %320, %321 : vector<1x512xf32>
    %323 = arith.mulf %322, %305 : vector<1x512xf32>
    %c0_298 = arith.constant 0 : index
    %c0_299 = arith.constant 0 : index
    %c0_300 = arith.constant 0 : index
    %324 = vector.load %arg23[%c0_298, %c0_299, %c0_300] : memref<1x1x512xf32, #tpu.memory_space<vmem>>, vector<1x1x512xf32>
    %325 = vector.shape_cast %324 : vector<1x1x512xf32> to vector<1x512xf32>
    %326 = vector.shape_cast %323 : vector<1x512xf32> to vector<1x1x512xf32>
    tpu.vector_store %arg23[%c0_298, %c0_299, %c0_300], %326 {strides = array<i32>} : memref<1x1x512xf32, #tpu.memory_space<vmem>>, vector<1x1x512xf32>,
    %327 = arith.truncf %323 : vector<1x512xf32> to vector<1x512xbf16>
    %c0_301 = arith.constant 0 : index
    %c0_302 = arith.constant 0 : index
    %328 = vector.load %arg18[%c0_301, %c0_302] : memref<512x256xbf16, #tpu.memory_space<vmem>>, vector<512x256xbf16>
    %cst_303 = arith.constant dense<0.000000e+00> : vector<1x256xf32>
    %329 = tpu.matmul %327, %328, %cst_303 {dimension_numbers = #tpu.dot_dimension_numbers<[1], [0], [0], [1], [0, 0, 1, 1], [], []>} : vector<1x512xbf16>, vector<512x256xbf16>, vector<1x256xf32> -> vector<1x256xf32>
    %c0_304 = arith.constant 0 : index
    %c0_305 = arith.constant 0 : index
    %330 = vector.load %arg19[%c0_304, %c0_305] : memref<1x256xf32, #tpu.memory_space<vmem>>, vector<1x256xf32>
    %331 = arith.addf %329, %330 : vector<1x256xf32>
    %cst_306 = arith.constant 0.000000e+00 : f32
    %332 = vector.broadcast %cst_306 : f32 to vector<1x256xf32>
    %333 = arith.maximumf %331, %332 : vector<1x256xf32>
    %334 = arith.truncf %333 : vector<1x256xf32> to vector<1x256xbf16>
    %c0_307 = arith.constant 0 : index
    %c0_308 = arith.constant 0 : index
    %335 = vector.load %arg20[%c0_307, %c0_308] : memref<256x128xbf16, #tpu.memory_space<vmem>>, vector<256x128xbf16>
    %cst_309 = arith.constant dense<0.000000e+00> : vector<1x128xf32>
    %336 = tpu.matmul %334, %335, %cst_309 {dimension_numbers = #tpu.dot_dimension_numbers<[1], [0], [0], [1], [0, 0, 1, 1], [], []>} : vector<1x256xbf16>, vector<256x128xbf16>, vector<1x128xf32> -> vector<1x128xf32>
    %c0_310 = arith.constant 0 : index
    %c0_311 = arith.constant 0 : index
    %337 = vector.load %arg21[%c0_310, %c0_311] : memref<1x128xf32, #tpu.memory_space<vmem>>, vector<1x128xf32>
    %338 = arith.addf %336, %337 : vector<1x128xf32>
    %c0_312 = arith.constant 0 : index
    %c0_313 = arith.constant 0 : index
    %c0_314 = arith.constant 0 : index
    %339 = vector.load %arg24[%c0_312, %c0_313, %c0_314] : memref<1x1x128xf32, #tpu.memory_space<vmem>>, vector<1x1x128xf32>
    %340 = vector.shape_cast %339 : vector<1x1x128xf32> to vector<1x128xf32>
    %341 = vector.shape_cast %338 : vector<1x128xf32> to vector<1x1x128xf32>
    tpu.vector_store %arg24[%c0_312, %c0_313, %c0_314], %341 {strides = array<i32>} : memref<1x1x128xf32, #tpu.memory_space<vmem>>, vector<1x1x128xf32>,
    return
  }
  func.func @transform_0(%arg0: i32) -> (i32, i32, i32, i32) {
    %c0_i32 = arith.constant 0 : i32
    %c0_i32_0 = arith.constant 0 : i32
    %c0_i32_1 = arith.constant 0 : i32
    %c0_i32_2 = arith.constant 0 : i32
    return %arg0, %c0_i32, %c0_i32_0, %c0_i32_1 : i32, i32, i32, i32
  }
  func.func @transform_1(%arg0: i32) -> (i32, i32) {
    %c0_i32 = arith.constant 0 : i32
    %c0_i32_0 = arith.constant 0 : i32
    %c0_i32_1 = arith.constant 0 : i32
    return %c0_i32, %c0_i32_0 : i32, i32
  }
  func.func @transform_2(%arg0: i32) -> (i32, i32) {
    %c0_i32 = arith.constant 0 : i32
    %c0_i32_0 = arith.constant 0 : i32
    %c0_i32_1 = arith.constant 0 : i32
    return %c0_i32, %c0_i32_0 : i32, i32
  }
  func.func @transform_3(%arg0: i32) -> (i32, i32) {
    %c0_i32 = arith.constant 0 : i32
    %c0_i32_0 = arith.constant 0 : i32
    %c0_i32_1 = arith.constant 0 : i32
    return %c0_i32, %c0_i32_0 : i32, i32
  }
  func.func @transform_4(%arg0: i32) -> (i32, i32) {
    %c0_i32 = arith.constant 0 : i32
    %c0_i32_0 = arith.constant 0 : i32
    %c0_i32_1 = arith.constant 0 : i32
    return %c0_i32, %c0_i32_0 : i32, i32
  }
  func.func @transform_5(%arg0: i32) -> (i32, i32) {
    %c0_i32 = arith.constant 0 : i32
    %c0_i32_0 = arith.constant 0 : i32
    %c0_i32_1 = arith.constant 0 : i32
    return %c0_i32, %c0_i32_0 : i32, i32
  }
  func.func @transform_6(%arg0: i32) -> (i32, i32) {
    %c0_i32 = arith.constant 0 : i32
    %c0_i32_0 = arith.constant 0 : i32
    %c0_i32_1 = arith.constant 0 : i32
    return %c0_i32, %c0_i32_0 : i32, i32
  }
  func.func @transform_7(%arg0: i32) -> (i32, i32) {
    %c0_i32 = arith.constant 0 : i32
    %c0_i32_0 = arith.constant 0 : i32
    %c0_i32_1 = arith.constant 0 : i32
    return %c0_i32, %c0_i32_0 : i32, i32
  }
  func.func @transform_8(%arg0: i32) -> (i32, i32) {
    %c0_i32 = arith.constant 0 : i32
    %c0_i32_0 = arith.constant 0 : i32
    %c0_i32_1 = arith.constant 0 : i32
    return %c0_i32, %c0_i32_0 : i32, i32
  }
  func.func @transform_9(%arg0: i32) -> (i32, i32) {
    %c0_i32 = arith.constant 0 : i32
    %c0_i32_0 = arith.constant 0 : i32
    %c0_i32_1 = arith.constant 0 : i32
    return %c0_i32, %c0_i32_0 : i32, i32
  }
  func.func @transform_10(%arg0: i32) -> (i32, i32) {
    %c0_i32 = arith.constant 0 : i32
    %c0_i32_0 = arith.constant 0 : i32
    %c0_i32_1 = arith.constant 0 : i32
    return %c0_i32, %c0_i32_0 : i32, i32
  }
  func.func @transform_11(%arg0: i32) -> (i32, i32) {
    %c0_i32 = arith.constant 0 : i32
    %c0_i32_0 = arith.constant 0 : i32
    %c0_i32_1 = arith.constant 0 : i32
    return %c0_i32, %c0_i32_0 : i32, i32
  }
  func.func @transform_12(%arg0: i32) -> (i32, i32) {
    %c0_i32 = arith.constant 0 : i32
    %c0_i32_0 = arith.constant 0 : i32
    %c0_i32_1 = arith.constant 0 : i32
    return %c0_i32, %c0_i32_0 : i32, i32
  }
  func.func @transform_13(%arg0: i32) -> (i32, i32) {
    %c0_i32 = arith.constant 0 : i32
    %c0_i32_0 = arith.constant 0 : i32
    %c0_i32_1 = arith.constant 0 : i32
    return %c0_i32, %c0_i32_0 : i32, i32
  }
  func.func @transform_14(%arg0: i32) -> (i32, i32) {
    %c0_i32 = arith.constant 0 : i32
    %c0_i32_0 = arith.constant 0 : i32
    %c0_i32_1 = arith.constant 0 : i32
    return %c0_i32, %c0_i32_0 : i32, i32
  }
  func.func @transform_15(%arg0: i32) -> (i32, i32) {
    %c0_i32 = arith.constant 0 : i32
    %c0_i32_0 = arith.constant 0 : i32
    %c0_i32_1 = arith.constant 0 : i32
    return %c0_i32, %c0_i32_0 : i32, i32
  }
  func.func @transform_16(%arg0: i32) -> (i32, i32) {
    %c0_i32 = arith.constant 0 : i32
    %c0_i32_0 = arith.constant 0 : i32
    %c0_i32_1 = arith.constant 0 : i32
    return %c0_i32, %c0_i32_0 : i32, i32
  }
  func.func @transform_17(%arg0: i32) -> (i32, i32) {
    %c0_i32 = arith.constant 0 : i32
    %c0_i32_0 = arith.constant 0 : i32
    %c0_i32_1 = arith.constant 0 : i32
    return %c0_i32, %c0_i32_0 : i32, i32
  }
  func.func @transform_18(%arg0: i32) -> (i32, i32) {
    %c0_i32 = arith.constant 0 : i32
    %c0_i32_0 = arith.constant 0 : i32
    %c0_i32_1 = arith.constant 0 : i32
    return %c0_i32, %c0_i32_0 : i32, i32
  }
  func.func @transform_19(%arg0: i32) -> (i32, i32) {
    %c0_i32 = arith.constant 0 : i32
    %c0_i32_0 = arith.constant 0 : i32
    %c0_i32_1 = arith.constant 0 : i32
    return %c0_i32, %c0_i32_0 : i32, i32
  }
  func.func @transform_20(%arg0: i32) -> (i32, i32) {
    %c0_i32 = arith.constant 0 : i32
    %c0_i32_0 = arith.constant 0 : i32
    %c0_i32_1 = arith.constant 0 : i32
    return %c0_i32, %c0_i32_0 : i32, i32
  }
  func.func @transform_21(%arg0: i32) -> (i32, i32, i32) {
    %c0_i32 = arith.constant 0 : i32
    %c0_i32_0 = arith.constant 0 : i32
    %c0_i32_1 = arith.constant 0 : i32
    return %arg0, %c0_i32, %c0_i32_0 : i32, i32, i32
  }
  func.func @transform_22(%arg0: i32) -> (i32, i32, i32) {
    %c0_i32 = arith.constant 0 : i32
    %c0_i32_0 = arith.constant 0 : i32
    %c0_i32_1 = arith.constant 0 : i32
    return %arg0, %c0_i32, %c0_i32_0 : i32, i32, i32
  }
  func.func @transform_23(%arg0: i32) -> (i32, i32, i32) {
    %c0_i32 = arith.constant 0 : i32
    %c0_i32_0 = arith.constant 0 : i32
    %c0_i32_1 = arith.constant 0 : i32
    return %arg0, %c0_i32, %c0_i32_0 : i32, i32, i32
  }
}

</mosaic_0001>

<llo_original>
// kernel: attention_cnn_forward.1
$region0: #{attention_cnn_forward.1}
  #allocation0 [shape = 'u32[]', space=smem, size = 0x4, offset = 0x4, fixed_abs, tag = 'smem constant byte address 0x4 - core index']
  #allocation1 [shape = 'u32[144,128]{1,0:T(1,128)}', space=vmem, size = 0x12000, scoped, tag = 'internal scratch']
  #allocation2 [shape = 'f32[10,10,128]{2,1,0:T(8,128)}', space=vmem, size = 0x14000, scoped, tag = 'scratch operand']
  #allocation3 [shape = 'f32[6,6,128]{2,1,0:T(8,128)}', space=vmem, size = 0x6000, scoped, tag = 'scratch operand']
  #allocation4 [shape = 'f32[4,4,128]{2,1,0:T(4,128)}', space=vmem, size = 0x2000, scoped, tag = 'scratch operand']
  %s0 = inlined_call_operand.vmem [shape: f32[2,18,18,128], index: 0, kind: input, shape index: {}]
  %s1 = inlined_call_operand.vmem [shape: bf16[1152,128], index: 1, kind: input, shape index: {}]
  %s2 = inlined_call_operand.vmem [shape: f32[1,128], index: 2, kind: input, shape index: {}]
  %s3 = inlined_call_operand.vmem [shape: f32[1,128], index: 3, kind: input, shape index: {}]
  %s4 = inlined_call_operand.vmem [shape: f32[1,128], index: 4, kind: input, shape index: {}]
  %s5 = inlined_call_operand.hbm [shape: bf16[1152,128], index: 5, kind: input, shape index: {}]
  %s6 = inlined_call_operand.vmem [shape: f32[1,128], index: 6, kind: input, shape index: {}]
  %s7 = inlined_call_operand.hbm [shape: bf16[1152,128], index: 7, kind: input, shape index: {}]
  %s8 = inlined_call_operand.vmem [shape: f32[1,128], index: 8, kind: input, shape index: {}]
  %s9 = inlined_call_operand.hbm [shape: bf16[1152,128], index: 9, kind: input, shape index: {}]
  %s10 = inlined_call_operand.vmem [shape: f32[1,128], index: 10, kind: input, shape index: {}]
  %s11 = inlined_call_operand.vmem [shape: bf16[64,239], index: 11, kind: input, shape index: {}]
  %s12 = inlined_call_operand.vmem [shape: bf16[16,55], index: 12, kind: input, shape index: {}]
  %s13 = inlined_call_operand.vmem [shape: bf16[4,11], index: 13, kind: input, shape index: {}]
  %s14 = inlined_call_operand.vmem [shape: bf16[512,512], index: 14, kind: input, shape index: {}]
  %s15 = inlined_call_operand.vmem [shape: f32[1,512], index: 15, kind: input, shape index: {}]
  %s16 = inlined_call_operand.vmem [shape: f32[1,512], index: 16, kind: input, shape index: {}]
  %s17 = inlined_call_operand.hbm [shape: bf16[512,256], index: 17, kind: input, shape index: {}]
  %s18 = inlined_call_operand.vmem [shape: f32[1,256], index: 18, kind: input, shape index: {}]
  %s19 = inlined_call_operand.vmem [shape: bf16[256,128], index: 19, kind: input, shape index: {}]
  %s20 = inlined_call_operand.vmem [shape: f32[1,128], index: 20, kind: input, shape index: {}]
  %s21 = inlined_call_operand.hbm [shape: f32[2,1,512], index: 21, kind: output, shape index: {0}]
  %s22 = inlined_call_operand.hbm [shape: f32[2,1,512], index: 22, kind: output, shape index: {1}]
  %s23 = inlined_call_operand.hbm [shape: f32[2,1,128], index: 23, kind: output, shape index: {2}]
  %24 = xla_tuple %s21, %s22, %s23
  %s25 = sld [smem:[#allocation0]]
  $region149: #{attention_cnn_forward.1} parent=0
    _
  %s27 = ssub.s32 1, %s25
  %s28 = scalar_select 0, %s27, %s25
  $region1: #{attention_cnn_forward.1} parent=0
    #allocation5 [shape = 'u8[294912]{0}', space=vmem, size = 0x48000, scoped, tag = 'input window, operand 5, single buffered']
    #allocation6 [shape = 's32[2]{0}', space=sflag, size = 0x8, scoped, tag = 'scoped memory for attention_cnn_forward.1']
    #allocation7 [shape = 's32[2]{0}', space=sflag, size = 0x8, scoped, tag = 'scoped memory for attention_cnn_forward.1']
    #allocation8 [shape = 'u8[294912]{0}', space=vmem, size = 0x48000, scoped, tag = 'input window, operand 7, single buffered']
    #allocation9 [shape = 's32[1]{0}', space=sflag, size = 0x4, scoped, tag = 'scoped memory for attention_cnn_forward.1']
    #allocation10 [shape = 'u8[294912]{0}', space=vmem, size = 0x48000, scoped, tag = 'input window, operand 9, single buffered']
    #allocation11 [shape = 'u8[262144]{0}', space=vmem, size = 0x40000, scoped, tag = 'input window, operand 17, single buffered']
    #allocation12 [shape = 's32[1]{0}', space=sflag, size = 0x4, scoped, tag = 'scoped memory for attention_cnn_forward.1']
    #allocation13 [shape = 'u8[4096]{0}', space=vmem, size = 0x1000, scoped, tag = 'output window, operand 0']
    #allocation14 [shape = 'u8[4096]{0}', space=vmem, size = 0x1000, scoped, tag = 'output window, operand 1']
    #allocation15 [shape = 's32[2]{0}', space=sflag, size = 0x8, scoped, tag = 'scoped memory for attention_cnn_forward.1']
    #allocation16 [shape = 'u8[1024]{0}', space=vmem, size = 0x400, scoped, tag = 'output window, operand 2']
    %29 = vsyncpa [#allocation6], 0
    %30 = vsyncpa [#allocation9], 0
    %31 = vsyncpa [#allocation12], 0
    %32 = vsyncpa [#allocation7], 0
    %s33 = scalar_lea.sflag [#allocation7], 1
    %34 = vsyncpa %s33, 0
    %35 = vsyncpa [#allocation15], 0
    %s36 = scalar_lea.sflag [#allocation15], 1
    %37 = vsyncpa %s36, 0
    loop: start=0, step=1, limit=4
    $region2: #{attention_cnn_forward.1} parent=1 // loop_pre_header
      _
    $region3: #{attention_cnn_forward.1} parent=1 // loop_header
      %s39 = sphi 0, %s43
      %p40 = scmp.ge.s32.totalorder %s39, 4
      %s49 = sphi 0, %s51
      %s52 = sphi 0, %s49
      %s53 = sphi 0, %s52
      %s69 = sphi 0, %s53
      %s73 = sphi 0, %s73
      %s75 = sphi 0, %s73
      %s76 = sphi 0, %s75
      %s90 = sphi 0, %s76
      %s94 = sphi 0, %s94
      %s96 = sphi 0, %s94
      %s97 = sphi 0, %s96
      %s111 = sphi 0, %s97
      %s115 = sphi 0, %s115
      %s117 = sphi 0, %s115
      %s118 = sphi 0, %s117
      %s132 = sphi 0, %s118
      %s136 = sphi 0, %s136
      %s138 = sphi 0, %s136
      %s139 = sphi 0, %s138
      %s153 = sphi 0, %s139
      %s157 = sphi 0, %s157
      %s159 = sphi 0, %s157
      %s160 = sphi 0, %s159
      %s174 = sphi 0, %s160
      %s178 = sphi 0, %s178
      %s180 = sphi 0, %s178
      %s181 = sphi 0, %s180
      %s195 = sphi 0, %s181
      %s199 = sphi 0, %s199
      %s201 = sphi 0, %s199
      %s202 = sphi 0, %s201
      %s216 = sphi 0, %s202
      %s220 = sphi 0, %s220
      %s222 = sphi 0, %s220
      %s223 = sphi 0, %s222
      %s237 = sphi 0, %s223
      %s241 = sphi 0, %s241
      %s243 = sphi 0, %s241
      %s244 = sphi 0, %s243
      %s258 = sphi 0, %s244
      %s262 = sphi 0, %s262
      %s264 = sphi 0, %s262
      %s265 = sphi 0, %s264
      %s279 = sphi 0, %s265
      %s283 = sphi 0, %s283
      %s285 = sphi 0, %s283
      %s286 = sphi 0, %s285
      %s300 = sphi 0, %s286
      %s304 = sphi 0, %s304
      %s306 = sphi 0, %s304
      %s307 = sphi 0, %s306
      %s321 = sphi 0, %s307
      %s325 = sphi 0, %s325
      %s327 = sphi 0, %s325
      %s328 = sphi 0, %s327
      %s342 = sphi 0, %s328
      %s346 = sphi 0, %s346
      %s348 = sphi 0, %s346
      %s349 = sphi 0, %s348
      %s363 = sphi 0, %s349
      %s367 = sphi 0, %s367
      %s369 = sphi 0, %s367
      %s370 = sphi 0, %s369
      %s384 = sphi 0, %s370
      %s388 = sphi 0, %s388
      %s390 = sphi 0, %s388
      %s391 = sphi 0, %s390
      %s405 = sphi 0, %s391
      %s409 = sphi 0, %s409
      %s411 = sphi 0, %s409
      %s412 = sphi 0, %s411
      %s426 = sphi 0, %s412
      %s430 = sphi 0, %s430
      %s432 = sphi 0, %s430
      %s433 = sphi 0, %s432
      %s447 = sphi 0, %s433
      %s451 = sphi 0, %s451
      %s453 = sphi 0, %s451
      %s454 = sphi 0, %s453
      %s468 = sphi 0, %s454
      %s472 = sphi 0, %s472
      %s474 = sphi 0, %s472
      %s475 = sphi 0, %s474
      %s489 = sphi 0, %s475
      %s495 = sphi 0, %s497
      %s498 = sphi 0, %s495
      %s499 = sphi 0, %s498
      %s515 = sphi 0, %s499
      %s521 = sphi 0, %s523
      %s524 = sphi 0, %s521
      %s525 = sphi 0, %s524
      %s541 = sphi 0, %s525
      %s547 = sphi 0, %s549
      %s550 = sphi 0, %s547
      %s551 = sphi 0, %s550
      %s567 = sphi 0, %s551
    $region4: #{attention_cnn_forward.1} parent=1 // loop_header_branch
      %42 = sbr.rel (%p40) target = $region8
    $region5: #{attention_cnn_forward.1} parent=1 // loop_body
      %s44 = ssub.s32 %s39, 1
      %s45 = ssub.s32 %s39, 2
      %s46 = sadd.s32 %s39, 1
      %s47 = ssub.s32 %s39, %s46
      %p48 = scmp.eq.s32.totalorder %s47, 0
      %s50 = sadd.s32 %s49, 1
      %s51 = scalar_select %p48, %s49, %s50
      %p54 = pneg %p48
      %p55 = scmp.eq.s32.totalorder %s39, 1
      %p56 = por %p54, %p55
      %p57 = scmp.ne.s32.totalorder %s49, %s52
      %p58 = scmp.eq.s32.totalorder %s39, 0
      %p59 = por %p57, %p58
      %p60 = scmp.ne.s32.totalorder %s49, %s52
      %p61 = scmp.eq.s32.totalorder %s44, 1
      %p62 = por %p60, %p61
      %p63 = scmp.ne.s32.totalorder %s52, %s53
      %p64 = scmp.eq.s32.totalorder %s44, 0
      %p65 = por %p63, %p64
      %p66 = scmp.ne.s32.totalorder %s52, %s53
      %p67 = scmp.eq.s32.totalorder %s45, 1
      %p68 = por %p66, %p67
      %p70 = scmp.ne.s32.totalorder %s53, %s69
      %p71 = scmp.eq.s32.totalorder %s45, 0
      %p72 = por %p70, %p71
      %s74 = sadd.s32 %s73, 1
      %p77 = scmp.eq.s32.totalorder %s39, 1
      %p78 = scmp.ne.s32.totalorder %s73, %s75
      %p79 = scmp.eq.s32.totalorder %s39, 0
      %p80 = por %p78, %p79
      %p81 = scmp.ne.s32.totalorder %s73, %s75
      %p82 = scmp.eq.s32.totalorder %s44, 1
      %p83 = por %p81, %p82
      %p84 = scmp.ne.s32.totalorder %s75, %s76
      %p85 = scmp.eq.s32.totalorder %s44, 0
      %p86 = por %p84, %p85
      %p87 = scmp.ne.s32.totalorder %s75, %s76
      %p88 = scmp.eq.s32.totalorder %s45, 1
      %p89 = por %p87, %p88
      %p91 = scmp.ne.s32.totalorder %s76, %s90
      %p92 = scmp.eq.s32.totalorder %s45, 0
      %p93 = por %p91, %p92
      %s95 = sadd.s32 %s94, 1
      %p98 = scmp.eq.s32.totalorder %s39, 1
      %p99 = scmp.ne.s32.totalorder %s94, %s96
      %p100 = scmp.eq.s32.totalorder %s39, 0
      %p101 = por %p99, %p100
      %p102 = scmp.ne.s32.totalorder %s94, %s96
      %p103 = scmp.eq.s32.totalorder %s44, 1
      %p104 = por %p102, %p103
      %p105 = scmp.ne.s32.totalorder %s96, %s97
      %p106 = scmp.eq.s32.totalorder %s44, 0
      %p107 = por %p105, %p106
      %p108 = scmp.ne.s32.totalorder %s96, %s97
      %p109 = scmp.eq.s32.totalorder %s45, 1
      %p110 = por %p108, %p109
      %p112 = scmp.ne.s32.totalorder %s97, %s111
      %p113 = scmp.eq.s32.totalorder %s45, 0
      %p114 = por %p112, %p113
      %s116 = sadd.s32 %s115, 1
      %p119 = scmp.eq.s32.totalorder %s39, 1
      %p120 = scmp.ne.s32.totalorder %s115, %s117
      %p121 = scmp.eq.s32.totalorder %s39, 0
      %p122 = por %p120, %p121
      %p123 = scmp.ne.s32.totalorder %s115, %s117
      %p124 = scmp.eq.s32.totalorder %s44, 1
      %p125 = por %p123, %p124
      %p126 = scmp.ne.s32.totalorder %s117, %s118
      %p127 = scmp.eq.s32.totalorder %s44, 0
      %p128 = por %p126, %p127
      %p129 = scmp.ne.s32.totalorder %s117, %s118
      %p130 = scmp.eq.s32.totalorder %s45, 1
      %p131 = por %p129, %p130
      %p133 = scmp.ne.s32.totalorder %s118, %s132
      %p134 = scmp.eq.s32.totalorder %s45, 0
      %p135 = por %p133, %p134
      %s137 = sadd.s32 %s136, 1
      %p140 = scmp.eq.s32.totalorder %s39, 1
      %p141 = scmp.ne.s32.totalorder %s136, %s138
      %p142 = scmp.eq.s32.totalorder %s39, 0
      %p143 = por %p141, %p142
      %p144 = scmp.ne.s32.totalorder %s136, %s138
      %p145 = scmp.eq.s32.totalorder %s44, 1
      %p146 = por %p144, %p145
      %p147 = scmp.ne.s32.totalorder %s138, %s139
      %p148 = scmp.eq.s32.totalorder %s44, 0
      %p149 = por %p147, %p148
      %p150 = scmp.ne.s32.totalorder %s138, %s139
      %p151 = scmp.eq.s32.totalorder %s45, 1
      %p152 = por %p150, %p151
      %p154 = scmp.ne.s32.totalorder %s139, %s153
      %p155 = scmp.eq.s32.totalorder %s45, 0
      %p156 = por %p154, %p155
      %s158 = sadd.s32 %s157, 1
      %p161 = scmp.eq.s32.totalorder %s39, 1
      %p162 = scmp.ne.s32.totalorder %s157, %s159
      %p163 = scmp.eq.s32.totalorder %s39, 0
      %p164 = por %p162, %p163
      %p165 = scmp.ne.s32.totalorder %s157, %s159
      %p166 = scmp.eq.s32.totalorder %s44, 1
      %p167 = por %p165, %p166
      %p168 = scmp.ne.s32.totalorder %s159, %s160
      %p169 = scmp.eq.s32.totalorder %s44, 0
      %p170 = por %p168, %p169
      %p171 = scmp.ne.s32.totalorder %s159, %s160
      %p172 = scmp.eq.s32.totalorder %s45, 1
      %p173 = por %p171, %p172
      %p175 = scmp.ne.s32.totalorder %s160, %s174
      %p176 = scmp.eq.s32.totalorder %s45, 0
      %p177 = por %p175, %p176
      %s179 = sadd.s32 %s178, 1
      %p182 = scmp.eq.s32.totalorder %s39, 1
      %p183 = scmp.ne.s32.totalorder %s178, %s180
      %p184 = scmp.eq.s32.totalorder %s39, 0
      %p185 = por %p183, %p184
      %p186 = scmp.ne.s32.totalorder %s178, %s180
      %p187 = scmp.eq.s32.totalorder %s44, 1
      %p188 = por %p186, %p187
      %p189 = scmp.ne.s32.totalorder %s180, %s181
      %p190 = scmp.eq.s32.totalorder %s44, 0
      %p191 = por %p189, %p190
      %p192 = scmp.ne.s32.totalorder %s180, %s181
      %p193 = scmp.eq.s32.totalorder %s45, 1
      %p194 = por %p192, %p193
      %p196 = scmp.ne.s32.totalorder %s181, %s195
      %p197 = scmp.eq.s32.totalorder %s45, 0
      %p198 = por %p196, %p197
      %s200 = sadd.s32 %s199, 1
      %p203 = scmp.eq.s32.totalorder %s39, 1
      %p204 = scmp.ne.s32.totalorder %s199, %s201
      %p205 = scmp.eq.s32.totalorder %s39, 0
      %p206 = por %p204, %p205
      %p207 = scmp.ne.s32.totalorder %s199, %s201
      %p208 = scmp.eq.s32.totalorder %s44, 1
      %p209 = por %p207, %p208
      %p210 = scmp.ne.s32.totalorder %s201, %s202
      %p211 = scmp.eq.s32.totalorder %s44, 0
      %p212 = por %p210, %p211
      %p213 = scmp.ne.s32.totalorder %s201, %s202
      %p214 = scmp.eq.s32.totalorder %s45, 1
      %p215 = por %p213, %p214
      %p217 = scmp.ne.s32.totalorder %s202, %s216
      %p218 = scmp.eq.s32.totalorder %s45, 0
      %p219 = por %p217, %p218
      %s221 = sadd.s32 %s220, 1
      %p224 = scmp.eq.s32.totalorder %s39, 1
      %p225 = scmp.ne.s32.totalorder %s220, %s222
      %p226 = scmp.eq.s32.totalorder %s39, 0
      %p227 = por %p225, %p226
      %p228 = scmp.ne.s32.totalorder %s220, %s222
      %p229 = scmp.eq.s32.totalorder %s44, 1
      %p230 = por %p228, %p229
      %p231 = scmp.ne.s32.totalorder %s222, %s223
      %p232 = scmp.eq.s32.totalorder %s44, 0
      %p233 = por %p231, %p232
      %p234 = scmp.ne.s32.totalorder %s222, %s223
      %p235 = scmp.eq.s32.totalorder %s45, 1
      %p236 = por %p234, %p235
      %p238 = scmp.ne.s32.totalorder %s223, %s237
      %p239 = scmp.eq.s32.totalorder %s45, 0
      %p240 = por %p238, %p239
      %s242 = sadd.s32 %s241, 1
      %p245 = scmp.eq.s32.totalorder %s39, 1
      %p246 = scmp.ne.s32.totalorder %s241, %s243
      %p247 = scmp.eq.s32.totalorder %s39, 0
      %p248 = por %p246, %p247
      %p249 = scmp.ne.s32.totalorder %s241, %s243
      %p250 = scmp.eq.s32.totalorder %s44, 1
      %p251 = por %p249, %p250
      %p252 = scmp.ne.s32.totalorder %s243, %s244
      %p253 = scmp.eq.s32.totalorder %s44, 0
      %p254 = por %p252, %p253
      %p255 = scmp.ne.s32.totalorder %s243, %s244
      %p256 = scmp.eq.s32.totalorder %s45, 1
      %p257 = por %p255, %p256
      %p259 = scmp.ne.s32.totalorder %s244, %s258
      %p260 = scmp.eq.s32.totalorder %s45, 0
      %p261 = por %p259, %p260
      %s263 = sadd.s32 %s262, 1
      %p266 = scmp.eq.s32.totalorder %s39, 1
      %p267 = scmp.ne.s32.totalorder %s262, %s264
      %p268 = scmp.eq.s32.totalorder %s39, 0
      %p269 = por %p267, %p268
      %p270 = scmp.ne.s32.totalorder %s262, %s264
      %p271 = scmp.eq.s32.totalorder %s44, 1
      %p272 = por %p270, %p271
      %p273 = scmp.ne.s32.totalorder %s264, %s265
      %p274 = scmp.eq.s32.totalorder %s44, 0
      %p275 = por %p273, %p274
      %p276 = scmp.ne.s32.totalorder %s264, %s265
      %p277 = scmp.eq.s32.totalorder %s45, 1
      %p278 = por %p276, %p277
      %p280 = scmp.ne.s32.totalorder %s265, %s279
      %p281 = scmp.eq.s32.totalorder %s45, 0
      %p282 = por %p280, %p281
      %s284 = sadd.s32 %s283, 1
      %p287 = scmp.eq.s32.totalorder %s39, 1
      %p288 = scmp.ne.s32.totalorder %s283, %s285
      %p289 = scmp.eq.s32.totalorder %s39, 0
      %p290 = por %p288, %p289
      %p291 = scmp.ne.s32.totalorder %s283, %s285
      %p292 = scmp.eq.s32.totalorder %s44, 1
      %p293 = por %p291, %p292
      %p294 = scmp.ne.s32.totalorder %s285, %s286
      %p295 = scmp.eq.s32.totalorder %s44, 0
      %p296 = por %p294, %p295
      %p297 = scmp.ne.s32.totalorder %s285, %s286
      %p298 = scmp.eq.s32.totalorder %s45, 1
      %p299 = por %p297, %p298
      %p301 = scmp.ne.s32.totalorder %s286, %s300
      %p302 = scmp.eq.s32.totalorder %s45, 0
      %p303 = por %p301, %p302
      %s305 = sadd.s32 %s304, 1
      %p308 = scmp.eq.s32.totalorder %s39, 1
      %p309 = scmp.ne.s32.totalorder %s304, %s306
      %p310 = scmp.eq.s32.totalorder %s39, 0
      %p311 = por %p309, %p310
      %p312 = scmp.ne.s32.totalorder %s304, %s306
      %p313 = scmp.eq.s32.totalorder %s44, 1
      %p314 = por %p312, %p313
      %p315 = scmp.ne.s32.totalorder %s306, %s307
      %p316 = scmp.eq.s32.totalorder %s44, 0
      %p317 = por %p315, %p316
      %p318 = scmp.ne.s32.totalorder %s306, %s307
      %p319 = scmp.eq.s32.totalorder %s45, 1
      %p320 = por %p318, %p319
      %p322 = scmp.ne.s32.totalorder %s307, %s321
      %p323 = scmp.eq.s32.totalorder %s45, 0
      %p324 = por %p322, %p323
      %s326 = sadd.s32 %s325, 1
      %p329 = scmp.eq.s32.totalorder %s39, 1
      %p330 = scmp.ne.s32.totalorder %s325, %s327
      %p331 = scmp.eq.s32.totalorder %s39, 0
      %p332 = por %p330, %p331
      %p333 = scmp.ne.s32.totalorder %s325, %s327
      %p334 = scmp.eq.s32.totalorder %s44, 1
      %p335 = por %p333, %p334
      %p336 = scmp.ne.s32.totalorder %s327, %s328
      %p337 = scmp.eq.s32.totalorder %s44, 0
      %p338 = por %p336, %p337
      %p339 = scmp.ne.s32.totalorder %s327, %s328
      %p340 = scmp.eq.s32.totalorder %s45, 1
      %p341 = por %p339, %p340
      %p343 = scmp.ne.s32.totalorder %s328, %s342
      %p344 = scmp.eq.s32.totalorder %s45, 0
      %p345 = por %p343, %p344
      %s347 = sadd.s32 %s346, 1
      %p350 = scmp.eq.s32.totalorder %s39, 1
      %p351 = scmp.ne.s32.totalorder %s346, %s348
      %p352 = scmp.eq.s32.totalorder %s39, 0
      %p353 = por %p351, %p352
      %p354 = scmp.ne.s32.totalorder %s346, %s348
      %p355 = scmp.eq.s32.totalorder %s44, 1
      %p356 = por %p354, %p355
      %p357 = scmp.ne.s32.totalorder %s348, %s349
      %p358 = scmp.eq.s32.totalorder %s44, 0
      %p359 = por %p357, %p358
      %p360 = scmp.ne.s32.totalorder %s348, %s349
      %p361 = scmp.eq.s32.totalorder %s45, 1
      %p362 = por %p360, %p361
      %p364 = scmp.ne.s32.totalorder %s349, %s363
      %p365 = scmp.eq.s32.totalorder %s45, 0
      %p366 = por %p364, %p365
      %s368 = sadd.s32 %s367, 1
      %p371 = scmp.eq.s32.totalorder %s39, 1
      %p372 = scmp.ne.s32.totalorder %s367, %s369
      %p373 = scmp.eq.s32.totalorder %s39, 0
      %p374 = por %p372, %p373
      %p375 = scmp.ne.s32.totalorder %s367, %s369
      %p376 = scmp.eq.s32.totalorder %s44, 1
      %p377 = por %p375, %p376
      %p378 = scmp.ne.s32.totalorder %s369, %s370
      %p379 = scmp.eq.s32.totalorder %s44, 0
      %p380 = por %p378, %p379
      %p381 = scmp.ne.s32.totalorder %s369, %s370
      %p382 = scmp.eq.s32.totalorder %s45, 1
      %p383 = por %p381, %p382
      %p385 = scmp.ne.s32.totalorder %s370, %s384
      %p386 = scmp.eq.s32.totalorder %s45, 0
      %p387 = por %p385, %p386
      %s389 = sadd.s32 %s388, 1
      %p392 = scmp.eq.s32.totalorder %s39, 1
      %p393 = scmp.ne.s32.totalorder %s388, %s390
      %p394 = scmp.eq.s32.totalorder %s39, 0
      %p395 = por %p393, %p394
      %p396 = scmp.ne.s32.totalorder %s388, %s390
      %p397 = scmp.eq.s32.totalorder %s44, 1
      %p398 = por %p396, %p397
      %p399 = scmp.ne.s32.totalorder %s390, %s391
      %p400 = scmp.eq.s32.totalorder %s44, 0
      %p401 = por %p399, %p400
      %p402 = scmp.ne.s32.totalorder %s390, %s391
      %p403 = scmp.eq.s32.totalorder %s45, 1
      %p404 = por %p402, %p403
      %p406 = scmp.ne.s32.totalorder %s391, %s405
      %p407 = scmp.eq.s32.totalorder %s45, 0
      %p408 = por %p406, %p407
      %s410 = sadd.s32 %s409, 1
      %p413 = scmp.eq.s32.totalorder %s39, 1
      %p414 = scmp.ne.s32.totalorder %s409, %s411
      %p415 = scmp.eq.s32.totalorder %s39, 0
      %p416 = por %p414, %p415
      %p417 = scmp.ne.s32.totalorder %s409, %s411
      %p418 = scmp.eq.s32.totalorder %s44, 1
      %p419 = por %p417, %p418
      %p420 = scmp.ne.s32.totalorder %s411, %s412
      %p421 = scmp.eq.s32.totalorder %s44, 0
      %p422 = por %p420, %p421
      %p423 = scmp.ne.s32.totalorder %s411, %s412
      %p424 = scmp.eq.s32.totalorder %s45, 1
      %p425 = por %p423, %p424
      %p427 = scmp.ne.s32.totalorder %s412, %s426
      %p428 = scmp.eq.s32.totalorder %s45, 0
      %p429 = por %p427, %p428
      %s431 = sadd.s32 %s430, 1
      %p434 = scmp.eq.s32.totalorder %s39, 1
      %p435 = scmp.ne.s32.totalorder %s430, %s432
      %p436 = scmp.eq.s32.totalorder %s39, 0
      %p437 = por %p435, %p436
      %p438 = scmp.ne.s32.totalorder %s430, %s432
      %p439 = scmp.eq.s32.totalorder %s44, 1
      %p440 = por %p438, %p439
      %p441 = scmp.ne.s32.totalorder %s432, %s433
      %p442 = scmp.eq.s32.totalorder %s44, 0
      %p443 = por %p441, %p442
      %p444 = scmp.ne.s32.totalorder %s432, %s433
      %p445 = scmp.eq.s32.totalorder %s45, 1
      %p446 = por %p444, %p445
      %p448 = scmp.ne.s32.totalorder %s433, %s447
      %p449 = scmp.eq.s32.totalorder %s45, 0
      %p450 = por %p448, %p449
      %s452 = sadd.s32 %s451, 1
      %p455 = scmp.eq.s32.totalorder %s39, 1
      %p456 = scmp.ne.s32.totalorder %s451, %s453
      %p457 = scmp.eq.s32.totalorder %s39, 0
      %p458 = por %p456, %p457
      %p459 = scmp.ne.s32.totalorder %s451, %s453
      %p460 = scmp.eq.s32.totalorder %s44, 1
      %p461 = por %p459, %p460
      %p462 = scmp.ne.s32.totalorder %s453, %s454
      %p463 = scmp.eq.s32.totalorder %s44, 0
      %p464 = por %p462, %p463
      %p465 = scmp.ne.s32.totalorder %s453, %s454
      %p466 = scmp.eq.s32.totalorder %s45, 1
      %p467 = por %p465, %p466
      %p469 = scmp.ne.s32.totalorder %s454, %s468
      %p470 = scmp.eq.s32.totalorder %s45, 0
      %p471 = por %p469, %p470
      %s473 = sadd.s32 %s472, 1
      %p476 = scmp.eq.s32.totalorder %s39, 1
      %p477 = scmp.ne.s32.totalorder %s472, %s474
      %p478 = scmp.eq.s32.totalorder %s39, 0
      %p479 = por %p477, %p478
      %p480 = scmp.ne.s32.totalorder %s472, %s474
      %p481 = scmp.eq.s32.totalorder %s44, 1
      %p482 = por %p480, %p481
      %p483 = scmp.ne.s32.totalorder %s474, %s475
      %p484 = scmp.eq.s32.totalorder %s44, 0
      %p485 = por %p483, %p484
      %p486 = scmp.ne.s32.totalorder %s474, %s475
      %p487 = scmp.eq.s32.totalorder %s45, 1
      %p488 = por %p486, %p487
      %p490 = scmp.ne.s32.totalorder %s475, %s489
      %p491 = scmp.eq.s32.totalorder %s45, 0
      %p492 = por %p490, %p491
      %s493 = ssub.s32 %s39, %s46
      %p494 = scmp.eq.s32.totalorder %s493, 0
      %s496 = sadd.s32 %s495, 1
      %s497 = scalar_select %p494, %s495, %s496
      %p500 = pneg %p494
      %p501 = scmp.eq.s32.totalorder %s39, 1
      %p502 = por %p500, %p501
      %p503 = scmp.ne.s32.totalorder %s495, %s498
      %p504 = scmp.eq.s32.totalorder %s39, 0
      %p505 = por %p503, %p504
      %p506 = scmp.ne.s32.totalorder %s495, %s498
      %p507 = scmp.eq.s32.totalorder %s44, 1
      %p508 = por %p506, %p507
      %p509 = scmp.ne.s32.totalorder %s498, %s499
      %p510 = scmp.eq.s32.totalorder %s44, 0
      %p511 = por %p509, %p510
      %p512 = scmp.ne.s32.totalorder %s498, %s499
      %p513 = scmp.eq.s32.totalorder %s45, 1
      %p514 = por %p512, %p513
      %p516 = scmp.ne.s32.totalorder %s499, %s515
      %p517 = scmp.eq.s32.totalorder %s45, 0
      %p518 = por %p516, %p517
      %s519 = ssub.s32 %s39, %s46
      %p520 = scmp.eq.s32.totalorder %s519, 0
      %s522 = sadd.s32 %s521, 1
      %s523 = scalar_select %p520, %s521, %s522
      %p526 = pneg %p520
      %p527 = scmp.eq.s32.totalorder %s39, 1
      %p528 = por %p526, %p527
      %p529 = scmp.ne.s32.totalorder %s521, %s524
      %p530 = scmp.eq.s32.totalorder %s39, 0
      %p531 = por %p529, %p530
      %p532 = scmp.ne.s32.totalorder %s521, %s524
      %p533 = scmp.eq.s32.totalorder %s44, 1
      %p534 = por %p532, %p533
      %p535 = scmp.ne.s32.totalorder %s524, %s525
      %p536 = scmp.eq.s32.totalorder %s44, 0
      %p537 = por %p535, %p536
      %p538 = scmp.ne.s32.totalorder %s524, %s525
      %p539 = scmp.eq.s32.totalorder %s45, 1
      %p540 = por %p538, %p539
      %p542 = scmp.ne.s32.totalorder %s525, %s541
      %p543 = scmp.eq.s32.totalorder %s45, 0
      %p544 = por %p542, %p543
      %s545 = ssub.s32 %s39, %s46
      %p546 = scmp.eq.s32.totalorder %s545, 0
      %s548 = sadd.s32 %s547, 1
      %s549 = scalar_select %p546, %s547, %s548
      %p552 = pneg %p546
      %p553 = scmp.eq.s32.totalorder %s39, 1
      %p554 = por %p552, %p553
      %p555 = scmp.ne.s32.totalorder %s547, %s550
      %p556 = scmp.eq.s32.totalorder %s39, 0
      %p557 = por %p555, %p556
      %p558 = scmp.ne.s32.totalorder %s547, %s550
      %p559 = scmp.eq.s32.totalorder %s44, 1
      %p560 = por %p558, %p559
      %p561 = scmp.ne.s32.totalorder %s550, %s551
      %p562 = scmp.eq.s32.totalorder %s44, 0
      %p563 = por %p561, %p562
      %p564 = scmp.ne.s32.totalorder %s550, %s551
      %p565 = scmp.eq.s32.totalorder %s45, 1
      %p566 = por %p564, %p565
      %p568 = scmp.ne.s32.totalorder %s551, %s567
      %p569 = scmp.eq.s32.totalorder %s45, 0
      %p570 = por %p568, %p569
      %p571 = scmp.le.s32.totalorder 1, %s39
      %p572 = scmp.lt.s32.totalorder %s39, 3
      %p573 = pnand %p571, %p572
      %p574 = pneg %p573
      // Predicated region
      $region9: #{attention_cnn_forward.1} parent=5 // pred_check
        _
      $region10: #{attention_cnn_forward.1} parent=5 // pred_check_branch
        %576 = sbr.rel (%p573) target = $region12
      $region11: #{attention_cnn_forward.1} parent=5 // pred_region
        %s577 = ssub.s32 %s39, 1
        // Predicated region
        $region13: #{attention_cnn_forward.1} parent=11 // pred_check
          %p578 = pneg %p86
        $region14: #{attention_cnn_forward.1} parent=11 // pred_check_branch
          %580 = sbr.rel (%p578) target = $region16
        $region15: #{attention_cnn_forward.1} parent=11 // pred_region
          _
        $region16: #{attention_cnn_forward.1} parent=11 // pred_fallthru
          _
        // Predicated region
        $region17: #{attention_cnn_forward.1} parent=11 // pred_check
          %p581 = pneg %p107
        $region18: #{attention_cnn_forward.1} parent=11 // pred_check_branch
          %583 = sbr.rel (%p581) target = $region20
        $region19: #{attention_cnn_forward.1} parent=11 // pred_region
          _
        $region20: #{attention_cnn_forward.1} parent=11 // pred_fallthru
          _
        // Predicated region
        $region21: #{attention_cnn_forward.1} parent=11 // pred_check
          %p584 = pneg %p128
        $region22: #{attention_cnn_forward.1} parent=11 // pred_check_branch
          %586 = sbr.rel (%p584) target = $region24
        $region23: #{attention_cnn_forward.1} parent=11 // pred_region
          _
        $region24: #{attention_cnn_forward.1} parent=11 // pred_fallthru
          _
        // Predicated region
        $region25: #{attention_cnn_forward.1} parent=11 // pred_check
          %p587 = pneg %p149
        $region26: #{attention_cnn_forward.1} parent=11 // pred_check_branch
          %589 = sbr.rel (%p587) target = $region28
        $region27: #{attention_cnn_forward.1} parent=11 // pred_region
          _
        $region28: #{attention_cnn_forward.1} parent=11 // pred_fallthru
          _
        // Predicated region
        $region29: #{attention_cnn_forward.1} parent=11 // pred_check
          %p590 = pneg %p170
        $region30: #{attention_cnn_forward.1} parent=11 // pred_check_branch
          %592 = sbr.rel (%p590) target = $region32
        $region31: #{attention_cnn_forward.1} parent=11 // pred_region
          %s594 = ssub.s32 9216, 9216
          %595 = vsyncadd [#allocation6], %s594
          %s596 = sshll.u32 [#allocation5], 4
          %s597 = int_to_ptr.vmem [resolvable:$true] %s596
          %602 = dma.hbm_to_vmem [thread:$0]  %s5, 9216, %s597, [#allocation6], 64, 64, 4
        $region32: #{attention_cnn_forward.1} parent=11 // pred_fallthru
          _
        // Predicated region
        $region33: #{attention_cnn_forward.1} parent=11 // pred_check
          %p603 = pneg %p191
        $region34: #{attention_cnn_forward.1} parent=11 // pred_check_branch
          %605 = sbr.rel (%p603) target = $region36
        $region35: #{attention_cnn_forward.1} parent=11 // pred_region
          _
        $region36: #{attention_cnn_forward.1} parent=11 // pred_fallthru
          _
        // Predicated region
        $region37: #{attention_cnn_forward.1} parent=11 // pred_check
          %p606 = pneg %p212
        $region38: #{attention_cnn_forward.1} parent=11 // pred_check_branch
          %608 = sbr.rel (%p606) target = $region40
        $region39: #{attention_cnn_forward.1} parent=11 // pred_region
          %s610 = ssub.s32 9216, 9216
          %611 = vsyncadd [#allocation9], %s610
          %s612 = sshll.u32 [#allocation8], 4
          %s613 = int_to_ptr.vmem [resolvable:$true] %s612
          %618 = dma.hbm_to_vmem [thread:$0]  %s7, 9216, %s613, [#allocation9], 64, 64, 4
        $region40: #{attention_cnn_forward.1} parent=11 // pred_fallthru
          _
        // Predicated region
        $region41: #{attention_cnn_forward.1} parent=11 // pred_check
          %p619 = pneg %p233
        $region42: #{attention_cnn_forward.1} parent=11 // pred_check_branch
          %621 = sbr.rel (%p619) target = $region44
        $region43: #{attention_cnn_forward.1} parent=11 // pred_region
          _
        $region44: #{attention_cnn_forward.1} parent=11 // pred_fallthru
          _
        // Predicated region
        $region45: #{attention_cnn_forward.1} parent=11 // pred_check
          %p622 = pneg %p254
        $region46: #{attention_cnn_forward.1} parent=11 // pred_check_branch
          %624 = sbr.rel (%p622) target = $region48
        $region47: #{attention_cnn_forward.1} parent=11 // pred_region
          %s626 = ssub.s32 9216, 9216
          %627 = vsyncadd [#allocation9], %s626
          %s628 = sshll.u32 [#allocation10], 4
          %s629 = int_to_ptr.vmem [resolvable:$true] %s628
          %634 = dma.hbm_to_vmem [thread:$0]  %s9, 9216, %s629, [#allocation9], 64, 64, 4
        $region48: #{attention_cnn_forward.1} parent=11 // pred_fallthru
          _
        // Predicated region
        $region49: #{attention_cnn_forward.1} parent=11 // pred_check
          %p635 = pneg %p275
        $region50: #{attention_cnn_forward.1} parent=11 // pred_check_branch
          %637 = sbr.rel (%p635) target = $region52
        $region51: #{attention_cnn_forward.1} parent=11 // pred_region
          _
        $region52: #{attention_cnn_forward.1} parent=11 // pred_fallthru
          _
        // Predicated region
        $region53: #{attention_cnn_forward.1} parent=11 // pred_check
          %p638 = pneg %p296
        $region54: #{attention_cnn_forward.1} parent=11 // pred_check_branch
          %640 = sbr.rel (%p638) target = $region56
        $region55: #{attention_cnn_forward.1} parent=11 // pred_region
          _
        $region56: #{attention_cnn_forward.1} parent=11 // pred_fallthru
          _
        // Predicated region
        $region57: #{attention_cnn_forward.1} parent=11 // pred_check
          %p641 = pneg %p317
        $region58: #{attention_cnn_forward.1} parent=11 // pred_check_branch
          %643 = sbr.rel (%p641) target = $region60
        $region59: #{attention_cnn_forward.1} parent=11 // pred_region
          _
        $region60: #{attention_cnn_forward.1} parent=11 // pred_fallthru
          _
        // Predicated region
        $region61: #{attention_cnn_forward.1} parent=11 // pred_check
          %p644 = pneg %p338
        $region62: #{attention_cnn_forward.1} parent=11 // pred_check_branch
          %646 = sbr.rel (%p644) target = $region64
        $region63: #{attention_cnn_forward.1} parent=11 // pred_region
          _
        $region64: #{attention_cnn_forward.1} parent=11 // pred_fallthru
          _
        // Predicated region
        $region65: #{attention_cnn_forward.1} parent=11 // pred_check
          %p647 = pneg %p359
        $region66: #{attention_cnn_forward.1} parent=11 // pred_check_branch
          %649 = sbr.rel (%p647) target = $region68
        $region67: #{attention_cnn_forward.1} parent=11 // pred_region
          _
        $region68: #{attention_cnn_forward.1} parent=11 // pred_fallthru
          _
        // Predicated region
        $region69: #{attention_cnn_forward.1} parent=11 // pred_check
          %p650 = pneg %p380
        $region70: #{attention_cnn_forward.1} parent=11 // pred_check_branch
          %652 = sbr.rel (%p650) target = $region72
        $region71: #{attention_cnn_forward.1} parent=11 // pred_region
          _
        $region72: #{attention_cnn_forward.1} parent=11 // pred_fallthru
          _
        // Predicated region
        $region73: #{attention_cnn_forward.1} parent=11 // pred_check
          %p653 = pneg %p401
        $region74: #{attention_cnn_forward.1} parent=11 // pred_check_branch
          %655 = sbr.rel (%p653) target = $region76
        $region75: #{attention_cnn_forward.1} parent=11 // pred_region
          _
        $region76: #{attention_cnn_forward.1} parent=11 // pred_fallthru
          _
        // Predicated region
        $region77: #{attention_cnn_forward.1} parent=11 // pred_check
          %p656 = pneg %p422
        $region78: #{attention_cnn_forward.1} parent=11 // pred_check_branch
          %658 = sbr.rel (%p656) target = $region80
        $region79: #{attention_cnn_forward.1} parent=11 // pred_region
          %s660 = ssub.s32 8192, 8192
          %661 = vsyncadd [#allocation12], %s660
          %s662 = sshll.u32 [#allocation11], 4
          %s663 = int_to_ptr.vmem [resolvable:$true] %s662
          %668 = dma.hbm_to_vmem [thread:$0]  %s17, 8192, %s663, [#allocation12], 128, 128, 8
        $region80: #{attention_cnn_forward.1} parent=11 // pred_fallthru
          _
        // Predicated region
        $region81: #{attention_cnn_forward.1} parent=11 // pred_check
          %p669 = pneg %p443
        $region82: #{attention_cnn_forward.1} parent=11 // pred_check_branch
          %671 = sbr.rel (%p669) target = $region84
        $region83: #{attention_cnn_forward.1} parent=11 // pred_region
          _
        $region84: #{attention_cnn_forward.1} parent=11 // pred_fallthru
          _
        // Predicated region
        $region85: #{attention_cnn_forward.1} parent=11 // pred_check
          %p672 = pneg %p464
        $region86: #{attention_cnn_forward.1} parent=11 // pred_check_branch
          %674 = sbr.rel (%p672) target = $region88
        $region87: #{attention_cnn_forward.1} parent=11 // pred_region
          _
        $region88: #{attention_cnn_forward.1} parent=11 // pred_fallthru
          _
        // Predicated region
        $region89: #{attention_cnn_forward.1} parent=11 // pred_check
          %p675 = pneg %p485
        $region90: #{attention_cnn_forward.1} parent=11 // pred_check_branch
          %677 = sbr.rel (%p675) target = $region92
        $region91: #{attention_cnn_forward.1} parent=11 // pred_region
          _
        $region92: #{attention_cnn_forward.1} parent=11 // pred_fallthru
          _
      $region12: #{attention_cnn_forward.1} parent=5 // pred_fallthru
        _
      %p678 = scmp.lt.s32.totalorder %s39, 2
      // Predicated region
      $region93: #{attention_cnn_forward.1} parent=5 // pred_check
        %p679 = pneg %p678
      $region94: #{attention_cnn_forward.1} parent=5 // pred_check_branch
        %681 = sbr.rel (%p679) target = $region96
      $region95: #{attention_cnn_forward.1} parent=5 // pred_region
        // Predicated region
        $region97: #{attention_cnn_forward.1} parent=95 // pred_check
          %p682 = pneg %p59
        $region98: #{attention_cnn_forward.1} parent=95 // pred_check_branch
          %684 = sbr.rel (%p682) target = $region100
        $region99: #{attention_cnn_forward.1} parent=95 // pred_region
          %p685 = scmp.lt.s32.totalorder %s39, 1
          %s686 = scalar_select %p685, %s39, 1
          %s687 = smul.addr %s686, 54
          %s688 = smul.addr %s687, 8
          %s689 = scalar_lea.vmem %s0, %s688
        $region100: #{attention_cnn_forward.1} parent=95 // pred_fallthru
          _
      $region96: #{attention_cnn_forward.1} parent=5 // pred_fallthru
        _
      %p690 = scmp.le.s32.totalorder 1, %s39
      %p691 = scmp.lt.s32.totalorder %s39, 3
      %p692 = pnand %p690, %p691
      %p693 = pneg %p692
      // Predicated region
      $region101: #{attention_cnn_forward.1} parent=5 // pred_check
        _
      $region102: #{attention_cnn_forward.1} parent=5 // pred_check_branch
        %695 = sbr.rel (%p692) target = $region104
      $region103: #{attention_cnn_forward.1} parent=5 // pred_region
        %s696 = ssub.s32 %s39, 1
        // Predicated region
        $region105: #{attention_cnn_forward.1} parent=103 // pred_check
          %p697 = pneg %p170
        $region106: #{attention_cnn_forward.1} parent=103 // pred_check_branch
          %699 = sbr.rel (%p697) target = $region108
        $region107: #{attention_cnn_forward.1} parent=103 // pred_region
          %700 = dma.done [#allocation6], 9216
        $region108: #{attention_cnn_forward.1} parent=103 // pred_fallthru
          _
        // Predicated region
        $region109: #{attention_cnn_forward.1} parent=103 // pred_check
          %p701 = pneg %p212
        $region110: #{attention_cnn_forward.1} parent=103 // pred_check_branch
          %703 = sbr.rel (%p701) target = $region112
        $region111: #{attention_cnn_forward.1} parent=103 // pred_region
          %704 = dma.done [#allocation9], 9216
        $region112: #{attention_cnn_forward.1} parent=103 // pred_fallthru
          _
        // Predicated region
        $region113: #{attention_cnn_forward.1} parent=103 // pred_check
          %p705 = pneg %p254
        $region114: #{attention_cnn_forward.1} parent=103 // pred_check_branch
          %707 = sbr.rel (%p705) target = $region116
        $region115: #{attention_cnn_forward.1} parent=103 // pred_region
          %708 = dma.done [#allocation9], 9216
        $region116: #{attention_cnn_forward.1} parent=103 // pred_fallthru
          _
        // Predicated region
        $region117: #{attention_cnn_forward.1} parent=103 // pred_check
          %p709 = pneg %p422
        $region118: #{attention_cnn_forward.1} parent=103 // pred_check_branch
          %711 = sbr.rel (%p709) target = $region120
        $region119: #{attention_cnn_forward.1} parent=103 // pred_region
          %712 = dma.done [#allocation12], 8192
        $region120: #{attention_cnn_forward.1} parent=103 // pred_fallthru
          _
        %p713 = scmp.lt.s32.totalorder %s44, 1
        %s714 = scalar_select %p713, %s44, 1
        %s715 = smul.addr %s714, 54
        %s716 = smul.addr %s715, 8
        %s717 = scalar_lea.vmem %s0, %s716
        %p718 = pneg %p65
        %p719 = pneg %p62
        %p720 = pneg %p86
        %p721 = pneg %p83
        %p722 = pneg %p107
        %p723 = pneg %p104
        %p724 = pneg %p128
        %p725 = pneg %p125
        %p726 = pneg %p149
        %p727 = pneg %p146
        %p728 = pneg %p170
        %p729 = pneg %p167
        %p730 = pneg %p191
        %p731 = pneg %p188
        %p732 = pneg %p212
        %p733 = pneg %p209
        %p734 = pneg %p233
        %p735 = pneg %p230
        %p736 = pneg %p254
        %p737 = pneg %p251
        %p738 = pneg %p275
        %p739 = pneg %p272
        %p740 = pneg %p296
        %p741 = pneg %p293
        %p742 = pneg %p317
        %p743 = pneg %p314
        %p744 = pneg %p338
        %p745 = pneg %p335
        %p746 = pneg %p359
        %p747 = pneg %p356
        %p748 = pneg %p380
        %p749 = pneg %p377
        %p750 = pneg %p401
        %p751 = pneg %p398
        %p752 = pneg %p422
        %p753 = pneg %p419
        %p754 = pneg %p443
        %p755 = pneg %p440
        %p756 = pneg %p464
        %p757 = pneg %p461
        %p758 = pneg %p485
        %p759 = pneg %p482
        %p760 = pneg %p511
        %p761 = pneg %p508
        %s762 = sand.u32 %s498, 1
        %s763 = scalar_lea.sflag [#allocation7], %s762
        %s764 = sand.u32 %s498, 1
        %s765 = smul.addr %s764, 4
        %s766 = scalar_lea.vmem [#allocation13], %s765
        %p767 = pneg %p537
        %p768 = pneg %p534
        %s769 = sand.u32 %s44, 1
        %s770 = scalar_lea.sflag [#allocation15], %s769
        %s771 = sand.u32 %s524, 1
        %s772 = smul.addr %s771, 4
        %s773 = scalar_lea.vmem [#allocation14], %s772
        %p774 = pneg %p563
        %p775 = pneg %p560
        %s776 = sand.u32 %s44, 1
        %s777 = scalar_lea.sflag [#allocation15], %s776
        %s778 = sand.u32 %s550, 1
        %s779 = scalar_lea.vmem [#allocation16], %s778
        %p780 = scmp.lt.s32.totalorder %s44, 1
        %s781 = scalar_select %p780, %s44, 1
        %s782 = smul.addr %s781, 54
        %s783 = smul.addr %s782, 8
        %s784 = scalar_lea.vmem %s0, %s783
        %v786 = vld [vmem:[%s784] sm:$0xff]
        %v787 = vld [vmem:[%s784 + $0x8] sm:$0xff]
        %v788 = vld [vmem:[%s784 + $0x18] sm:$0xff]
        %v789 = vld [vmem:[%s784 + $0x20] sm:$0xff]
        %v790 = vld [vmem:[%s784 + $0x30] sm:$0xff]
        %v791 = vld [vmem:[%s784 + $0x38] sm:$0xff]
        %v792 = vld [vmem:[%s784 + $0x48] sm:$0xff]
        %v793 = vld [vmem:[%s784 + $0x50] sm:$0xff]
        %v794 = vld [vmem:[%s784 + $0x60] sm:$0xff]
        %v795 = vld [vmem:[%s784 + $0x68] sm:$0xff]
        %v796 = vld [vmem:[%s784 + $0x78] sm:$0xff]
        %v797 = vld [vmem:[%s784 + $0x80] sm:$0xff]
        %v798 = vld [vmem:[%s784 + $0x90] sm:$0xff]
        %v799 = vld [vmem:[%s784 + $0x98] sm:$0xff]
        %v800 = vld [vmem:[%s784 + $0xa8] sm:$0xff]
        %v801 = vld [vmem:[%s784 + $0xb0] sm:$0xff]
        %v802 = vld [vmem:[%s784 + $0xc0] sm:$0xff]
        %v803 = vld [vmem:[%s784 + $0xc8] sm:$0xff]
        %v804 = vld [vmem:[%s784 + $0xd8] sm:$0xff]
        %v805 = vld [vmem:[%s784 + $0xe0] sm:$0xff]
        %v806 = vld [vmem:[%s784 + $0xf0] sm:$0xff]
        %v807 = vld [vmem:[%s784 + $0xf8] sm:$0xff]
        %v808 = vld [vmem:[%s784 + $0x108] sm:$0xff]
        %v809 = vld [vmem:[%s784 + $0x110] sm:$0xff]
        %v810 = vld [vmem:[%s784 + $0x120] sm:$0xff]
        %v811 = vld [vmem:[%s784 + $0x128] sm:$0xff]
        %v812 = vld [vmem:[%s784 + $0x138] sm:$0xff]
        %v813 = vld [vmem:[%s784 + $0x140] sm:$0xff]
        %v814 = vld [vmem:[%s784 + $0x150] sm:$0xff]
        %v815 = vld [vmem:[%s784 + $0x158] sm:$0xff]
        %v816 = vld [vmem:[%s784 + $0x168] sm:$0xff]
        %v817 = vld [vmem:[%s784 + $0x170] sm:$0xff]
        %v818 = vpack.c.bf16 %v787, %v786
        %v819 = vpack.c.bf16 %v789, %v788
        %v820 = vpack.c.bf16 %v791, %v790
        %v821 = vpack.c.bf16 %v793, %v792
        %v822 = vpack.c.bf16 %v795, %v794
        %v823 = vpack.c.bf16 %v797, %v796
        %v824 = vpack.c.bf16 %v799, %v798
        %v825 = vpack.c.bf16 %v801, %v800
        %v826 = vpack.c.bf16 %v803, %v802
        %v827 = vpack.c.bf16 %v805, %v804
        %v828 = vpack.c.bf16 %v807, %v806
        %v829 = vpack.c.bf16 %v809, %v808
        %v830 = vpack.c.bf16 %v811, %v810
        %v831 = vpack.c.bf16 %v813, %v812
        %v832 = vpack.c.bf16 %v815, %v814
        %v833 = vpack.c.bf16 %v817, %v816
        %v834 = vld [vmem:[%s1] sm:$0xf]
        %v835 = vld [vmem:[%s1 + $0x4] sm:$0xf]
        %v836 = vld [vmem:[%s1 + $0x8] sm:$0xf]
        %v837 = vld [vmem:[%s1 + $0xc] sm:$0xf]
        %v838 = vld [vmem:[%s1 + $0x10] sm:$0xf]
        %v839 = vld [vmem:[%s1 + $0x14] sm:$0xf]
        %v840 = vld [vmem:[%s1 + $0x18] sm:$0xf]
        %v841 = vld [vmem:[%s1 + $0x1c] sm:$0xf]
        %v842 = vld [vmem:[%s1 + $0x20] sm:$0xf]
        %v843 = vld [vmem:[%s1 + $0x24] sm:$0xf]
        %v844 = vld [vmem:[%s1 + $0x28] sm:$0xf]
        %v845 = vld [vmem:[%s1 + $0x2c] sm:$0xf]
        %v846 = vld [vmem:[%s1 + $0x30] sm:$0xf]
        %v847 = vld [vmem:[%s1 + $0x34] sm:$0xf]
        %v848 = vld [vmem:[%s1 + $0x38] sm:$0xf]
        %v849 = vld [vmem:[%s1 + $0x3c] sm:$0xf]
        %v850 = vld [vmem:[%s784 + $0x1] sm:$0xff]
        %v851 = vld [vmem:[%s784 + $0x9] sm:$0xff]
        %v852 = vld [vmem:[%s784 + $0x19] sm:$0xff]
        %v853 = vld [vmem:[%s784 + $0x21] sm:$0xff]
        %v854 = vld [vmem:[%s784 + $0x31] sm:$0xff]
        %v855 = vld [vmem:[%s784 + $0x39] sm:$0xff]
        %v856 = vld [vmem:[%s784 + $0x49] sm:$0xff]
        %v857 = vld [vmem:[%s784 + $0x51] sm:$0xff]
        %v858 = vld [vmem:[%s784 + $0x61] sm:$0xff]
        %v859 = vld [vmem:[%s784 + $0x69] sm:$0xff]
        %v860 = vld [vmem:[%s784 + $0x79] sm:$0xff]
        %v861 = vld [vmem:[%s784 + $0x81] sm:$0xff]
        %v862 = vld [vmem:[%s784 + $0x91] sm:$0xff]
        %v863 = vld [vmem:[%s784 + $0x99] sm:$0xff]
        %v864 = vld [vmem:[%s784 + $0xa9] sm:$0xff]
        %v865 = vld [vmem:[%s784 + $0xb1] sm:$0xff]
        %v866 = vld [vmem:[%s784 + $0xc1] sm:$0xff]
        %v867 = vld [vmem:[%s784 + $0xc9] sm:$0xff]
        %v868 = vld [vmem:[%s784 + $0xd9] sm:$0xff]
        %v869 = vld [vmem:[%s784 + $0xe1] sm:$0xff]
        %v870 = vld [vmem:[%s784 + $0xf1] sm:$0xff]
        %v871 = vld [vmem:[%s784 + $0xf9] sm:$0xff]
        %v872 = vld [vmem:[%s784 + $0x109] sm:$0xff]
        %v873 = vld [vmem:[%s784 + $0x111] sm:$0xff]
        %v874 = vld [vmem:[%s784 + $0x121] sm:$0xff]
        %v875 = vld [vmem:[%s784 + $0x129] sm:$0xff]
        %v876 = vld [vmem:[%s784 + $0x139] sm:$0xff]
        %v877 = vld [vmem:[%s784 + $0x141] sm:$0xff]
        %v878 = vld [vmem:[%s784 + $0x151] sm:$0xff]
        %v879 = vld [vmem:[%s784 + $0x159] sm:$0xff]
        %v880 = vld [vmem:[%s784 + $0x169] sm:$0xff]
        %v881 = vld [vmem:[%s784 + $0x171] sm:$0xff]
        %v882 = vpack.c.bf16 %v851, %v850
        %v883 = vpack.c.bf16 %v853, %v852
        %v884 = vpack.c.bf16 %v855, %v854
        %v885 = vpack.c.bf16 %v857, %v856
        %v886 = vpack.c.bf16 %v859, %v858
        %v887 = vpack.c.bf16 %v861, %v860
        %v888 = vpack.c.bf16 %v863, %v862
        %v889 = vpack.c.bf16 %v865, %v864
        %v890 = vpack.c.bf16 %v867, %v866
        %v891 = vpack.c.bf16 %v869, %v868
        %v892 = vpack.c.bf16 %v871, %v870
        %v893 = vpack.c.bf16 %v873, %v872
        %v894 = vpack.c.bf16 %v875, %v874
        %v895 = vpack.c.bf16 %v877, %v876
        %v896 = vpack.c.bf16 %v879, %v878
        %v897 = vpack.c.bf16 %v881, %v880
        %v898 = vld [vmem:[%s1 + $0x40] sm:$0xf]
        %v899 = vld [vmem:[%s1 + $0x44] sm:$0xf]
        %v900 = vld [vmem:[%s1 + $0x48] sm:$0xf]
        %v901 = vld [vmem:[%s1 + $0x4c] sm:$0xf]
        %v902 = vld [vmem:[%s1 + $0x50] sm:$0xf]
        %v903 = vld [vmem:[%s1 + $0x54] sm:$0xf]
        %v904 = vld [vmem:[%s1 + $0x58] sm:$0xf]
        %v905 = vld [vmem:[%s1 + $0x5c] sm:$0xf]
        %v906 = vld [vmem:[%s1 + $0x60] sm:$0xf]
        %v907 = vld [vmem:[%s1 + $0x64] sm:$0xf]
        %v908 = vld [vmem:[%s1 + $0x68] sm:$0xf]
        %v909 = vld [vmem:[%s1 + $0x6c] sm:$0xf]
        %v910 = vld [vmem:[%s1 + $0x70] sm:$0xf]
        %v911 = vld [vmem:[%s1 + $0x74] sm:$0xf]
        %v912 = vld [vmem:[%s1 + $0x78] sm:$0xf]
        %v913 = vld [vmem:[%s1 + $0x7c] sm:$0xf]
        %v930 = vunpack.c.l.b16 %v898
        %v931 = vunpack.c.l.b16 %v899
        %v932 = vunpack.c.l.b16 %v900
        %v933 = vunpack.c.l.b16 %v901
        %v934 = vunpack.c.l.b16 %v902
        %v935 = vunpack.c.l.b16 %v903
        %v936 = vunpack.c.l.b16 %v904
        %v937 = vunpack.c.l.b16 %v905
        %v938 = vunpack.c.l.b16 %v906
        %v939 = vunpack.c.l.b16 %v907
        %v940 = vunpack.c.l.b16 %v908
        %v941 = vunpack.c.l.b16 %v909
        %v942 = vunpack.c.l.b16 %v910
        %v943 = vunpack.c.l.b16 %v911
        %v944 = vunpack.c.l.b16 %v912
        %v945 = vunpack.c.l.b16 %v913
        %v946 = vpack.c.b16 %v931, %v930
        %v947 = vpack.c.b16 %v933, %v932
        %v948 = vpack.c.b16 %v935, %v934
        %v949 = vpack.c.b16 %v937, %v936
        %v950 = vpack.c.b16 %v939, %v938
        %v951 = vpack.c.b16 %v941, %v940
        %v952 = vpack.c.b16 %v943, %v942
        %v953 = vpack.c.b16 %v945, %v944
        %962 = vmatprep.subr.bf16.mxu0 0
        %963 = vmatpush1.bf16.msra.mxu0 %v953
        %964 = vmatprep.subr.bf16.mxu0 0
        %965 = vmatpush1.bf16.msra.mxu0 %v952
        %966 = vmatprep.subr.bf16.mxu0 0
        %967 = vmatpush1.bf16.msra.mxu0 %v951
        %968 = vmatprep.subr.bf16.mxu0 0
        %969 = vmatpush1.bf16.msra.mxu0 %v950
        %970 = vmatprep.subr.bf16.mxu0 0
        %971 = vmatpush1.bf16.msra.mxu0 %v949
        %972 = vmatprep.subr.bf16.mxu0 0
        %973 = vmatpush1.bf16.msra.mxu0 %v948
        %974 = vmatprep.subr.bf16.mxu0 0
        %975 = vmatpush1.bf16.msra.mxu0 %v947
        %976 = vmatprep.subr.bf16.mxu0 0
        %977 = vmatpush1.bf16.msra.mxu0 %v946
        %978 = vmatprep.subr.bf16.mxu0 0
        %979 = vmatpush2.bf16.msra.mxu0 0
        %980 = vmatprep.subr.bf16.mxu0 0
        %981 = vmatpush2.bf16.msra.mxu0 0
        %982 = vmatprep.subr.bf16.mxu0 0
        %983 = vmatpush2.bf16.msra.mxu0 0
        %984 = vmatprep.subr.bf16.mxu0 0
        %985 = vmatpush2.bf16.msra.mxu0 0
        %986 = vmatprep.subr.bf16.mxu0 0
        %987 = vmatpush2.bf16.msra.mxu0 0
        %988 = vmatprep.subr.bf16.mxu0 0
        %989 = vmatpush2.bf16.msra.mxu0 0
        %990 = vmatprep.subr.bf16.mxu0 0
        %991 = vmatpush2.bf16.msra.mxu0 0
        %992 = vmatprep.subr.bf16.mxu0 0
        %993 = vmatpush2.bf16.msra.mxu0 0
        %994 = vmatprep.mubr.bf16.mxu0 0
        %995 = vmatmul.mubr.bf16.gmra.mxu0 %v882
        %v996 = vpop.f32.mrf.mxu0
        %v997 = vadd.f32 0.0, %v996
        %v998 = vpop.f32.mrf.mxu0
        %v999 = vpop.f32.mrf.mxu0
        %v1000 = vadd.f32 0.0, %v999
        %v1001 = vpop.f32.mrf.mxu0
        %1002 = vmatprep.mubr.bf16.mxu0 0
        %1003 = vmatmul.mubr.bf16.gmra.mxu0 %v883
        %v1004 = vpop.f32.mrf.mxu0
        %v1005 = vadd.f32 0.0, %v1004
        %v1006 = vpop.f32.mrf.mxu0
        %v1007 = vpop.f32.mrf.mxu0
        %v1008 = vadd.f32 0.0, %v1007
        %v1009 = vpop.f32.mrf.mxu0
        %1010 = vmatprep.mubr.bf16.mxu0 0
        %1011 = vmatmul.mubr.bf16.gmra.mxu0 %v884
        %v1012 = vpop.f32.mrf.mxu0
        %v1013 = vadd.f32 0.0, %v1012
        %v1014 = vpop.f32.mrf.mxu0
        %v1015 = vpop.f32.mrf.mxu0
        %v1016 = vadd.f32 0.0, %v1015
        %v1017 = vpop.f32.mrf.mxu0
        %1018 = vmatprep.mubr.bf16.mxu0 0
        %1019 = vmatmul.mubr.bf16.gmra.mxu0 %v885
        %v1020 = vpop.f32.mrf.mxu0
        %v1021 = vadd.f32 0.0, %v1020
        %v1022 = vpop.f32.mrf.mxu0
        %v1023 = vpop.f32.mrf.mxu0
        %v1024 = vadd.f32 0.0, %v1023
        %v1025 = vpop.f32.mrf.mxu0
        %1026 = vmatprep.mubr.bf16.mxu0 0
        %1027 = vmatmul.mubr.bf16.gmra.mxu0 %v886
        %v1028 = vpop.f32.mrf.mxu0
        %v1029 = vadd.f32 0.0, %v1028
        %v1030 = vpop.f32.mrf.mxu0
        %v1031 = vpop.f32.mrf.mxu0
        %v1032 = vadd.f32 0.0, %v1031
        %v1033 = vpop.f32.mrf.mxu0
        %1034 = vmatprep.mubr.bf16.mxu0 0
        %1035 = vmatmul.mubr.bf16.gmra.mxu0 %v887
        %v1036 = vpop.f32.mrf.mxu0
        %v1037 = vadd.f32 0.0, %v1036
        %v1038 = vpop.f32.mrf.mxu0
        %v1039 = vpop.f32.mrf.mxu0
        %v1040 = vadd.f32 0.0, %v1039
        %v1041 = vpop.f32.mrf.mxu0
        %1042 = vmatprep.mubr.bf16.mxu0 0
        %1043 = vmatmul.mubr.bf16.gmra.mxu0 %v888
        %v1044 = vpop.f32.mrf.mxu0
        %v1045 = vadd.f32 0.0, %v1044
        %v1046 = vpop.f32.mrf.mxu0
        %v1047 = vpop.f32.mrf.mxu0
        %v1048 = vadd.f32 0.0, %v1047
        %v1049 = vpop.f32.mrf.mxu0
        %1050 = vmatprep.mubr.bf16.mxu0 0
        %1051 = vmatmul.mubr.bf16.gmra.mxu0 %v889
        %v1052 = vpop.f32.mrf.mxu0
        %v1053 = vadd.f32 0.0, %v1052
        %v1054 = vpop.f32.mrf.mxu0
        %v1055 = vpop.f32.mrf.mxu0
        %v1056 = vadd.f32 0.0, %v1055
        %v1057 = vpop.f32.mrf.mxu0
        %1058 = vmatprep.mubr.bf16.mxu0 0
        %1059 = vmatmul.mubr.bf16.gmra.mxu0 %v890
        %v1060 = vpop.f32.mrf.mxu0
        %v1061 = vadd.f32 0.0, %v1060
        %v1062 = vpop.f32.mrf.mxu0
        %v1063 = vpop.f32.mrf.mxu0
        %v1064 = vadd.f32 0.0, %v1063
        %v1065 = vpop.f32.mrf.mxu0
        %1066 = vmatprep.mubr.bf16.mxu0 0
        %1067 = vmatmul.mubr.bf16.gmra.mxu0 %v891
        %v1068 = vpop.f32.mrf.mxu0
        %v1069 = vadd.f32 0.0, %v1068
        %v1070 = vpop.f32.mrf.mxu0
        %v1071 = vpop.f32.mrf.mxu0
        %v1072 = vadd.f32 0.0, %v1071
        %v1073 = vpop.f32.mrf.mxu0
        %1074 = vmatprep.mubr.bf16.mxu0 0
        %1075 = vmatmul.mubr.bf16.gmra.mxu0 %v892
        %v1076 = vpop.f32.mrf.mxu0
        %v1077 = vadd.f32 0.0, %v1076
        %v1078 = vpop.f32.mrf.mxu0
        %v1079 = vpop.f32.mrf.mxu0
        %v1080 = vadd.f32 0.0, %v1079
        %v1081 = vpop.f32.mrf.mxu0
        %1082 = vmatprep.mubr.bf16.mxu0 0
        %1083 = vmatmul.mubr.bf16.gmra.mxu0 %v893
        %v1084 = vpop.f32.mrf.mxu0
        %v1085 = vadd.f32 0.0, %v1084
        %v1086 = vpop.f32.mrf.mxu0
        %v1087 = vpop.f32.mrf.mxu0
        %v1088 = vadd.f32 0.0, %v1087
        %v1089 = vpop.f32.mrf.mxu0
        %1090 = vmatprep.mubr.bf16.mxu0 0
        %1091 = vmatmul.mubr.bf16.gmra.mxu0 %v894
        %v1092 = vpop.f32.mrf.mxu0
        %v1093 = vadd.f32 0.0, %v1092
        %v1094 = vpop.f32.mrf.mxu0
        %v1095 = vpop.f32.mrf.mxu0
        %v1096 = vadd.f32 0.0, %v1095
        %v1097 = vpop.f32.mrf.mxu0
        %1098 = vmatprep.mubr.bf16.mxu0 0
        %1099 = vmatmul.mubr.bf16.gmra.mxu0 %v895
        %v1100 = vpop.f32.mrf.mxu0
        %v1101 = vadd.f32 0.0, %v1100
        %v1102 = vpop.f32.mrf.mxu0
        %v1103 = vpop.f32.mrf.mxu0
        %v1104 = vadd.f32 0.0, %v1103
        %v1105 = vpop.f32.mrf.mxu0
        %1106 = vmatprep.mubr.bf16.mxu0 0
        %1107 = vmatmul.mubr.bf16.gmra.mxu0 %v896
        %v1108 = vpop.f32.mrf.mxu0
        %v1109 = vadd.f32 0.0, %v1108
        %v1110 = vpop.f32.mrf.mxu0
        %v1111 = vpop.f32.mrf.mxu0
        %v1112 = vadd.f32 0.0, %v1111
        %v1113 = vpop.f32.mrf.mxu0
        %1114 = vmatprep.mubr.bf16.mxu0 0
        %1115 = vmatmul.mubr.bf16.gmra.mxu0 %v897
        %v1116 = vpop.f32.mrf.mxu0
        %v1117 = vadd.f32 0.0, %v1116
        %v1118 = vpop.f32.mrf.mxu0
        %v1119 = vpop.f32.mrf.mxu0
        %v1120 = vadd.f32 0.0, %v1119
        %v1121 = vpop.f32.mrf.mxu0
        %1122 = vdwg.mxu0
        %v1139 = vunpack.c.l.b16 %v834
        %v1140 = vunpack.c.l.b16 %v835
        %v1141 = vunpack.c.l.b16 %v836
        %v1142 = vunpack.c.l.b16 %v837
        %v1143 = vunpack.c.l.b16 %v838
        %v1144 = vunpack.c.l.b16 %v839
        %v1145 = vunpack.c.l.b16 %v840
        %v1146 = vunpack.c.l.b16 %v841
        %v1147 = vunpack.c.l.b16 %v842
        %v1148 = vunpack.c.l.b16 %v843
        %v1149 = vunpack.c.l.b16 %v844
        %v1150 = vunpack.c.l.b16 %v845
        %v1151 = vunpack.c.l.b16 %v846
        %v1152 = vunpack.c.l.b16 %v847
        %v1153 = vunpack.c.l.b16 %v848
        %v1154 = vunpack.c.l.b16 %v849
        %v1155 = vpack.c.b16 %v1140, %v1139
        %v1156 = vpack.c.b16 %v1142, %v1141
        %v1157 = vpack.c.b16 %v1144, %v1143
        %v1158 = vpack.c.b16 %v1146, %v1145
        %v1159 = vpack.c.b16 %v1148, %v1147
        %v1160 = vpack.c.b16 %v1150, %v1149
        %v1161 = vpack.c.b16 %v1152, %v1151
        %v1162 = vpack.c.b16 %v1154, %v1153
        %1171 = vmatprep.subr.bf16.mxu0 0
        %1172 = vmatpush1.bf16.msra.mxu0 %v1162
        %1173 = vmatprep.subr.bf16.mxu0 0
        %1174 = vmatpush1.bf16.msra.mxu0 %v1161
        %1175 = vmatprep.subr.bf16.mxu0 0
        %1176 = vmatpush1.bf16.msra.mxu0 %v1160
        %1177 = vmatprep.subr.bf16.mxu0 0
        %1178 = vmatpush1.bf16.msra.mxu0 %v1159
        %1179 = vmatprep.subr.bf16.mxu0 0
        %1180 = vmatpush1.bf16.msra.mxu0 %v1158
        %1181 = vmatprep.subr.bf16.mxu0 0
        %1182 = vmatpush1.bf16.msra.mxu0 %v1157
        %1183 = vmatprep.subr.bf16.mxu0 0
        %1184 = vmatpush1.bf16.msra.mxu0 %v1156
        %1185 = vmatprep.subr.bf16.mxu0 0
        %1186 = vmatpush1.bf16.msra.mxu0 %v1155
        %1187 = vmatprep.subr.bf16.mxu0 0
        %1188 = vmatpush2.bf16.msra.mxu0 0
        %1189 = vmatprep.subr.bf16.mxu0 0
        %1190 = vmatpush2.bf16.msra.mxu0 0
        %1191 = vmatprep.subr.bf16.mxu0 0
        %1192 = vmatpush2.bf16.msra.mxu0 0
        %1193 = vmatprep.subr.bf16.mxu0 0
        %1194 = vmatpush2.bf16.msra.mxu0 0
        %1195 = vmatprep.subr.bf16.mxu0 0
        %1196 = vmatpush2.bf16.msra.mxu0 0
        %1197 = vmatprep.subr.bf16.mxu0 0
        %1198 = vmatpush2.bf16.msra.mxu0 0
        %1199 = vmatprep.subr.bf16.mxu0 0
        %1200 = vmatpush2.bf16.msra.mxu0 0
        %1201 = vmatprep.subr.bf16.mxu0 0
        %1202 = vmatpush2.bf16.msra.mxu0 0
        %1203 = vmatprep.mubr.bf16.mxu0 0
        %1204 = vmatmul.mubr.bf16.gmra.mxu0 %v818
        %v1205 = vpop.f32.mrf.mxu0
        %v1206 = vadd.f32 %v997, %v1205
        %v1207 = vpop.f32.mrf.mxu0
        %v1208 = vpop.f32.mrf.mxu0
        %v1209 = vadd.f32 %v1000, %v1208
        %v1210 = vpop.f32.mrf.mxu0
        %1211 = vmatprep.mubr.bf16.mxu0 0
        %1212 = vmatmul.mubr.bf16.gmra.mxu0 %v819
        %v1213 = vpop.f32.mrf.mxu0
        %v1214 = vadd.f32 %v1005, %v1213
        %v1215 = vpop.f32.mrf.mxu0
        %v1216 = vpop.f32.mrf.mxu0
        %v1217 = vadd.f32 %v1008, %v1216
        %v1218 = vpop.f32.mrf.mxu0
        %1219 = vmatprep.mubr.bf16.mxu0 0
        %1220 = vmatmul.mubr.bf16.gmra.mxu0 %v820
        %v1221 = vpop.f32.mrf.mxu0
        %v1222 = vadd.f32 %v1013, %v1221
        %v1223 = vpop.f32.mrf.mxu0
        %v1224 = vpop.f32.mrf.mxu0
        %v1225 = vadd.f32 %v1016, %v1224
        %v1226 = vpop.f32.mrf.mxu0
        %1227 = vmatprep.mubr.bf16.mxu0 0
        %1228 = vmatmul.mubr.bf16.gmra.mxu0 %v821
        %v1229 = vpop.f32.mrf.mxu0
        %v1230 = vadd.f32 %v1021, %v1229
        %v1231 = vpop.f32.mrf.mxu0
        %v1232 = vpop.f32.mrf.mxu0
        %v1233 = vadd.f32 %v1024, %v1232
        %v1234 = vpop.f32.mrf.mxu0
        %1235 = vmatprep.mubr.bf16.mxu0 0
        %1236 = vmatmul.mubr.bf16.gmra.mxu0 %v822
        %v1237 = vpop.f32.mrf.mxu0
        %v1238 = vadd.f32 %v1029, %v1237
        %v1239 = vpop.f32.mrf.mxu0
        %v1240 = vpop.f32.mrf.mxu0
        %v1241 = vadd.f32 %v1032, %v1240
        %v1242 = vpop.f32.mrf.mxu0
        %1243 = vmatprep.mubr.bf16.mxu0 0
        %1244 = vmatmul.mubr.bf16.gmra.mxu0 %v823
        %v1245 = vpop.f32.mrf.mxu0
        %v1246 = vadd.f32 %v1037, %v1245
        %v1247 = vpop.f32.mrf.mxu0
        %v1248 = vpop.f32.mrf.mxu0
        %v1249 = vadd.f32 %v1040, %v1248
        %v1250 = vpop.f32.mrf.mxu0
        %1251 = vmatprep.mubr.bf16.mxu0 0
        %1252 = vmatmul.mubr.bf16.gmra.mxu0 %v824
        %v1253 = vpop.f32.mrf.mxu0
        %v1254 = vadd.f32 %v1045, %v1253
        %v1255 = vpop.f32.mrf.mxu0
        %v1256 = vpop.f32.mrf.mxu0
        %v1257 = vadd.f32 %v1048, %v1256
        %v1258 = vpop.f32.mrf.mxu0
        %1259 = vmatprep.mubr.bf16.mxu0 0
        %1260 = vmatmul.mubr.bf16.gmra.mxu0 %v825
        %v1261 = vpop.f32.mrf.mxu0
        %v1262 = vadd.f32 %v1053, %v1261
        %v1263 = vpop.f32.mrf.mxu0
        %v1264 = vpop.f32.mrf.mxu0
        %v1265 = vadd.f32 %v1056, %v1264
        %v1266 = vpop.f32.mrf.mxu0
        %1267 = vmatprep.mubr.bf16.mxu0 0
        %1268 = vmatmul.mubr.bf16.gmra.mxu0 %v826
        %v1269 = vpop.f32.mrf.mxu0
        %v1270 = vadd.f32 %v1061, %v1269
        %v1271 = vpop.f32.mrf.mxu0
        %v1272 = vpop.f32.mrf.mxu0
        %v1273 = vadd.f32 %v1064, %v1272
        %v1274 = vpop.f32.mrf.mxu0
        %1275 = vmatprep.mubr.bf16.mxu0 0
        %1276 = vmatmul.mubr.bf16.gmra.mxu0 %v827
        %v1277 = vpop.f32.mrf.mxu0
        %v1278 = vadd.f32 %v1069, %v1277
        %v1279 = vpop.f32.mrf.mxu0
        %v1280 = vpop.f32.mrf.mxu0
        %v1281 = vadd.f32 %v1072, %v1280
        %v1282 = vpop.f32.mrf.mxu0
        %1283 = vmatprep.mubr.bf16.mxu0 0
        %1284 = vmatmul.mubr.bf16.gmra.mxu0 %v828
        %v1285 = vpop.f32.mrf.mxu0
        %v1286 = vadd.f32 %v1077, %v1285
        %v1287 = vpop.f32.mrf.mxu0
        %v1288 = vpop.f32.mrf.mxu0
        %v1289 = vadd.f32 %v1080, %v1288
        %v1290 = vpop.f32.mrf.mxu0
        %1291 = vmatprep.mubr.bf16.mxu0 0
        %1292 = vmatmul.mubr.bf16.gmra.mxu0 %v829
        %v1293 = vpop.f32.mrf.mxu0
        %v1294 = vadd.f32 %v1085, %v1293
        %v1295 = vpop.f32.mrf.mxu0
        %v1296 = vpop.f32.mrf.mxu0
        %v1297 = vadd.f32 %v1088, %v1296
        %v1298 = vpop.f32.mrf.mxu0
        %1299 = vmatprep.mubr.bf16.mxu0 0
        %1300 = vmatmul.mubr.bf16.gmra.mxu0 %v830
        %v1301 = vpop.f32.mrf.mxu0
        %v1302 = vadd.f32 %v1093, %v1301
        %v1303 = vpop.f32.mrf.mxu0
        %v1304 = vpop.f32.mrf.mxu0
        %v1305 = vadd.f32 %v1096, %v1304
        %v1306 = vpop.f32.mrf.mxu0
        %1307 = vmatprep.mubr.bf16.mxu0 0
        %1308 = vmatmul.mubr.bf16.gmra.mxu0 %v831
        %v1309 = vpop.f32.mrf.mxu0
        %v1310 = vadd.f32 %v1101, %v1309
        %v1311 = vpop.f32.mrf.mxu0
        %v1312 = vpop.f32.mrf.mxu0
        %v1313 = vadd.f32 %v1104, %v1312
        %v1314 = vpop.f32.mrf.mxu0
        %1315 = vmatprep.mubr.bf16.mxu0 0
        %1316 = vmatmul.mubr.bf16.gmra.mxu0 %v832
        %v1317 = vpop.f32.mrf.mxu0
        %v1318 = vadd.f32 %v1109, %v1317
        %v1319 = vpop.f32.mrf.mxu0
        %v1320 = vpop.f32.mrf.mxu0
        %v1321 = vadd.f32 %v1112, %v1320
        %v1322 = vpop.f32.mrf.mxu0
        %1323 = vmatprep.mubr.bf16.mxu0 0
        %1324 = vmatmul.mubr.bf16.gmra.mxu0 %v833
        %v1325 = vpop.f32.mrf.mxu0
        %v1326 = vadd.f32 %v1117, %v1325
        %v1327 = vpop.f32.mrf.mxu0
        %v1328 = vpop.f32.mrf.mxu0
        %v1329 = vadd.f32 %v1120, %v1328
        %v1330 = vpop.f32.mrf.mxu0
        %1331 = vdwg.mxu0
        %v1332 = vld [vmem:[%s784 + $0x2] sm:$0xff]
        %v1333 = vld [vmem:[%s784 + $0xa] sm:$0xff]
        %v1334 = vld [vmem:[%s784 + $0x1a] sm:$0xff]
        %v1335 = vld [vmem:[%s784 + $0x22] sm:$0xff]
        %v1336 = vld [vmem:[%s784 + $0x32] sm:$0xff]
        %v1337 = vld [vmem:[%s784 + $0x3a] sm:$0xff]
        %v1338 = vld [vmem:[%s784 + $0x4a] sm:$0xff]
        %v1339 = vld [vmem:[%s784 + $0x52] sm:$0xff]
        %v1340 = vld [vmem:[%s784 + $0x62] sm:$0xff]
        %v1341 = vld [vmem:[%s784 + $0x6a] sm:$0xff]
        %v1342 = vld [vmem:[%s784 + $0x7a] sm:$0xff]
        %v1343 = vld [vmem:[%s784 + $0x82] sm:$0xff]
        %v1344 = vld [vmem:[%s784 + $0x92] sm:$0xff]
        %v1345 = vld [vmem:[%s784 + $0x9a] sm:$0xff]
        %v1346 = vld [vmem:[%s784 + $0xaa] sm:$0xff]
        %v1347 = vld [vmem:[%s784 + $0xb2] sm:$0xff]
        %v1348 = vld [vmem:[%s784 + $0xc2] sm:$0xff]
        %v1349 = vld [vmem:[%s784 + $0xca] sm:$0xff]
        %v1350 = vld [vmem:[%s784 + $0xda] sm:$0xff]
        %v1351 = vld [vmem:[%s784 + $0xe2] sm:$0xff]
        %v1352 = vld [vmem:[%s784 + $0xf2] sm:$0xff]
        %v1353 = vld [vmem:[%s784 + $0xfa] sm:$0xff]
        %v1354 = vld [vmem:[%s784 + $0x10a] sm:$0xff]
        %v1355 = vld [vmem:[%s784 + $0x112] sm:$0xff]
        %v1356 = vld [vmem:[%s784 + $0x122] sm:$0xff]
        %v1357 = vld [vmem:[%s784 + $0x12a] sm:$0xff]
        %v1358 = vld [vmem:[%s784 + $0x13a] sm:$0xff]
        %v1359 = vld [vmem:[%s784 + $0x142] sm:$0xff]
        %v1360 = vld [vmem:[%s784 + $0x152] sm:$0xff]
        %v1361 = vld [vmem:[%s784 + $0x15a] sm:$0xff]
        %v1362 = vld [vmem:[%s784 + $0x16a] sm:$0xff]
        %v1363 = vld [vmem:[%s784 + $0x172] sm:$0xff]
        %v1364 = vpack.c.bf16 %v1333, %v1332
        %v1365 = vpack.c.bf16 %v1335, %v1334
        %v1366 = vpack.c.bf16 %v1337, %v1336
        %v1367 = vpack.c.bf16 %v1339, %v1338
        %v1368 = vpack.c.bf16 %v1341, %v1340
        %v1369 = vpack.c.bf16 %v1343, %v1342
        %v1370 = vpack.c.bf16 %v1345, %v1344
        %v1371 = vpack.c.bf16 %v1347, %v1346
        %v1372 = vpack.c.bf16 %v1349, %v1348
        %v1373 = vpack.c.bf16 %v1351, %v1350
        %v1374 = vpack.c.bf16 %v1353, %v1352
        %v1375 = vpack.c.bf16 %v1355, %v1354
        %v1376 = vpack.c.bf16 %v1357, %v1356
        %v1377 = vpack.c.bf16 %v1359, %v1358
        %v1378 = vpack.c.bf16 %v1361, %v1360
        %v1379 = vpack.c.bf16 %v1363, %v1362
        %v1380 = vld [vmem:[%s1 + $0x80] sm:$0xf]
        %v1381 = vld [vmem:[%s1 + $0x84] sm:$0xf]
        %v1382 = vld [vmem:[%s1 + $0x88] sm:$0xf]
        %v1383 = vld [vmem:[%s1 + $0x8c] sm:$0xf]
        %v1384 = vld [vmem:[%s1 + $0x90] sm:$0xf]
        %v1385 = vld [vmem:[%s1 + $0x94] sm:$0xf]
        %v1386 = vld [vmem:[%s1 + $0x98] sm:$0xf]
        %v1387 = vld [vmem:[%s1 + $0x9c] sm:$0xf]
        %v1388 = vld [vmem:[%s1 + $0xa0] sm:$0xf]
        %v1389 = vld [vmem:[%s1 + $0xa4] sm:$0xf]
        %v1390 = vld [vmem:[%s1 + $0xa8] sm:$0xf]
        %v1391 = vld [vmem:[%s1 + $0xac] sm:$0xf]
        %v1392 = vld [vmem:[%s1 + $0xb0] sm:$0xf]
        %v1393 = vld [vmem:[%s1 + $0xb4] sm:$0xf]
        %v1394 = vld [vmem:[%s1 + $0xb8] sm:$0xf]
        %v1395 = vld [vmem:[%s1 + $0xbc] sm:$0xf]
        %v1412 = vunpack.c.l.b16 %v1380
        %v1413 = vunpack.c.l.b16 %v1381
        %v1414 = vunpack.c.l.b16 %v1382
        %v1415 = vunpack.c.l.b16 %v1383
        %v1416 = vunpack.c.l.b16 %v1384
        %v1417 = vunpack.c.l.b16 %v1385
        %v1418 = vunpack.c.l.b16 %v1386
        %v1419 = vunpack.c.l.b16 %v1387
        %v1420 = vunpack.c.l.b16 %v1388
        %v1421 = vunpack.c.l.b16 %v1389
        %v1422 = vunpack.c.l.b16 %v1390
        %v1423 = vunpack.c.l.b16 %v1391
        %v1424 = vunpack.c.l.b16 %v1392
        %v1425 = vunpack.c.l.b16 %v1393
        %v1426 = vunpack.c.l.b16 %v1394
        %v1427 = vunpack.c.l.b16 %v1395
        %v1428 = vpack.c.b16 %v1413, %v1412
        %v1429 = vpack.c.b16 %v1415, %v1414
        %v1430 = vpack.c.b16 %v1417, %v1416
        %v1431 = vpack.c.b16 %v1419, %v1418
        %v1432 = vpack.c.b16 %v1421, %v1420
        %v1433 = vpack.c.b16 %v1423, %v1422
        %v1434 = vpack.c.b16 %v1425, %v1424
        %v1435 = vpack.c.b16 %v1427, %v1426
        %1444 = vmatprep.subr.bf16.mxu0 0
        %1445 = vmatpush1.bf16.msra.mxu0 %v1435
        %1446 = vmatprep.subr.bf16.mxu0 0
        %1447 = vmatpush1.bf16.msra.mxu0 %v1434
        %1448 = vmatprep.subr.bf16.mxu0 0
        %1449 = vmatpush1.bf16.msra.mxu0 %v1433
        %1450 = vmatprep.subr.bf16.mxu0 0
        %1451 = vmatpush1.bf16.msra.mxu0 %v1432
        %1452 = vmatprep.subr.bf16.mxu0 0
        %1453 = vmatpush1.bf16.msra.mxu0 %v1431
        %1454 = vmatprep.subr.bf16.mxu0 0
        %1455 = vmatpush1.bf16.msra.mxu0 %v1430
        %1456 = vmatprep.subr.bf16.mxu0 0
        %1457 = vmatpush1.bf16.msra.mxu0 %v1429
        %1458 = vmatprep.subr.bf16.mxu0 0
        %1459 = vmatpush1.bf16.msra.mxu0 %v1428
        %1460 = vmatprep.subr.bf16.mxu0 0
        %1461 = vmatpush2.bf16.msra.mxu0 0
        %1462 = vmatprep.subr.bf16.mxu0 0
        %1463 = vmatpush2.bf16.msra.mxu0 0
        %1464 = vmatprep.subr.bf16.mxu0 0
        %1465 = vmatpush2.bf16.msra.mxu0 0
        %1466 = vmatprep.subr.bf16.mxu0 0
        %1467 = vmatpush2.bf16.msra.mxu0 0
        %1468 = vmatprep.subr.bf16.mxu0 0
        %1469 = vmatpush2.bf16.msra.mxu0 0
        %1470 = vmatprep.subr.bf16.mxu0 0
        %1471 = vmatpush2.bf16.msra.mxu0 0
        %1472 = vmatprep.subr.bf16.mxu0 0
        %1473 = vmatpush2.bf16.msra.mxu0 0
        %1474 = vmatprep.subr.bf16.mxu0 0
        %1475 = vmatpush2.bf16.msra.mxu0 0
        %1476 = vmatprep.mubr.bf16.mxu0 0
        %1477 = vmatmul.mubr.bf16.gmra.mxu0 %v1364
        %v1478 = vpop.f32.mrf.mxu0
        %v1479 = vadd.f32 0.0, %v1478
        %v1480 = vpop.f32.mrf.mxu0
        %v1481 = vpop.f32.mrf.mxu0
        %v1482 = vadd.f32 0.0, %v1481
        %v1483 = vpop.f32.mrf.mxu0
        %1484 = vmatprep.mubr.bf16.mxu0 0
        %1485 = vmatmul.mubr.bf16.gmra.mxu0 %v1365
        %v1486 = vpop.f32.mrf.mxu0
        %v1487 = vadd.f32 0.0, %v1486
        %v1488 = vpop.f32.mrf.mxu0
        %v1489 = vpop.f32.mrf.mxu0
        %v1490 = vadd.f32 0.0, %v1489
        %v1491 = vpop.f32.mrf.mxu0
        %1492 = vmatprep.mubr.bf16.mxu0 0
        %1493 = vmatmul.mubr.bf16.gmra.mxu0 %v1366
        %v1494 = vpop.f32.mrf.mxu0
        %v1495 = vadd.f32 0.0, %v1494
        %v1496 = vpop.f32.mrf.mxu0
        %v1497 = vpop.f32.mrf.mxu0
        %v1498 = vadd.f32 0.0, %v1497
        %v1499 = vpop.f32.mrf.mxu0
        %1500 = vmatprep.mubr.bf16.mxu0 0
        %1501 = vmatmul.mubr.bf16.gmra.mxu0 %v1367
        %v1502 = vpop.f32.mrf.mxu0
        %v1503 = vadd.f32 0.0, %v1502
        %v1504 = vpop.f32.mrf.mxu0
        %v1505 = vpop.f32.mrf.mxu0
        %v1506 = vadd.f32 0.0, %v1505
        %v1507 = vpop.f32.mrf.mxu0
        %1508 = vmatprep.mubr.bf16.mxu0 0
        %1509 = vmatmul.mubr.bf16.gmra.mxu0 %v1368
        %v1510 = vpop.f32.mrf.mxu0
        %v1511 = vadd.f32 0.0, %v1510
        %v1512 = vpop.f32.mrf.mxu0
        %v1513 = vpop.f32.mrf.mxu0
        %v1514 = vadd.f32 0.0, %v1513
        %v1515 = vpop.f32.mrf.mxu0
        %1516 = vmatprep.mubr.bf16.mxu0 0
        %1517 = vmatmul.mubr.bf16.gmra.mxu0 %v1369
        %v1518 = vpop.f32.mrf.mxu0
        %v1519 = vadd.f32 0.0, %v1518
        %v1520 = vpop.f32.mrf.mxu0
        %v1521 = vpop.f32.mrf.mxu0
        %v1522 = vadd.f32 0.0, %v1521
        %v1523 = vpop.f32.mrf.mxu0
        %1524 = vmatprep.mubr.bf16.mxu0 0
        %1525 = vmatmul.mubr.bf16.gmra.mxu0 %v1370
        %v1526 = vpop.f32.mrf.mxu0
        %v1527 = vadd.f32 0.0, %v1526
        %v1528 = vpop.f32.mrf.mxu0
        %v1529 = vpop.f32.mrf.mxu0
        %v1530 = vadd.f32 0.0, %v1529
        %v1531 = vpop.f32.mrf.mxu0
        %1532 = vmatprep.mubr.bf16.mxu0 0
        %1533 = vmatmul.mubr.bf16.gmra.mxu0 %v1371
        %v1534 = vpop.f32.mrf.mxu0
        %v1535 = vadd.f32 0.0, %v1534
        %v1536 = vpop.f32.mrf.mxu0
        %v1537 = vpop.f32.mrf.mxu0
        %v1538 = vadd.f32 0.0, %v1537
        %v1539 = vpop.f32.mrf.mxu0
        %1540 = vmatprep.mubr.bf16.mxu0 0
        %1541 = vmatmul.mubr.bf16.gmra.mxu0 %v1372
        %v1542 = vpop.f32.mrf.mxu0
        %v1543 = vadd.f32 0.0, %v1542
        %v1544 = vpop.f32.mrf.mxu0
        %v1545 = vpop.f32.mrf.mxu0
        %v1546 = vadd.f32 0.0, %v1545
        %v1547 = vpop.f32.mrf.mxu0
        %1548 = vmatprep.mubr.bf16.mxu0 0
        %1549 = vmatmul.mubr.bf16.gmra.mxu0 %v1373
        %v1550 = vpop.f32.mrf.mxu0
        %v1551 = vadd.f32 0.0, %v1550
        %v1552 = vpop.f32.mrf.mxu0
        %v1553 = vpop.f32.mrf.mxu0
        %v1554 = vadd.f32 0.0, %v1553
        %v1555 = vpop.f32.mrf.mxu0
        %1556 = vmatprep.mubr.bf16.mxu0 0
        %1557 = vmatmul.mubr.bf16.gmra.mxu0 %v1374
        %v1558 = vpop.f32.mrf.mxu0
        %v1559 = vadd.f32 0.0, %v1558
        %v1560 = vpop.f32.mrf.mxu0
        %v1561 = vpop.f32.mrf.mxu0
        %v1562 = vadd.f32 0.0, %v1561
        %v1563 = vpop.f32.mrf.mxu0
        %1564 = vmatprep.mubr.bf16.mxu0 0
        %1565 = vmatmul.mubr.bf16.gmra.mxu0 %v1375
        %v1566 = vpop.f32.mrf.mxu0
        %v1567 = vadd.f32 0.0, %v1566
        %v1568 = vpop.f32.mrf.mxu0
        %v1569 = vpop.f32.mrf.mxu0
        %v1570 = vadd.f32 0.0, %v1569
        %v1571 = vpop.f32.mrf.mxu0
        %1572 = vmatprep.mubr.bf16.mxu0 0
        %1573 = vmatmul.mubr.bf16.gmra.mxu0 %v1376
        %v1574 = vpop.f32.mrf.mxu0
        %v1575 = vadd.f32 0.0, %v1574
        %v1576 = vpop.f32.mrf.mxu0
        %v1577 = vpop.f32.mrf.mxu0
        %v1578 = vadd.f32 0.0, %v1577
        %v1579 = vpop.f32.mrf.mxu0
        %1580 = vmatprep.mubr.bf16.mxu0 0
        %1581 = vmatmul.mubr.bf16.gmra.mxu0 %v1377
        %v1582 = vpop.f32.mrf.mxu0
        %v1583 = vadd.f32 0.0, %v1582
        %v1584 = vpop.f32.mrf.mxu0
        %v1585 = vpop.f32.mrf.mxu0
        %v1586 = vadd.f32 0.0, %v1585
        %v1587 = vpop.f32.mrf.mxu0
        %1588 = vmatprep.mubr.bf16.mxu0 0
        %1589 = vmatmul.mubr.bf16.gmra.mxu0 %v1378
        %v1590 = vpop.f32.mrf.mxu0
        %v1591 = vadd.f32 0.0, %v1590
        %v1592 = vpop.f32.mrf.mxu0
        %v1593 = vpop.f32.mrf.mxu0
        %v1594 = vadd.f32 0.0, %v1593
        %v1595 = vpop.f32.mrf.mxu0
        %1596 = vmatprep.mubr.bf16.mxu0 0
        %1597 = vmatmul.mubr.bf16.gmra.mxu0 %v1379
        %v1598 = vpop.f32.mrf.mxu0
        %v1599 = vadd.f32 0.0, %v1598
        %v1600 = vpop.f32.mrf.mxu0
        %v1601 = vpop.f32.mrf.mxu0
        %v1602 = vadd.f32 0.0, %v1601
        %v1603 = vpop.f32.mrf.mxu0
        %1604 = vdwg.mxu0
        %v1605 = vadd.f32 %v1206, %v1479
        %v1606 = vadd.f32 %v1209, %v1482
        %v1607 = vadd.f32 %v1214, %v1487
        %v1608 = vadd.f32 %v1217, %v1490
        %v1609 = vadd.f32 %v1222, %v1495
        %v1610 = vadd.f32 %v1225, %v1498
        %v1611 = vadd.f32 %v1230, %v1503
        %v1612 = vadd.f32 %v1233, %v1506
        %v1613 = vadd.f32 %v1238, %v1511
        %v1614 = vadd.f32 %v1241, %v1514
        %v1615 = vadd.f32 %v1246, %v1519
        %v1616 = vadd.f32 %v1249, %v1522
        %v1617 = vadd.f32 %v1254, %v1527
        %v1618 = vadd.f32 %v1257, %v1530
        %v1619 = vadd.f32 %v1262, %v1535
        %v1620 = vadd.f32 %v1265, %v1538
        %v1621 = vadd.f32 %v1270, %v1543
        %v1622 = vadd.f32 %v1273, %v1546
        %v1623 = vadd.f32 %v1278, %v1551
        %v1624 = vadd.f32 %v1281, %v1554
        %v1625 = vadd.f32 %v1286, %v1559
        %v1626 = vadd.f32 %v1289, %v1562
        %v1627 = vadd.f32 %v1294, %v1567
        %v1628 = vadd.f32 %v1297, %v1570
        %v1629 = vadd.f32 %v1302, %v1575
        %v1630 = vadd.f32 %v1305, %v1578
        %v1631 = vadd.f32 %v1310, %v1583
        %v1632 = vadd.f32 %v1313, %v1586
        %v1633 = vadd.f32 %v1318, %v1591
        %v1634 = vadd.f32 %v1321, %v1594
        %v1635 = vadd.f32 %v1326, %v1599
        %v1636 = vadd.f32 %v1329, %v1602
        %s1637 = scalar_lea.vmem %s784, 24
        %v1638 = vld [vmem:[%s1637] sm:$0xff]
        %v1639 = vld [vmem:[%s1637 + $0x8] sm:$0xff]
        %v1640 = vld [vmem:[%s1637 + $0x18] sm:$0xff]
        %v1641 = vld [vmem:[%s1637 + $0x20] sm:$0xff]
        %v1642 = vld [vmem:[%s1637 + $0x30] sm:$0xff]
        %v1643 = vld [vmem:[%s1637 + $0x38] sm:$0xff]
        %v1644 = vld [vmem:[%s1637 + $0x48] sm:$0xff]
        %v1645 = vld [vmem:[%s1637 + $0x50] sm:$0xff]
        %v1646 = vld [vmem:[%s1637 + $0x60] sm:$0xff]
        %v1647 = vld [vmem:[%s1637 + $0x68] sm:$0xff]
        %v1648 = vld [vmem:[%s1637 + $0x78] sm:$0xff]
        %v1649 = vld [vmem:[%s1637 + $0x80] sm:$0xff]
        %v1650 = vld [vmem:[%s1637 + $0x90] sm:$0xff]
        %v1651 = vld [vmem:[%s1637 + $0x98] sm:$0xff]
        %v1652 = vld [vmem:[%s1637 + $0xa8] sm:$0xff]
        %v1653 = vld [vmem:[%s1637 + $0xb0] sm:$0xff]
        %v1654 = vld [vmem:[%s1637 + $0xc0] sm:$0xff]
        %v1655 = vld [vmem:[%s1637 + $0xc8] sm:$0xff]
        %v1656 = vld [vmem:[%s1637 + $0xd8] sm:$0xff]
        %v1657 = vld [vmem:[%s1637 + $0xe0] sm:$0xff]
        %v1658 = vld [vmem:[%s1637 + $0xf0] sm:$0xff]
        %v1659 = vld [vmem:[%s1637 + $0xf8] sm:$0xff]
        %v1660 = vld [vmem:[%s1637 + $0x108] sm:$0xff]
        %v1661 = vld [vmem:[%s1637 + $0x110] sm:$0xff]
        %v1662 = vld [vmem:[%s1637 + $0x120] sm:$0xff]
        %v1663 = vld [vmem:[%s1637 + $0x128] sm:$0xff]
        %v1664 = vld [vmem:[%s1637 + $0x138] sm:$0xff]
        %v1665 = vld [vmem:[%s1637 + $0x140] sm:$0xff]
        %v1666 = vld [vmem:[%s1637 + $0x150] sm:$0xff]
        %v1667 = vld [vmem:[%s1637 + $0x158] sm:$0xff]
        %v1668 = vld [vmem:[%s1637 + $0x168] sm:$0xff]
        %v1669 = vld [vmem:[%s1637 + $0x170] sm:$0xff]
        %v1670 = vpack.c.bf16 %v1639, %v1638
        %v1671 = vpack.c.bf16 %v1641, %v1640
        %v1672 = vpack.c.bf16 %v1643, %v1642
        %v1673 = vpack.c.bf16 %v1645, %v1644
        %v1674 = vpack.c.bf16 %v1647, %v1646
        %v1675 = vpack.c.bf16 %v1649, %v1648
        %v1676 = vpack.c.bf16 %v1651, %v1650
        %v1677 = vpack.c.bf16 %v1653, %v1652
        %v1678 = vpack.c.bf16 %v1655, %v1654
        %v1679 = vpack.c.bf16 %v1657, %v1656
        %v1680 = vpack.c.bf16 %v1659, %v1658
        %v1681 = vpack.c.bf16 %v1661, %v1660
        %v1682 = vpack.c.bf16 %v1663, %v1662
        %v1683 = vpack.c.bf16 %v1665, %v1664
        %v1684 = vpack.c.bf16 %v1667, %v1666
        %v1685 = vpack.c.bf16 %v1669, %v1668
        %v1686 = vld [vmem:[%s1 + $0xc0] sm:$0xf]
        %v1687 = vld [vmem:[%s1 + $0xc4] sm:$0xf]
        %v1688 = vld [vmem:[%s1 + $0xc8] sm:$0xf]
        %v1689 = vld [vmem:[%s1 + $0xcc] sm:$0xf]
        %v1690 = vld [vmem:[%s1 + $0xd0] sm:$0xf]
        %v1691 = vld [vmem:[%s1 + $0xd4] sm:$0xf]
        %v1692 = vld [vmem:[%s1 + $0xd8] sm:$0xf]
        %v1693 = vld [vmem:[%s1 + $0xdc] sm:$0xf]
        %v1694 = vld [vmem:[%s1 + $0xe0] sm:$0xf]
        %v1695 = vld [vmem:[%s1 + $0xe4] sm:$0xf]
        %v1696 = vld [vmem:[%s1 + $0xe8] sm:$0xf]
        %v1697 = vld [vmem:[%s1 + $0xec] sm:$0xf]
        %v1698 = vld [vmem:[%s1 + $0xf0] sm:$0xf]
        %v1699 = vld [vmem:[%s1 + $0xf4] sm:$0xf]
        %v1700 = vld [vmem:[%s1 + $0xf8] sm:$0xf]
        %v1701 = vld [vmem:[%s1 + $0xfc] sm:$0xf]
        %v1718 = vunpack.c.l.b16 %v1686
        %v1719 = vunpack.c.l.b16 %v1687
        %v1720 = vunpack.c.l.b16 %v1688
        %v1721 = vunpack.c.l.b16 %v1689
        %v1722 = vunpack.c.l.b16 %v1690
        %v1723 = vunpack.c.l.b16 %v1691
        %v1724 = vunpack.c.l.b16 %v1692
        %v1725 = vunpack.c.l.b16 %v1693
        %v1726 = vunpack.c.l.b16 %v1694
        %v1727 = vunpack.c.l.b16 %v1695
        %v1728 = vunpack.c.l.b16 %v1696
        %v1729 = vunpack.c.l.b16 %v1697
        %v1730 = vunpack.c.l.b16 %v1698
        %v1731 = vunpack.c.l.b16 %v1699
        %v1732 = vunpack.c.l.b16 %v1700
        %v1733 = vunpack.c.l.b16 %v1701
        %v1734 = vpack.c.b16 %v1719, %v1718
        %v1735 = vpack.c.b16 %v1721, %v1720
        %v1736 = vpack.c.b16 %v1723, %v1722
        %v1737 = vpack.c.b16 %v1725, %v1724
        %v1738 = vpack.c.b16 %v1727, %v1726
        %v1739 = vpack.c.b16 %v1729, %v1728
        %v1740 = vpack.c.b16 %v1731, %v1730
        %v1741 = vpack.c.b16 %v1733, %v1732
        %1750 = vmatprep.subr.bf16.mxu0 0
        %1751 = vmatpush1.bf16.msra.mxu0 %v1741
        %1752 = vmatprep.subr.bf16.mxu0 0
        %1753 = vmatpush1.bf16.msra.mxu0 %v1740
        %1754 = vmatprep.subr.bf16.mxu0 0
        %1755 = vmatpush1.bf16.msra.mxu0 %v1739
        %1756 = vmatprep.subr.bf16.mxu0 0
        %1757 = vmatpush1.bf16.msra.mxu0 %v1738
        %1758 = vmatprep.subr.bf16.mxu0 0
        %1759 = vmatpush1.bf16.msra.mxu0 %v1737
        %1760 = vmatprep.subr.bf16.mxu0 0
        %1761 = vmatpush1.bf16.msra.mxu0 %v1736
        %1762 = vmatprep.subr.bf16.mxu0 0
        %1763 = vmatpush1.bf16.msra.mxu0 %v1735
        %1764 = vmatprep.subr.bf16.mxu0 0
        %1765 = vmatpush1.bf16.msra.mxu0 %v1734
        %1766 = vmatprep.subr.bf16.mxu0 0
        %1767 = vmatpush2.bf16.msra.mxu0 0
        %1768 = vmatprep.subr.bf16.mxu0 0
        %1769 = vmatpush2.bf16.msra.mxu0 0
        %1770 = vmatprep.subr.bf16.mxu0 0
        %1771 = vmatpush2.bf16.msra.mxu0 0
        %1772 = vmatprep.subr.bf16.mxu0 0
        %1773 = vmatpush2.bf16.msra.mxu0 0
        %1774 = vmatprep.subr.bf16.mxu0 0
        %1775 = vmatpush2.bf16.msra.mxu0 0
        %1776 = vmatprep.subr.bf16.mxu0 0
        %1777 = vmatpush2.bf16.msra.mxu0 0
        %1778 = vmatprep.subr.bf16.mxu0 0
        %1779 = vmatpush2.bf16.msra.mxu0 0
        %1780 = vmatprep.subr.bf16.mxu0 0
        %1781 = vmatpush2.bf16.msra.mxu0 0
        %1782 = vmatprep.mubr.bf16.mxu0 0
        %1783 = vmatmul.mubr.bf16.gmra.mxu0 %v1670
        %v1784 = vpop.f32.mrf.mxu0
        %v1785 = vadd.f32 0.0, %v1784
        %v1786 = vpop.f32.mrf.mxu0
        %v1787 = vpop.f32.mrf.mxu0
        %v1788 = vadd.f32 0.0, %v1787
        %v1789 = vpop.f32.mrf.mxu0
        %1790 = vmatprep.mubr.bf16.mxu0 0
        %1791 = vmatmul.mubr.bf16.gmra.mxu0 %v1671
        %v1792 = vpop.f32.mrf.mxu0
        %v1793 = vadd.f32 0.0, %v1792
        %v1794 = vpop.f32.mrf.mxu0
        %v1795 = vpop.f32.mrf.mxu0
        %v1796 = vadd.f32 0.0, %v1795
        %v1797 = vpop.f32.mrf.mxu0
        %1798 = vmatprep.mubr.bf16.mxu0 0
        %1799 = vmatmul.mubr.bf16.gmra.mxu0 %v1672
        %v1800 = vpop.f32.mrf.mxu0
        %v1801 = vadd.f32 0.0, %v1800
        %v1802 = vpop.f32.mrf.mxu0
        %v1803 = vpop.f32.mrf.mxu0
        %v1804 = vadd.f32 0.0, %v1803
        %v1805 = vpop.f32.mrf.mxu0
        %1806 = vmatprep.mubr.bf16.mxu0 0
        %1807 = vmatmul.mubr.bf16.gmra.mxu0 %v1673
        %v1808 = vpop.f32.mrf.mxu0
        %v1809 = vadd.f32 0.0, %v1808
        %v1810 = vpop.f32.mrf.mxu0
        %v1811 = vpop.f32.mrf.mxu0
        %v1812 = vadd.f32 0.0, %v1811
        %v1813 = vpop.f32.mrf.mxu0
        %1814 = vmatprep.mubr.bf16.mxu0 0
        %1815 = vmatmul.mubr.bf16.gmra.mxu0 %v1674
        %v1816 = vpop.f32.mrf.mxu0
        %v1817 = vadd.f32 0.0, %v1816
        %v1818 = vpop.f32.mrf.mxu0
        %v1819 = vpop.f32.mrf.mxu0
        %v1820 = vadd.f32 0.0, %v1819
        %v1821 = vpop.f32.mrf.mxu0
        %1822 = vmatprep.mubr.bf16.mxu0 0
        %1823 = vmatmul.mubr.bf16.gmra.mxu0 %v1675
        %v1824 = vpop.f32.mrf.mxu0
        %v1825 = vadd.f32 0.0, %v1824
        %v1826 = vpop.f32.mrf.mxu0
        %v1827 = vpop.f32.mrf.mxu0
        %v1828 = vadd.f32 0.0, %v1827
        %v1829 = vpop.f32.mrf.mxu0
        %1830 = vmatprep.mubr.bf16.mxu0 0
        %1831 = vmatmul.mubr.bf16.gmra.mxu0 %v1676
        %v1832 = vpop.f32.mrf.mxu0
        %v1833 = vadd.f32 0.0, %v1832
        %v1834 = vpop.f32.mrf.mxu0
        %v1835 = vpop.f32.mrf.mxu0
        %v1836 = vadd.f32 0.0, %v1835
        %v1837 = vpop.f32.mrf.mxu0
        %1838 = vmatprep.mubr.bf16.mxu0 0
        %1839 = vmatmul.mubr.bf16.gmra.mxu0 %v1677
        %v1840 = vpop.f32.mrf.mxu0
        %v1841 = vadd.f32 0.0, %v1840
        %v1842 = vpop.f32.mrf.mxu0
        %v1843 = vpop.f32.mrf.mxu0
        %v1844 = vadd.f32 0.0, %v1843
        %v1845 = vpop.f32.mrf.mxu0
        %1846 = vmatprep.mubr.bf16.mxu0 0
        %1847 = vmatmul.mubr.bf16.gmra.mxu0 %v1678
        %v1848 = vpop.f32.mrf.mxu0
        %v1849 = vadd.f32 0.0, %v1848
        %v1850 = vpop.f32.mrf.mxu0
        %v1851 = vpop.f32.mrf.mxu0
        %v1852 = vadd.f32 0.0, %v1851
        %v1853 = vpop.f32.mrf.mxu0
        %1854 = vmatprep.mubr.bf16.mxu0 0
        %1855 = vmatmul.mubr.bf16.gmra.mxu0 %v1679
        %v1856 = vpop.f32.mrf.mxu0
        %v1857 = vadd.f32 0.0, %v1856
        %v1858 = vpop.f32.mrf.mxu0
        %v1859 = vpop.f32.mrf.mxu0
        %v1860 = vadd.f32 0.0, %v1859
        %v1861 = vpop.f32.mrf.mxu0
        %1862 = vmatprep.mubr.bf16.mxu0 0
        %1863 = vmatmul.mubr.bf16.gmra.mxu0 %v1680
        %v1864 = vpop.f32.mrf.mxu0
        %v1865 = vadd.f32 0.0, %v1864
        %v1866 = vpop.f32.mrf.mxu0
        %v1867 = vpop.f32.mrf.mxu0
        %v1868 = vadd.f32 0.0, %v1867
        %v1869 = vpop.f32.mrf.mxu0
        %1870 = vmatprep.mubr.bf16.mxu0 0
        %1871 = vmatmul.mubr.bf16.gmra.mxu0 %v1681
        %v1872 = vpop.f32.mrf.mxu0
        %v1873 = vadd.f32 0.0, %v1872
        %v1874 = vpop.f32.mrf.mxu0
        %v1875 = vpop.f32.mrf.mxu0
        %v1876 = vadd.f32 0.0, %v1875
        %v1877 = vpop.f32.mrf.mxu0
        %1878 = vmatprep.mubr.bf16.mxu0 0
        %1879 = vmatmul.mubr.bf16.gmra.mxu0 %v1682
        %v1880 = vpop.f32.mrf.mxu0
        %v1881 = vadd.f32 0.0, %v1880
        %v1882 = vpop.f32.mrf.mxu0
        %v1883 = vpop.f32.mrf.mxu0
        %v1884 = vadd.f32 0.0, %v1883
        %v1885 = vpop.f32.mrf.mxu0
        %1886 = vmatprep.mubr.bf16.mxu0 0
        %1887 = vmatmul.mubr.bf16.gmra.mxu0 %v1683
        %v1888 = vpop.f32.mrf.mxu0
        %v1889 = vadd.f32 0.0, %v1888
        %v1890 = vpop.f32.mrf.mxu0
        %v1891 = vpop.f32.mrf.mxu0
        %v1892 = vadd.f32 0.0, %v1891
        %v1893 = vpop.f32.mrf.mxu0
        %1894 = vmatprep.mubr.bf16.mxu0 0
        %1895 = vmatmul.mubr.bf16.gmra.mxu0 %v1684
        %v1896 = vpop.f32.mrf.mxu0
        %v1897 = vadd.f32 0.0, %v1896
        %v1898 = vpop.f32.mrf.mxu0
        %v1899 = vpop.f32.mrf.mxu0
        %v1900 = vadd.f32 0.0, %v1899
        %v1901 = vpop.f32.mrf.mxu0
        %1902 = vmatprep.mubr.bf16.mxu0 0
        %1903 = vmatmul.mubr.bf16.gmra.mxu0 %v1685
        %v1904 = vpop.f32.mrf.mxu0
        %v1905 = vadd.f32 0.0, %v1904
        %v1906 = vpop.f32.mrf.mxu0
        %v1907 = vpop.f32.mrf.mxu0
        %v1908 = vadd.f32 0.0, %v1907
        %v1909 = vpop.f32.mrf.mxu0
        %1910 = vdwg.mxu0
        %v1911 = vadd.f32 %v1605, %v1785
        %v1912 = vadd.f32 %v1606, %v1788
        %v1913 = vadd.f32 %v1607, %v1793
        %v1914 = vadd.f32 %v1608, %v1796
        %v1915 = vadd.f32 %v1609, %v1801
        %v1916 = vadd.f32 %v1610, %v1804
        %v1917 = vadd.f32 %v1611, %v1809
        %v1918 = vadd.f32 %v1612, %v1812
        %v1919 = vadd.f32 %v1613, %v1817
        %v1920 = vadd.f32 %v1614, %v1820
        %v1921 = vadd.f32 %v1615, %v1825
        %v1922 = vadd.f32 %v1616, %v1828
        %v1923 = vadd.f32 %v1617, %v1833
        %v1924 = vadd.f32 %v1618, %v1836
        %v1925 = vadd.f32 %v1619, %v1841
        %v1926 = vadd.f32 %v1620, %v1844
        %v1927 = vadd.f32 %v1621, %v1849
        %v1928 = vadd.f32 %v1622, %v1852
        %v1929 = vadd.f32 %v1623, %v1857
        %v1930 = vadd.f32 %v1624, %v1860
        %v1931 = vadd.f32 %v1625, %v1865
        %v1932 = vadd.f32 %v1626, %v1868
        %v1933 = vadd.f32 %v1627, %v1873
        %v1934 = vadd.f32 %v1628, %v1876
        %v1935 = vadd.f32 %v1629, %v1881
        %v1936 = vadd.f32 %v1630, %v1884
        %v1937 = vadd.f32 %v1631, %v1889
        %v1938 = vadd.f32 %v1632, %v1892
        %v1939 = vadd.f32 %v1633, %v1897
        %v1940 = vadd.f32 %v1634, %v1900
        %v1941 = vadd.f32 %v1635, %v1905
        %v1942 = vadd.f32 %v1636, %v1908
        %v1943 = vld [vmem:[%s1637 + $0x1] sm:$0xff]
        %v1944 = vld [vmem:[%s1637 + $0x9] sm:$0xff]
        %v1945 = vld [vmem:[%s1637 + $0x19] sm:$0xff]
        %v1946 = vld [vmem:[%s1637 + $0x21] sm:$0xff]
        %v1947 = vld [vmem:[%s1637 + $0x31] sm:$0xff]
        %v1948 = vld [vmem:[%s1637 + $0x39] sm:$0xff]
        %v1949 = vld [vmem:[%s1637 + $0x49] sm:$0xff]
        %v1950 = vld [vmem:[%s1637 + $0x51] sm:$0xff]
        %v1951 = vld [vmem:[%s1637 + $0x61] sm:$0xff]
        %v1952 = vld [vmem:[%s1637 + $0x69] sm:$0xff]
        %v1953 = vld [vmem:[%s1637 + $0x79] sm:$0xff]
        %v1954 = vld [vmem:[%s1637 + $0x81] sm:$0xff]
        %v1955 = vld [vmem:[%s1637 + $0x91] sm:$0xff]
        %v1956 = vld [vmem:[%s1637 + $0x99] sm:$0xff]
        %v1957 = vld [vmem:[%s1637 + $0xa9] sm:$0xff]
        %v1958 = vld [vmem:[%s1637 + $0xb1] sm:$0xff]
        %v1959 = vld [vmem:[%s1637 + $0xc1] sm:$0xff]
        %v1960 = vld [vmem:[%s1637 + $0xc9] sm:$0xff]
        %v1961 = vld [vmem:[%s1637 + $0xd9] sm:$0xff]
        %v1962 = vld [vmem:[%s1637 + $0xe1] sm:$0xff]
        %v1963 = vld [vmem:[%s1637 + $0xf1] sm:$0xff]
        %v1964 = vld [vmem:[%s1637 + $0xf9] sm:$0xff]
        %v1965 = vld [vmem:[%s1637 + $0x109] sm:$0xff]
        %v1966 = vld [vmem:[%s1637 + $0x111] sm:$0xff]
        %v1967 = vld [vmem:[%s1637 + $0x121] sm:$0xff]
        %v1968 = vld [vmem:[%s1637 + $0x129] sm:$0xff]
        %v1969 = vld [vmem:[%s1637 + $0x139] sm:$0xff]
        %v1970 = vld [vmem:[%s1637 + $0x141] sm:$0xff]
        %v1971 = vld [vmem:[%s1637 + $0x151] sm:$0xff]
        %v1972 = vld [vmem:[%s1637 + $0x159] sm:$0xff]
        %v1973 = vld [vmem:[%s1637 + $0x169] sm:$0xff]
        %v1974 = vld [vmem:[%s1637 + $0x171] sm:$0xff]
        %v1975 = vpack.c.bf16 %v1944, %v1943
        %v1976 = vpack.c.bf16 %v1946, %v1945
        %v1977 = vpack.c.bf16 %v1948, %v1947
        %v1978 = vpack.c.bf16 %v1950, %v1949
        %v1979 = vpack.c.bf16 %v1952, %v1951
        %v1980 = vpack.c.bf16 %v1954, %v1953
        %v1981 = vpack.c.bf16 %v1956, %v1955
        %v1982 = vpack.c.bf16 %v1958, %v1957
        %v1983 = vpack.c.bf16 %v1960, %v1959
        %v1984 = vpack.c.bf16 %v1962, %v1961
        %v1985 = vpack.c.bf16 %v1964, %v1963
        %v1986 = vpack.c.bf16 %v1966, %v1965
        %v1987 = vpack.c.bf16 %v1968, %v1967
        %v1988 = vpack.c.bf16 %v1970, %v1969
        %v1989 = vpack.c.bf16 %v1972, %v1971
        %v1990 = vpack.c.bf16 %v1974, %v1973
        %v1991 = vld [vmem:[%s1 + $0x100] sm:$0xf]
        %v1992 = vld [vmem:[%s1 + $0x104] sm:$0xf]
        %v1993 = vld [vmem:[%s1 + $0x108] sm:$0xf]
        %v1994 = vld [vmem:[%s1 + $0x10c] sm:$0xf]
        %v1995 = vld [vmem:[%s1 + $0x110] sm:$0xf]
        %v1996 = vld [vmem:[%s1 + $0x114] sm:$0xf]
        %v1997 = vld [vmem:[%s1 + $0x118] sm:$0xf]
        %v1998 = vld [vmem:[%s1 + $0x11c] sm:$0xf]
        %v1999 = vld [vmem:[%s1 + $0x120] sm:$0xf]
        %v2000 = vld [vmem:[%s1 + $0x124] sm:$0xf]
        %v2001 = vld [vmem:[%s1 + $0x128] sm:$0xf]
        %v2002 = vld [vmem:[%s1 + $0x12c] sm:$0xf]
        %v2003 = vld [vmem:[%s1 + $0x130] sm:$0xf]
        %v2004 = vld [vmem:[%s1 + $0x134] sm:$0xf]
        %v2005 = vld [vmem:[%s1 + $0x138] sm:$0xf]
        %v2006 = vld [vmem:[%s1 + $0x13c] sm:$0xf]
        %v2023 = vunpack.c.l.b16 %v1991
        %v2024 = vunpack.c.l.b16 %v1992
        %v2025 = vunpack.c.l.b16 %v1993
        %v2026 = vunpack.c.l.b16 %v1994
        %v2027 = vunpack.c.l.b16 %v1995
        %v2028 = vunpack.c.l.b16 %v1996
        %v2029 = vunpack.c.l.b16 %v1997
        %v2030 = vunpack.c.l.b16 %v1998
        %v2031 = vunpack.c.l.b16 %v1999
        %v2032 = vunpack.c.l.b16 %v2000
        %v2033 = vunpack.c.l.b16 %v2001
        %v2034 = vunpack.c.l.b16 %v2002
        %v2035 = vunpack.c.l.b16 %v2003
        %v2036 = vunpack.c.l.b16 %v2004
        %v2037 = vunpack.c.l.b16 %v2005
        %v2038 = vunpack.c.l.b16 %v2006
        %v2039 = vpack.c.b16 %v2024, %v2023
        %v2040 = vpack.c.b16 %v2026, %v2025
        %v2041 = vpack.c.b16 %v2028, %v2027
        %v2042 = vpack.c.b16 %v2030, %v2029
        %v2043 = vpack.c.b16 %v2032, %v2031
        %v2044 = vpack.c.b16 %v2034, %v2033
        %v2045 = vpack.c.b16 %v2036, %v2035
        %v2046 = vpack.c.b16 %v2038, %v2037
        %2055 = vmatprep.subr.bf16.mxu0 0
        %2056 = vmatpush1.bf16.msra.mxu0 %v2046
        %2057 = vmatprep.subr.bf16.mxu0 0
        %2058 = vmatpush1.bf16.msra.mxu0 %v2045
        %2059 = vmatprep.subr.bf16.mxu0 0
        %2060 = vmatpush1.bf16.msra.mxu0 %v2044
        %2061 = vmatprep.subr.bf16.mxu0 0
        %2062 = vmatpush1.bf16.msra.mxu0 %v2043
        %2063 = vmatprep.subr.bf16.mxu0 0
        %2064 = vmatpush1.bf16.msra.mxu0 %v2042
        %2065 = vmatprep.subr.bf16.mxu0 0
        %2066 = vmatpush1.bf16.msra.mxu0 %v2041
        %2067 = vmatprep.subr.bf16.mxu0 0
        %2068 = vmatpush1.bf16.msra.mxu0 %v2040
        %2069 = vmatprep.subr.bf16.mxu0 0
        %2070 = vmatpush1.bf16.msra.mxu0 %v2039
        %2071 = vmatprep.subr.bf16.mxu0 0
        %2072 = vmatpush2.bf16.msra.mxu0 0
        %2073 = vmatprep.subr.bf16.mxu0 0
        %2074 = vmatpush2.bf16.msra.mxu0 0
        %2075 = vmatprep.subr.bf16.mxu0 0
        %2076 = vmatpush2.bf16.msra.mxu0 0
        %2077 = vmatprep.subr.bf16.mxu0 0
        %2078 = vmatpush2.bf16.msra.mxu0 0
        %2079 = vmatprep.subr.bf16.mxu0 0
        %2080 = vmatpush2.bf16.msra.mxu0 0
        %2081 = vmatprep.subr.bf16.mxu0 0
        %2082 = vmatpush2.bf16.msra.mxu0 0
        %2083 = vmatprep.subr.bf16.mxu0 0
        %2084 = vmatpush2.bf16.msra.mxu0 0
        %2085 = vmatprep.subr.bf16.mxu0 0
        %2086 = vmatpush2.bf16.msra.mxu0 0
        %2087 = vmatprep.mubr.bf16.mxu0 0
        %2088 = vmatmul.mubr.bf16.gmra.mxu0 %v1975
        %v2089 = vpop.f32.mrf.mxu0
        %v2090 = vadd.f32 0.0, %v2089
        %v2091 = vpop.f32.mrf.mxu0
        %v2092 = vpop.f32.mrf.mxu0
        %v2093 = vadd.f32 0.0, %v2092
        %v2094 = vpop.f32.mrf.mxu0
        %2095 = vmatprep.mubr.bf16.mxu0 0
        %2096 = vmatmul.mubr.bf16.gmra.mxu0 %v1976
        %v2097 = vpop.f32.mrf.mxu0
        %v2098 = vadd.f32 0.0, %v2097
        %v2099 = vpop.f32.mrf.mxu0
        %v2100 = vpop.f32.mrf.mxu0
        %v2101 = vadd.f32 0.0, %v2100
        %v2102 = vpop.f32.mrf.mxu0
        %2103 = vmatprep.mubr.bf16.mxu0 0
        %2104 = vmatmul.mubr.bf16.gmra.mxu0 %v1977
        %v2105 = vpop.f32.mrf.mxu0
        %v2106 = vadd.f32 0.0, %v2105
        %v2107 = vpop.f32.mrf.mxu0
        %v2108 = vpop.f32.mrf.mxu0
        %v2109 = vadd.f32 0.0, %v2108
        %v2110 = vpop.f32.mrf.mxu0
        %2111 = vmatprep.mubr.bf16.mxu0 0
        %2112 = vmatmul.mubr.bf16.gmra.mxu0 %v1978
        %v2113 = vpop.f32.mrf.mxu0
        %v2114 = vadd.f32 0.0, %v2113
        %v2115 = vpop.f32.mrf.mxu0
        %v2116 = vpop.f32.mrf.mxu0
        %v2117 = vadd.f32 0.0, %v2116
        %v2118 = vpop.f32.mrf.mxu0
        %2119 = vmatprep.mubr.bf16.mxu0 0
        %2120 = vmatmul.mubr.bf16.gmra.mxu0 %v1979
        %v2121 = vpop.f32.mrf.mxu0
        %v2122 = vadd.f32 0.0, %v2121
        %v2123 = vpop.f32.mrf.mxu0
        %v2124 = vpop.f32.mrf.mxu0
        %v2125 = vadd.f32 0.0, %v2124
        %v2126 = vpop.f32.mrf.mxu0
        %2127 = vmatprep.mubr.bf16.mxu0 0
        %2128 = vmatmul.mubr.bf16.gmra.mxu0 %v1980
        %v2129 = vpop.f32.mrf.mxu0
        %v2130 = vadd.f32 0.0, %v2129
        %v2131 = vpop.f32.mrf.mxu0
        %v2132 = vpop.f32.mrf.mxu0
        %v2133 = vadd.f32 0.0, %v2132
        %v2134 = vpop.f32.mrf.mxu0
        %2135 = vmatprep.mubr.bf16.mxu0 0
        %2136 = vmatmul.mubr.bf16.gmra.mxu0 %v1981
        %v2137 = vpop.f32.mrf.mxu0
        %v2138 = vadd.f32 0.0, %v2137
        %v2139 = vpop.f32.mrf.mxu0
        %v2140 = vpop.f32.mrf.mxu0
        %v2141 = vadd.f32 0.0, %v2140
        %v2142 = vpop.f32.mrf.mxu0
        %2143 = vmatprep.mubr.bf16.mxu0 0
        %2144 = vmatmul.mubr.bf16.gmra.mxu0 %v1982
        %v2145 = vpop.f32.mrf.mxu0
        %v2146 = vadd.f32 0.0, %v2145
        %v2147 = vpop.f32.mrf.mxu0
        %v2148 = vpop.f32.mrf.mxu0
        %v2149 = vadd.f32 0.0, %v2148
        %v2150 = vpop.f32.mrf.mxu0
        %2151 = vmatprep.mubr.bf16.mxu0 0
        %2152 = vmatmul.mubr.bf16.gmra.mxu0 %v1983
        %v2153 = vpop.f32.mrf.mxu0
        %v2154 = vadd.f32 0.0, %v2153
        %v2155 = vpop.f32.mrf.mxu0
        %v2156 = vpop.f32.mrf.mxu0
        %v2157 = vadd.f32 0.0, %v2156
        %v2158 = vpop.f32.mrf.mxu0
        %2159 = vmatprep.mubr.bf16.mxu0 0
        %2160 = vmatmul.mubr.bf16.gmra.mxu0 %v1984
        %v2161 = vpop.f32.mrf.mxu0
        %v2162 = vadd.f32 0.0, %v2161
        %v2163 = vpop.f32.mrf.mxu0
        %v2164 = vpop.f32.mrf.mxu0
        %v2165 = vadd.f32 0.0, %v2164
        %v2166 = vpop.f32.mrf.mxu0
        %2167 = vmatprep.mubr.bf16.mxu0 0
        %2168 = vmatmul.mubr.bf16.gmra.mxu0 %v1985
        %v2169 = vpop.f32.mrf.mxu0
        %v2170 = vadd.f32 0.0, %v2169
        %v2171 = vpop.f32.mrf.mxu0
        %v2172 = vpop.f32.mrf.mxu0
        %v2173 = vadd.f32 0.0, %v2172
        %v2174 = vpop.f32.mrf.mxu0
        %2175 = vmatprep.mubr.bf16.mxu0 0
        %2176 = vmatmul.mubr.bf16.gmra.mxu0 %v1986
        %v2177 = vpop.f32.mrf.mxu0
        %v2178 = vadd.f32 0.0, %v2177
        %v2179 = vpop.f32.mrf.mxu0
        %v2180 = vpop.f32.mrf.mxu0
        %v2181 = vadd.f32 0.0, %v2180
        %v2182 = vpop.f32.mrf.mxu0
        %2183 = vmatprep.mubr.bf16.mxu0 0
        %2184 = vmatmul.mubr.bf16.gmra.mxu0 %v1987
        %v2185 = vpop.f32.mrf.mxu0
        %v2186 = vadd.f32 0.0, %v2185
        %v2187 = vpop.f32.mrf.mxu0
        %v2188 = vpop.f32.mrf.mxu0
        %v2189 = vadd.f32 0.0, %v2188
        %v2190 = vpop.f32.mrf.mxu0
        %2191 = vmatprep.mubr.bf16.mxu0 0
        %2192 = vmatmul.mubr.bf16.gmra.mxu0 %v1988
        %v2193 = vpop.f32.mrf.mxu0
        %v2194 = vadd.f32 0.0, %v2193
        %v2195 = vpop.f32.mrf.mxu0
        %v2196 = vpop.f32.mrf.mxu0
        %v2197 = vadd.f32 0.0, %v2196
        %v2198 = vpop.f32.mrf.mxu0
        %2199 = vmatprep.mubr.bf16.mxu0 0
        %2200 = vmatmul.mubr.bf16.gmra.mxu0 %v1989
        %v2201 = vpop.f32.mrf.mxu0
        %v2202 = vadd.f32 0.0, %v2201
        %v2203 = vpop.f32.mrf.mxu0
        %v2204 = vpop.f32.mrf.mxu0
        %v2205 = vadd.f32 0.0, %v2204
        %v2206 = vpop.f32.mrf.mxu0
        %2207 = vmatprep.mubr.bf16.mxu0 0
        %2208 = vmatmul.mubr.bf16.gmra.mxu0 %v1990
        %v2209 = vpop.f32.mrf.mxu0
        %v2210 = vadd.f32 0.0, %v2209
        %v2211 = vpop.f32.mrf.mxu0
        %v2212 = vpop.f32.mrf.mxu0
        %v2213 = vadd.f32 0.0, %v2212
        %v2214 = vpop.f32.mrf.mxu0
        %2215 = vdwg.mxu0
        %v2216 = vadd.f32 %v1911, %v2090
        %v2217 = vadd.f32 %v1912, %v2093
        %v2218 = vadd.f32 %v1913, %v2098
        %v2219 = vadd.f32 %v1914, %v2101
        %v2220 = vadd.f32 %v1915, %v2106
        %v2221 = vadd.f32 %v1916, %v2109
        %v2222 = vadd.f32 %v1917, %v2114
        %v2223 = vadd.f32 %v1918, %v2117
        %v2224 = vadd.f32 %v1919, %v2122
        %v2225 = vadd.f32 %v1920, %v2125
        %v2226 = vadd.f32 %v1921, %v2130
        %v2227 = vadd.f32 %v1922, %v2133
        %v2228 = vadd.f32 %v1923, %v2138
        %v2229 = vadd.f32 %v1924, %v2141
        %v2230 = vadd.f32 %v1925, %v2146
        %v2231 = vadd.f32 %v1926, %v2149
        %v2232 = vadd.f32 %v1927, %v2154
        %v2233 = vadd.f32 %v1928, %v2157
        %v2234 = vadd.f32 %v1929, %v2162
        %v2235 = vadd.f32 %v1930, %v2165
        %v2236 = vadd.f32 %v1931, %v2170
        %v2237 = vadd.f32 %v1932, %v2173
        %v2238 = vadd.f32 %v1933, %v2178
        %v2239 = vadd.f32 %v1934, %v2181
        %v2240 = vadd.f32 %v1935, %v2186
        %v2241 = vadd.f32 %v1936, %v2189
        %v2242 = vadd.f32 %v1937, %v2194
        %v2243 = vadd.f32 %v1938, %v2197
        %v2244 = vadd.f32 %v1939, %v2202
        %v2245 = vadd.f32 %v1940, %v2205
        %v2246 = vadd.f32 %v1941, %v2210
        %v2247 = vadd.f32 %v1942, %v2213
        %v2248 = vld [vmem:[%s1637 + $0x2] sm:$0xff]
        %v2249 = vld [vmem:[%s1637 + $0xa] sm:$0xff]
        %v2250 = vld [vmem:[%s1637 + $0x1a] sm:$0xff]
        %v2251 = vld [vmem:[%s1637 + $0x22] sm:$0xff]
        %v2252 = vld [vmem:[%s1637 + $0x32] sm:$0xff]
        %v2253 = vld [vmem:[%s1637 + $0x3a] sm:$0xff]
        %v2254 = vld [vmem:[%s1637 + $0x4a] sm:$0xff]
        %v2255 = vld [vmem:[%s1637 + $0x52] sm:$0xff]
        %v2256 = vld [vmem:[%s1637 + $0x62] sm:$0xff]
        %v2257 = vld [vmem:[%s1637 + $0x6a] sm:$0xff]
        %v2258 = vld [vmem:[%s1637 + $0x7a] sm:$0xff]
        %v2259 = vld [vmem:[%s1637 + $0x82] sm:$0xff]
        %v2260 = vld [vmem:[%s1637 + $0x92] sm:$0xff]
        %v2261 = vld [vmem:[%s1637 + $0x9a] sm:$0xff]
        %v2262 = vld [vmem:[%s1637 + $0xaa] sm:$0xff]
        %v2263 = vld [vmem:[%s1637 + $0xb2] sm:$0xff]
        %v2264 = vld [vmem:[%s1637 + $0xc2] sm:$0xff]
        %v2265 = vld [vmem:[%s1637 + $0xca] sm:$0xff]
        %v2266 = vld [vmem:[%s1637 + $0xda] sm:$0xff]
        %v2267 = vld [vmem:[%s1637 + $0xe2] sm:$0xff]
        %v2268 = vld [vmem:[%s1637 + $0xf2] sm:$0xff]
        %v2269 = vld [vmem:[%s1637 + $0xfa] sm:$0xff]
        %v2270 = vld [vmem:[%s1637 + $0x10a] sm:$0xff]
        %v2271 = vld [vmem:[%s1637 + $0x112] sm:$0xff]
        %v2272 = vld [vmem:[%s1637 + $0x122] sm:$0xff]
        %v2273 = vld [vmem:[%s1637 + $0x12a] sm:$0xff]
        %v2274 = vld [vmem:[%s1637 + $0x13a] sm:$0xff]
        %v2275 = vld [vmem:[%s1637 + $0x142] sm:$0xff]
        %v2276 = vld [vmem:[%s1637 + $0x152] sm:$0xff]
        %v2277 = vld [vmem:[%s1637 + $0x15a] sm:$0xff]
        %v2278 = vld [vmem:[%s1637 + $0x16a] sm:$0xff]
        %v2279 = vld [vmem:[%s1637 + $0x172] sm:$0xff]
        %v2280 = vpack.c.bf16 %v2249, %v2248
        %v2281 = vpack.c.bf16 %v2251, %v2250
        %v2282 = vpack.c.bf16 %v2253, %v2252
        %v2283 = vpack.c.bf16 %v2255, %v2254
        %v2284 = vpack.c.bf16 %v2257, %v2256
        %v2285 = vpack.c.bf16 %v2259, %v2258
        %v2286 = vpack.c.bf16 %v2261, %v2260
        %v2287 = vpack.c.bf16 %v2263, %v2262
        %v2288 = vpack.c.bf16 %v2265, %v2264
        %v2289 = vpack.c.bf16 %v2267, %v2266
        %v2290 = vpack.c.bf16 %v2269, %v2268
        %v2291 = vpack.c.bf16 %v2271, %v2270
        %v2292 = vpack.c.bf16 %v2273, %v2272
        %v2293 = vpack.c.bf16 %v2275, %v2274
        %v2294 = vpack.c.bf16 %v2277, %v2276
        %v2295 = vpack.c.bf16 %v2279, %v2278
        %v2296 = vld [vmem:[%s1 + $0x140] sm:$0xf]
        %v2297 = vld [vmem:[%s1 + $0x144] sm:$0xf]
        %v2298 = vld [vmem:[%s1 + $0x148] sm:$0xf]
        %v2299 = vld [vmem:[%s1 + $0x14c] sm:$0xf]
        %v2300 = vld [vmem:[%s1 + $0x150] sm:$0xf]
        %v2301 = vld [vmem:[%s1 + $0x154] sm:$0xf]
        %v2302 = vld [vmem:[%s1 + $0x158] sm:$0xf]
        %v2303 = vld [vmem:[%s1 + $0x15c] sm:$0xf]
        %v2304 = vld [vmem:[%s1 + $0x160] sm:$0xf]
        %v2305 = vld [vmem:[%s1 + $0x164] sm:$0xf]
        %v2306 = vld [vmem:[%s1 + $0x168] sm:$0xf]
        %v2307 = vld [vmem:[%s1 + $0x16c] sm:$0xf]
        %v2308 = vld [vmem:[%s1 + $0x170] sm:$0xf]
        %v2309 = vld [vmem:[%s1 + $0x174] sm:$0xf]
        %v2310 = vld [vmem:[%s1 + $0x178] sm:$0xf]
        %v2311 = vld [vmem:[%s1 + $0x17c] sm:$0xf]
        %v2328 = vunpack.c.l.b16 %v2296
        %v2329 = vunpack.c.l.b16 %v2297
        %v2330 = vunpack.c.l.b16 %v2298
        %v2331 = vunpack.c.l.b16 %v2299
        %v2332 = vunpack.c.l.b16 %v2300
        %v2333 = vunpack.c.l.b16 %v2301
        %v2334 = vunpack.c.l.b16 %v2302
        %v2335 = vunpack.c.l.b16 %v2303
        %v2336 = vunpack.c.l.b16 %v2304
        %v2337 = vunpack.c.l.b16 %v2305
        %v2338 = vunpack.c.l.b16 %v2306
        %v2339 = vunpack.c.l.b16 %v2307
        %v2340 = vunpack.c.l.b16 %v2308
        %v2341 = vunpack.c.l.b16 %v2309
        %v2342 = vunpack.c.l.b16 %v2310
        %v2343 = vunpack.c.l.b16 %v2311
        %v2344 = vpack.c.b16 %v2329, %v2328
        %v2345 = vpack.c.b16 %v2331, %v2330
        %v2346 = vpack.c.b16 %v2333, %v2332
        %v2347 = vpack.c.b16 %v2335, %v2334
        %v2348 = vpack.c.b16 %v2337, %v2336
        %v2349 = vpack.c.b16 %v2339, %v2338
        %v2350 = vpack.c.b16 %v2341, %v2340
        %v2351 = vpack.c.b16 %v2343, %v2342
        %2360 = vmatprep.subr.bf16.mxu0 0
        %2361 = vmatpush1.bf16.msra.mxu0 %v2351
        %2362 = vmatprep.subr.bf16.mxu0 0
        %2363 = vmatpush1.bf16.msra.mxu0 %v2350
        %2364 = vmatprep.subr.bf16.mxu0 0
        %2365 = vmatpush1.bf16.msra.mxu0 %v2349
        %2366 = vmatprep.subr.bf16.mxu0 0
        %2367 = vmatpush1.bf16.msra.mxu0 %v2348
        %2368 = vmatprep.subr.bf16.mxu0 0
        %2369 = vmatpush1.bf16.msra.mxu0 %v2347
        %2370 = vmatprep.subr.bf16.mxu0 0
        %2371 = vmatpush1.bf16.msra.mxu0 %v2346
        %2372 = vmatprep.subr.bf16.mxu0 0
        %2373 = vmatpush1.bf16.msra.mxu0 %v2345
        %2374 = vmatprep.subr.bf16.mxu0 0
        %2375 = vmatpush1.bf16.msra.mxu0 %v2344
        %2376 = vmatprep.subr.bf16.mxu0 0
        %2377 = vmatpush2.bf16.msra.mxu0 0
        %2378 = vmatprep.subr.bf16.mxu0 0
        %2379 = vmatpush2.bf16.msra.mxu0 0
        %2380 = vmatprep.subr.bf16.mxu0 0
        %2381 = vmatpush2.bf16.msra.mxu0 0
        %2382 = vmatprep.subr.bf16.mxu0 0
        %2383 = vmatpush2.bf16.msra.mxu0 0
        %2384 = vmatprep.subr.bf16.mxu0 0
        %2385 = vmatpush2.bf16.msra.mxu0 0
        %2386 = vmatprep.subr.bf16.mxu0 0
        %2387 = vmatpush2.bf16.msra.mxu0 0
        %2388 = vmatprep.subr.bf16.mxu0 0
        %2389 = vmatpush2.bf16.msra.mxu0 0
        %2390 = vmatprep.subr.bf16.mxu0 0
        %2391 = vmatpush2.bf16.msra.mxu0 0
        %2392 = vmatprep.mubr.bf16.mxu0 0
        %2393 = vmatmul.mubr.bf16.gmra.mxu0 %v2280
        %v2394 = vpop.f32.mrf.mxu0
        %v2395 = vadd.f32 0.0, %v2394
        %v2396 = vpop.f32.mrf.mxu0
        %v2397 = vpop.f32.mrf.mxu0
        %v2398 = vadd.f32 0.0, %v2397
        %v2399 = vpop.f32.mrf.mxu0
        %2400 = vmatprep.mubr.bf16.mxu0 0
        %2401 = vmatmul.mubr.bf16.gmra.mxu0 %v2281
        %v2402 = vpop.f32.mrf.mxu0
        %v2403 = vadd.f32 0.0, %v2402
        %v2404 = vpop.f32.mrf.mxu0
        %v2405 = vpop.f32.mrf.mxu0
        %v2406 = vadd.f32 0.0, %v2405
        %v2407 = vpop.f32.mrf.mxu0
        %2408 = vmatprep.mubr.bf16.mxu0 0
        %2409 = vmatmul.mubr.bf16.gmra.mxu0 %v2282
        %v2410 = vpop.f32.mrf.mxu0
        %v2411 = vadd.f32 0.0, %v2410
        %v2412 = vpop.f32.mrf.mxu0
        %v2413 = vpop.f32.mrf.mxu0
        %v2414 = vadd.f32 0.0, %v2413
        %v2415 = vpop.f32.mrf.mxu0
        %2416 = vmatprep.mubr.bf16.mxu0 0
        %2417 = vmatmul.mubr.bf16.gmra.mxu0 %v2283
        %v2418 = vpop.f32.mrf.mxu0
        %v2419 = vadd.f32 0.0, %v2418
        %v2420 = vpop.f32.mrf.mxu0
        %v2421 = vpop.f32.mrf.mxu0
        %v2422 = vadd.f32 0.0, %v2421
        %v2423 = vpop.f32.mrf.mxu0
        %2424 = vmatprep.mubr.bf16.mxu0 0
        %2425 = vmatmul.mubr.bf16.gmra.mxu0 %v2284
        %v2426 = vpop.f32.mrf.mxu0
        %v2427 = vadd.f32 0.0, %v2426
        %v2428 = vpop.f32.mrf.mxu0
        %v2429 = vpop.f32.mrf.mxu0
        %v2430 = vadd.f32 0.0, %v2429
        %v2431 = vpop.f32.mrf.mxu0
        %2432 = vmatprep.mubr.bf16.mxu0 0
        %2433 = vmatmul.mubr.bf16.gmra.mxu0 %v2285
        %v2434 = vpop.f32.mrf.mxu0
        %v2435 = vadd.f32 0.0, %v2434
        %v2436 = vpop.f32.mrf.mxu0
        %v2437 = vpop.f32.mrf.mxu0
        %v2438 = vadd.f32 0.0, %v2437
        %v2439 = vpop.f32.mrf.mxu0
        %2440 = vmatprep.mubr.bf16.mxu0 0
        %2441 = vmatmul.mubr.bf16.gmra.mxu0 %v2286
        %v2442 = vpop.f32.mrf.mxu0
        %v2443 = vadd.f32 0.0, %v2442
        %v2444 = vpop.f32.mrf.mxu0
        %v2445 = vpop.f32.mrf.mxu0
        %v2446 = vadd.f32 0.0, %v2445
        %v2447 = vpop.f32.mrf.mxu0
        %2448 = vmatprep.mubr.bf16.mxu0 0
        %2449 = vmatmul.mubr.bf16.gmra.mxu0 %v2287
        %v2450 = vpop.f32.mrf.mxu0
        %v2451 = vadd.f32 0.0, %v2450
        %v2452 = vpop.f32.mrf.mxu0
        %v2453 = vpop.f32.mrf.mxu0
        %v2454 = vadd.f32 0.0, %v2453
        %v2455 = vpop.f32.mrf.mxu0
        %2456 = vmatprep.mubr.bf16.mxu0 0
        %2457 = vmatmul.mubr.bf16.gmra.mxu0 %v2288
        %v2458 = vpop.f32.mrf.mxu0
        %v2459 = vadd.f32 0.0, %v2458
        %v2460 = vpop.f32.mrf.mxu0
        %v2461 = vpop.f32.mrf.mxu0
        %v2462 = vadd.f32 0.0, %v2461
        %v2463 = vpop.f32.mrf.mxu0
        %2464 = vmatprep.mubr.bf16.mxu0 0
        %2465 = vmatmul.mubr.bf16.gmra.mxu0 %v2289
        %v2466 = vpop.f32.mrf.mxu0
        %v2467 = vadd.f32 0.0, %v2466
        %v2468 = vpop.f32.mrf.mxu0
        %v2469 = vpop.f32.mrf.mxu0
        %v2470 = vadd.f32 0.0, %v2469
        %v2471 = vpop.f32.mrf.mxu0
        %2472 = vmatprep.mubr.bf16.mxu0 0
        %2473 = vmatmul.mubr.bf16.gmra.mxu0 %v2290
        %v2474 = vpop.f32.mrf.mxu0
        %v2475 = vadd.f32 0.0, %v2474
        %v2476 = vpop.f32.mrf.mxu0
        %v2477 = vpop.f32.mrf.mxu0
        %v2478 = vadd.f32 0.0, %v2477
        %v2479 = vpop.f32.mrf.mxu0
        %2480 = vmatprep.mubr.bf16.mxu0 0
        %2481 = vmatmul.mubr.bf16.gmra.mxu0 %v2291
        %v2482 = vpop.f32.mrf.mxu0
        %v2483 = vadd.f32 0.0, %v2482
        %v2484 = vpop.f32.mrf.mxu0
        %v2485 = vpop.f32.mrf.mxu0
        %v2486 = vadd.f32 0.0, %v2485
        %v2487 = vpop.f32.mrf.mxu0
        %2488 = vmatprep.mubr.bf16.mxu0 0
        %2489 = vmatmul.mubr.bf16.gmra.mxu0 %v2292
        %v2490 = vpop.f32.mrf.mxu0
        %v2491 = vadd.f32 0.0, %v2490
        %v2492 = vpop.f32.mrf.mxu0
        %v2493 = vpop.f32.mrf.mxu0
        %v2494 = vadd.f32 0.0, %v2493
        %v2495 = vpop.f32.mrf.mxu0
        %2496 = vmatprep.mubr.bf16.mxu0 0
        %2497 = vmatmul.mubr.bf16.gmra.mxu0 %v2293
        %v2498 = vpop.f32.mrf.mxu0
        %v2499 = vadd.f32 0.0, %v2498
        %v2500 = vpop.f32.mrf.mxu0
        %v2501 = vpop.f32.mrf.mxu0
        %v2502 = vadd.f32 0.0, %v2501
        %v2503 = vpop.f32.mrf.mxu0
        %2504 = vmatprep.mubr.bf16.mxu0 0
        %2505 = vmatmul.mubr.bf16.gmra.mxu0 %v2294
        %v2506 = vpop.f32.mrf.mxu0
        %v2507 = vadd.f32 0.0, %v2506
        %v2508 = vpop.f32.mrf.mxu0
        %v2509 = vpop.f32.mrf.mxu0
        %v2510 = vadd.f32 0.0, %v2509
        %v2511 = vpop.f32.mrf.mxu0
        %2512 = vmatprep.mubr.bf16.mxu0 0
        %2513 = vmatmul.mubr.bf16.gmra.mxu0 %v2295
        %v2514 = vpop.f32.mrf.mxu0
        %v2515 = vadd.f32 0.0, %v2514
        %v2516 = vpop.f32.mrf.mxu0
        %v2517 = vpop.f32.mrf.mxu0
        %v2518 = vadd.f32 0.0, %v2517
        %v2519 = vpop.f32.mrf.mxu0
        %2520 = vdwg.mxu0
        %v2521 = vadd.f32 %v2216, %v2395
        %v2522 = vadd.f32 %v2217, %v2398
        %v2523 = vadd.f32 %v2218, %v2403
        %v2524 = vadd.f32 %v2219, %v2406
        %v2525 = vadd.f32 %v2220, %v2411
        %v2526 = vadd.f32 %v2221, %v2414
        %v2527 = vadd.f32 %v2222, %v2419
        %v2528 = vadd.f32 %v2223, %v2422
        %v2529 = vadd.f32 %v2224, %v2427
        %v2530 = vadd.f32 %v2225, %v2430
        %v2531 = vadd.f32 %v2226, %v2435
        %v2532 = vadd.f32 %v2227, %v2438
        %v2533 = vadd.f32 %v2228, %v2443
        %v2534 = vadd.f32 %v2229, %v2446
        %v2535 = vadd.f32 %v2230, %v2451
        %v2536 = vadd.f32 %v2231, %v2454
        %v2537 = vadd.f32 %v2232, %v2459
        %v2538 = vadd.f32 %v2233, %v2462
        %v2539 = vadd.f32 %v2234, %v2467
        %v2540 = vadd.f32 %v2235, %v2470
        %v2541 = vadd.f32 %v2236, %v2475
        %v2542 = vadd.f32 %v2237, %v2478
        %v2543 = vadd.f32 %v2238, %v2483
        %v2544 = vadd.f32 %v2239, %v2486
        %v2545 = vadd.f32 %v2240, %v2491
        %v2546 = vadd.f32 %v2241, %v2494
        %v2547 = vadd.f32 %v2242, %v2499
        %v2548 = vadd.f32 %v2243, %v2502
        %v2549 = vadd.f32 %v2244, %v2507
        %v2550 = vadd.f32 %v2245, %v2510
        %v2551 = vadd.f32 %v2246, %v2515
        %v2552 = vadd.f32 %v2247, %v2518
        %s2553 = scalar_lea.vmem %s784, 48
        %v2554 = vld [vmem:[%s2553] sm:$0xff]
        %v2555 = vld [vmem:[%s2553 + $0x8] sm:$0xff]
        %v2556 = vld [vmem:[%s2553 + $0x18] sm:$0xff]
        %v2557 = vld [vmem:[%s2553 + $0x20] sm:$0xff]
        %v2558 = vld [vmem:[%s2553 + $0x30] sm:$0xff]
        %v2559 = vld [vmem:[%s2553 + $0x38] sm:$0xff]
        %v2560 = vld [vmem:[%s2553 + $0x48] sm:$0xff]
        %v2561 = vld [vmem:[%s2553 + $0x50] sm:$0xff]
        %v2562 = vld [vmem:[%s2553 + $0x60] sm:$0xff]
        %v2563 = vld [vmem:[%s2553 + $0x68] sm:$0xff]
        %v2564 = vld [vmem:[%s2553 + $0x78] sm:$0xff]
        %v2565 = vld [vmem:[%s2553 + $0x80] sm:$0xff]
        %v2566 = vld [vmem:[%s2553 + $0x90] sm:$0xff]
        %v2567 = vld [vmem:[%s2553 + $0x98] sm:$0xff]
        %v2568 = vld [vmem:[%s2553 + $0xa8] sm:$0xff]
        %v2569 = vld [vmem:[%s2553 + $0xb0] sm:$0xff]
        %v2570 = vld [vmem:[%s2553 + $0xc0] sm:$0xff]
        %v2571 = vld [vmem:[%s2553 + $0xc8] sm:$0xff]
        %v2572 = vld [vmem:[%s2553 + $0xd8] sm:$0xff]
        %v2573 = vld [vmem:[%s2553 + $0xe0] sm:$0xff]
        %v2574 = vld [vmem:[%s2553 + $0xf0] sm:$0xff]
        %v2575 = vld [vmem:[%s2553 + $0xf8] sm:$0xff]
        %v2576 = vld [vmem:[%s2553 + $0x108] sm:$0xff]
        %v2577 = vld [vmem:[%s2553 + $0x110] sm:$0xff]
        %v2578 = vld [vmem:[%s2553 + $0x120] sm:$0xff]
        %v2579 = vld [vmem:[%s2553 + $0x128] sm:$0xff]
        %v2580 = vld [vmem:[%s2553 + $0x138] sm:$0xff]
        %v2581 = vld [vmem:[%s2553 + $0x140] sm:$0xff]
        %v2582 = vld [vmem:[%s2553 + $0x150] sm:$0xff]
        %v2583 = vld [vmem:[%s2553 + $0x158] sm:$0xff]
        %v2584 = vld [vmem:[%s2553 + $0x168] sm:$0xff]
        %v2585 = vld [vmem:[%s2553 + $0x170] sm:$0xff]
        %v2586 = vpack.c.bf16 %v2555, %v2554
        %v2587 = vpack.c.bf16 %v2557, %v2556
        %v2588 = vpack.c.bf16 %v2559, %v2558
        %v2589 = vpack.c.bf16 %v2561, %v2560
        %v2590 = vpack.c.bf16 %v2563, %v2562
        %v2591 = vpack.c.bf16 %v2565, %v2564
        %v2592 = vpack.c.bf16 %v2567, %v2566
        %v2593 = vpack.c.bf16 %v2569, %v2568
        %v2594 = vpack.c.bf16 %v2571, %v2570
        %v2595 = vpack.c.bf16 %v2573, %v2572
        %v2596 = vpack.c.bf16 %v2575, %v2574
        %v2597 = vpack.c.bf16 %v2577, %v2576
        %v2598 = vpack.c.bf16 %v2579, %v2578
        %v2599 = vpack.c.bf16 %v2581, %v2580
        %v2600 = vpack.c.bf16 %v2583, %v2582
        %v2601 = vpack.c.bf16 %v2585, %v2584
        %v2602 = vld [vmem:[%s1 + $0x180] sm:$0xf]
        %v2603 = vld [vmem:[%s1 + $0x184] sm:$0xf]
        %v2604 = vld [vmem:[%s1 + $0x188] sm:$0xf]
        %v2605 = vld [vmem:[%s1 + $0x18c] sm:$0xf]
        %v2606 = vld [vmem:[%s1 + $0x190] sm:$0xf]
        %v2607 = vld [vmem:[%s1 + $0x194] sm:$0xf]
        %v2608 = vld [vmem:[%s1 + $0x198] sm:$0xf]
        %v2609 = vld [vmem:[%s1 + $0x19c] sm:$0xf]
        %v2610 = vld [vmem:[%s1 + $0x1a0] sm:$0xf]
        %v2611 = vld [vmem:[%s1 + $0x1a4] sm:$0xf]
        %v2612 = vld [vmem:[%s1 + $0x1a8] sm:$0xf]
        %v2613 = vld [vmem:[%s1 + $0x1ac] sm:$0xf]
        %v2614 = vld [vmem:[%s1 + $0x1b0] sm:$0xf]
        %v2615 = vld [vmem:[%s1 + $0x1b4] sm:$0xf]
        %v2616 = vld [vmem:[%s1 + $0x1b8] sm:$0xf]
        %v2617 = vld [vmem:[%s1 + $0x1bc] sm:$0xf]
        %v2634 = vunpack.c.l.b16 %v2602
        %v2635 = vunpack.c.l.b16 %v2603
        %v2636 = vunpack.c.l.b16 %v2604
        %v2637 = vunpack.c.l.b16 %v2605
        %v2638 = vunpack.c.l.b16 %v2606
        %v2639 = vunpack.c.l.b16 %v2607
        %v2640 = vunpack.c.l.b16 %v2608
        %v2641 = vunpack.c.l.b16 %v2609
        %v2642 = vunpack.c.l.b16 %v2610
        %v2643 = vunpack.c.l.b16 %v2611
        %v2644 = vunpack.c.l.b16 %v2612
        %v2645 = vunpack.c.l.b16 %v2613
        %v2646 = vunpack.c.l.b16 %v2614
        %v2647 = vunpack.c.l.b16 %v2615
        %v2648 = vunpack.c.l.b16 %v2616
        %v2649 = vunpack.c.l.b16 %v2617
        %v2650 = vpack.c.b16 %v2635, %v2634
        %v2651 = vpack.c.b16 %v2637, %v2636
        %v2652 = vpack.c.b16 %v2639, %v2638
        %v2653 = vpack.c.b16 %v2641, %v2640
        %v2654 = vpack.c.b16 %v2643, %v2642
        %v2655 = vpack.c.b16 %v2645, %v2644
        %v2656 = vpack.c.b16 %v2647, %v2646
        %v2657 = vpack.c.b16 %v2649, %v2648
        %2666 = vmatprep.subr.bf16.mxu0 0
        %2667 = vmatpush1.bf16.msra.mxu0 %v2657
        %2668 = vmatprep.subr.bf16.mxu0 0
        %2669 = vmatpush1.bf16.msra.mxu0 %v2656
        %2670 = vmatprep.subr.bf16.mxu0 0
        %2671 = vmatpush1.bf16.msra.mxu0 %v2655
        %2672 = vmatprep.subr.bf16.mxu0 0
        %2673 = vmatpush1.bf16.msra.mxu0 %v2654
        %2674 = vmatprep.subr.bf16.mxu0 0
        %2675 = vmatpush1.bf16.msra.mxu0 %v2653
        %2676 = vmatprep.subr.bf16.mxu0 0
        %2677 = vmatpush1.bf16.msra.mxu0 %v2652
        %2678 = vmatprep.subr.bf16.mxu0 0
        %2679 = vmatpush1.bf16.msra.mxu0 %v2651
        %2680 = vmatprep.subr.bf16.mxu0 0
        %2681 = vmatpush1.bf16.msra.mxu0 %v2650
        %2682 = vmatprep.subr.bf16.mxu0 0
        %2683 = vmatpush2.bf16.msra.mxu0 0
        %2684 = vmatprep.subr.bf16.mxu0 0
        %2685 = vmatpush2.bf16.msra.mxu0 0
        %2686 = vmatprep.subr.bf16.mxu0 0
        %2687 = vmatpush2.bf16.msra.mxu0 0
        %2688 = vmatprep.subr.bf16.mxu0 0
        %2689 = vmatpush2.bf16.msra.mxu0 0
        %2690 = vmatprep.subr.bf16.mxu0 0
        %2691 = vmatpush2.bf16.msra.mxu0 0
        %2692 = vmatprep.subr.bf16.mxu0 0
        %2693 = vmatpush2.bf16.msra.mxu0 0
        %2694 = vmatprep.subr.bf16.mxu0 0
        %2695 = vmatpush2.bf16.msra.mxu0 0
        %2696 = vmatprep.subr.bf16.mxu0 0
        %2697 = vmatpush2.bf16.msra.mxu0 0
        %2698 = vmatprep.mubr.bf16.mxu0 0
        %2699 = vmatmul.mubr.bf16.gmra.mxu0 %v2586
        %v2700 = vpop.f32.mrf.mxu0
        %v2701 = vadd.f32 0.0, %v2700
        %v2702 = vpop.f32.mrf.mxu0
        %v2703 = vpop.f32.mrf.mxu0
        %v2704 = vadd.f32 0.0, %v2703
        %v2705 = vpop.f32.mrf.mxu0
        %2706 = vmatprep.mubr.bf16.mxu0 0
        %2707 = vmatmul.mubr.bf16.gmra.mxu0 %v2587
        %v2708 = vpop.f32.mrf.mxu0
        %v2709 = vadd.f32 0.0, %v2708
        %v2710 = vpop.f32.mrf.mxu0
        %v2711 = vpop.f32.mrf.mxu0
        %v2712 = vadd.f32 0.0, %v2711
        %v2713 = vpop.f32.mrf.mxu0
        %2714 = vmatprep.mubr.bf16.mxu0 0
        %2715 = vmatmul.mubr.bf16.gmra.mxu0 %v2588
        %v2716 = vpop.f32.mrf.mxu0
        %v2717 = vadd.f32 0.0, %v2716
        %v2718 = vpop.f32.mrf.mxu0
        %v2719 = vpop.f32.mrf.mxu0
        %v2720 = vadd.f32 0.0, %v2719
        %v2721 = vpop.f32.mrf.mxu0
        %2722 = vmatprep.mubr.bf16.mxu0 0
        %2723 = vmatmul.mubr.bf16.gmra.mxu0 %v2589
        %v2724 = vpop.f32.mrf.mxu0
        %v2725 = vadd.f32 0.0, %v2724
        %v2726 = vpop.f32.mrf.mxu0
        %v2727 = vpop.f32.mrf.mxu0
        %v2728 = vadd.f32 0.0, %v2727
        %v2729 = vpop.f32.mrf.mxu0
        %2730 = vmatprep.mubr.bf16.mxu0 0
        %2731 = vmatmul.mubr.bf16.gmra.mxu0 %v2590
        %v2732 = vpop.f32.mrf.mxu0
        %v2733 = vadd.f32 0.0, %v2732
        %v2734 = vpop.f32.mrf.mxu0
        %v2735 = vpop.f32.mrf.mxu0
        %v2736 = vadd.f32 0.0, %v2735
        %v2737 = vpop.f32.mrf.mxu0
        %2738 = vmatprep.mubr.bf16.mxu0 0
        %2739 = vmatmul.mubr.bf16.gmra.mxu0 %v2591
        %v2740 = vpop.f32.mrf.mxu0
        %v2741 = vadd.f32 0.0, %v2740
        %v2742 = vpop.f32.mrf.mxu0
        %v2743 = vpop.f32.mrf.mxu0
        %v2744 = vadd.f32 0.0, %v2743
        %v2745 = vpop.f32.mrf.mxu0
        %2746 = vmatprep.mubr.bf16.mxu0 0
        %2747 = vmatmul.mubr.bf16.gmra.mxu0 %v2592
        %v2748 = vpop.f32.mrf.mxu0
        %v2749 = vadd.f32 0.0, %v2748
        %v2750 = vpop.f32.mrf.mxu0
        %v2751 = vpop.f32.mrf.mxu0
        %v2752 = vadd.f32 0.0, %v2751
        %v2753 = vpop.f32.mrf.mxu0
        %2754 = vmatprep.mubr.bf16.mxu0 0
        %2755 = vmatmul.mubr.bf16.gmra.mxu0 %v2593
        %v2756 = vpop.f32.mrf.mxu0
        %v2757 = vadd.f32 0.0, %v2756
        %v2758 = vpop.f32.mrf.mxu0
        %v2759 = vpop.f32.mrf.mxu0
        %v2760 = vadd.f32 0.0, %v2759
        %v2761 = vpop.f32.mrf.mxu0
        %2762 = vmatprep.mubr.bf16.mxu0 0
        %2763 = vmatmul.mubr.bf16.gmra.mxu0 %v2594
        %v2764 = vpop.f32.mrf.mxu0
        %v2765 = vadd.f32 0.0, %v2764
        %v2766 = vpop.f32.mrf.mxu0
        %v2767 = vpop.f32.mrf.mxu0
        %v2768 = vadd.f32 0.0, %v2767
        %v2769 = vpop.f32.mrf.mxu0
        %2770 = vmatprep.mubr.bf16.mxu0 0
        %2771 = vmatmul.mubr.bf16.gmra.mxu0 %v2595
        %v2772 = vpop.f32.mrf.mxu0
        %v2773 = vadd.f32 0.0, %v2772
        %v2774 = vpop.f32.mrf.mxu0
        %v2775 = vpop.f32.mrf.mxu0
        %v2776 = vadd.f32 0.0, %v2775
        %v2777 = vpop.f32.mrf.mxu0
        %2778 = vmatprep.mubr.bf16.mxu0 0
        %2779 = vmatmul.mubr.bf16.gmra.mxu0 %v2596
        %v2780 = vpop.f32.mrf.mxu0
        %v2781 = vadd.f32 0.0, %v2780
        %v2782 = vpop.f32.mrf.mxu0
        %v2783 = vpop.f32.mrf.mxu0
        %v2784 = vadd.f32 0.0, %v2783
        %v2785 = vpop.f32.mrf.mxu0
        %2786 = vmatprep.mubr.bf16.mxu0 0
        %2787 = vmatmul.mubr.bf16.gmra.mxu0 %v2597
        %v2788 = vpop.f32.mrf.mxu0
        %v2789 = vadd.f32 0.0, %v2788
        %v2790 = vpop.f32.mrf.mxu0
        %v2791 = vpop.f32.mrf.mxu0
        %v2792 = vadd.f32 0.0, %v2791
        %v2793 = vpop.f32.mrf.mxu0
        %2794 = vmatprep.mubr.bf16.mxu0 0
        %2795 = vmatmul.mubr.bf16.gmra.mxu0 %v2598
        %v2796 = vpop.f32.mrf.mxu0
        %v2797 = vadd.f32 0.0, %v2796
        %v2798 = vpop.f32.mrf.mxu0
        %v2799 = vpop.f32.mrf.mxu0
        %v2800 = vadd.f32 0.0, %v2799
        %v2801 = vpop.f32.mrf.mxu0
        %2802 = vmatprep.mubr.bf16.mxu0 0
        %2803 = vmatmul.mubr.bf16.gmra.mxu0 %v2599
        %v2804 = vpop.f32.mrf.mxu0
        %v2805 = vadd.f32 0.0, %v2804
        %v2806 = vpop.f32.mrf.mxu0
        %v2807 = vpop.f32.mrf.mxu0
        %v2808 = vadd.f32 0.0, %v2807
        %v2809 = vpop.f32.mrf.mxu0
        %2810 = vmatprep.mubr.bf16.mxu0 0
        %2811 = vmatmul.mubr.bf16.gmra.mxu0 %v2600
        %v2812 = vpop.f32.mrf.mxu0
        %v2813 = vadd.f32 0.0, %v2812
        %v2814 = vpop.f32.mrf.mxu0
        %v2815 = vpop.f32.mrf.mxu0
        %v2816 = vadd.f32 0.0, %v2815
        %v2817 = vpop.f32.mrf.mxu0
        %2818 = vmatprep.mubr.bf16.mxu0 0
        %2819 = vmatmul.mubr.bf16.gmra.mxu0 %v2601
        %v2820 = vpop.f32.mrf.mxu0
        %v2821 = vadd.f32 0.0, %v2820
        %v2822 = vpop.f32.mrf.mxu0
        %v2823 = vpop.f32.mrf.mxu0
        %v2824 = vadd.f32 0.0, %v2823
        %v2825 = vpop.f32.mrf.mxu0
        %2826 = vdwg.mxu0
        %v2827 = vadd.f32 %v2521, %v2701
        %v2828 = vadd.f32 %v2522, %v2704
        %v2829 = vadd.f32 %v2523, %v2709
        %v2830 = vadd.f32 %v2524, %v2712
        %v2831 = vadd.f32 %v2525, %v2717
        %v2832 = vadd.f32 %v2526, %v2720
        %v2833 = vadd.f32 %v2527, %v2725
        %v2834 = vadd.f32 %v2528, %v2728
        %v2835 = vadd.f32 %v2529, %v2733
        %v2836 = vadd.f32 %v2530, %v2736
        %v2837 = vadd.f32 %v2531, %v2741
        %v2838 = vadd.f32 %v2532, %v2744
        %v2839 = vadd.f32 %v2533, %v2749
        %v2840 = vadd.f32 %v2534, %v2752
        %v2841 = vadd.f32 %v2535, %v2757
        %v2842 = vadd.f32 %v2536, %v2760
        %v2843 = vadd.f32 %v2537, %v2765
        %v2844 = vadd.f32 %v2538, %v2768
        %v2845 = vadd.f32 %v2539, %v2773
        %v2846 = vadd.f32 %v2540, %v2776
        %v2847 = vadd.f32 %v2541, %v2781
        %v2848 = vadd.f32 %v2542, %v2784
        %v2849 = vadd.f32 %v2543, %v2789
        %v2850 = vadd.f32 %v2544, %v2792
        %v2851 = vadd.f32 %v2545, %v2797
        %v2852 = vadd.f32 %v2546, %v2800
        %v2853 = vadd.f32 %v2547, %v2805
        %v2854 = vadd.f32 %v2548, %v2808
        %v2855 = vadd.f32 %v2549, %v2813
        %v2856 = vadd.f32 %v2550, %v2816
        %v2857 = vadd.f32 %v2551, %v2821
        %v2858 = vadd.f32 %v2552, %v2824
        %v2859 = vld [vmem:[%s2553 + $0x1] sm:$0xff]
        %v2860 = vld [vmem:[%s2553 + $0x9] sm:$0xff]
        %v2861 = vld [vmem:[%s2553 + $0x19] sm:$0xff]
        %v2862 = vld [vmem:[%s2553 + $0x21] sm:$0xff]
        %v2863 = vld [vmem:[%s2553 + $0x31] sm:$0xff]
        %v2864 = vld [vmem:[%s2553 + $0x39] sm:$0xff]
        %v2865 = vld [vmem:[%s2553 + $0x49] sm:$0xff]
        %v2866 = vld [vmem:[%s2553 + $0x51] sm:$0xff]
        %v2867 = vld [vmem:[%s2553 + $0x61] sm:$0xff]
        %v2868 = vld [vmem:[%s2553 + $0x69] sm:$0xff]
        %v2869 = vld [vmem:[%s2553 + $0x79] sm:$0xff]
        %v2870 = vld [vmem:[%s2553 + $0x81] sm:$0xff]
        %v2871 = vld [vmem:[%s2553 + $0x91] sm:$0xff]
        %v2872 = vld [vmem:[%s2553 + $0x99] sm:$0xff]
        %v2873 = vld [vmem:[%s2553 + $0xa9] sm:$0xff]
        %v2874 = vld [vmem:[%s2553 + $0xb1] sm:$0xff]
        %v2875 = vld [vmem:[%s2553 + $0xc1] sm:$0xff]
        %v2876 = vld [vmem:[%s2553 + $0xc9] sm:$0xff]
        %v2877 = vld [vmem:[%s2553 + $0xd9] sm:$0xff]
        %v2878 = vld [vmem:[%s2553 + $0xe1] sm:$0xff]
        %v2879 = vld [vmem:[%s2553 + $0xf1] sm:$0xff]
        %v2880 = vld [vmem:[%s2553 + $0xf9] sm:$0xff]
        %v2881 = vld [vmem:[%s2553 + $0x109] sm:$0xff]
        %v2882 = vld [vmem:[%s2553 + $0x111] sm:$0xff]
        %v2883 = vld [vmem:[%s2553 + $0x121] sm:$0xff]
        %v2884 = vld [vmem:[%s2553 + $0x129] sm:$0xff]
        %v2885 = vld [vmem:[%s2553 + $0x139] sm:$0xff]
        %v2886 = vld [vmem:[%s2553 + $0x141] sm:$0xff]
        %v2887 = vld [vmem:[%s2553 + $0x151] sm:$0xff]
        %v2888 = vld [vmem:[%s2553 + $0x159] sm:$0xff]
        %v2889 = vld [vmem:[%s2553 + $0x169] sm:$0xff]
        %v2890 = vld [vmem:[%s2553 + $0x171] sm:$0xff]
        %v2891 = vpack.c.bf16 %v2860, %v2859
        %v2892 = vpack.c.bf16 %v2862, %v2861
        %v2893 = vpack.c.bf16 %v2864, %v2863
        %v2894 = vpack.c.bf16 %v2866, %v2865
        %v2895 = vpack.c.bf16 %v2868, %v2867
        %v2896 = vpack.c.bf16 %v2870, %v2869
        %v2897 = vpack.c.bf16 %v2872, %v2871
        %v2898 = vpack.c.bf16 %v2874, %v2873
        %v2899 = vpack.c.bf16 %v2876, %v2875
        %v2900 = vpack.c.bf16 %v2878, %v2877
        %v2901 = vpack.c.bf16 %v2880, %v2879
        %v2902 = vpack.c.bf16 %v2882, %v2881
        %v2903 = vpack.c.bf16 %v2884, %v2883
        %v2904 = vpack.c.bf16 %v2886, %v2885
        %v2905 = vpack.c.bf16 %v2888, %v2887
        %v2906 = vpack.c.bf16 %v2890, %v2889
        %v2907 = vld [vmem:[%s1 + $0x1c0] sm:$0xf]
        %v2908 = vld [vmem:[%s1 + $0x1c4] sm:$0xf]
        %v2909 = vld [vmem:[%s1 + $0x1c8] sm:$0xf]
        %v2910 = vld [vmem:[%s1 + $0x1cc] sm:$0xf]
        %v2911 = vld [vmem:[%s1 + $0x1d0] sm:$0xf]
        %v2912 = vld [vmem:[%s1 + $0x1d4] sm:$0xf]
        %v2913 = vld [vmem:[%s1 + $0x1d8] sm:$0xf]
        %v2914 = vld [vmem:[%s1 + $0x1dc] sm:$0xf]
        %v2915 = vld [vmem:[%s1 + $0x1e0] sm:$0xf]
        %v2916 = vld [vmem:[%s1 + $0x1e4] sm:$0xf]
        %v2917 = vld [vmem:[%s1 + $0x1e8] sm:$0xf]
        %v2918 = vld [vmem:[%s1 + $0x1ec] sm:$0xf]
        %v2919 = vld [vmem:[%s1 + $0x1f0] sm:$0xf]
        %v2920 = vld [vmem:[%s1 + $0x1f4] sm:$0xf]
        %v2921 = vld [vmem:[%s1 + $0x1f8] sm:$0xf]
        %v2922 = vld [vmem:[%s1 + $0x1fc] sm:$0xf]
        %v2939 = vunpack.c.l.b16 %v2907
        %v2940 = vunpack.c.l.b16 %v2908
        %v2941 = vunpack.c.l.b16 %v2909
        %v2942 = vunpack.c.l.b16 %v2910
        %v2943 = vunpack.c.l.b16 %v2911
        %v2944 = vunpack.c.l.b16 %v2912
        %v2945 = vunpack.c.l.b16 %v2913
        %v2946 = vunpack.c.l.b16 %v2914
        %v2947 = vunpack.c.l.b16 %v2915
        %v2948 = vunpack.c.l.b16 %v2916
        %v2949 = vunpack.c.l.b16 %v2917
        %v2950 = vunpack.c.l.b16 %v2918
        %v2951 = vunpack.c.l.b16 %v2919
        %v2952 = vunpack.c.l.b16 %v2920
        %v2953 = vunpack.c.l.b16 %v2921
        %v2954 = vunpack.c.l.b16 %v2922
        %v2955 = vpack.c.b16 %v2940, %v2939
        %v2956 = vpack.c.b16 %v2942, %v2941
        %v2957 = vpack.c.b16 %v2944, %v2943
        %v2958 = vpack.c.b16 %v2946, %v2945
        %v2959 = vpack.c.b16 %v2948, %v2947
        %v2960 = vpack.c.b16 %v2950, %v2949
        %v2961 = vpack.c.b16 %v2952, %v2951
        %v2962 = vpack.c.b16 %v2954, %v2953
        %2971 = vmatprep.subr.bf16.mxu0 0
        %2972 = vmatpush1.bf16.msra.mxu0 %v2962
        %2973 = vmatprep.subr.bf16.mxu0 0
        %2974 = vmatpush1.bf16.msra.mxu0 %v2961
        %2975 = vmatprep.subr.bf16.mxu0 0
        %2976 = vmatpush1.bf16.msra.mxu0 %v2960
        %2977 = vmatprep.subr.bf16.mxu0 0
        %2978 = vmatpush1.bf16.msra.mxu0 %v2959
        %2979 = vmatprep.subr.bf16.mxu0 0
        %2980 = vmatpush1.bf16.msra.mxu0 %v2958
        %2981 = vmatprep.subr.bf16.mxu0 0
        %2982 = vmatpush1.bf16.msra.mxu0 %v2957
        %2983 = vmatprep.subr.bf16.mxu0 0
        %2984 = vmatpush1.bf16.msra.mxu0 %v2956
        %2985 = vmatprep.subr.bf16.mxu0 0
        %2986 = vmatpush1.bf16.msra.mxu0 %v2955
        %2987 = vmatprep.subr.bf16.mxu0 0
        %2988 = vmatpush2.bf16.msra.mxu0 0
        %2989 = vmatprep.subr.bf16.mxu0 0
        %2990 = vmatpush2.bf16.msra.mxu0 0
        %2991 = vmatprep.subr.bf16.mxu0 0
        %2992 = vmatpush2.bf16.msra.mxu0 0
        %2993 = vmatprep.subr.bf16.mxu0 0
        %2994 = vmatpush2.bf16.msra.mxu0 0
        %2995 = vmatprep.subr.bf16.mxu0 0
        %2996 = vmatpush2.bf16.msra.mxu0 0
        %2997 = vmatprep.subr.bf16.mxu0 0
        %2998 = vmatpush2.bf16.msra.mxu0 0
        %2999 = vmatprep.subr.bf16.mxu0 0
        %3000 = vmatpush2.bf16.msra.mxu0 0
        %3001 = vmatprep.subr.bf16.mxu0 0
        %3002 = vmatpush2.bf16.msra.mxu0 0
        %3003 = vmatprep.mubr.bf16.mxu0 0
        %3004 = vmatmul.mubr.bf16.gmra.mxu0 %v2891
        %v3005 = vpop.f32.mrf.mxu0
        %v3006 = vadd.f32 0.0, %v3005
        %v3007 = vpop.f32.mrf.mxu0
        %v3008 = vpop.f32.mrf.mxu0
        %v3009 = vadd.f32 0.0, %v3008
        %v3010 = vpop.f32.mrf.mxu0
        %3011 = vmatprep.mubr.bf16.mxu0 0
        %3012 = vmatmul.mubr.bf16.gmra.mxu0 %v2892
        %v3013 = vpop.f32.mrf.mxu0
        %v3014 = vadd.f32 0.0, %v3013
        %v3015 = vpop.f32.mrf.mxu0
        %v3016 = vpop.f32.mrf.mxu0
        %v3017 = vadd.f32 0.0, %v3016
        %v3018 = vpop.f32.mrf.mxu0
        %3019 = vmatprep.mubr.bf16.mxu0 0
        %3020 = vmatmul.mubr.bf16.gmra.mxu0 %v2893
        %v3021 = vpop.f32.mrf.mxu0
        %v3022 = vadd.f32 0.0, %v3021
        %v3023 = vpop.f32.mrf.mxu0
        %v3024 = vpop.f32.mrf.mxu0
        %v3025 = vadd.f32 0.0, %v3024
        %v3026 = vpop.f32.mrf.mxu0
        %3027 = vmatprep.mubr.bf16.mxu0 0
        %3028 = vmatmul.mubr.bf16.gmra.mxu0 %v2894
        %v3029 = vpop.f32.mrf.mxu0
        %v3030 = vadd.f32 0.0, %v3029
        %v3031 = vpop.f32.mrf.mxu0
        %v3032 = vpop.f32.mrf.mxu0
        %v3033 = vadd.f32 0.0, %v3032
        %v3034 = vpop.f32.mrf.mxu0
        %3035 = vmatprep.mubr.bf16.mxu0 0
        %3036 = vmatmul.mubr.bf16.gmra.mxu0 %v2895
        %v3037 = vpop.f32.mrf.mxu0
        %v3038 = vadd.f32 0.0, %v3037
        %v3039 = vpop.f32.mrf.mxu0
        %v3040 = vpop.f32.mrf.mxu0
        %v3041 = vadd.f32 0.0, %v3040
        %v3042 = vpop.f32.mrf.mxu0
        %3043 = vmatprep.mubr.bf16.mxu0 0
        %3044 = vmatmul.mubr.bf16.gmra.mxu0 %v2896
        %v3045 = vpop.f32.mrf.mxu0
        %v3046 = vadd.f32 0.0, %v3045
        %v3047 = vpop.f32.mrf.mxu0
        %v3048 = vpop.f32.mrf.mxu0
        %v3049 = vadd.f32 0.0, %v3048
        %v3050 = vpop.f32.mrf.mxu0
        %3051 = vmatprep.mubr.bf16.mxu0 0
        %3052 = vmatmul.mubr.bf16.gmra.mxu0 %v2897
        %v3053 = vpop.f32.mrf.mxu0
        %v3054 = vadd.f32 0.0, %v3053
        %v3055 = vpop.f32.mrf.mxu0
        %v3056 = vpop.f32.mrf.mxu0
        %v3057 = vadd.f32 0.0, %v3056
        %v3058 = vpop.f32.mrf.mxu0
        %3059 = vmatprep.mubr.bf16.mxu0 0
        %3060 = vmatmul.mubr.bf16.gmra.mxu0 %v2898
        %v3061 = vpop.f32.mrf.mxu0
        %v3062 = vadd.f32 0.0, %v3061
        %v3063 = vpop.f32.mrf.mxu0
        %v3064 = vpop.f32.mrf.mxu0
        %v3065 = vadd.f32 0.0, %v3064
        %v3066 = vpop.f32.mrf.mxu0
        %3067 = vmatprep.mubr.bf16.mxu0 0
        %3068 = vmatmul.mubr.bf16.gmra.mxu0 %v2899
        %v3069 = vpop.f32.mrf.mxu0
        %v3070 = vadd.f32 0.0, %v3069
        %v3071 = vpop.f32.mrf.mxu0
        %v3072 = vpop.f32.mrf.mxu0
        %v3073 = vadd.f32 0.0, %v3072
        %v3074 = vpop.f32.mrf.mxu0
        %3075 = vmatprep.mubr.bf16.mxu0 0
        %3076 = vmatmul.mubr.bf16.gmra.mxu0 %v2900
        %v3077 = vpop.f32.mrf.mxu0
        %v3078 = vadd.f32 0.0, %v3077
        %v3079 = vpop.f32.mrf.mxu0
        %v3080 = vpop.f32.mrf.mxu0
        %v3081 = vadd.f32 0.0, %v3080
        %v3082 = vpop.f32.mrf.mxu0
        %3083 = vmatprep.mubr.bf16.mxu0 0
        %3084 = vmatmul.mubr.bf16.gmra.mxu0 %v2901
        %v3085 = vpop.f32.mrf.mxu0
        %v3086 = vadd.f32 0.0, %v3085
        %v3087 = vpop.f32.mrf.mxu0
        %v3088 = vpop.f32.mrf.mxu0
        %v3089 = vadd.f32 0.0, %v3088
        %v3090 = vpop.f32.mrf.mxu0
        %3091 = vmatprep.mubr.bf16.mxu0 0
        %3092 = vmatmul.mubr.bf16.gmra.mxu0 %v2902
        %v3093 = vpop.f32.mrf.mxu0
        %v3094 = vadd.f32 0.0, %v3093
        %v3095 = vpop.f32.mrf.mxu0
        %v3096 = vpop.f32.mrf.mxu0
        %v3097 = vadd.f32 0.0, %v3096
        %v3098 = vpop.f32.mrf.mxu0
        %3099 = vmatprep.mubr.bf16.mxu0 0
        %3100 = vmatmul.mubr.bf16.gmra.mxu0 %v2903
        %v3101 = vpop.f32.mrf.mxu0
        %v3102 = vadd.f32 0.0, %v3101
        %v3103 = vpop.f32.mrf.mxu0
        %v3104 = vpop.f32.mrf.mxu0
        %v3105 = vadd.f32 0.0, %v3104
        %v3106 = vpop.f32.mrf.mxu0
        %3107 = vmatprep.mubr.bf16.mxu0 0
        %3108 = vmatmul.mubr.bf16.gmra.mxu0 %v2904
        %v3109 = vpop.f32.mrf.mxu0
        %v3110 = vadd.f32 0.0, %v3109
        %v3111 = vpop.f32.mrf.mxu0
        %v3112 = vpop.f32.mrf.mxu0
        %v3113 = vadd.f32 0.0, %v3112
        %v3114 = vpop.f32.mrf.mxu0
        %3115 = vmatprep.mubr.bf16.mxu0 0
        %3116 = vmatmul.mubr.bf16.gmra.mxu0 %v2905
        %v3117 = vpop.f32.mrf.mxu0
        %v3118 = vadd.f32 0.0, %v3117
        %v3119 = vpop.f32.mrf.mxu0
        %v3120 = vpop.f32.mrf.mxu0
        %v3121 = vadd.f32 0.0, %v3120
        %v3122 = vpop.f32.mrf.mxu0
        %3123 = vmatprep.mubr.bf16.mxu0 0
        %3124 = vmatmul.mubr.bf16.gmra.mxu0 %v2906
        %v3125 = vpop.f32.mrf.mxu0
        %v3126 = vadd.f32 0.0, %v3125
        %v3127 = vpop.f32.mrf.mxu0
        %v3128 = vpop.f32.mrf.mxu0
        %v3129 = vadd.f32 0.0, %v3128
        %v3130 = vpop.f32.mrf.mxu0
        %3131 = vdwg.mxu0
        %v3132 = vadd.f32 %v2827, %v3006
        %v3133 = vadd.f32 %v2828, %v3009
        %v3134 = vadd.f32 %v2829, %v3014
        %v3135 = vadd.f32 %v2830, %v3017
        %v3136 = vadd.f32 %v2831, %v3022
        %v3137 = vadd.f32 %v2832, %v3025
        %v3138 = vadd.f32 %v2833, %v3030
        %v3139 = vadd.f32 %v2834, %v3033
        %v3140 = vadd.f32 %v2835, %v3038
        %v3141 = vadd.f32 %v2836, %v3041
        %v3142 = vadd.f32 %v2837, %v3046
        %v3143 = vadd.f32 %v2838, %v3049
        %v3144 = vadd.f32 %v2839, %v3054
        %v3145 = vadd.f32 %v2840, %v3057
        %v3146 = vadd.f32 %v2841, %v3062
        %v3147 = vadd.f32 %v2842, %v3065
        %v3148 = vadd.f32 %v2843, %v3070
        %v3149 = vadd.f32 %v2844, %v3073
        %v3150 = vadd.f32 %v2845, %v3078
        %v3151 = vadd.f32 %v2846, %v3081
        %v3152 = vadd.f32 %v2847, %v3086
        %v3153 = vadd.f32 %v2848, %v3089
        %v3154 = vadd.f32 %v2849, %v3094
        %v3155 = vadd.f32 %v2850, %v3097
        %v3156 = vadd.f32 %v2851, %v3102
        %v3157 = vadd.f32 %v2852, %v3105
        %v3158 = vadd.f32 %v2853, %v3110
        %v3159 = vadd.f32 %v2854, %v3113
        %v3160 = vadd.f32 %v2855, %v3118
        %v3161 = vadd.f32 %v2856, %v3121
        %v3162 = vadd.f32 %v2857, %v3126
        %v3163 = vadd.f32 %v2858, %v3129
        %v3164 = vld [vmem:[%s2553 + $0x2] sm:$0xff]
        %v3165 = vld [vmem:[%s2553 + $0xa] sm:$0xff]
        %v3166 = vld [vmem:[%s2553 + $0x1a] sm:$0xff]
        %v3167 = vld [vmem:[%s2553 + $0x22] sm:$0xff]
        %v3168 = vld [vmem:[%s2553 + $0x32] sm:$0xff]
        %v3169 = vld [vmem:[%s2553 + $0x3a] sm:$0xff]
        %v3170 = vld [vmem:[%s2553 + $0x4a] sm:$0xff]
        %v3171 = vld [vmem:[%s2553 + $0x52] sm:$0xff]
        %v3172 = vld [vmem:[%s2553 + $0x62] sm:$0xff]
        %v3173 = vld [vmem:[%s2553 + $0x6a] sm:$0xff]
        %v3174 = vld [vmem:[%s2553 + $0x7a] sm:$0xff]
        %v3175 = vld [vmem:[%s2553 + $0x82] sm:$0xff]
        %v3176 = vld [vmem:[%s2553 + $0x92] sm:$0xff]
        %v3177 = vld [vmem:[%s2553 + $0x9a] sm:$0xff]
        %v3178 = vld [vmem:[%s2553 + $0xaa] sm:$0xff]
        %v3179 = vld [vmem:[%s2553 + $0xb2] sm:$0xff]
        %v3180 = vld [vmem:[%s2553 + $0xc2] sm:$0xff]
        %v3181 = vld [vmem:[%s2553 + $0xca] sm:$0xff]
        %v3182 = vld [vmem:[%s2553 + $0xda] sm:$0xff]
        %v3183 = vld [vmem:[%s2553 + $0xe2] sm:$0xff]
        %v3184 = vld [vmem:[%s2553 + $0xf2] sm:$0xff]
        %v3185 = vld [vmem:[%s2553 + $0xfa] sm:$0xff]
        %v3186 = vld [vmem:[%s2553 + $0x10a] sm:$0xff]
        %v3187 = vld [vmem:[%s2553 + $0x112] sm:$0xff]
        %v3188 = vld [vmem:[%s2553 + $0x122] sm:$0xff]
        %v3189 = vld [vmem:[%s2553 + $0x12a] sm:$0xff]
        %v3190 = vld [vmem:[%s2553 + $0x13a] sm:$0xff]
        %v3191 = vld [vmem:[%s2553 + $0x142] sm:$0xff]
        %v3192 = vld [vmem:[%s2553 + $0x152] sm:$0xff]
        %v3193 = vld [vmem:[%s2553 + $0x15a] sm:$0xff]
        %v3194 = vld [vmem:[%s2553 + $0x16a] sm:$0xff]
        %v3195 = vld [vmem:[%s2553 + $0x172] sm:$0xff]
        %v3196 = vpack.c.bf16 %v3165, %v3164
        %v3197 = vpack.c.bf16 %v3167, %v3166
        %v3198 = vpack.c.bf16 %v3169, %v3168
        %v3199 = vpack.c.bf16 %v3171, %v3170
        %v3200 = vpack.c.bf16 %v3173, %v3172
        %v3201 = vpack.c.bf16 %v3175, %v3174
        %v3202 = vpack.c.bf16 %v3177, %v3176
        %v3203 = vpack.c.bf16 %v3179, %v3178
        %v3204 = vpack.c.bf16 %v3181, %v3180
        %v3205 = vpack.c.bf16 %v3183, %v3182
        %v3206 = vpack.c.bf16 %v3185, %v3184
        %v3207 = vpack.c.bf16 %v3187, %v3186
        %v3208 = vpack.c.bf16 %v3189, %v3188
        %v3209 = vpack.c.bf16 %v3191, %v3190
        %v3210 = vpack.c.bf16 %v3193, %v3192
        %v3211 = vpack.c.bf16 %v3195, %v3194
        %v3212 = vld [vmem:[%s1 + $0x200] sm:$0xf]
        %v3213 = vld [vmem:[%s1 + $0x204] sm:$0xf]
        %v3214 = vld [vmem:[%s1 + $0x208] sm:$0xf]
        %v3215 = vld [vmem:[%s1 + $0x20c] sm:$0xf]
        %v3216 = vld [vmem:[%s1 + $0x210] sm:$0xf]
        %v3217 = vld [vmem:[%s1 + $0x214] sm:$0xf]
        %v3218 = vld [vmem:[%s1 + $0x218] sm:$0xf]
        %v3219 = vld [vmem:[%s1 + $0x21c] sm:$0xf]
        %v3220 = vld [vmem:[%s1 + $0x220] sm:$0xf]
        %v3221 = vld [vmem:[%s1 + $0x224] sm:$0xf]
        %v3222 = vld [vmem:[%s1 + $0x228] sm:$0xf]
        %v3223 = vld [vmem:[%s1 + $0x22c] sm:$0xf]
        %v3224 = vld [vmem:[%s1 + $0x230] sm:$0xf]
        %v3225 = vld [vmem:[%s1 + $0x234] sm:$0xf]
        %v3226 = vld [vmem:[%s1 + $0x238] sm:$0xf]
        %v3227 = vld [vmem:[%s1 + $0x23c] sm:$0xf]
        %v3244 = vunpack.c.l.b16 %v3212
        %v3245 = vunpack.c.l.b16 %v3213
        %v3246 = vunpack.c.l.b16 %v3214
        %v3247 = vunpack.c.l.b16 %v3215
        %v3248 = vunpack.c.l.b16 %v3216
        %v3249 = vunpack.c.l.b16 %v3217
        %v3250 = vunpack.c.l.b16 %v3218
        %v3251 = vunpack.c.l.b16 %v3219
        %v3252 = vunpack.c.l.b16 %v3220
        %v3253 = vunpack.c.l.b16 %v3221
        %v3254 = vunpack.c.l.b16 %v3222
        %v3255 = vunpack.c.l.b16 %v3223
        %v3256 = vunpack.c.l.b16 %v3224
        %v3257 = vunpack.c.l.b16 %v3225
        %v3258 = vunpack.c.l.b16 %v3226
        %v3259 = vunpack.c.l.b16 %v3227
        %v3260 = vpack.c.b16 %v3245, %v3244
        %v3261 = vpack.c.b16 %v3247, %v3246
        %v3262 = vpack.c.b16 %v3249, %v3248
        %v3263 = vpack.c.b16 %v3251, %v3250
        %v3264 = vpack.c.b16 %v3253, %v3252
        %v3265 = vpack.c.b16 %v3255, %v3254
        %v3266 = vpack.c.b16 %v3257, %v3256
        %v3267 = vpack.c.b16 %v3259, %v3258
        %3276 = vmatprep.subr.bf16.mxu0 0
        %3277 = vmatpush1.bf16.msra.mxu0 %v3267
        %3278 = vmatprep.subr.bf16.mxu0 0
        %3279 = vmatpush1.bf16.msra.mxu0 %v3266
        %3280 = vmatprep.subr.bf16.mxu0 0
        %3281 = vmatpush1.bf16.msra.mxu0 %v3265
        %3282 = vmatprep.subr.bf16.mxu0 0
        %3283 = vmatpush1.bf16.msra.mxu0 %v3264
        %3284 = vmatprep.subr.bf16.mxu0 0
        %3285 = vmatpush1.bf16.msra.mxu0 %v3263
        %3286 = vmatprep.subr.bf16.mxu0 0
        %3287 = vmatpush1.bf16.msra.mxu0 %v3262
        %3288 = vmatprep.subr.bf16.mxu0 0
        %3289 = vmatpush1.bf16.msra.mxu0 %v3261
        %3290 = vmatprep.subr.bf16.mxu0 0
        %3291 = vmatpush1.bf16.msra.mxu0 %v3260
        %3292 = vmatprep.subr.bf16.mxu0 0
        %3293 = vmatpush2.bf16.msra.mxu0 0
        %3294 = vmatprep.subr.bf16.mxu0 0
        %3295 = vmatpush2.bf16.msra.mxu0 0
        %3296 = vmatprep.subr.bf16.mxu0 0
        %3297 = vmatpush2.bf16.msra.mxu0 0
        %3298 = vmatprep.subr.bf16.mxu0 0
        %3299 = vmatpush2.bf16.msra.mxu0 0
        %3300 = vmatprep.subr.bf16.mxu0 0
        %3301 = vmatpush2.bf16.msra.mxu0 0
        %3302 = vmatprep.subr.bf16.mxu0 0
        %3303 = vmatpush2.bf16.msra.mxu0 0
        %3304 = vmatprep.subr.bf16.mxu0 0
        %3305 = vmatpush2.bf16.msra.mxu0 0
        %3306 = vmatprep.subr.bf16.mxu0 0
        %3307 = vmatpush2.bf16.msra.mxu0 0
        %3308 = vmatprep.mubr.bf16.mxu0 0
        %3309 = vmatmul.mubr.bf16.gmra.mxu0 %v3196
        %v3310 = vpop.f32.mrf.mxu0
        %v3311 = vadd.f32 0.0, %v3310
        %v3312 = vpop.f32.mrf.mxu0
        %v3313 = vpop.f32.mrf.mxu0
        %v3314 = vadd.f32 0.0, %v3313
        %v3315 = vpop.f32.mrf.mxu0
        %3316 = vmatprep.mubr.bf16.mxu0 0
        %3317 = vmatmul.mubr.bf16.gmra.mxu0 %v3197
        %v3318 = vpop.f32.mrf.mxu0
        %v3319 = vadd.f32 0.0, %v3318
        %v3320 = vpop.f32.mrf.mxu0
        %v3321 = vpop.f32.mrf.mxu0
        %v3322 = vadd.f32 0.0, %v3321
        %v3323 = vpop.f32.mrf.mxu0
        %3324 = vmatprep.mubr.bf16.mxu0 0
        %3325 = vmatmul.mubr.bf16.gmra.mxu0 %v3198
        %v3326 = vpop.f32.mrf.mxu0
        %v3327 = vadd.f32 0.0, %v3326
        %v3328 = vpop.f32.mrf.mxu0
        %v3329 = vpop.f32.mrf.mxu0
        %v3330 = vadd.f32 0.0, %v3329
        %v3331 = vpop.f32.mrf.mxu0
        %3332 = vmatprep.mubr.bf16.mxu0 0
        %3333 = vmatmul.mubr.bf16.gmra.mxu0 %v3199
        %v3334 = vpop.f32.mrf.mxu0
        %v3335 = vadd.f32 0.0, %v3334
        %v3336 = vpop.f32.mrf.mxu0
        %v3337 = vpop.f32.mrf.mxu0
        %v3338 = vadd.f32 0.0, %v3337
        %v3339 = vpop.f32.mrf.mxu0
        %3340 = vmatprep.mubr.bf16.mxu0 0
        %3341 = vmatmul.mubr.bf16.gmra.mxu0 %v3200
        %v3342 = vpop.f32.mrf.mxu0
        %v3343 = vadd.f32 0.0, %v3342
        %v3344 = vpop.f32.mrf.mxu0
        %v3345 = vpop.f32.mrf.mxu0
        %v3346 = vadd.f32 0.0, %v3345
        %v3347 = vpop.f32.mrf.mxu0
        %3348 = vmatprep.mubr.bf16.mxu0 0
        %3349 = vmatmul.mubr.bf16.gmra.mxu0 %v3201
        %v3350 = vpop.f32.mrf.mxu0
        %v3351 = vadd.f32 0.0, %v3350
        %v3352 = vpop.f32.mrf.mxu0
        %v3353 = vpop.f32.mrf.mxu0
        %v3354 = vadd.f32 0.0, %v3353
        %v3355 = vpop.f32.mrf.mxu0
        %3356 = vmatprep.mubr.bf16.mxu0 0
        %3357 = vmatmul.mubr.bf16.gmra.mxu0 %v3202
        %v3358 = vpop.f32.mrf.mxu0
        %v3359 = vadd.f32 0.0, %v3358
        %v3360 = vpop.f32.mrf.mxu0
        %v3361 = vpop.f32.mrf.mxu0
        %v3362 = vadd.f32 0.0, %v3361
        %v3363 = vpop.f32.mrf.mxu0
        %3364 = vmatprep.mubr.bf16.mxu0 0
        %3365 = vmatmul.mubr.bf16.gmra.mxu0 %v3203
        %v3366 = vpop.f32.mrf.mxu0
        %v3367 = vadd.f32 0.0, %v3366
        %v3368 = vpop.f32.mrf.mxu0
        %v3369 = vpop.f32.mrf.mxu0
        %v3370 = vadd.f32 0.0, %v3369
        %v3371 = vpop.f32.mrf.mxu0
        %3372 = vmatprep.mubr.bf16.mxu0 0
        %3373 = vmatmul.mubr.bf16.gmra.mxu0 %v3204
        %v3374 = vpop.f32.mrf.mxu0
        %v3375 = vadd.f32 0.0, %v3374
        %v3376 = vpop.f32.mrf.mxu0
        %v3377 = vpop.f32.mrf.mxu0
        %v3378 = vadd.f32 0.0, %v3377
        %v3379 = vpop.f32.mrf.mxu0
        %3380 = vmatprep.mubr.bf16.mxu0 0
        %3381 = vmatmul.mubr.bf16.gmra.mxu0 %v3205
        %v3382 = vpop.f32.mrf.mxu0
        %v3383 = vadd.f32 0.0, %v3382
        %v3384 = vpop.f32.mrf.mxu0
        %v3385 = vpop.f32.mrf.mxu0
        %v3386 = vadd.f32 0.0, %v3385
        %v3387 = vpop.f32.mrf.mxu0
        %3388 = vmatprep.mubr.bf16.mxu0 0
        %3389 = vmatmul.mubr.bf16.gmra.mxu0 %v3206
        %v3390 = vpop.f32.mrf.mxu0
        %v3391 = vadd.f32 0.0, %v3390
        %v3392 = vpop.f32.mrf.mxu0
        %v3393 = vpop.f32.mrf.mxu0
        %v3394 = vadd.f32 0.0, %v3393
        %v3395 = vpop.f32.mrf.mxu0
        %3396 = vmatprep.mubr.bf16.mxu0 0
        %3397 = vmatmul.mubr.bf16.gmra.mxu0 %v3207
        %v3398 = vpop.f32.mrf.mxu0
        %v3399 = vadd.f32 0.0, %v3398
        %v3400 = vpop.f32.mrf.mxu0
        %v3401 = vpop.f32.mrf.mxu0
        %v3402 = vadd.f32 0.0, %v3401
        %v3403 = vpop.f32.mrf.mxu0
        %3404 = vmatprep.mubr.bf16.mxu0 0
        %3405 = vmatmul.mubr.bf16.gmra.mxu0 %v3208
        %v3406 = vpop.f32.mrf.mxu0
        %v3407 = vadd.f32 0.0, %v3406
        %v3408 = vpop.f32.mrf.mxu0
        %v3409 = vpop.f32.mrf.mxu0
        %v3410 = vadd.f32 0.0, %v3409
        %v3411 = vpop.f32.mrf.mxu0
        %3412 = vmatprep.mubr.bf16.mxu0 0
        %3413 = vmatmul.mubr.bf16.gmra.mxu0 %v3209
        %v3414 = vpop.f32.mrf.mxu0
        %v3415 = vadd.f32 0.0, %v3414
        %v3416 = vpop.f32.mrf.mxu0
        %v3417 = vpop.f32.mrf.mxu0
        %v3418 = vadd.f32 0.0, %v3417
        %v3419 = vpop.f32.mrf.mxu0
        %3420 = vmatprep.mubr.bf16.mxu0 0
        %3421 = vmatmul.mubr.bf16.gmra.mxu0 %v3210
        %v3422 = vpop.f32.mrf.mxu0
        %v3423 = vadd.f32 0.0, %v3422
        %v3424 = vpop.f32.mrf.mxu0
        %v3425 = vpop.f32.mrf.mxu0
        %v3426 = vadd.f32 0.0, %v3425
        %v3427 = vpop.f32.mrf.mxu0
        %3428 = vmatprep.mubr.bf16.mxu0 0
        %3429 = vmatmul.mubr.bf16.gmra.mxu0 %v3211
        %v3430 = vpop.f32.mrf.mxu0
        %v3431 = vadd.f32 0.0, %v3430
        %v3432 = vpop.f32.mrf.mxu0
        %v3433 = vpop.f32.mrf.mxu0
        %v3434 = vadd.f32 0.0, %v3433
        %v3435 = vpop.f32.mrf.mxu0
        %3436 = vdwg.mxu0
        %v3437 = vadd.f32 %v3132, %v3311
        %v3438 = vadd.f32 %v3133, %v3314
        %v3439 = vadd.f32 %v3134, %v3319
        %v3440 = vadd.f32 %v3135, %v3322
        %v3441 = vadd.f32 %v3136, %v3327
        %v3442 = vadd.f32 %v3137, %v3330
        %v3443 = vadd.f32 %v3138, %v3335
        %v3444 = vadd.f32 %v3139, %v3338
        %v3445 = vadd.f32 %v3140, %v3343
        %v3446 = vadd.f32 %v3141, %v3346
        %v3447 = vadd.f32 %v3142, %v3351
        %v3448 = vadd.f32 %v3143, %v3354
        %v3449 = vadd.f32 %v3144, %v3359
        %v3450 = vadd.f32 %v3145, %v3362
        %v3451 = vadd.f32 %v3146, %v3367
        %v3452 = vadd.f32 %v3147, %v3370
        %v3453 = vadd.f32 %v3148, %v3375
        %v3454 = vadd.f32 %v3149, %v3378
        %v3455 = vadd.f32 %v3150, %v3383
        %v3456 = vadd.f32 %v3151, %v3386
        %v3457 = vadd.f32 %v3152, %v3391
        %v3458 = vadd.f32 %v3153, %v3394
        %v3459 = vadd.f32 %v3154, %v3399
        %v3460 = vadd.f32 %v3155, %v3402
        %v3461 = vadd.f32 %v3156, %v3407
        %v3462 = vadd.f32 %v3157, %v3410
        %v3463 = vadd.f32 %v3158, %v3415
        %v3464 = vadd.f32 %v3159, %v3418
        %v3465 = vadd.f32 %v3160, %v3423
        %v3466 = vadd.f32 %v3161, %v3426
        %v3467 = vadd.f32 %v3162, %v3431
        %v3468 = vadd.f32 %v3163, %v3434
        %v3469 = vld [vmem:[%s2] sm:$0x1]
        %v3471 = vlaneseq
        %v3472 = vshrl.u32 %v3471, 7
        %v3473 = vsub.s32 0, %v3472
        %v3474 = vrot.slane %v3469, %v3473
        %v3476 = vadd.f32 %v3437, %v3474
        %v3477 = vadd.f32 %v3438, %v3474
        %v3478 = vadd.f32 %v3439, %v3474
        %v3479 = vadd.f32 %v3440, %v3474
        %v3480 = vadd.f32 %v3441, %v3474
        %v3481 = vadd.f32 %v3442, %v3474
        %v3482 = vadd.f32 %v3443, %v3474
        %v3483 = vadd.f32 %v3444, %v3474
        %v3484 = vadd.f32 %v3445, %v3474
        %v3485 = vadd.f32 %v3446, %v3474
        %v3486 = vadd.f32 %v3447, %v3474
        %v3487 = vadd.f32 %v3448, %v3474
        %v3488 = vadd.f32 %v3449, %v3474
        %v3489 = vadd.f32 %v3450, %v3474
        %v3490 = vadd.f32 %v3451, %v3474
        %v3491 = vadd.f32 %v3452, %v3474
        %v3492 = vadd.f32 %v3453, %v3474
        %v3493 = vadd.f32 %v3454, %v3474
        %v3494 = vadd.f32 %v3455, %v3474
        %v3495 = vadd.f32 %v3456, %v3474
        %v3496 = vadd.f32 %v3457, %v3474
        %v3497 = vadd.f32 %v3458, %v3474
        %v3498 = vadd.f32 %v3459, %v3474
        %v3499 = vadd.f32 %v3460, %v3474
        %v3500 = vadd.f32 %v3461, %v3474
        %v3501 = vadd.f32 %v3462, %v3474
        %v3502 = vadd.f32 %v3463, %v3474
        %v3503 = vadd.f32 %v3464, %v3474
        %v3504 = vadd.f32 %v3465, %v3474
        %v3505 = vadd.f32 %v3466, %v3474
        %v3506 = vadd.f32 %v3467, %v3474
        %v3507 = vadd.f32 %v3468, %v3474
        %v3508 = vmax.f32 %v3476, 0.0
        %v3509 = vmax.f32 %v3477, 0.0
        %v3510 = vmax.f32 %v3478, 0.0
        %v3511 = vmax.f32 %v3479, 0.0
        %v3512 = vmax.f32 %v3480, 0.0
        %v3513 = vmax.f32 %v3481, 0.0
        %v3514 = vmax.f32 %v3482, 0.0
        %v3515 = vmax.f32 %v3483, 0.0
        %v3516 = vmax.f32 %v3484, 0.0
        %v3517 = vmax.f32 %v3485, 0.0
        %v3518 = vmax.f32 %v3486, 0.0
        %v3519 = vmax.f32 %v3487, 0.0
        %v3520 = vmax.f32 %v3488, 0.0
        %v3521 = vmax.f32 %v3489, 0.0
        %v3522 = vmax.f32 %v3490, 0.0
        %v3523 = vmax.f32 %v3491, 0.0
        %v3524 = vmax.f32 %v3492, 0.0
        %v3525 = vmax.f32 %v3493, 0.0
        %v3526 = vmax.f32 %v3494, 0.0
        %v3527 = vmax.f32 %v3495, 0.0
        %v3528 = vmax.f32 %v3496, 0.0
        %v3529 = vmax.f32 %v3497, 0.0
        %v3530 = vmax.f32 %v3498, 0.0
        %v3531 = vmax.f32 %v3499, 0.0
        %v3532 = vmax.f32 %v3500, 0.0
        %v3533 = vmax.f32 %v3501, 0.0
        %v3534 = vmax.f32 %v3502, 0.0
        %v3535 = vmax.f32 %v3503, 0.0
        %v3536 = vmax.f32 %v3504, 0.0
        %v3537 = vmax.f32 %v3505, 0.0
        %v3538 = vmax.f32 %v3506, 0.0
        %v3539 = vmax.f32 %v3507, 0.0
        %v3540 = vld [vmem:[%s3] sm:$0x1]
        %v3542 = vlaneseq
        %v3543 = vshrl.u32 %v3542, 7
        %v3544 = vsub.s32 0, %v3543
        %v3545 = vrot.slane %v3540, %v3544
        %v3547 = vmul.f32 %v3508, %v3545
        %v3548 = vmul.f32 %v3509, %v3545
        %v3549 = vmul.f32 %v3510, %v3545
        %v3550 = vmul.f32 %v3511, %v3545
        %v3551 = vmul.f32 %v3512, %v3545
        %v3552 = vmul.f32 %v3513, %v3545
        %v3553 = vmul.f32 %v3514, %v3545
        %v3554 = vmul.f32 %v3515, %v3545
        %v3555 = vmul.f32 %v3516, %v3545
        %v3556 = vmul.f32 %v3517, %v3545
        %v3557 = vmul.f32 %v3518, %v3545
        %v3558 = vmul.f32 %v3519, %v3545
        %v3559 = vmul.f32 %v3520, %v3545
        %v3560 = vmul.f32 %v3521, %v3545
        %v3561 = vmul.f32 %v3522, %v3545
        %v3562 = vmul.f32 %v3523, %v3545
        %v3563 = vmul.f32 %v3524, %v3545
        %v3564 = vmul.f32 %v3525, %v3545
        %v3565 = vmul.f32 %v3526, %v3545
        %v3566 = vmul.f32 %v3527, %v3545
        %v3567 = vmul.f32 %v3528, %v3545
        %v3568 = vmul.f32 %v3529, %v3545
        %v3569 = vmul.f32 %v3530, %v3545
        %v3570 = vmul.f32 %v3531, %v3545
        %v3571 = vmul.f32 %v3532, %v3545
        %v3572 = vmul.f32 %v3533, %v3545
        %v3573 = vmul.f32 %v3534, %v3545
        %v3574 = vmul.f32 %v3535, %v3545
        %v3575 = vmul.f32 %v3536, %v3545
        %v3576 = vmul.f32 %v3537, %v3545
        %v3577 = vmul.f32 %v3538, %v3545
        %v3578 = vmul.f32 %v3539, %v3545
        %v3579 = vld [vmem:[%s4] sm:$0x1]
        %v3581 = vlaneseq
        %v3582 = vshrl.u32 %v3581, 7
        %v3583 = vsub.s32 0, %v3582
        %v3584 = vrot.slane %v3579, %v3583
        %v3586 = vadd.f32 %v3547, %v3584
        %v3587 = vadd.f32 %v3548, %v3584
        %v3588 = vadd.f32 %v3549, %v3584
        %v3589 = vadd.f32 %v3550, %v3584
        %v3590 = vadd.f32 %v3551, %v3584
        %v3591 = vadd.f32 %v3552, %v3584
        %v3592 = vadd.f32 %v3553, %v3584
        %v3593 = vadd.f32 %v3554, %v3584
        %v3594 = vadd.f32 %v3555, %v3584
        %v3595 = vadd.f32 %v3556, %v3584
        %v3596 = vadd.f32 %v3557, %v3584
        %v3597 = vadd.f32 %v3558, %v3584
        %v3598 = vadd.f32 %v3559, %v3584
        %v3599 = vadd.f32 %v3560, %v3584
        %v3600 = vadd.f32 %v3561, %v3584
        %v3601 = vadd.f32 %v3562, %v3584
        %v3602 = vadd.f32 %v3563, %v3584
        %v3603 = vadd.f32 %v3564, %v3584
        %v3604 = vadd.f32 %v3565, %v3584
        %v3605 = vadd.f32 %v3566, %v3584
        %v3606 = vadd.f32 %v3567, %v3584
        %v3607 = vadd.f32 %v3568, %v3584
        %v3608 = vadd.f32 %v3569, %v3584
        %v3609 = vadd.f32 %v3570, %v3584
        %v3610 = vadd.f32 %v3571, %v3584
        %v3611 = vadd.f32 %v3572, %v3584
        %v3612 = vadd.f32 %v3573, %v3584
        %v3613 = vadd.f32 %v3574, %v3584
        %v3614 = vadd.f32 %v3575, %v3584
        %v3615 = vadd.f32 %v3576, %v3584
        %v3616 = vadd.f32 %v3577, %v3584
        %v3617 = vadd.f32 %v3578, %v3584
        %vm3648 = vcmask 1046528
        %v3649 = vrot.slane %v3586, 1
        %v3650 = vrot.slane %v3587, 1
        %v3651 = vsel %vm3648, %v3649, %v3650
        %v3652 = vrot.slane %v3588, 1
        %v3653 = vsel %vm3648, %v3650, %v3652
        %v3654 = vrot.slane %v3589, 1
        %v3655 = vsel %vm3648, %v3652, %v3654
        %v3656 = vrot.slane %v3590, 1
        %v3657 = vsel %vm3648, %v3654, %v3656
        %v3658 = vrot.slane %v3591, 1
        %v3659 = vsel %vm3648, %v3656, %v3658
        %v3660 = vrot.slane %v3592, 1
        %v3661 = vsel %vm3648, %v3658, %v3660
        %v3662 = vrot.slane %v3593, 1
        %v3663 = vsel %vm3648, %v3660, %v3662
        %v3664 = vrot.slane %v3594, 1
        %v3665 = vsel %vm3648, %v3662, %v3664
        %v3666 = vrot.slane %v3595, 1
        %v3667 = vsel %vm3648, %v3664, %v3666
        %v3668 = vrot.slane %v3596, 1
        %v3669 = vsel %vm3648, %v3666, %v3668
        %v3670 = vrot.slane %v3597, 1
        %v3671 = vsel %vm3648, %v3668, %v3670
        %v3672 = vrot.slane %v3598, 1
        %v3673 = vsel %vm3648, %v3670, %v3672
        %v3674 = vrot.slane %v3599, 1
        %v3675 = vsel %vm3648, %v3672, %v3674
        %v3676 = vrot.slane %v3600, 1
        %v3677 = vsel %vm3648, %v3674, %v3676
        %v3678 = vrot.slane %v3601, 1
        %v3679 = vsel %vm3648, %v3676, %v3678
        %v3680 = vrot.slane %v3602, 1
        %v3681 = vsel %vm3648, %v3678, %v3680
        %v3682 = vrot.slane %v3603, 1
        %v3683 = vsel %vm3648, %v3680, %v3682
        %v3684 = vrot.slane %v3604, 1
        %v3685 = vsel %vm3648, %v3682, %v3684
        %v3686 = vrot.slane %v3605, 1
        %v3687 = vsel %vm3648, %v3684, %v3686
        %v3688 = vrot.slane %v3606, 1
        %v3689 = vsel %vm3648, %v3686, %v3688
        %v3690 = vrot.slane %v3607, 1
        %v3691 = vsel %vm3648, %v3688, %v3690
        %v3692 = vrot.slane %v3608, 1
        %v3693 = vsel %vm3648, %v3690, %v3692
        %v3694 = vrot.slane %v3609, 1
        %v3695 = vsel %vm3648, %v3692, %v3694
        %v3696 = vrot.slane %v3610, 1
        %v3697 = vsel %vm3648, %v3694, %v3696
        %v3698 = vrot.slane %v3611, 1
        %v3699 = vsel %vm3648, %v3696, %v3698
        %v3700 = vrot.slane %v3612, 1
        %v3701 = vsel %vm3648, %v3698, %v3700
        %v3702 = vrot.slane %v3613, 1
        %v3703 = vsel %vm3648, %v3700, %v3702
        %v3704 = vrot.slane %v3614, 1
        %v3705 = vsel %vm3648, %v3702, %v3704
        %v3706 = vrot.slane %v3615, 1
        %v3707 = vsel %vm3648, %v3704, %v3706
        %v3738 = vmax.f32 %v3586, %v3651
        %v3739 = vmax.f32 %v3587, %v3653
        %v3740 = vmax.f32 %v3588, %v3655
        %v3741 = vmax.f32 %v3589, %v3657
        %v3742 = vmax.f32 %v3590, %v3659
        %v3743 = vmax.f32 %v3591, %v3661
        %v3744 = vmax.f32 %v3592, %v3663
        %v3745 = vmax.f32 %v3593, %v3665
        %v3746 = vmax.f32 %v3594, %v3667
        %v3747 = vmax.f32 %v3595, %v3669
        %v3748 = vmax.f32 %v3596, %v3671
        %v3749 = vmax.f32 %v3597, %v3673
        %v3750 = vmax.f32 %v3598, %v3675
        %v3751 = vmax.f32 %v3599, %v3677
        %v3752 = vmax.f32 %v3600, %v3679
        %v3753 = vmax.f32 %v3601, %v3681
        %v3754 = vmax.f32 %v3602, %v3683
        %v3755 = vmax.f32 %v3603, %v3685
        %v3756 = vmax.f32 %v3604, %v3687
        %v3757 = vmax.f32 %v3605, %v3689
        %v3758 = vmax.f32 %v3606, %v3691
        %v3759 = vmax.f32 %v3607, %v3693
        %v3760 = vmax.f32 %v3608, %v3695
        %v3761 = vmax.f32 %v3609, %v3697
        %v3762 = vmax.f32 %v3610, %v3699
        %v3763 = vmax.f32 %v3611, %v3701
        %v3764 = vmax.f32 %v3612, %v3703
        %v3765 = vmax.f32 %v3613, %v3705
        %v3766 = vmax.f32 %v3614, %v3707
        %v3767 = vmax.f32 %v3615, %v3706
        %v3770 = vrot.slane %v3616, 1
        %v3771 = vsel %vm3648, %v3706, %v3770
        %v3772 = vrot.slane %v3617, 1
        %v3773 = vsel %vm3648, %v3770, %v3772
        %v3777 = vmax.f32 %v3615, %v3771
        %v3778 = vmax.f32 %v3616, %v3773
        %v3779 = vmax.f32 %v3617, %v3772
        %v3780 = vmax.f32 %v3738, %v3740
        %v3781 = vmax.f32 %v3739, %v3741
        %v3782 = vmax.f32 %v3740, %v3742
        %v3783 = vmax.f32 %v3741, %v3743
        %v3784 = vmax.f32 %v3742, %v3744
        %v3785 = vmax.f32 %v3743, %v3745
        %v3786 = vmax.f32 %v3744, %v3746
        %v3787 = vmax.f32 %v3745, %v3747
        %v3788 = vmax.f32 %v3746, %v3748
        %v3789 = vmax.f32 %v3747, %v3749
        %v3790 = vmax.f32 %v3748, %v3750
        %v3791 = vmax.f32 %v3749, %v3751
        %v3792 = vmax.f32 %v3750, %v3752
        %v3793 = vmax.f32 %v3751, %v3753
        %v3794 = vmax.f32 %v3752, %v3754
        %v3795 = vmax.f32 %v3753, %v3755
        %v3796 = vmax.f32 %v3754, %v3756
        %v3797 = vmax.f32 %v3755, %v3757
        %v3798 = vmax.f32 %v3756, %v3758
        %v3799 = vmax.f32 %v3757, %v3759
        %v3800 = vmax.f32 %v3758, %v3760
        %v3801 = vmax.f32 %v3759, %v3761
        %v3802 = vmax.f32 %v3760, %v3762
        %v3803 = vmax.f32 %v3761, %v3763
        %v3804 = vmax.f32 %v3762, %v3764
        %v3805 = vmax.f32 %v3763, %v3765
        %v3806 = vmax.f32 %v3764, %v3766
        %v3807 = vmax.f32 %v3765, %v3777
        %v3808 = vmax.f32 %v3766, %v3778
        %v3809 = vmax.f32 %v3767, %v3779
        %v3810 = vld [vmem:[%s11] sm:$0xff]
        %v3811 = vld [vmem:[%s11 + $0x8] sm:$0xff]
        %v3812 = vld [vmem:[%s11 + $0x10] sm:$0xff]
        %v3813 = vld [vmem:[%s11 + $0x18] sm:$0xff]
        %v3814 = vld [vmem:[%s11 + $0x20] sm:$0xff]
        %v3815 = vld [vmem:[%s11 + $0x28] sm:$0xff]
        %v3816 = vld [vmem:[%s11 + $0x30] sm:$0xff]
        %v3817 = vld [vmem:[%s11 + $0x38] sm:$0xff]
        %v3818 = vpack.c.bf16 %v3781, %v3780
        %v3819 = vpack.c.bf16 %v3783, %v3782
        %v3820 = vpack.c.bf16 %v3785, %v3784
        %v3821 = vpack.c.bf16 %v3787, %v3786
        %v3822 = vpack.c.bf16 %v3789, %v3788
        %v3823 = vpack.c.bf16 %v3791, %v3790
        %v3824 = vpack.c.bf16 %v3793, %v3792
        %v3825 = vpack.c.bf16 %v3795, %v3794
        %v3826 = vpack.c.bf16 %v3797, %v3796
        %v3827 = vpack.c.bf16 %v3799, %v3798
        %v3828 = vpack.c.bf16 %v3801, %v3800
        %v3829 = vpack.c.bf16 %v3803, %v3802
        %v3830 = vpack.c.bf16 %v3805, %v3804
        %v3831 = vpack.c.bf16 %v3807, %v3806
        %v3832 = vpack.c.bf16 %v3809, %v3808
        %v3841 = vunpack.c.l.b16 %v3810
        %v3842 = vunpack.c.h.b16 %v3810
        %v3843 = vunpack.c.l.b16 %v3811
        %v3844 = vunpack.c.h.b16 %v3811
        %v3845 = vunpack.c.l.b16 %v3812
        %v3846 = vunpack.c.h.b16 %v3812
        %v3847 = vunpack.c.l.b16 %v3813
        %v3848 = vunpack.c.h.b16 %v3813
        %v3849 = vunpack.c.l.b16 %v3814
        %v3850 = vunpack.c.h.b16 %v3814
        %v3851 = vunpack.c.l.b16 %v3815
        %v3852 = vunpack.c.h.b16 %v3815
        %v3853 = vunpack.c.l.b16 %v3816
        %v3854 = vunpack.c.h.b16 %v3816
        %v3855 = vunpack.c.l.b16 %v3817
        %v3856 = vunpack.c.h.b16 %v3817
        %v3857 = vpack.c.b16 %v3843, %v3841
        %v3858 = vpack.c.b16 %v3844, %v3842
        %v3859 = vpack.c.b16 %v3847, %v3845
        %v3860 = vpack.c.b16 %v3848, %v3846
        %v3861 = vpack.c.b16 %v3851, %v3849
        %v3862 = vpack.c.b16 %v3852, %v3850
        %v3863 = vpack.c.b16 %v3855, %v3853
        %v3864 = vpack.c.b16 %v3856, %v3854
        %vm3869 = vcmask 908288
        %v3871 = vsel %vm3869, %v3858, 0
        %v3874 = vsel %vm3869, %v3860, 0
        %v3877 = vsel %vm3869, %v3862, 0
        %v3880 = vsel %vm3869, %v3864, 0
        %vm3882 = vcmask 1047552
        %v3883 = vsel %vm3648, 4294967295, 65535
        %v3884 = vsel %vm3882, %v3883, 0
        %v3886 = vand.u32 %v3832, %v3884
        %3888 = vmatprep.subr.bf16.mxu0 0
        %3889 = vmatpush1.bf16.msra.mxu0 %v3825
        %3890 = vmatprep.subr.bf16.mxu0 0
        %3891 = vmatpush1.bf16.msra.mxu0 %v3824
        %3892 = vmatprep.subr.bf16.mxu0 0
        %3893 = vmatpush1.bf16.msra.mxu0 %v3823
        %3894 = vmatprep.subr.bf16.mxu0 0
        %3895 = vmatpush1.bf16.msra.mxu0 %v3822
        %3896 = vmatprep.subr.bf16.mxu0 0
        %3897 = vmatpush1.bf16.msra.mxu0 %v3821
        %3898 = vmatprep.subr.bf16.mxu0 0
        %3899 = vmatpush1.bf16.msra.mxu0 %v3820
        %3900 = vmatprep.subr.bf16.mxu0 0
        %3901 = vmatpush1.bf16.msra.mxu0 %v3819
        %3902 = vmatprep.subr.bf16.mxu0 0
        %3903 = vmatpush1.bf16.msra.mxu0 %v3818
        %3904 = vmatprep.subr.bf16.mxu0 0
        %3905 = vmatpush2.bf16.msra.mxu0 0
        %3906 = vmatprep.subr.bf16.mxu0 0
        %3907 = vmatpush2.bf16.msra.mxu0 %v3886
        %3908 = vmatprep.subr.bf16.mxu0 0
        %3909 = vmatpush2.bf16.msra.mxu0 %v3831
        %3910 = vmatprep.subr.bf16.mxu0 0
        %3911 = vmatpush2.bf16.msra.mxu0 %v3830
        %3912 = vmatprep.subr.bf16.mxu0 0
        %3913 = vmatpush2.bf16.msra.mxu0 %v3829
        %3914 = vmatprep.subr.bf16.mxu0 0
        %3915 = vmatpush2.bf16.msra.mxu0 %v3828
        %3916 = vmatprep.subr.bf16.mxu0 0
        %3917 = vmatpush2.bf16.msra.mxu0 %v3827
        %3918 = vmatprep.subr.bf16.mxu0 0
        %3919 = vmatpush2.bf16.msra.mxu0 %v3826
        %3920 = vmatprep.mubr.bf16.mxu0 %v3871
        %3921 = vmatmul.mubr.bf16.gmra.mxu0 %v3857
        %v3922 = vpop.f32.mrf.mxu0
        %v3923 = vadd.f32 0.0, %v3922
        %v3924 = vpop.f32.mrf.mxu0
        %v3925 = vpop.f32.mrf.mxu0
        %v3926 = vadd.f32 0.0, %v3925
        %v3927 = vpop.f32.mrf.mxu0
        %3928 = vmatprep.mubr.bf16.mxu0 %v3874
        %3929 = vmatmul.mubr.bf16.gmra.mxu0 %v3859
        %v3930 = vpop.f32.mrf.mxu0
        %v3931 = vadd.f32 0.0, %v3930
        %v3932 = vpop.f32.mrf.mxu0
        %v3933 = vpop.f32.mrf.mxu0
        %v3934 = vadd.f32 0.0, %v3933
        %v3935 = vpop.f32.mrf.mxu0
        %3936 = vmatprep.mubr.bf16.mxu0 %v3877
        %3937 = vmatmul.mubr.bf16.gmra.mxu0 %v3861
        %v3938 = vpop.f32.mrf.mxu0
        %v3939 = vadd.f32 0.0, %v3938
        %v3940 = vpop.f32.mrf.mxu0
        %v3941 = vpop.f32.mrf.mxu0
        %v3942 = vadd.f32 0.0, %v3941
        %v3943 = vpop.f32.mrf.mxu0
        %3944 = vmatprep.mubr.bf16.mxu0 %v3880
        %3945 = vmatmul.mubr.bf16.gmra.mxu0 %v3863
        %v3946 = vpop.f32.mrf.mxu0
        %v3947 = vadd.f32 0.0, %v3946
        %v3948 = vpop.f32.mrf.mxu0
        %v3949 = vpop.f32.mrf.mxu0
        %v3950 = vadd.f32 0.0, %v3949
        %v3951 = vpop.f32.mrf.mxu0
        %3952 = vdwg.mxu0
        %3953 = vst [vmem:[#allocation2] sm:$0xff] 0.0
        %3954 = vst [vmem:[#allocation2 + $0x8] sm:$0x3] 0.0
        %s3955 = scalar_lea.vmem [#allocation2], 144
        %3956 = vst [vmem:[%s3955] sm:$0xff] 0.0
        %3957 = vst [vmem:[%s3955 + $0x8] sm:$0x3] 0.0
        %s3958 = scalar_lea.vmem [#allocation2], 16
        %3959 = vst [vmem:[%s3958] sm:$0x1] 0.0
        %3960 = vst [vmem:[%s3958 + $0x10] sm:$0x1] 0.0
        %3961 = vst [vmem:[%s3958 + $0x20] sm:$0x1] 0.0
        %3962 = vst [vmem:[%s3958 + $0x30] sm:$0x1] 0.0
        %3963 = vst [vmem:[%s3958 + $0x40] sm:$0x1] 0.0
        %3964 = vst [vmem:[%s3958 + $0x50] sm:$0x1] 0.0
        %3965 = vst [vmem:[%s3958 + $0x60] sm:$0x1] 0.0
        %3966 = vst [vmem:[%s3958 + $0x70] sm:$0x1] 0.0
        %3967 = vst [vmem:[%s3958 + $0x9] sm:$0x1] 0.0
        %3968 = vst [vmem:[%s3958 + $0x19] sm:$0x1] 0.0
        %3969 = vst [vmem:[%s3958 + $0x29] sm:$0x1] 0.0
        %3970 = vst [vmem:[%s3958 + $0x39] sm:$0x1] 0.0
        %3971 = vst [vmem:[%s3958 + $0x49] sm:$0x1] 0.0
        %3972 = vst [vmem:[%s3958 + $0x59] sm:$0x1] 0.0
        %3973 = vst [vmem:[%s3958 + $0x69] sm:$0x1] 0.0
        %3974 = vst [vmem:[%s3958 + $0x79] sm:$0x1] 0.0
        %3975 = vst [vmem:[%s3958 + $0x1] sm:$0xff] %v3923
        %3976 = vst [vmem:[%s3958 + $0x11] sm:$0xff] %v3926
        %3977 = vst [vmem:[%s3958 + $0x21] sm:$0xff] %v3931
        %3978 = vst [vmem:[%s3958 + $0x31] sm:$0xff] %v3934
        %3979 = vst [vmem:[%s3958 + $0x41] sm:$0xff] %v3939
        %3980 = vst [vmem:[%s3958 + $0x51] sm:$0xff] %v3942
        %3981 = vst [vmem:[%s3958 + $0x61] sm:$0xff] %v3947
        %3982 = vst [vmem:[%s3958 + $0x71] sm:$0xff] %v3950
        %v3983 = vld [vmem:[#allocation2] sm:$0xff]
        %v3984 = vld [vmem:[#allocation2 + $0x10] sm:$0xff]
        %v3985 = vld [vmem:[#allocation2 + $0x20] sm:$0xff]
        %v3986 = vld [vmem:[#allocation2 + $0x30] sm:$0xff]
        %v3987 = vld [vmem:[#allocation2 + $0x40] sm:$0xff]
        %v3988 = vld [vmem:[#allocation2 + $0x50] sm:$0xff]
        %v3989 = vld [vmem:[#allocation2 + $0x60] sm:$0xff]
        %v3990 = vld [vmem:[#allocation2 + $0x70] sm:$0xff]
        %v3991 = vpack.c.bf16 %v3984, %v3983
        %v3992 = vpack.c.bf16 %v3986, %v3985
        %v3993 = vpack.c.bf16 %v3988, %v3987
        %v3994 = vpack.c.bf16 %v3990, %v3989
        %v3995 = vld [vmem:[#allocation5] sm:$0xf]
        %v3996 = vld [vmem:[#allocation5 + $0x4] sm:$0xf]
        %v3997 = vld [vmem:[#allocation5 + $0x8] sm:$0xf]
        %v3998 = vld [vmem:[#allocation5 + $0xc] sm:$0xf]
        %v3999 = vld [vmem:[#allocation5 + $0x10] sm:$0xf]
        %v4000 = vld [vmem:[#allocation5 + $0x14] sm:$0xf]
        %v4001 = vld [vmem:[#allocation5 + $0x18] sm:$0xf]
        %v4002 = vld [vmem:[#allocation5 + $0x1c] sm:$0xf]
        %v4003 = vld [vmem:[#allocation5 + $0x20] sm:$0xf]
        %v4004 = vld [vmem:[#allocation5 + $0x24] sm:$0xf]
        %v4005 = vld [vmem:[#allocation5 + $0x28] sm:$0xf]
        %v4006 = vld [vmem:[#allocation5 + $0x2c] sm:$0xf]
        %v4007 = vld [vmem:[#allocation5 + $0x30] sm:$0xf]
        %v4008 = vld [vmem:[#allocation5 + $0x34] sm:$0xf]
        %v4009 = vld [vmem:[#allocation5 + $0x38] sm:$0xf]
        %v4010 = vld [vmem:[#allocation5 + $0x3c] sm:$0xf]
        %v4011 = vld [vmem:[#allocation2 + $0x1] sm:$0xff]
        %v4012 = vld [vmem:[#allocation2 + $0x11] sm:$0xff]
        %v4013 = vld [vmem:[#allocation2 + $0x21] sm:$0xff]
        %v4014 = vld [vmem:[#allocation2 + $0x31] sm:$0xff]
        %v4015 = vld [vmem:[#allocation2 + $0x41] sm:$0xff]
        %v4016 = vld [vmem:[#allocation2 + $0x51] sm:$0xff]
        %v4017 = vld [vmem:[#allocation2 + $0x61] sm:$0xff]
        %v4018 = vld [vmem:[#allocation2 + $0x71] sm:$0xff]
        %v4019 = vpack.c.bf16 %v4012, %v4011
        %v4020 = vpack.c.bf16 %v4014, %v4013
        %v4021 = vpack.c.bf16 %v4016, %v4015
        %v4022 = vpack.c.bf16 %v4018, %v4017
        %v4023 = vld [vmem:[#allocation5 + $0x40] sm:$0xf]
        %v4024 = vld [vmem:[#allocation5 + $0x44] sm:$0xf]
        %v4025 = vld [vmem:[#allocation5 + $0x48] sm:$0xf]
        %v4026 = vld [vmem:[#allocation5 + $0x4c] sm:$0xf]
        %v4027 = vld [vmem:[#allocation5 + $0x50] sm:$0xf]
        %v4028 = vld [vmem:[#allocation5 + $0x54] sm:$0xf]
        %v4029 = vld [vmem:[#allocation5 + $0x58] sm:$0xf]
        %v4030 = vld [vmem:[#allocation5 + $0x5c] sm:$0xf]
        %v4031 = vld [vmem:[#allocation5 + $0x60] sm:$0xf]
        %v4032 = vld [vmem:[#allocation5 + $0x64] sm:$0xf]
        %v4033 = vld [vmem:[#allocation5 + $0x68] sm:$0xf]
        %v4034 = vld [vmem:[#allocation5 + $0x6c] sm:$0xf]
        %v4035 = vld [vmem:[#allocation5 + $0x70] sm:$0xf]
        %v4036 = vld [vmem:[#allocation5 + $0x74] sm:$0xf]
        %v4037 = vld [vmem:[#allocation5 + $0x78] sm:$0xf]
        %v4038 = vld [vmem:[#allocation5 + $0x7c] sm:$0xf]
        %v4055 = vunpack.c.l.b16 %v4023
        %v4056 = vunpack.c.l.b16 %v4024
        %v4057 = vunpack.c.l.b16 %v4025
        %v4058 = vunpack.c.l.b16 %v4026
        %v4059 = vunpack.c.l.b16 %v4027
        %v4060 = vunpack.c.l.b16 %v4028
        %v4061 = vunpack.c.l.b16 %v4029
        %v4062 = vunpack.c.l.b16 %v4030
        %v4063 = vunpack.c.l.b16 %v4031
        %v4064 = vunpack.c.l.b16 %v4032
        %v4065 = vunpack.c.l.b16 %v4033
        %v4066 = vunpack.c.l.b16 %v4034
        %v4067 = vunpack.c.l.b16 %v4035
        %v4068 = vunpack.c.l.b16 %v4036
        %v4069 = vunpack.c.l.b16 %v4037
        %v4070 = vunpack.c.l.b16 %v4038
        %v4071 = vpack.c.b16 %v4056, %v4055
        %v4072 = vpack.c.b16 %v4058, %v4057
        %v4073 = vpack.c.b16 %v4060, %v4059
        %v4074 = vpack.c.b16 %v4062, %v4061
        %v4075 = vpack.c.b16 %v4064, %v4063
        %v4076 = vpack.c.b16 %v4066, %v4065
        %v4077 = vpack.c.b16 %v4068, %v4067
        %v4078 = vpack.c.b16 %v4070, %v4069
        %4087 = vmatprep.subr.bf16.mxu0 0
        %4088 = vmatpush1.bf16.msra.mxu0 %v4078
        %4089 = vmatprep.subr.bf16.mxu0 0
        %4090 = vmatpush1.bf16.msra.mxu0 %v4077
        %4091 = vmatprep.subr.bf16.mxu0 0
        %4092 = vmatpush1.bf16.msra.mxu0 %v4076
        %4093 = vmatprep.subr.bf16.mxu0 0
        %4094 = vmatpush1.bf16.msra.mxu0 %v4075
        %4095 = vmatprep.subr.bf16.mxu0 0
        %4096 = vmatpush1.bf16.msra.mxu0 %v4074
        %4097 = vmatprep.subr.bf16.mxu0 0
        %4098 = vmatpush1.bf16.msra.mxu0 %v4073
        %4099 = vmatprep.subr.bf16.mxu0 0
        %4100 = vmatpush1.bf16.msra.mxu0 %v4072
        %4101 = vmatprep.subr.bf16.mxu0 0
        %4102 = vmatpush1.bf16.msra.mxu0 %v4071
        %4103 = vmatprep.subr.bf16.mxu0 0
        %4104 = vmatpush2.bf16.msra.mxu0 0
        %4105 = vmatprep.subr.bf16.mxu0 0
        %4106 = vmatpush2.bf16.msra.mxu0 0
        %4107 = vmatprep.subr.bf16.mxu0 0
        %4108 = vmatpush2.bf16.msra.mxu0 0
        %4109 = vmatprep.subr.bf16.mxu0 0
        %4110 = vmatpush2.bf16.msra.mxu0 0
        %4111 = vmatprep.subr.bf16.mxu0 0
        %4112 = vmatpush2.bf16.msra.mxu0 0
        %4113 = vmatprep.subr.bf16.mxu0 0
        %4114 = vmatpush2.bf16.msra.mxu0 0
        %4115 = vmatprep.subr.bf16.mxu0 0
        %4116 = vmatpush2.bf16.msra.mxu0 0
        %4117 = vmatprep.subr.bf16.mxu0 0
        %4118 = vmatpush2.bf16.msra.mxu0 0
        %4119 = vmatprep.mubr.bf16.mxu0 0
        %4120 = vmatmul.mubr.bf16.gmra.mxu0 %v4019
        %v4121 = vpop.f32.mrf.mxu0
        %v4122 = vadd.f32 0.0, %v4121
        %v4123 = vpop.f32.mrf.mxu0
        %v4124 = vpop.f32.mrf.mxu0
        %v4125 = vadd.f32 0.0, %v4124
        %v4126 = vpop.f32.mrf.mxu0
        %4127 = vmatprep.mubr.bf16.mxu0 0
        %4128 = vmatmul.mubr.bf16.gmra.mxu0 %v4020
        %v4129 = vpop.f32.mrf.mxu0
        %v4130 = vadd.f32 0.0, %v4129
        %v4131 = vpop.f32.mrf.mxu0
        %v4132 = vpop.f32.mrf.mxu0
        %v4133 = vadd.f32 0.0, %v4132
        %v4134 = vpop.f32.mrf.mxu0
        %4135 = vmatprep.mubr.bf16.mxu0 0
        %4136 = vmatmul.mubr.bf16.gmra.mxu0 %v4021
        %v4137 = vpop.f32.mrf.mxu0
        %v4138 = vadd.f32 0.0, %v4137
        %v4139 = vpop.f32.mrf.mxu0
        %v4140 = vpop.f32.mrf.mxu0
        %v4141 = vadd.f32 0.0, %v4140
        %v4142 = vpop.f32.mrf.mxu0
        %4143 = vmatprep.mubr.bf16.mxu0 0
        %4144 = vmatmul.mubr.bf16.gmra.mxu0 %v4022
        %v4145 = vpop.f32.mrf.mxu0
        %v4146 = vadd.f32 0.0, %v4145
        %v4147 = vpop.f32.mrf.mxu0
        %v4148 = vpop.f32.mrf.mxu0
        %v4149 = vadd.f32 0.0, %v4148
        %v4150 = vpop.f32.mrf.mxu0
        %4151 = vdwg.mxu0
        %v4168 = vunpack.c.l.b16 %v3995
        %v4169 = vunpack.c.l.b16 %v3996
        %v4170 = vunpack.c.l.b16 %v3997
        %v4171 = vunpack.c.l.b16 %v3998
        %v4172 = vunpack.c.l.b16 %v3999
        %v4173 = vunpack.c.l.b16 %v4000
        %v4174 = vunpack.c.l.b16 %v4001
        %v4175 = vunpack.c.l.b16 %v4002
        %v4176 = vunpack.c.l.b16 %v4003
        %v4177 = vunpack.c.l.b16 %v4004
        %v4178 = vunpack.c.l.b16 %v4005
        %v4179 = vunpack.c.l.b16 %v4006
        %v4180 = vunpack.c.l.b16 %v4007
        %v4181 = vunpack.c.l.b16 %v4008
        %v4182 = vunpack.c.l.b16 %v4009
        %v4183 = vunpack.c.l.b16 %v4010
        %v4184 = vpack.c.b16 %v4169, %v4168
        %v4185 = vpack.c.b16 %v4171, %v4170
        %v4186 = vpack.c.b16 %v4173, %v4172
        %v4187 = vpack.c.b16 %v4175, %v4174
        %v4188 = vpack.c.b16 %v4177, %v4176
        %v4189 = vpack.c.b16 %v4179, %v4178
        %v4190 = vpack.c.b16 %v4181, %v4180
        %v4191 = vpack.c.b16 %v4183, %v4182
        %4200 = vmatprep.subr.bf16.mxu0 0
        %4201 = vmatpush1.bf16.msra.mxu0 %v4191
        %4202 = vmatprep.subr.bf16.mxu0 0
        %4203 = vmatpush1.bf16.msra.mxu0 %v4190
        %4204 = vmatprep.subr.bf16.mxu0 0
        %4205 = vmatpush1.bf16.msra.mxu0 %v4189
        %4206 = vmatprep.subr.bf16.mxu0 0
        %4207 = vmatpush1.bf16.msra.mxu0 %v4188
        %4208 = vmatprep.subr.bf16.mxu0 0
        %4209 = vmatpush1.bf16.msra.mxu0 %v4187
        %4210 = vmatprep.subr.bf16.mxu0 0
        %4211 = vmatpush1.bf16.msra.mxu0 %v4186
        %4212 = vmatprep.subr.bf16.mxu0 0
        %4213 = vmatpush1.bf16.msra.mxu0 %v4185
        %4214 = vmatprep.subr.bf16.mxu0 0
        %4215 = vmatpush1.bf16.msra.mxu0 %v4184
        %4216 = vmatprep.subr.bf16.mxu0 0
        %4217 = vmatpush2.bf16.msra.mxu0 0
        %4218 = vmatprep.subr.bf16.mxu0 0
        %4219 = vmatpush2.bf16.msra.mxu0 0
        %4220 = vmatprep.subr.bf16.mxu0 0
        %4221 = vmatpush2.bf16.msra.mxu0 0
        %4222 = vmatprep.subr.bf16.mxu0 0
        %4223 = vmatpush2.bf16.msra.mxu0 0
        %4224 = vmatprep.subr.bf16.mxu0 0
        %4225 = vmatpush2.bf16.msra.mxu0 0
        %4226 = vmatprep.subr.bf16.mxu0 0
        %4227 = vmatpush2.bf16.msra.mxu0 0
        %4228 = vmatprep.subr.bf16.mxu0 0
        %4229 = vmatpush2.bf16.msra.mxu0 0
        %4230 = vmatprep.subr.bf16.mxu0 0
        %4231 = vmatpush2.bf16.msra.mxu0 0
        %4232 = vmatprep.mubr.bf16.mxu0 0
        %4233 = vmatmul.mubr.bf16.gmra.mxu0 %v3991
        %v4234 = vpop.f32.mrf.mxu0
        %v4235 = vadd.f32 %v4122, %v4234
        %v4236 = vpop.f32.mrf.mxu0
        %v4237 = vpop.f32.mrf.mxu0
        %v4238 = vadd.f32 %v4125, %v4237
        %v4239 = vpop.f32.mrf.mxu0
        %4240 = vmatprep.mubr.bf16.mxu0 0
        %4241 = vmatmul.mubr.bf16.gmra.mxu0 %v3992
        %v4242 = vpop.f32.mrf.mxu0
        %v4243 = vadd.f32 %v4130, %v4242
        %v4244 = vpop.f32.mrf.mxu0
        %v4245 = vpop.f32.mrf.mxu0
        %v4246 = vadd.f32 %v4133, %v4245
        %v4247 = vpop.f32.mrf.mxu0
        %4248 = vmatprep.mubr.bf16.mxu0 0
        %4249 = vmatmul.mubr.bf16.gmra.mxu0 %v3993
        %v4250 = vpop.f32.mrf.mxu0
        %v4251 = vadd.f32 %v4138, %v4250
        %v4252 = vpop.f32.mrf.mxu0
        %v4253 = vpop.f32.mrf.mxu0
        %v4254 = vadd.f32 %v4141, %v4253
        %v4255 = vpop.f32.mrf.mxu0
        %4256 = vmatprep.mubr.bf16.mxu0 0
        %4257 = vmatmul.mubr.bf16.gmra.mxu0 %v3994
        %v4258 = vpop.f32.mrf.mxu0
        %v4259 = vadd.f32 %v4146, %v4258
        %v4260 = vpop.f32.mrf.mxu0
        %v4261 = vpop.f32.mrf.mxu0
        %v4262 = vadd.f32 %v4149, %v4261
        %v4263 = vpop.f32.mrf.mxu0
        %4264 = vdwg.mxu0
        %v4265 = vld [vmem:[#allocation2 + $0x2] sm:$0xff]
        %v4266 = vld [vmem:[#allocation2 + $0x12] sm:$0xff]
        %v4267 = vld [vmem:[#allocation2 + $0x22] sm:$0xff]
        %v4268 = vld [vmem:[#allocation2 + $0x32] sm:$0xff]
        %v4269 = vld [vmem:[#allocation2 + $0x42] sm:$0xff]
        %v4270 = vld [vmem:[#allocation2 + $0x52] sm:$0xff]
        %v4271 = vld [vmem:[#allocation2 + $0x62] sm:$0xff]
        %v4272 = vld [vmem:[#allocation2 + $0x72] sm:$0xff]
        %v4273 = vpack.c.bf16 %v4266, %v4265
        %v4274 = vpack.c.bf16 %v4268, %v4267
        %v4275 = vpack.c.bf16 %v4270, %v4269
        %v4276 = vpack.c.bf16 %v4272, %v4271
        %v4277 = vld [vmem:[#allocation5 + $0x80] sm:$0xf]
        %v4278 = vld [vmem:[#allocation5 + $0x84] sm:$0xf]
        %v4279 = vld [vmem:[#allocation5 + $0x88] sm:$0xf]
        %v4280 = vld [vmem:[#allocation5 + $0x8c] sm:$0xf]
        %v4281 = vld [vmem:[#allocation5 + $0x90] sm:$0xf]
        %v4282 = vld [vmem:[#allocation5 + $0x94] sm:$0xf]
        %v4283 = vld [vmem:[#allocation5 + $0x98] sm:$0xf]
        %v4284 = vld [vmem:[#allocation5 + $0x9c] sm:$0xf]
        %v4285 = vld [vmem:[#allocation5 + $0xa0] sm:$0xf]
        %v4286 = vld [vmem:[#allocation5 + $0xa4] sm:$0xf]
        %v4287 = vld [vmem:[#allocation5 + $0xa8] sm:$0xf]
        %v4288 = vld [vmem:[#allocation5 + $0xac] sm:$0xf]
        %v4289 = vld [vmem:[#allocation5 + $0xb0] sm:$0xf]
        %v4290 = vld [vmem:[#allocation5 + $0xb4] sm:$0xf]
        %v4291 = vld [vmem:[#allocation5 + $0xb8] sm:$0xf]
        %v4292 = vld [vmem:[#allocation5 + $0xbc] sm:$0xf]
        %v4309 = vunpack.c.l.b16 %v4277
        %v4310 = vunpack.c.l.b16 %v4278
        %v4311 = vunpack.c.l.b16 %v4279
        %v4312 = vunpack.c.l.b16 %v4280
        %v4313 = vunpack.c.l.b16 %v4281
        %v4314 = vunpack.c.l.b16 %v4282
        %v4315 = vunpack.c.l.b16 %v4283
        %v4316 = vunpack.c.l.b16 %v4284
        %v4317 = vunpack.c.l.b16 %v4285
        %v4318 = vunpack.c.l.b16 %v4286
        %v4319 = vunpack.c.l.b16 %v4287
        %v4320 = vunpack.c.l.b16 %v4288
        %v4321 = vunpack.c.l.b16 %v4289
        %v4322 = vunpack.c.l.b16 %v4290
        %v4323 = vunpack.c.l.b16 %v4291
        %v4324 = vunpack.c.l.b16 %v4292
        %v4325 = vpack.c.b16 %v4310, %v4309
        %v4326 = vpack.c.b16 %v4312, %v4311
        %v4327 = vpack.c.b16 %v4314, %v4313
        %v4328 = vpack.c.b16 %v4316, %v4315
        %v4329 = vpack.c.b16 %v4318, %v4317
        %v4330 = vpack.c.b16 %v4320, %v4319
        %v4331 = vpack.c.b16 %v4322, %v4321
        %v4332 = vpack.c.b16 %v4324, %v4323
        %4341 = vmatprep.subr.bf16.mxu0 0
        %4342 = vmatpush1.bf16.msra.mxu0 %v4332
        %4343 = vmatprep.subr.bf16.mxu0 0
        %4344 = vmatpush1.bf16.msra.mxu0 %v4331
        %4345 = vmatprep.subr.bf16.mxu0 0
        %4346 = vmatpush1.bf16.msra.mxu0 %v4330
        %4347 = vmatprep.subr.bf16.mxu0 0
        %4348 = vmatpush1.bf16.msra.mxu0 %v4329
        %4349 = vmatprep.subr.bf16.mxu0 0
        %4350 = vmatpush1.bf16.msra.mxu0 %v4328
        %4351 = vmatprep.subr.bf16.mxu0 0
        %4352 = vmatpush1.bf16.msra.mxu0 %v4327
        %4353 = vmatprep.subr.bf16.mxu0 0
        %4354 = vmatpush1.bf16.msra.mxu0 %v4326
        %4355 = vmatprep.subr.bf16.mxu0 0
        %4356 = vmatpush1.bf16.msra.mxu0 %v4325
        %4357 = vmatprep.subr.bf16.mxu0 0
        %4358 = vmatpush2.bf16.msra.mxu0 0
        %4359 = vmatprep.subr.bf16.mxu0 0
        %4360 = vmatpush2.bf16.msra.mxu0 0
        %4361 = vmatprep.subr.bf16.mxu0 0
        %4362 = vmatpush2.bf16.msra.mxu0 0
        %4363 = vmatprep.subr.bf16.mxu0 0
        %4364 = vmatpush2.bf16.msra.mxu0 0
        %4365 = vmatprep.subr.bf16.mxu0 0
        %4366 = vmatpush2.bf16.msra.mxu0 0
        %4367 = vmatprep.subr.bf16.mxu0 0
        %4368 = vmatpush2.bf16.msra.mxu0 0
        %4369 = vmatprep.subr.bf16.mxu0 0
        %4370 = vmatpush2.bf16.msra.mxu0 0
        %4371 = vmatprep.subr.bf16.mxu0 0
        %4372 = vmatpush2.bf16.msra.mxu0 0
        %4373 = vmatprep.mubr.bf16.mxu0 0
        %4374 = vmatmul.mubr.bf16.gmra.mxu0 %v4273
        %v4375 = vpop.f32.mrf.mxu0
        %v4376 = vadd.f32 0.0, %v4375
        %v4377 = vpop.f32.mrf.mxu0
        %v4378 = vpop.f32.mrf.mxu0
        %v4379 = vadd.f32 0.0, %v4378
        %v4380 = vpop.f32.mrf.mxu0
        %4381 = vmatprep.mubr.bf16.mxu0 0
        %4382 = vmatmul.mubr.bf16.gmra.mxu0 %v4274
        %v4383 = vpop.f32.mrf.mxu0
        %v4384 = vadd.f32 0.0, %v4383
        %v4385 = vpop.f32.mrf.mxu0
        %v4386 = vpop.f32.mrf.mxu0
        %v4387 = vadd.f32 0.0, %v4386
        %v4388 = vpop.f32.mrf.mxu0
        %4389 = vmatprep.mubr.bf16.mxu0 0
        %4390 = vmatmul.mubr.bf16.gmra.mxu0 %v4275
        %v4391 = vpop.f32.mrf.mxu0
        %v4392 = vadd.f32 0.0, %v4391
        %v4393 = vpop.f32.mrf.mxu0
        %v4394 = vpop.f32.mrf.mxu0
        %v4395 = vadd.f32 0.0, %v4394
        %v4396 = vpop.f32.mrf.mxu0
        %4397 = vmatprep.mubr.bf16.mxu0 0
        %4398 = vmatmul.mubr.bf16.gmra.mxu0 %v4276
        %v4399 = vpop.f32.mrf.mxu0
        %v4400 = vadd.f32 0.0, %v4399
        %v4401 = vpop.f32.mrf.mxu0
        %v4402 = vpop.f32.mrf.mxu0
        %v4403 = vadd.f32 0.0, %v4402
        %v4404 = vpop.f32.mrf.mxu0
        %4405 = vdwg.mxu0
        %v4406 = vadd.f32 %v4235, %v4376
        %v4407 = vadd.f32 %v4238, %v4379
        %v4408 = vadd.f32 %v4243, %v4384
        %v4409 = vadd.f32 %v4246, %v4387
        %v4410 = vadd.f32 %v4251, %v4392
        %v4411 = vadd.f32 %v4254, %v4395
        %v4412 = vadd.f32 %v4259, %v4400
        %v4413 = vadd.f32 %v4262, %v4403
        %v4414 = vld [vmem:[%s3958] sm:$0xff]
        %v4415 = vld [vmem:[%s3958 + $0x10] sm:$0xff]
        %v4416 = vld [vmem:[%s3958 + $0x20] sm:$0xff]
        %v4417 = vld [vmem:[%s3958 + $0x30] sm:$0xff]
        %v4418 = vld [vmem:[%s3958 + $0x40] sm:$0xff]
        %v4419 = vld [vmem:[%s3958 + $0x50] sm:$0xff]
        %v4420 = vld [vmem:[%s3958 + $0x60] sm:$0xff]
        %v4421 = vld [vmem:[%s3958 + $0x70] sm:$0xff]
        %v4422 = vpack.c.bf16 %v4415, %v4414
        %v4423 = vpack.c.bf16 %v4417, %v4416
        %v4424 = vpack.c.bf16 %v4419, %v4418
        %v4425 = vpack.c.bf16 %v4421, %v4420
        %v4426 = vld [vmem:[#allocation5 + $0xc0] sm:$0xf]
        %v4427 = vld [vmem:[#allocation5 + $0xc4] sm:$0xf]
        %v4428 = vld [vmem:[#allocation5 + $0xc8] sm:$0xf]
        %v4429 = vld [vmem:[#allocation5 + $0xcc] sm:$0xf]
        %v4430 = vld [vmem:[#allocation5 + $0xd0] sm:$0xf]
        %v4431 = vld [vmem:[#allocation5 + $0xd4] sm:$0xf]
        %v4432 = vld [vmem:[#allocation5 + $0xd8] sm:$0xf]
        %v4433 = vld [vmem:[#allocation5 + $0xdc] sm:$0xf]
        %v4434 = vld [vmem:[#allocation5 + $0xe0] sm:$0xf]
        %v4435 = vld [vmem:[#allocation5 + $0xe4] sm:$0xf]
        %v4436 = vld [vmem:[#allocation5 + $0xe8] sm:$0xf]
        %v4437 = vld [vmem:[#allocation5 + $0xec] sm:$0xf]
        %v4438 = vld [vmem:[#allocation5 + $0xf0] sm:$0xf]
        %v4439 = vld [vmem:[#allocation5 + $0xf4] sm:$0xf]
        %v4440 = vld [vmem:[#allocation5 + $0xf8] sm:$0xf]
        %v4441 = vld [vmem:[#allocation5 + $0xfc] sm:$0xf]
        %v4458 = vunpack.c.l.b16 %v4426
        %v4459 = vunpack.c.l.b16 %v4427
        %v4460 = vunpack.c.l.b16 %v4428
        %v4461 = vunpack.c.l.b16 %v4429
        %v4462 = vunpack.c.l.b16 %v4430
        %v4463 = vunpack.c.l.b16 %v4431
        %v4464 = vunpack.c.l.b16 %v4432
        %v4465 = vunpack.c.l.b16 %v4433
        %v4466 = vunpack.c.l.b16 %v4434
        %v4467 = vunpack.c.l.b16 %v4435
        %v4468 = vunpack.c.l.b16 %v4436
        %v4469 = vunpack.c.l.b16 %v4437
        %v4470 = vunpack.c.l.b16 %v4438
        %v4471 = vunpack.c.l.b16 %v4439
        %v4472 = vunpack.c.l.b16 %v4440
        %v4473 = vunpack.c.l.b16 %v4441
        %v4474 = vpack.c.b16 %v4459, %v4458
        %v4475 = vpack.c.b16 %v4461, %v4460
        %v4476 = vpack.c.b16 %v4463, %v4462
        %v4477 = vpack.c.b16 %v4465, %v4464
        %v4478 = vpack.c.b16 %v4467, %v4466
        %v4479 = vpack.c.b16 %v4469, %v4468
        %v4480 = vpack.c.b16 %v4471, %v4470
        %v4481 = vpack.c.b16 %v4473, %v4472
        %4490 = vmatprep.subr.bf16.mxu0 0
        %4491 = vmatpush1.bf16.msra.mxu0 %v4481
        %4492 = vmatprep.subr.bf16.mxu0 0
        %4493 = vmatpush1.bf16.msra.mxu0 %v4480
        %4494 = vmatprep.subr.bf16.mxu0 0
        %4495 = vmatpush1.bf16.msra.mxu0 %v4479
        %4496 = vmatprep.subr.bf16.mxu0 0
        %4497 = vmatpush1.bf16.msra.mxu0 %v4478
        %4498 = vmatprep.subr.bf16.mxu0 0
        %4499 = vmatpush1.bf16.msra.mxu0 %v4477
        %4500 = vmatprep.subr.bf16.mxu0 0
        %4501 = vmatpush1.bf16.msra.mxu0 %v4476
        %4502 = vmatprep.subr.bf16.mxu0 0
        %4503 = vmatpush1.bf16.msra.mxu0 %v4475
        %4504 = vmatprep.subr.bf16.mxu0 0
        %4505 = vmatpush1.bf16.msra.mxu0 %v4474
        %4506 = vmatprep.subr.bf16.mxu0 0
        %4507 = vmatpush2.bf16.msra.mxu0 0
        %4508 = vmatprep.subr.bf16.mxu0 0
        %4509 = vmatpush2.bf16.msra.mxu0 0
        %4510 = vmatprep.subr.bf16.mxu0 0
        %4511 = vmatpush2.bf16.msra.mxu0 0
        %4512 = vmatprep.subr.bf16.mxu0 0
        %4513 = vmatpush2.bf16.msra.mxu0 0
        %4514 = vmatprep.subr.bf16.mxu0 0
        %4515 = vmatpush2.bf16.msra.mxu0 0
        %4516 = vmatprep.subr.bf16.mxu0 0
        %4517 = vmatpush2.bf16.msra.mxu0 0
        %4518 = vmatprep.subr.bf16.mxu0 0
        %4519 = vmatpush2.bf16.msra.mxu0 0
        %4520 = vmatprep.subr.bf16.mxu0 0
        %4521 = vmatpush2.bf16.msra.mxu0 0
        %4522 = vmatprep.mubr.bf16.mxu0 0
        %4523 = vmatmul.mubr.bf16.gmra.mxu0 %v4422
        %v4524 = vpop.f32.mrf.mxu0
        %v4525 = vadd.f32 0.0, %v4524
        %v4526 = vpop.f32.mrf.mxu0
        %v4527 = vpop.f32.mrf.mxu0
        %v4528 = vadd.f32 0.0, %v4527
        %v4529 = vpop.f32.mrf.mxu0
        %4530 = vmatprep.mubr.bf16.mxu0 0
        %4531 = vmatmul.mubr.bf16.gmra.mxu0 %v4423
        %v4532 = vpop.f32.mrf.mxu0
        %v4533 = vadd.f32 0.0, %v4532
        %v4534 = vpop.f32.mrf.mxu0
        %v4535 = vpop.f32.mrf.mxu0
        %v4536 = vadd.f32 0.0, %v4535
        %v4537 = vpop.f32.mrf.mxu0
        %4538 = vmatprep.mubr.bf16.mxu0 0
        %4539 = vmatmul.mubr.bf16.gmra.mxu0 %v4424
        %v4540 = vpop.f32.mrf.mxu0
        %v4541 = vadd.f32 0.0, %v4540
        %v4542 = vpop.f32.mrf.mxu0
        %v4543 = vpop.f32.mrf.mxu0
        %v4544 = vadd.f32 0.0, %v4543
        %v4545 = vpop.f32.mrf.mxu0
        %4546 = vmatprep.mubr.bf16.mxu0 0
        %4547 = vmatmul.mubr.bf16.gmra.mxu0 %v4425
        %v4548 = vpop.f32.mrf.mxu0
        %v4549 = vadd.f32 0.0, %v4548
        %v4550 = vpop.f32.mrf.mxu0
        %v4551 = vpop.f32.mrf.mxu0
        %v4552 = vadd.f32 0.0, %v4551
        %v4553 = vpop.f32.mrf.mxu0
        %4554 = vdwg.mxu0
        %v4555 = vadd.f32 %v4406, %v4525
        %v4556 = vadd.f32 %v4407, %v4528
        %v4557 = vadd.f32 %v4408, %v4533
        %v4558 = vadd.f32 %v4409, %v4536
        %v4559 = vadd.f32 %v4410, %v4541
        %v4560 = vadd.f32 %v4411, %v4544
        %v4561 = vadd.f32 %v4412, %v4549
        %v4562 = vadd.f32 %v4413, %v4552
        %v4563 = vld [vmem:[%s3958 + $0x1] sm:$0xff]
        %v4564 = vld [vmem:[%s3958 + $0x11] sm:$0xff]
        %v4565 = vld [vmem:[%s3958 + $0x21] sm:$0xff]
        %v4566 = vld [vmem:[%s3958 + $0x31] sm:$0xff]
        %v4567 = vld [vmem:[%s3958 + $0x41] sm:$0xff]
        %v4568 = vld [vmem:[%s3958 + $0x51] sm:$0xff]
        %v4569 = vld [vmem:[%s3958 + $0x61] sm:$0xff]
        %v4570 = vld [vmem:[%s3958 + $0x71] sm:$0xff]
        %v4571 = vpack.c.bf16 %v4564, %v4563
        %v4572 = vpack.c.bf16 %v4566, %v4565
        %v4573 = vpack.c.bf16 %v4568, %v4567
        %v4574 = vpack.c.bf16 %v4570, %v4569
        %v4575 = vld [vmem:[#allocation5 + $0x100] sm:$0xf]
        %v4576 = vld [vmem:[#allocation5 + $0x104] sm:$0xf]
        %v4577 = vld [vmem:[#allocation5 + $0x108] sm:$0xf]
        %v4578 = vld [vmem:[#allocation5 + $0x10c] sm:$0xf]
        %v4579 = vld [vmem:[#allocation5 + $0x110] sm:$0xf]
        %v4580 = vld [vmem:[#allocation5 + $0x114] sm:$0xf]
        %v4581 = vld [vmem:[#allocation5 + $0x118] sm:$0xf]
        %v4582 = vld [vmem:[#allocation5 + $0x11c] sm:$0xf]
        %v4583 = vld [vmem:[#allocation5 + $0x120] sm:$0xf]
        %v4584 = vld [vmem:[#allocation5 + $0x124] sm:$0xf]
        %v4585 = vld [vmem:[#allocation5 + $0x128] sm:$0xf]
        %v4586 = vld [vmem:[#allocation5 + $0x12c] sm:$0xf]
        %v4587 = vld [vmem:[#allocation5 + $0x130] sm:$0xf]
        %v4588 = vld [vmem:[#allocation5 + $0x134] sm:$0xf]
        %v4589 = vld [vmem:[#allocation5 + $0x138] sm:$0xf]
        %v4590 = vld [vmem:[#allocation5 + $0x13c] sm:$0xf]
        %v4607 = vunpack.c.l.b16 %v4575
        %v4608 = vunpack.c.l.b16 %v4576
        %v4609 = vunpack.c.l.b16 %v4577
        %v4610 = vunpack.c.l.b16 %v4578
        %v4611 = vunpack.c.l.b16 %v4579
        %v4612 = vunpack.c.l.b16 %v4580
        %v4613 = vunpack.c.l.b16 %v4581
        %v4614 = vunpack.c.l.b16 %v4582
        %v4615 = vunpack.c.l.b16 %v4583
        %v4616 = vunpack.c.l.b16 %v4584
        %v4617 = vunpack.c.l.b16 %v4585
        %v4618 = vunpack.c.l.b16 %v4586
        %v4619 = vunpack.c.l.b16 %v4587
        %v4620 = vunpack.c.l.b16 %v4588
        %v4621 = vunpack.c.l.b16 %v4589
        %v4622 = vunpack.c.l.b16 %v4590
        %v4623 = vpack.c.b16 %v4608, %v4607
        %v4624 = vpack.c.b16 %v4610, %v4609
        %v4625 = vpack.c.b16 %v4612, %v4611
        %v4626 = vpack.c.b16 %v4614, %v4613
        %v4627 = vpack.c.b16 %v4616, %v4615
        %v4628 = vpack.c.b16 %v4618, %v4617
        %v4629 = vpack.c.b16 %v4620, %v4619
        %v4630 = vpack.c.b16 %v4622, %v4621
        %4639 = vmatprep.subr.bf16.mxu0 0
        %4640 = vmatpush1.bf16.msra.mxu0 %v4630
        %4641 = vmatprep.subr.bf16.mxu0 0
        %4642 = vmatpush1.bf16.msra.mxu0 %v4629
        %4643 = vmatprep.subr.bf16.mxu0 0
        %4644 = vmatpush1.bf16.msra.mxu0 %v4628
        %4645 = vmatprep.subr.bf16.mxu0 0
        %4646 = vmatpush1.bf16.msra.mxu0 %v4627
        %4647 = vmatprep.subr.bf16.mxu0 0
        %4648 = vmatpush1.bf16.msra.mxu0 %v4626
        %4649 = vmatprep.subr.bf16.mxu0 0
        %4650 = vmatpush1.bf16.msra.mxu0 %v4625
        %4651 = vmatprep.subr.bf16.mxu0 0
        %4652 = vmatpush1.bf16.msra.mxu0 %v4624
        %4653 = vmatprep.subr.bf16.mxu0 0
        %4654 = vmatpush1.bf16.msra.mxu0 %v4623
        %4655 = vmatprep.subr.bf16.mxu0 0
        %4656 = vmatpush2.bf16.msra.mxu0 0
        %4657 = vmatprep.subr.bf16.mxu0 0
        %4658 = vmatpush2.bf16.msra.mxu0 0
        %4659 = vmatprep.subr.bf16.mxu0 0
        %4660 = vmatpush2.bf16.msra.mxu0 0
        %4661 = vmatprep.subr.bf16.mxu0 0
        %4662 = vmatpush2.bf16.msra.mxu0 0
        %4663 = vmatprep.subr.bf16.mxu0 0
        %4664 = vmatpush2.bf16.msra.mxu0 0
        %4665 = vmatprep.subr.bf16.mxu0 0
        %4666 = vmatpush2.bf16.msra.mxu0 0
        %4667 = vmatprep.subr.bf16.mxu0 0
        %4668 = vmatpush2.bf16.msra.mxu0 0
        %4669 = vmatprep.subr.bf16.mxu0 0
        %4670 = vmatpush2.bf16.msra.mxu0 0
        %4671 = vmatprep.mubr.bf16.mxu0 0
        %4672 = vmatmul.mubr.bf16.gmra.mxu0 %v4571
        %v4673 = vpop.f32.mrf.mxu0
        %v4674 = vadd.f32 0.0, %v4673
        %v4675 = vpop.f32.mrf.mxu0
        %v4676 = vpop.f32.mrf.mxu0
        %v4677 = vadd.f32 0.0, %v4676
        %v4678 = vpop.f32.mrf.mxu0
        %4679 = vmatprep.mubr.bf16.mxu0 0
        %4680 = vmatmul.mubr.bf16.gmra.mxu0 %v4572
        %v4681 = vpop.f32.mrf.mxu0
        %v4682 = vadd.f32 0.0, %v4681
        %v4683 = vpop.f32.mrf.mxu0
        %v4684 = vpop.f32.mrf.mxu0
        %v4685 = vadd.f32 0.0, %v4684
        %v4686 = vpop.f32.mrf.mxu0
        %4687 = vmatprep.mubr.bf16.mxu0 0
        %4688 = vmatmul.mubr.bf16.gmra.mxu0 %v4573
        %v4689 = vpop.f32.mrf.mxu0
        %v4690 = vadd.f32 0.0, %v4689
        %v4691 = vpop.f32.mrf.mxu0
        %v4692 = vpop.f32.mrf.mxu0
        %v4693 = vadd.f32 0.0, %v4692
        %v4694 = vpop.f32.mrf.mxu0
        %4695 = vmatprep.mubr.bf16.mxu0 0
        %4696 = vmatmul.mubr.bf16.gmra.mxu0 %v4574
        %v4697 = vpop.f32.mrf.mxu0
        %v4698 = vadd.f32 0.0, %v4697
        %v4699 = vpop.f32.mrf.mxu0
        %v4700 = vpop.f32.mrf.mxu0
        %v4701 = vadd.f32 0.0, %v4700
        %v4702 = vpop.f32.mrf.mxu0
        %4703 = vdwg.mxu0
        %v4704 = vadd.f32 %v4555, %v4674
        %v4705 = vadd.f32 %v4556, %v4677
        %v4706 = vadd.f32 %v4557, %v4682
        %v4707 = vadd.f32 %v4558, %v4685
        %v4708 = vadd.f32 %v4559, %v4690
        %v4709 = vadd.f32 %v4560, %v4693
        %v4710 = vadd.f32 %v4561, %v4698
        %v4711 = vadd.f32 %v4562, %v4701
        %v4712 = vld [vmem:[%s3958 + $0x2] sm:$0xff]
        %v4713 = vld [vmem:[%s3958 + $0x12] sm:$0xff]
        %v4714 = vld [vmem:[%s3958 + $0x22] sm:$0xff]
        %v4715 = vld [vmem:[%s3958 + $0x32] sm:$0xff]
        %v4716 = vld [vmem:[%s3958 + $0x42] sm:$0xff]
        %v4717 = vld [vmem:[%s3958 + $0x52] sm:$0xff]
        %v4718 = vld [vmem:[%s3958 + $0x62] sm:$0xff]
        %v4719 = vld [vmem:[%s3958 + $0x72] sm:$0xff]
        %v4720 = vpack.c.bf16 %v4713, %v4712
        %v4721 = vpack.c.bf16 %v4715, %v4714
        %v4722 = vpack.c.bf16 %v4717, %v4716
        %v4723 = vpack.c.bf16 %v4719, %v4718
        %v4724 = vld [vmem:[#allocation5 + $0x140] sm:$0xf]
        %v4725 = vld [vmem:[#allocation5 + $0x144] sm:$0xf]
        %v4726 = vld [vmem:[#allocation5 + $0x148] sm:$0xf]
        %v4727 = vld [vmem:[#allocation5 + $0x14c] sm:$0xf]
        %v4728 = vld [vmem:[#allocation5 + $0x150] sm:$0xf]
        %v4729 = vld [vmem:[#allocation5 + $0x154] sm:$0xf]
        %v4730 = vld [vmem:[#allocation5 + $0x158] sm:$0xf]
        %v4731 = vld [vmem:[#allocation5 + $0x15c] sm:$0xf]
        %v4732 = vld [vmem:[#allocation5 + $0x160] sm:$0xf]
        %v4733 = vld [vmem:[#allocation5 + $0x164] sm:$0xf]
        %v4734 = vld [vmem:[#allocation5 + $0x168] sm:$0xf]
        %v4735 = vld [vmem:[#allocation5 + $0x16c] sm:$0xf]
        %v4736 = vld [vmem:[#allocation5 + $0x170] sm:$0xf]
        %v4737 = vld [vmem:[#allocation5 + $0x174] sm:$0xf]
        %v4738 = vld [vmem:[#allocation5 + $0x178] sm:$0xf]
        %v4739 = vld [vmem:[#allocation5 + $0x17c] sm:$0xf]
        %v4756 = vunpack.c.l.b16 %v4724
        %v4757 = vunpack.c.l.b16 %v4725
        %v4758 = vunpack.c.l.b16 %v4726
        %v4759 = vunpack.c.l.b16 %v4727
        %v4760 = vunpack.c.l.b16 %v4728
        %v4761 = vunpack.c.l.b16 %v4729
        %v4762 = vunpack.c.l.b16 %v4730
        %v4763 = vunpack.c.l.b16 %v4731
        %v4764 = vunpack.c.l.b16 %v4732
        %v4765 = vunpack.c.l.b16 %v4733
        %v4766 = vunpack.c.l.b16 %v4734
        %v4767 = vunpack.c.l.b16 %v4735
        %v4768 = vunpack.c.l.b16 %v4736
        %v4769 = vunpack.c.l.b16 %v4737
        %v4770 = vunpack.c.l.b16 %v4738
        %v4771 = vunpack.c.l.b16 %v4739
        %v4772 = vpack.c.b16 %v4757, %v4756
        %v4773 = vpack.c.b16 %v4759, %v4758
        %v4774 = vpack.c.b16 %v4761, %v4760
        %v4775 = vpack.c.b16 %v4763, %v4762
        %v4776 = vpack.c.b16 %v4765, %v4764
        %v4777 = vpack.c.b16 %v4767, %v4766
        %v4778 = vpack.c.b16 %v4769, %v4768
        %v4779 = vpack.c.b16 %v4771, %v4770
        %4788 = vmatprep.subr.bf16.mxu0 0
        %4789 = vmatpush1.bf16.msra.mxu0 %v4779
        %4790 = vmatprep.subr.bf16.mxu0 0
        %4791 = vmatpush1.bf16.msra.mxu0 %v4778
        %4792 = vmatprep.subr.bf16.mxu0 0
        %4793 = vmatpush1.bf16.msra.mxu0 %v4777
        %4794 = vmatprep.subr.bf16.mxu0 0
        %4795 = vmatpush1.bf16.msra.mxu0 %v4776
        %4796 = vmatprep.subr.bf16.mxu0 0
        %4797 = vmatpush1.bf16.msra.mxu0 %v4775
        %4798 = vmatprep.subr.bf16.mxu0 0
        %4799 = vmatpush1.bf16.msra.mxu0 %v4774
        %4800 = vmatprep.subr.bf16.mxu0 0
        %4801 = vmatpush1.bf16.msra.mxu0 %v4773
        %4802 = vmatprep.subr.bf16.mxu0 0
        %4803 = vmatpush1.bf16.msra.mxu0 %v4772
        %4804 = vmatprep.subr.bf16.mxu0 0
        %4805 = vmatpush2.bf16.msra.mxu0 0
        %4806 = vmatprep.subr.bf16.mxu0 0
        %4807 = vmatpush2.bf16.msra.mxu0 0
        %4808 = vmatprep.subr.bf16.mxu0 0
        %4809 = vmatpush2.bf16.msra.mxu0 0
        %4810 = vmatprep.subr.bf16.mxu0 0
        %4811 = vmatpush2.bf16.msra.mxu0 0
        %4812 = vmatprep.subr.bf16.mxu0 0
        %4813 = vmatpush2.bf16.msra.mxu0 0
        %4814 = vmatprep.subr.bf16.mxu0 0
        %4815 = vmatpush2.bf16.msra.mxu0 0
        %4816 = vmatprep.subr.bf16.mxu0 0
        %4817 = vmatpush2.bf16.msra.mxu0 0
        %4818 = vmatprep.subr.bf16.mxu0 0
        %4819 = vmatpush2.bf16.msra.mxu0 0
        %4820 = vmatprep.mubr.bf16.mxu0 0
        %4821 = vmatmul.mubr.bf16.gmra.mxu0 %v4720
        %v4822 = vpop.f32.mrf.mxu0
        %v4823 = vadd.f32 0.0, %v4822
        %v4824 = vpop.f32.mrf.mxu0
        %v4825 = vpop.f32.mrf.mxu0
        %v4826 = vadd.f32 0.0, %v4825
        %v4827 = vpop.f32.mrf.mxu0
        %4828 = vmatprep.mubr.bf16.mxu0 0
        %4829 = vmatmul.mubr.bf16.gmra.mxu0 %v4721
        %v4830 = vpop.f32.mrf.mxu0
        %v4831 = vadd.f32 0.0, %v4830
        %v4832 = vpop.f32.mrf.mxu0
        %v4833 = vpop.f32.mrf.mxu0
        %v4834 = vadd.f32 0.0, %v4833
        %v4835 = vpop.f32.mrf.mxu0
        %4836 = vmatprep.mubr.bf16.mxu0 0
        %4837 = vmatmul.mubr.bf16.gmra.mxu0 %v4722
        %v4838 = vpop.f32.mrf.mxu0
        %v4839 = vadd.f32 0.0, %v4838
        %v4840 = vpop.f32.mrf.mxu0
        %v4841 = vpop.f32.mrf.mxu0
        %v4842 = vadd.f32 0.0, %v4841
        %v4843 = vpop.f32.mrf.mxu0
        %4844 = vmatprep.mubr.bf16.mxu0 0
        %4845 = vmatmul.mubr.bf16.gmra.mxu0 %v4723
        %v4846 = vpop.f32.mrf.mxu0
        %v4847 = vadd.f32 0.0, %v4846
        %v4848 = vpop.f32.mrf.mxu0
        %v4849 = vpop.f32.mrf.mxu0
        %v4850 = vadd.f32 0.0, %v4849
        %v4851 = vpop.f32.mrf.mxu0
        %4852 = vdwg.mxu0
        %v4853 = vadd.f32 %v4704, %v4823
        %v4854 = vadd.f32 %v4705, %v4826
        %v4855 = vadd.f32 %v4706, %v4831
        %v4856 = vadd.f32 %v4707, %v4834
        %v4857 = vadd.f32 %v4708, %v4839
        %v4858 = vadd.f32 %v4709, %v4842
        %v4859 = vadd.f32 %v4710, %v4847
        %v4860 = vadd.f32 %v4711, %v4850
        %s4861 = scalar_lea.vmem [#allocation2], 32
        %v4862 = vld [vmem:[%s4861] sm:$0xff]
        %v4863 = vld [vmem:[%s4861 + $0x10] sm:$0xff]
        %v4864 = vld [vmem:[%s4861 + $0x20] sm:$0xff]
        %v4865 = vld [vmem:[%s4861 + $0x30] sm:$0xff]
        %v4866 = vld [vmem:[%s4861 + $0x40] sm:$0xff]
        %v4867 = vld [vmem:[%s4861 + $0x50] sm:$0xff]
        %v4868 = vld [vmem:[%s4861 + $0x60] sm:$0xff]
        %v4869 = vld [vmem:[%s4861 + $0x70] sm:$0xff]
        %v4870 = vpack.c.bf16 %v4863, %v4862
        %v4871 = vpack.c.bf16 %v4865, %v4864
        %v4872 = vpack.c.bf16 %v4867, %v4866
        %v4873 = vpack.c.bf16 %v4869, %v4868
        %v4874 = vld [vmem:[#allocation5 + $0x180] sm:$0xf]
        %v4875 = vld [vmem:[#allocation5 + $0x184] sm:$0xf]
        %v4876 = vld [vmem:[#allocation5 + $0x188] sm:$0xf]
        %v4877 = vld [vmem:[#allocation5 + $0x18c] sm:$0xf]
        %v4878 = vld [vmem:[#allocation5 + $0x190] sm:$0xf]
        %v4879 = vld [vmem:[#allocation5 + $0x194] sm:$0xf]
        %v4880 = vld [vmem:[#allocation5 + $0x198] sm:$0xf]
        %v4881 = vld [vmem:[#allocation5 + $0x19c] sm:$0xf]
        %v4882 = vld [vmem:[#allocation5 + $0x1a0] sm:$0xf]
        %v4883 = vld [vmem:[#allocation5 + $0x1a4] sm:$0xf]
        %v4884 = vld [vmem:[#allocation5 + $0x1a8] sm:$0xf]
        %v4885 = vld [vmem:[#allocation5 + $0x1ac] sm:$0xf]
        %v4886 = vld [vmem:[#allocation5 + $0x1b0] sm:$0xf]
        %v4887 = vld [vmem:[#allocation5 + $0x1b4] sm:$0xf]
        %v4888 = vld [vmem:[#allocation5 + $0x1b8] sm:$0xf]
        %v4889 = vld [vmem:[#allocation5 + $0x1bc] sm:$0xf]
        %v4906 = vunpack.c.l.b16 %v4874
        %v4907 = vunpack.c.l.b16 %v4875
        %v4908 = vunpack.c.l.b16 %v4876
        %v4909 = vunpack.c.l.b16 %v4877
        %v4910 = vunpack.c.l.b16 %v4878
        %v4911 = vunpack.c.l.b16 %v4879
        %v4912 = vunpack.c.l.b16 %v4880
        %v4913 = vunpack.c.l.b16 %v4881
        %v4914 = vunpack.c.l.b16 %v4882
        %v4915 = vunpack.c.l.b16 %v4883
        %v4916 = vunpack.c.l.b16 %v4884
        %v4917 = vunpack.c.l.b16 %v4885
        %v4918 = vunpack.c.l.b16 %v4886
        %v4919 = vunpack.c.l.b16 %v4887
        %v4920 = vunpack.c.l.b16 %v4888
        %v4921 = vunpack.c.l.b16 %v4889
        %v4922 = vpack.c.b16 %v4907, %v4906
        %v4923 = vpack.c.b16 %v4909, %v4908
        %v4924 = vpack.c.b16 %v4911, %v4910
        %v4925 = vpack.c.b16 %v4913, %v4912
        %v4926 = vpack.c.b16 %v4915, %v4914
        %v4927 = vpack.c.b16 %v4917, %v4916
        %v4928 = vpack.c.b16 %v4919, %v4918
        %v4929 = vpack.c.b16 %v4921, %v4920
        %4938 = vmatprep.subr.bf16.mxu0 0
        %4939 = vmatpush1.bf16.msra.mxu0 %v4929
        %4940 = vmatprep.subr.bf16.mxu0 0
        %4941 = vmatpush1.bf16.msra.mxu0 %v4928
        %4942 = vmatprep.subr.bf16.mxu0 0
        %4943 = vmatpush1.bf16.msra.mxu0 %v4927
        %4944 = vmatprep.subr.bf16.mxu0 0
        %4945 = vmatpush1.bf16.msra.mxu0 %v4926
        %4946 = vmatprep.subr.bf16.mxu0 0
        %4947 = vmatpush1.bf16.msra.mxu0 %v4925
        %4948 = vmatprep.subr.bf16.mxu0 0
        %4949 = vmatpush1.bf16.msra.mxu0 %v4924
        %4950 = vmatprep.subr.bf16.mxu0 0
        %4951 = vmatpush1.bf16.msra.mxu0 %v4923
        %4952 = vmatprep.subr.bf16.mxu0 0
        %4953 = vmatpush1.bf16.msra.mxu0 %v4922
        %4954 = vmatprep.subr.bf16.mxu0 0
        %4955 = vmatpush2.bf16.msra.mxu0 0
        %4956 = vmatprep.subr.bf16.mxu0 0
        %4957 = vmatpush2.bf16.msra.mxu0 0
        %4958 = vmatprep.subr.bf16.mxu0 0
        %4959 = vmatpush2.bf16.msra.mxu0 0
        %4960 = vmatprep.subr.bf16.mxu0 0
        %4961 = vmatpush2.bf16.msra.mxu0 0
        %4962 = vmatprep.subr.bf16.mxu0 0
        %4963 = vmatpush2.bf16.msra.mxu0 0
        %4964 = vmatprep.subr.bf16.mxu0 0
        %4965 = vmatpush2.bf16.msra.mxu0 0
        %4966 = vmatprep.subr.bf16.mxu0 0
        %4967 = vmatpush2.bf16.msra.mxu0 0
        %4968 = vmatprep.subr.bf16.mxu0 0
        %4969 = vmatpush2.bf16.msra.mxu0 0
        %4970 = vmatprep.mubr.bf16.mxu0 0
        %4971 = vmatmul.mubr.bf16.gmra.mxu0 %v4870
        %v4972 = vpop.f32.mrf.mxu0
        %v4973 = vadd.f32 0.0, %v4972
        %v4974 = vpop.f32.mrf.mxu0
        %v4975 = vpop.f32.mrf.mxu0
        %v4976 = vadd.f32 0.0, %v4975
        %v4977 = vpop.f32.mrf.mxu0
        %4978 = vmatprep.mubr.bf16.mxu0 0
        %4979 = vmatmul.mubr.bf16.gmra.mxu0 %v4871
        %v4980 = vpop.f32.mrf.mxu0
        %v4981 = vadd.f32 0.0, %v4980
        %v4982 = vpop.f32.mrf.mxu0
        %v4983 = vpop.f32.mrf.mxu0
        %v4984 = vadd.f32 0.0, %v4983
        %v4985 = vpop.f32.mrf.mxu0
        %4986 = vmatprep.mubr.bf16.mxu0 0
        %4987 = vmatmul.mubr.bf16.gmra.mxu0 %v4872
        %v4988 = vpop.f32.mrf.mxu0
        %v4989 = vadd.f32 0.0, %v4988
        %v4990 = vpop.f32.mrf.mxu0
        %v4991 = vpop.f32.mrf.mxu0
        %v4992 = vadd.f32 0.0, %v4991
        %v4993 = vpop.f32.mrf.mxu0
        %4994 = vmatprep.mubr.bf16.mxu0 0
        %4995 = vmatmul.mubr.bf16.gmra.mxu0 %v4873
        %v4996 = vpop.f32.mrf.mxu0
        %v4997 = vadd.f32 0.0, %v4996
        %v4998 = vpop.f32.mrf.mxu0
        %v4999 = vpop.f32.mrf.mxu0
        %v5000 = vadd.f32 0.0, %v4999
        %v5001 = vpop.f32.mrf.mxu0
        %5002 = vdwg.mxu0
        %v5003 = vadd.f32 %v4853, %v4973
        %v5004 = vadd.f32 %v4854, %v4976
        %v5005 = vadd.f32 %v4855, %v4981
        %v5006 = vadd.f32 %v4856, %v4984
        %v5007 = vadd.f32 %v4857, %v4989
        %v5008 = vadd.f32 %v4858, %v4992
        %v5009 = vadd.f32 %v4859, %v4997
        %v5010 = vadd.f32 %v4860, %v5000
        %v5011 = vld [vmem:[%s4861 + $0x1] sm:$0xff]
        %v5012 = vld [vmem:[%s4861 + $0x11] sm:$0xff]
        %v5013 = vld [vmem:[%s4861 + $0x21] sm:$0xff]
        %v5014 = vld [vmem:[%s4861 + $0x31] sm:$0xff]
        %v5015 = vld [vmem:[%s4861 + $0x41] sm:$0xff]
        %v5016 = vld [vmem:[%s4861 + $0x51] sm:$0xff]
        %v5017 = vld [vmem:[%s4861 + $0x61] sm:$0xff]
        %v5018 = vld [vmem:[%s4861 + $0x71] sm:$0xff]
        %v5019 = vpack.c.bf16 %v5012, %v5011
        %v5020 = vpack.c.bf16 %v5014, %v5013
        %v5021 = vpack.c.bf16 %v5016, %v5015
        %v5022 = vpack.c.bf16 %v5018, %v5017
        %v5023 = vld [vmem:[#allocation5 + $0x1c0] sm:$0xf]
        %v5024 = vld [vmem:[#allocation5 + $0x1c4] sm:$0xf]
        %v5025 = vld [vmem:[#allocation5 + $0x1c8] sm:$0xf]
        %v5026 = vld [vmem:[#allocation5 + $0x1cc] sm:$0xf]
        %v5027 = vld [vmem:[#allocation5 + $0x1d0] sm:$0xf]
        %v5028 = vld [vmem:[#allocation5 + $0x1d4] sm:$0xf]
        %v5029 = vld [vmem:[#allocation5 + $0x1d8] sm:$0xf]
        %v5030 = vld [vmem:[#allocation5 + $0x1dc] sm:$0xf]
        %v5031 = vld [vmem:[#allocation5 + $0x1e0] sm:$0xf]
        %v5032 = vld [vmem:[#allocation5 + $0x1e4] sm:$0xf]
        %v5033 = vld [vmem:[#allocation5 + $0x1e8] sm:$0xf]
        %v5034 = vld [vmem:[#allocation5 + $0x1ec] sm:$0xf]
        %v5035 = vld [vmem:[#allocation5 + $0x1f0] sm:$0xf]
        %v5036 = vld [vmem:[#allocation5 + $0x1f4] sm:$0xf]
        %v5037 = vld [vmem:[#allocation5 + $0x1f8] sm:$0xf]
        %v5038 = vld [vmem:[#allocation5 + $0x1fc] sm:$0xf]
        %v5055 = vunpack.c.l.b16 %v5023
        %v5056 = vunpack.c.l.b16 %v5024
        %v5057 = vunpack.c.l.b16 %v5025
        %v5058 = vunpack.c.l.b16 %v5026
        %v5059 = vunpack.c.l.b16 %v5027
        %v5060 = vunpack.c.l.b16 %v5028
        %v5061 = vunpack.c.l.b16 %v5029
        %v5062 = vunpack.c.l.b16 %v5030
        %v5063 = vunpack.c.l.b16 %v5031
        %v5064 = vunpack.c.l.b16 %v5032
        %v5065 = vunpack.c.l.b16 %v5033
        %v5066 = vunpack.c.l.b16 %v5034
        %v5067 = vunpack.c.l.b16 %v5035
        %v5068 = vunpack.c.l.b16 %v5036
        %v5069 = vunpack.c.l.b16 %v5037
        %v5070 = vunpack.c.l.b16 %v5038
        %v5071 = vpack.c.b16 %v5056, %v5055
        %v5072 = vpack.c.b16 %v5058, %v5057
        %v5073 = vpack.c.b16 %v5060, %v5059
        %v5074 = vpack.c.b16 %v5062, %v5061
        %v5075 = vpack.c.b16 %v5064, %v5063
        %v5076 = vpack.c.b16 %v5066, %v5065
        %v5077 = vpack.c.b16 %v5068, %v5067
        %v5078 = vpack.c.b16 %v5070, %v5069
        %5087 = vmatprep.subr.bf16.mxu0 0
        %5088 = vmatpush1.bf16.msra.mxu0 %v5078
        %5089 = vmatprep.subr.bf16.mxu0 0
        %5090 = vmatpush1.bf16.msra.mxu0 %v5077
        %5091 = vmatprep.subr.bf16.mxu0 0
        %5092 = vmatpush1.bf16.msra.mxu0 %v5076
        %5093 = vmatprep.subr.bf16.mxu0 0
        %5094 = vmatpush1.bf16.msra.mxu0 %v5075
        %5095 = vmatprep.subr.bf16.mxu0 0
        %5096 = vmatpush1.bf16.msra.mxu0 %v5074
        %5097 = vmatprep.subr.bf16.mxu0 0
        %5098 = vmatpush1.bf16.msra.mxu0 %v5073
        %5099 = vmatprep.subr.bf16.mxu0 0
        %5100 = vmatpush1.bf16.msra.mxu0 %v5072
        %5101 = vmatprep.subr.bf16.mxu0 0
        %5102 = vmatpush1.bf16.msra.mxu0 %v5071
        %5103 = vmatprep.subr.bf16.mxu0 0
        %5104 = vmatpush2.bf16.msra.mxu0 0
        %5105 = vmatprep.subr.bf16.mxu0 0
        %5106 = vmatpush2.bf16.msra.mxu0 0
        %5107 = vmatprep.subr.bf16.mxu0 0
        %5108 = vmatpush2.bf16.msra.mxu0 0
        %5109 = vmatprep.subr.bf16.mxu0 0
        %5110 = vmatpush2.bf16.msra.mxu0 0
        %5111 = vmatprep.subr.bf16.mxu0 0
        %5112 = vmatpush2.bf16.msra.mxu0 0
        %5113 = vmatprep.subr.bf16.mxu0 0
        %5114 = vmatpush2.bf16.msra.mxu0 0
        %5115 = vmatprep.subr.bf16.mxu0 0
        %5116 = vmatpush2.bf16.msra.mxu0 0
        %5117 = vmatprep.subr.bf16.mxu0 0
        %5118 = vmatpush2.bf16.msra.mxu0 0
        %5119 = vmatprep.mubr.bf16.mxu0 0
        %5120 = vmatmul.mubr.bf16.gmra.mxu0 %v5019
        %v5121 = vpop.f32.mrf.mxu0
        %v5122 = vadd.f32 0.0, %v5121
        %v5123 = vpop.f32.mrf.mxu0
        %v5124 = vpop.f32.mrf.mxu0
        %v5125 = vadd.f32 0.0, %v5124
        %v5126 = vpop.f32.mrf.mxu0
        %5127 = vmatprep.mubr.bf16.mxu0 0
        %5128 = vmatmul.mubr.bf16.gmra.mxu0 %v5020
        %v5129 = vpop.f32.mrf.mxu0
        %v5130 = vadd.f32 0.0, %v5129
        %v5131 = vpop.f32.mrf.mxu0
        %v5132 = vpop.f32.mrf.mxu0
        %v5133 = vadd.f32 0.0, %v5132
        %v5134 = vpop.f32.mrf.mxu0
        %5135 = vmatprep.mubr.bf16.mxu0 0
        %5136 = vmatmul.mubr.bf16.gmra.mxu0 %v5021
        %v5137 = vpop.f32.mrf.mxu0
        %v5138 = vadd.f32 0.0, %v5137
        %v5139 = vpop.f32.mrf.mxu0
        %v5140 = vpop.f32.mrf.mxu0
        %v5141 = vadd.f32 0.0, %v5140
        %v5142 = vpop.f32.mrf.mxu0
        %5143 = vmatprep.mubr.bf16.mxu0 0
        %5144 = vmatmul.mubr.bf16.gmra.mxu0 %v5022
        %v5145 = vpop.f32.mrf.mxu0
        %v5146 = vadd.f32 0.0, %v5145
        %v5147 = vpop.f32.mrf.mxu0
        %v5148 = vpop.f32.mrf.mxu0
        %v5149 = vadd.f32 0.0, %v5148
        %v5150 = vpop.f32.mrf.mxu0
        %5151 = vdwg.mxu0
        %v5152 = vadd.f32 %v5003, %v5122
        %v5153 = vadd.f32 %v5004, %v5125
        %v5154 = vadd.f32 %v5005, %v5130
        %v5155 = vadd.f32 %v5006, %v5133
        %v5156 = vadd.f32 %v5007, %v5138
        %v5157 = vadd.f32 %v5008, %v5141
        %v5158 = vadd.f32 %v5009, %v5146
        %v5159 = vadd.f32 %v5010, %v5149
        %v5160 = vld [vmem:[%s4861 + $0x2] sm:$0xff]
        %v5161 = vld [vmem:[%s4861 + $0x12] sm:$0xff]
        %v5162 = vld [vmem:[%s4861 + $0x22] sm:$0xff]
        %v5163 = vld [vmem:[%s4861 + $0x32] sm:$0xff]
        %v5164 = vld [vmem:[%s4861 + $0x42] sm:$0xff]
        %v5165 = vld [vmem:[%s4861 + $0x52] sm:$0xff]
        %v5166 = vld [vmem:[%s4861 + $0x62] sm:$0xff]
        %v5167 = vld [vmem:[%s4861 + $0x72] sm:$0xff]
        %v5168 = vpack.c.bf16 %v5161, %v5160
        %v5169 = vpack.c.bf16 %v5163, %v5162
        %v5170 = vpack.c.bf16 %v5165, %v5164
        %v5171 = vpack.c.bf16 %v5167, %v5166
        %v5172 = vld [vmem:[#allocation5 + $0x200] sm:$0xf]
        %v5173 = vld [vmem:[#allocation5 + $0x204] sm:$0xf]
        %v5174 = vld [vmem:[#allocation5 + $0x208] sm:$0xf]
        %v5175 = vld [vmem:[#allocation5 + $0x20c] sm:$0xf]
        %v5176 = vld [vmem:[#allocation5 + $0x210] sm:$0xf]
        %v5177 = vld [vmem:[#allocation5 + $0x214] sm:$0xf]
        %v5178 = vld [vmem:[#allocation5 + $0x218] sm:$0xf]
        %v5179 = vld [vmem:[#allocation5 + $0x21c] sm:$0xf]
        %v5180 = vld [vmem:[#allocation5 + $0x220] sm:$0xf]
        %v5181 = vld [vmem:[#allocation5 + $0x224] sm:$0xf]
        %v5182 = vld [vmem:[#allocation5 + $0x228] sm:$0xf]
        %v5183 = vld [vmem:[#allocation5 + $0x22c] sm:$0xf]
        %v5184 = vld [vmem:[#allocation5 + $0x230] sm:$0xf]
        %v5185 = vld [vmem:[#allocation5 + $0x234] sm:$0xf]
        %v5186 = vld [vmem:[#allocation5 + $0x238] sm:$0xf]
        %v5187 = vld [vmem:[#allocation5 + $0x23c] sm:$0xf]
        %v5204 = vunpack.c.l.b16 %v5172
        %v5205 = vunpack.c.l.b16 %v5173
        %v5206 = vunpack.c.l.b16 %v5174
        %v5207 = vunpack.c.l.b16 %v5175
        %v5208 = vunpack.c.l.b16 %v5176
        %v5209 = vunpack.c.l.b16 %v5177
        %v5210 = vunpack.c.l.b16 %v5178
        %v5211 = vunpack.c.l.b16 %v5179
        %v5212 = vunpack.c.l.b16 %v5180
        %v5213 = vunpack.c.l.b16 %v5181
        %v5214 = vunpack.c.l.b16 %v5182
        %v5215 = vunpack.c.l.b16 %v5183
        %v5216 = vunpack.c.l.b16 %v5184
        %v5217 = vunpack.c.l.b16 %v5185
        %v5218 = vunpack.c.l.b16 %v5186
        %v5219 = vunpack.c.l.b16 %v5187
        %v5220 = vpack.c.b16 %v5205, %v5204
        %v5221 = vpack.c.b16 %v5207, %v5206
        %v5222 = vpack.c.b16 %v5209, %v5208
        %v5223 = vpack.c.b16 %v5211, %v5210
        %v5224 = vpack.c.b16 %v5213, %v5212
        %v5225 = vpack.c.b16 %v5215, %v5214
        %v5226 = vpack.c.b16 %v5217, %v5216
        %v5227 = vpack.c.b16 %v5219, %v5218
        %5236 = vmatprep.subr.bf16.mxu0 0
        %5237 = vmatpush1.bf16.msra.mxu0 %v5227
        %5238 = vmatprep.subr.bf16.mxu0 0
        %5239 = vmatpush1.bf16.msra.mxu0 %v5226
        %5240 = vmatprep.subr.bf16.mxu0 0
        %5241 = vmatpush1.bf16.msra.mxu0 %v5225
        %5242 = vmatprep.subr.bf16.mxu0 0
        %5243 = vmatpush1.bf16.msra.mxu0 %v5224
        %5244 = vmatprep.subr.bf16.mxu0 0
        %5245 = vmatpush1.bf16.msra.mxu0 %v5223
        %5246 = vmatprep.subr.bf16.mxu0 0
        %5247 = vmatpush1.bf16.msra.mxu0 %v5222
        %5248 = vmatprep.subr.bf16.mxu0 0
        %5249 = vmatpush1.bf16.msra.mxu0 %v5221
        %5250 = vmatprep.subr.bf16.mxu0 0
        %5251 = vmatpush1.bf16.msra.mxu0 %v5220
        %5252 = vmatprep.subr.bf16.mxu0 0
        %5253 = vmatpush2.bf16.msra.mxu0 0
        %5254 = vmatprep.subr.bf16.mxu0 0
        %5255 = vmatpush2.bf16.msra.mxu0 0
        %5256 = vmatprep.subr.bf16.mxu0 0
        %5257 = vmatpush2.bf16.msra.mxu0 0
        %5258 = vmatprep.subr.bf16.mxu0 0
        %5259 = vmatpush2.bf16.msra.mxu0 0
        %5260 = vmatprep.subr.bf16.mxu0 0
        %5261 = vmatpush2.bf16.msra.mxu0 0
        %5262 = vmatprep.subr.bf16.mxu0 0
        %5263 = vmatpush2.bf16.msra.mxu0 0
        %5264 = vmatprep.subr.bf16.mxu0 0
        %5265 = vmatpush2.bf16.msra.mxu0 0
        %5266 = vmatprep.subr.bf16.mxu0 0
        %5267 = vmatpush2.bf16.msra.mxu0 0
        %5268 = vmatprep.mubr.bf16.mxu0 0
        %5269 = vmatmul.mubr.bf16.gmra.mxu0 %v5168
        %v5270 = vpop.f32.mrf.mxu0
        %v5271 = vadd.f32 0.0, %v5270
        %v5272 = vpop.f32.mrf.mxu0
        %v5273 = vpop.f32.mrf.mxu0
        %v5274 = vadd.f32 0.0, %v5273
        %v5275 = vpop.f32.mrf.mxu0
        %5276 = vmatprep.mubr.bf16.mxu0 0
        %5277 = vmatmul.mubr.bf16.gmra.mxu0 %v5169
        %v5278 = vpop.f32.mrf.mxu0
        %v5279 = vadd.f32 0.0, %v5278
        %v5280 = vpop.f32.mrf.mxu0
        %v5281 = vpop.f32.mrf.mxu0
        %v5282 = vadd.f32 0.0, %v5281
        %v5283 = vpop.f32.mrf.mxu0
        %5284 = vmatprep.mubr.bf16.mxu0 0
        %5285 = vmatmul.mubr.bf16.gmra.mxu0 %v5170
        %v5286 = vpop.f32.mrf.mxu0
        %v5287 = vadd.f32 0.0, %v5286
        %v5288 = vpop.f32.mrf.mxu0
        %v5289 = vpop.f32.mrf.mxu0
        %v5290 = vadd.f32 0.0, %v5289
        %v5291 = vpop.f32.mrf.mxu0
        %5292 = vmatprep.mubr.bf16.mxu0 0
        %5293 = vmatmul.mubr.bf16.gmra.mxu0 %v5171
        %v5294 = vpop.f32.mrf.mxu0
        %v5295 = vadd.f32 0.0, %v5294
        %v5296 = vpop.f32.mrf.mxu0
        %v5297 = vpop.f32.mrf.mxu0
        %v5298 = vadd.f32 0.0, %v5297
        %v5299 = vpop.f32.mrf.mxu0
        %5300 = vdwg.mxu0
        %v5301 = vadd.f32 %v5152, %v5271
        %v5302 = vadd.f32 %v5153, %v5274
        %v5303 = vadd.f32 %v5154, %v5279
        %v5304 = vadd.f32 %v5155, %v5282
        %v5305 = vadd.f32 %v5156, %v5287
        %v5306 = vadd.f32 %v5157, %v5290
        %v5307 = vadd.f32 %v5158, %v5295
        %v5308 = vadd.f32 %v5159, %v5298
        %v5309 = vld [vmem:[%s6] sm:$0x1]
        %v5311 = vlaneseq
        %v5312 = vshrl.u32 %v5311, 7
        %v5313 = vsub.s32 0, %v5312
        %v5314 = vrot.slane %v5309, %v5313
        %v5316 = vadd.f32 %v5301, %v5314
        %v5317 = vadd.f32 %v5302, %v5314
        %v5318 = vadd.f32 %v5303, %v5314
        %v5319 = vadd.f32 %v5304, %v5314
        %v5320 = vadd.f32 %v5305, %v5314
        %v5321 = vadd.f32 %v5306, %v5314
        %v5322 = vadd.f32 %v5307, %v5314
        %v5323 = vadd.f32 %v5308, %v5314
        %v5324 = vmax.f32 %v5316, 0.0
        %v5325 = vmax.f32 %v5317, 0.0
        %v5326 = vmax.f32 %v5318, 0.0
        %v5327 = vmax.f32 %v5319, 0.0
        %v5328 = vmax.f32 %v5320, 0.0
        %v5329 = vmax.f32 %v5321, 0.0
        %v5330 = vmax.f32 %v5322, 0.0
        %v5331 = vmax.f32 %v5323, 0.0
        %v5339 = vrot.slane %v5324, 1
        %v5340 = vrot.slane %v5325, 1
        %v5341 = vsel %vm3648, %v5339, %v5340
        %v5342 = vrot.slane %v5326, 1
        %v5343 = vsel %vm3648, %v5340, %v5342
        %v5344 = vrot.slane %v5327, 1
        %v5345 = vsel %vm3648, %v5342, %v5344
        %v5346 = vrot.slane %v5328, 1
        %v5347 = vsel %vm3648, %v5344, %v5346
        %v5348 = vrot.slane %v5329, 1
        %v5349 = vsel %vm3648, %v5346, %v5348
        %v5350 = vrot.slane %v5330, 1
        %v5351 = vsel %vm3648, %v5348, %v5350
        %v5359 = vmax.f32 %v5324, %v5341
        %v5360 = vmax.f32 %v5325, %v5343
        %v5361 = vmax.f32 %v5326, %v5345
        %v5362 = vmax.f32 %v5327, %v5347
        %v5363 = vmax.f32 %v5328, %v5349
        %v5364 = vmax.f32 %v5329, %v5351
        %v5365 = vmax.f32 %v5330, %v5350
        %v5367 = vrot.slane %v5331, 1
        %v5368 = vsel %vm3648, %v5350, %v5367
        %v5371 = vmax.f32 %v5330, %v5368
        %v5372 = vmax.f32 %v5331, %v5367
        %v5373 = vmax.f32 %v5359, %v5360
        %v5374 = vmax.f32 %v5360, %v5361
        %v5375 = vmax.f32 %v5361, %v5362
        %v5376 = vmax.f32 %v5362, %v5363
        %v5377 = vmax.f32 %v5363, %v5364
        %v5378 = vmax.f32 %v5364, %v5371
        %v5379 = vmax.f32 %v5365, %v5372
        %v5380 = vld [vmem:[%s12] sm:$0xf]
        %v5381 = vld [vmem:[%s12 + $0x4] sm:$0xf]
        %v5382 = vpack.c.bf16 %v5374, %v5373
        %v5383 = vpack.c.bf16 %v5376, %v5375
        %v5384 = vpack.c.bf16 %v5378, %v5377
        %v5385 = vpack.c.bf16 %v5379, %v5379
        %v5388 = vunpack.c.l.b16 %v5380
        %v5389 = vunpack.c.l.b16 %v5381
        %v5390 = vpack.c.b16 %v5389, %v5388
        %vm5391 = vcmask 449536
        %v5393 = vsel %vm5391, %v5390, 0
        %vm5395 = vcmask 1042432
        %vm5396 = vcmask 1043456
        %v5397 = vsel %vm5395, 4294967295, 65535
        %v5398 = vsel %vm5396, %v5397, 0
        %v5400 = vand.u32 %v5385, %v5398
        %5402 = vmatprep.subr.bf16.mxu0 0
        %5403 = vmatpush1.bf16.msra.mxu0 0
        %5404 = vmatprep.subr.bf16.mxu0 0
        %5405 = vmatpush1.bf16.msra.mxu0 0
        %5406 = vmatprep.subr.bf16.mxu0 0
        %5407 = vmatpush1.bf16.msra.mxu0 0
        %5408 = vmatprep.subr.bf16.mxu0 0
        %5409 = vmatpush1.bf16.msra.mxu0 0
        %5410 = vmatprep.subr.bf16.mxu0 0
        %5411 = vmatpush1.bf16.msra.mxu0 %v5400
        %5412 = vmatprep.subr.bf16.mxu0 0
        %5413 = vmatpush1.bf16.msra.mxu0 %v5384
        %5414 = vmatprep.subr.bf16.mxu0 0
        %5415 = vmatpush1.bf16.msra.mxu0 %v5383
        %5416 = vmatprep.subr.bf16.mxu0 0
        %5417 = vmatpush1.bf16.msra.mxu0 %v5382
        %5418 = vmatprep.subr.bf16.mxu0 0
        %5419 = vmatpush2.bf16.msra.mxu0 0
        %5420 = vmatprep.subr.bf16.mxu0 0
        %5421 = vmatpush2.bf16.msra.mxu0 0
        %5422 = vmatprep.subr.bf16.mxu0 0
        %5423 = vmatpush2.bf16.msra.mxu0 0
        %5424 = vmatprep.subr.bf16.mxu0 0
        %5425 = vmatpush2.bf16.msra.mxu0 0
        %5426 = vmatprep.subr.bf16.mxu0 0
        %5427 = vmatpush2.bf16.msra.mxu0 0
        %5428 = vmatprep.subr.bf16.mxu0 0
        %5429 = vmatpush2.bf16.msra.mxu0 0
        %5430 = vmatprep.subr.bf16.mxu0 0
        %5431 = vmatpush2.bf16.msra.mxu0 0
        %5432 = vmatprep.subr.bf16.mxu0 0
        %5433 = vmatpush2.bf16.msra.mxu0 0
        %5434 = vmatprep.mubr.bf16.mxu0 0
        %5435 = vmatmul.mubr.bf16.gmra.mxu0 %v5393
        %v5436 = vpop.f32.mrf.mxu0
        %v5437 = vadd.f32 0.0, %v5436
        %v5438 = vpop.f32.mrf.mxu0
        %v5439 = vpop.f32.mrf.mxu0
        %v5440 = vadd.f32 0.0, %v5439
        %v5441 = vpop.f32.mrf.mxu0
        %5442 = vdwg.mxu0
        %5443 = vst [vmem:[#allocation3] sm:$0x3f] 0.0
        %s5444 = scalar_lea.vmem [#allocation3], 40
        %5445 = vst [vmem:[%s5444] sm:$0x3f] 0.0
        %s5446 = scalar_lea.vmem [#allocation3], 8
        %5447 = vst [vmem:[%s5446] sm:$0x1] 0.0
        %5448 = vst [vmem:[%s5446 + $0x8] sm:$0x1] 0.0
        %5449 = vst [vmem:[%s5446 + $0x10] sm:$0x1] 0.0
        %5450 = vst [vmem:[%s5446 + $0x18] sm:$0x1] 0.0
        %5451 = vst [vmem:[%s5446 + $0x5] sm:$0x1] 0.0
        %5452 = vst [vmem:[%s5446 + $0xd] sm:$0x1] 0.0
        %5453 = vst [vmem:[%s5446 + $0x15] sm:$0x1] 0.0
        %5454 = vst [vmem:[%s5446 + $0x1d] sm:$0x1] 0.0
        %v5457 = vcombine.high %v5437, %v5437
        %v5458 = vcombine.high %v5440, %v5440
        %5461 = vst [vmem:[%s5446 + $0x1] sm:$0xf] %v5437
        %5462 = vst [vmem:[%s5446 + $0x9] sm:$0xf] %v5457
        %5463 = vst [vmem:[%s5446 + $0x11] sm:$0xf] %v5440
        %5464 = vst [vmem:[%s5446 + $0x19] sm:$0xf] %v5458
        %v5465 = vld [vmem:[#allocation3] sm:$0xf]
        %v5466 = vld [vmem:[#allocation3 + $0x8] sm:$0xf]
        %v5467 = vld [vmem:[#allocation3 + $0x10] sm:$0xf]
        %v5468 = vld [vmem:[#allocation3 + $0x18] sm:$0xf]
        %v5473 = vcombine.low %v5465, %v5466
        %v5474 = vcombine.low %v5467, %v5468
        %v5477 = vpack.c.bf16 %v5474, %v5473
        %v5478 = vld [vmem:[#allocation8] sm:$0xf]
        %v5479 = vld [vmem:[#allocation8 + $0x4] sm:$0xf]
        %v5480 = vld [vmem:[#allocation8 + $0x8] sm:$0xf]
        %v5481 = vld [vmem:[#allocation8 + $0xc] sm:$0xf]
        %v5482 = vld [vmem:[#allocation8 + $0x10] sm:$0xf]
        %v5483 = vld [vmem:[#allocation8 + $0x14] sm:$0xf]
        %v5484 = vld [vmem:[#allocation8 + $0x18] sm:$0xf]
        %v5485 = vld [vmem:[#allocation8 + $0x1c] sm:$0xf]
        %v5486 = vld [vmem:[#allocation8 + $0x20] sm:$0xf]
        %v5487 = vld [vmem:[#allocation8 + $0x24] sm:$0xf]
        %v5488 = vld [vmem:[#allocation8 + $0x28] sm:$0xf]
        %v5489 = vld [vmem:[#allocation8 + $0x2c] sm:$0xf]
        %v5490 = vld [vmem:[#allocation8 + $0x30] sm:$0xf]
        %v5491 = vld [vmem:[#allocation8 + $0x34] sm:$0xf]
        %v5492 = vld [vmem:[#allocation8 + $0x38] sm:$0xf]
        %v5493 = vld [vmem:[#allocation8 + $0x3c] sm:$0xf]
        %v5494 = vld [vmem:[#allocation3 + $0x1] sm:$0xf]
        %v5495 = vld [vmem:[#allocation3 + $0x9] sm:$0xf]
        %v5496 = vld [vmem:[#allocation3 + $0x11] sm:$0xf]
        %v5497 = vld [vmem:[#allocation3 + $0x19] sm:$0xf]
        %v5502 = vcombine.low %v5494, %v5495
        %v5503 = vcombine.low %v5496, %v5497
        %v5506 = vpack.c.bf16 %v5503, %v5502
        %v5507 = vld [vmem:[#allocation8 + $0x40] sm:$0xf]
        %v5508 = vld [vmem:[#allocation8 + $0x44] sm:$0xf]
        %v5509 = vld [vmem:[#allocation8 + $0x48] sm:$0xf]
        %v5510 = vld [vmem:[#allocation8 + $0x4c] sm:$0xf]
        %v5511 = vld [vmem:[#allocation8 + $0x50] sm:$0xf]
        %v5512 = vld [vmem:[#allocation8 + $0x54] sm:$0xf]
        %v5513 = vld [vmem:[#allocation8 + $0x58] sm:$0xf]
        %v5514 = vld [vmem:[#allocation8 + $0x5c] sm:$0xf]
        %v5515 = vld [vmem:[#allocation8 + $0x60] sm:$0xf]
        %v5516 = vld [vmem:[#allocation8 + $0x64] sm:$0xf]
        %v5517 = vld [vmem:[#allocation8 + $0x68] sm:$0xf]
        %v5518 = vld [vmem:[#allocation8 + $0x6c] sm:$0xf]
        %v5519 = vld [vmem:[#allocation8 + $0x70] sm:$0xf]
        %v5520 = vld [vmem:[#allocation8 + $0x74] sm:$0xf]
        %v5521 = vld [vmem:[#allocation8 + $0x78] sm:$0xf]
        %v5522 = vld [vmem:[#allocation8 + $0x7c] sm:$0xf]
        %v5539 = vunpack.c.l.b16 %v5507
        %v5540 = vunpack.c.l.b16 %v5508
        %v5541 = vunpack.c.l.b16 %v5509
        %v5542 = vunpack.c.l.b16 %v5510
        %v5543 = vunpack.c.l.b16 %v5511
        %v5544 = vunpack.c.l.b16 %v5512
        %v5545 = vunpack.c.l.b16 %v5513
        %v5546 = vunpack.c.l.b16 %v5514
        %v5547 = vunpack.c.l.b16 %v5515
        %v5548 = vunpack.c.l.b16 %v5516
        %v5549 = vunpack.c.l.b16 %v5517
        %v5550 = vunpack.c.l.b16 %v5518
        %v5551 = vunpack.c.l.b16 %v5519
        %v5552 = vunpack.c.l.b16 %v5520
        %v5553 = vunpack.c.l.b16 %v5521
        %v5554 = vunpack.c.l.b16 %v5522
        %v5555 = vpack.c.b16 %v5540, %v5539
        %v5556 = vpack.c.b16 %v5542, %v5541
        %v5557 = vpack.c.b16 %v5544, %v5543
        %v5558 = vpack.c.b16 %v5546, %v5545
        %v5559 = vpack.c.b16 %v5548, %v5547
        %v5560 = vpack.c.b16 %v5550, %v5549
        %v5561 = vpack.c.b16 %v5552, %v5551
        %v5562 = vpack.c.b16 %v5554, %v5553
        %5571 = vmatprep.subr.bf16.mxu0 0
        %5572 = vmatpush1.bf16.msra.mxu0 %v5562
        %5573 = vmatprep.subr.bf16.mxu0 0
        %5574 = vmatpush1.bf16.msra.mxu0 %v5561
        %5575 = vmatprep.subr.bf16.mxu0 0
        %5576 = vmatpush1.bf16.msra.mxu0 %v5560
        %5577 = vmatprep.subr.bf16.mxu0 0
        %5578 = vmatpush1.bf16.msra.mxu0 %v5559
        %5579 = vmatprep.subr.bf16.mxu0 0
        %5580 = vmatpush1.bf16.msra.mxu0 %v5558
        %5581 = vmatprep.subr.bf16.mxu0 0
        %5582 = vmatpush1.bf16.msra.mxu0 %v5557
        %5583 = vmatprep.subr.bf16.mxu0 0
        %5584 = vmatpush1.bf16.msra.mxu0 %v5556
        %5585 = vmatprep.subr.bf16.mxu0 0
        %5586 = vmatpush1.bf16.msra.mxu0 %v5555
        %5587 = vmatprep.subr.bf16.mxu0 0
        %5588 = vmatpush2.bf16.msra.mxu0 0
        %5589 = vmatprep.subr.bf16.mxu0 0
        %5590 = vmatpush2.bf16.msra.mxu0 0
        %5591 = vmatprep.subr.bf16.mxu0 0
        %5592 = vmatpush2.bf16.msra.mxu0 0
        %5593 = vmatprep.subr.bf16.mxu0 0
        %5594 = vmatpush2.bf16.msra.mxu0 0
        %5595 = vmatprep.subr.bf16.mxu0 0
        %5596 = vmatpush2.bf16.msra.mxu0 0
        %5597 = vmatprep.subr.bf16.mxu0 0
        %5598 = vmatpush2.bf16.msra.mxu0 0
        %5599 = vmatprep.subr.bf16.mxu0 0
        %5600 = vmatpush2.bf16.msra.mxu0 0
        %5601 = vmatprep.subr.bf16.mxu0 0
        %5602 = vmatpush2.bf16.msra.mxu0 0
        %5603 = vmatprep.mubr.bf16.mxu0 0
        %5604 = vmatmul.mubr.bf16.gmra.mxu0 %v5506
        %v5605 = vpop.f32.mrf.mxu0
        %v5606 = vadd.f32 0.0, %v5605
        %v5607 = vpop.f32.mrf.mxu0
        %v5608 = vpop.f32.mrf.mxu0
        %v5609 = vadd.f32 0.0, %v5608
        %v5610 = vpop.f32.mrf.mxu0
        %5611 = vdwg.mxu0
        %v5628 = vunpack.c.l.b16 %v5478
        %v5629 = vunpack.c.l.b16 %v5479
        %v5630 = vunpack.c.l.b16 %v5480
        %v5631 = vunpack.c.l.b16 %v5481
        %v5632 = vunpack.c.l.b16 %v5482
        %v5633 = vunpack.c.l.b16 %v5483
        %v5634 = vunpack.c.l.b16 %v5484
        %v5635 = vunpack.c.l.b16 %v5485
        %v5636 = vunpack.c.l.b16 %v5486
        %v5637 = vunpack.c.l.b16 %v5487
        %v5638 = vunpack.c.l.b16 %v5488
        %v5639 = vunpack.c.l.b16 %v5489
        %v5640 = vunpack.c.l.b16 %v5490
        %v5641 = vunpack.c.l.b16 %v5491
        %v5642 = vunpack.c.l.b16 %v5492
        %v5643 = vunpack.c.l.b16 %v5493
        %v5644 = vpack.c.b16 %v5629, %v5628
        %v5645 = vpack.c.b16 %v5631, %v5630
        %v5646 = vpack.c.b16 %v5633, %v5632
        %v5647 = vpack.c.b16 %v5635, %v5634
        %v5648 = vpack.c.b16 %v5637, %v5636
        %v5649 = vpack.c.b16 %v5639, %v5638
        %v5650 = vpack.c.b16 %v5641, %v5640
        %v5651 = vpack.c.b16 %v5643, %v5642
        %5660 = vmatprep.subr.bf16.mxu0 0
        %5661 = vmatpush1.bf16.msra.mxu0 %v5651
        %5662 = vmatprep.subr.bf16.mxu0 0
        %5663 = vmatpush1.bf16.msra.mxu0 %v5650
        %5664 = vmatprep.subr.bf16.mxu0 0
        %5665 = vmatpush1.bf16.msra.mxu0 %v5649
        %5666 = vmatprep.subr.bf16.mxu0 0
        %5667 = vmatpush1.bf16.msra.mxu0 %v5648
        %5668 = vmatprep.subr.bf16.mxu0 0
        %5669 = vmatpush1.bf16.msra.mxu0 %v5647
        %5670 = vmatprep.subr.bf16.mxu0 0
        %5671 = vmatpush1.bf16.msra.mxu0 %v5646
        %5672 = vmatprep.subr.bf16.mxu0 0
        %5673 = vmatpush1.bf16.msra.mxu0 %v5645
        %5674 = vmatprep.subr.bf16.mxu0 0
        %5675 = vmatpush1.bf16.msra.mxu0 %v5644
        %5676 = vmatprep.subr.bf16.mxu0 0
        %5677 = vmatpush2.bf16.msra.mxu0 0
        %5678 = vmatprep.subr.bf16.mxu0 0
        %5679 = vmatpush2.bf16.msra.mxu0 0
        %5680 = vmatprep.subr.bf16.mxu0 0
        %5681 = vmatpush2.bf16.msra.mxu0 0
        %5682 = vmatprep.subr.bf16.mxu0 0
        %5683 = vmatpush2.bf16.msra.mxu0 0
        %5684 = vmatprep.subr.bf16.mxu0 0
        %5685 = vmatpush2.bf16.msra.mxu0 0
        %5686 = vmatprep.subr.bf16.mxu0 0
        %5687 = vmatpush2.bf16.msra.mxu0 0
        %5688 = vmatprep.subr.bf16.mxu0 0
        %5689 = vmatpush2.bf16.msra.mxu0 0
        %5690 = vmatprep.subr.bf16.mxu0 0
        %5691 = vmatpush2.bf16.msra.mxu0 0
        %5692 = vmatprep.mubr.bf16.mxu0 0
        %5693 = vmatmul.mubr.bf16.gmra.mxu0 %v5477
        %v5694 = vpop.f32.mrf.mxu0
        %v5695 = vadd.f32 %v5606, %v5694
        %v5696 = vpop.f32.mrf.mxu0
        %v5697 = vpop.f32.mrf.mxu0
        %v5698 = vadd.f32 %v5609, %v5697
        %v5699 = vpop.f32.mrf.mxu0
        %5700 = vdwg.mxu0
        %v5701 = vld [vmem:[#allocation3 + $0x2] sm:$0xf]
        %v5702 = vld [vmem:[#allocation3 + $0xa] sm:$0xf]
        %v5703 = vld [vmem:[#allocation3 + $0x12] sm:$0xf]
        %v5704 = vld [vmem:[#allocation3 + $0x1a] sm:$0xf]
        %v5709 = vcombine.low %v5701, %v5702
        %v5710 = vcombine.low %v5703, %v5704
        %v5713 = vpack.c.bf16 %v5710, %v5709
        %v5714 = vld [vmem:[#allocation8 + $0x80] sm:$0xf]
        %v5715 = vld [vmem:[#allocation8 + $0x84] sm:$0xf]
        %v5716 = vld [vmem:[#allocation8 + $0x88] sm:$0xf]
        %v5717 = vld [vmem:[#allocation8 + $0x8c] sm:$0xf]
        %v5718 = vld [vmem:[#allocation8 + $0x90] sm:$0xf]
        %v5719 = vld [vmem:[#allocation8 + $0x94] sm:$0xf]
        %v5720 = vld [vmem:[#allocation8 + $0x98] sm:$0xf]
        %v5721 = vld [vmem:[#allocation8 + $0x9c] sm:$0xf]
        %v5722 = vld [vmem:[#allocation8 + $0xa0] sm:$0xf]
        %v5723 = vld [vmem:[#allocation8 + $0xa4] sm:$0xf]
        %v5724 = vld [vmem:[#allocation8 + $0xa8] sm:$0xf]
        %v5725 = vld [vmem:[#allocation8 + $0xac] sm:$0xf]
        %v5726 = vld [vmem:[#allocation8 + $0xb0] sm:$0xf]
        %v5727 = vld [vmem:[#allocation8 + $0xb4] sm:$0xf]
        %v5728 = vld [vmem:[#allocation8 + $0xb8] sm:$0xf]
        %v5729 = vld [vmem:[#allocation8 + $0xbc] sm:$0xf]
        %v5746 = vunpack.c.l.b16 %v5714
        %v5747 = vunpack.c.l.b16 %v5715
        %v5748 = vunpack.c.l.b16 %v5716
        %v5749 = vunpack.c.l.b16 %v5717
        %v5750 = vunpack.c.l.b16 %v5718
        %v5751 = vunpack.c.l.b16 %v5719
        %v5752 = vunpack.c.l.b16 %v5720
        %v5753 = vunpack.c.l.b16 %v5721
        %v5754 = vunpack.c.l.b16 %v5722
        %v5755 = vunpack.c.l.b16 %v5723
        %v5756 = vunpack.c.l.b16 %v5724
        %v5757 = vunpack.c.l.b16 %v5725
        %v5758 = vunpack.c.l.b16 %v5726
        %v5759 = vunpack.c.l.b16 %v5727
        %v5760 = vunpack.c.l.b16 %v5728
        %v5761 = vunpack.c.l.b16 %v5729
        %v5762 = vpack.c.b16 %v5747, %v5746
        %v5763 = vpack.c.b16 %v5749, %v5748
        %v5764 = vpack.c.b16 %v5751, %v5750
        %v5765 = vpack.c.b16 %v5753, %v5752
        %v5766 = vpack.c.b16 %v5755, %v5754
        %v5767 = vpack.c.b16 %v5757, %v5756
        %v5768 = vpack.c.b16 %v5759, %v5758
        %v5769 = vpack.c.b16 %v5761, %v5760
        %5778 = vmatprep.subr.bf16.mxu0 0
        %5779 = vmatpush1.bf16.msra.mxu0 %v5769
        %5780 = vmatprep.subr.bf16.mxu0 0
        %5781 = vmatpush1.bf16.msra.mxu0 %v5768
        %5782 = vmatprep.subr.bf16.mxu0 0
        %5783 = vmatpush1.bf16.msra.mxu0 %v5767
        %5784 = vmatprep.subr.bf16.mxu0 0
        %5785 = vmatpush1.bf16.msra.mxu0 %v5766
        %5786 = vmatprep.subr.bf16.mxu0 0
        %5787 = vmatpush1.bf16.msra.mxu0 %v5765
        %5788 = vmatprep.subr.bf16.mxu0 0
        %5789 = vmatpush1.bf16.msra.mxu0 %v5764
        %5790 = vmatprep.subr.bf16.mxu0 0
        %5791 = vmatpush1.bf16.msra.mxu0 %v5763
        %5792 = vmatprep.subr.bf16.mxu0 0
        %5793 = vmatpush1.bf16.msra.mxu0 %v5762
        %5794 = vmatprep.subr.bf16.mxu0 0
        %5795 = vmatpush2.bf16.msra.mxu0 0
        %5796 = vmatprep.subr.bf16.mxu0 0
        %5797 = vmatpush2.bf16.msra.mxu0 0
        %5798 = vmatprep.subr.bf16.mxu0 0
        %5799 = vmatpush2.bf16.msra.mxu0 0
        %5800 = vmatprep.subr.bf16.mxu0 0
        %5801 = vmatpush2.bf16.msra.mxu0 0
        %5802 = vmatprep.subr.bf16.mxu0 0
        %5803 = vmatpush2.bf16.msra.mxu0 0
        %5804 = vmatprep.subr.bf16.mxu0 0
        %5805 = vmatpush2.bf16.msra.mxu0 0
        %5806 = vmatprep.subr.bf16.mxu0 0
        %5807 = vmatpush2.bf16.msra.mxu0 0
        %5808 = vmatprep.subr.bf16.mxu0 0
        %5809 = vmatpush2.bf16.msra.mxu0 0
        %5810 = vmatprep.mubr.bf16.mxu0 0
        %5811 = vmatmul.mubr.bf16.gmra.mxu0 %v5713
        %v5812 = vpop.f32.mrf.mxu0
        %v5813 = vadd.f32 0.0, %v5812
        %v5814 = vpop.f32.mrf.mxu0
        %v5815 = vpop.f32.mrf.mxu0
        %v5816 = vadd.f32 0.0, %v5815
        %v5817 = vpop.f32.mrf.mxu0
        %5818 = vdwg.mxu0
        %v5819 = vadd.f32 %v5695, %v5813
        %v5820 = vadd.f32 %v5698, %v5816
        %v5821 = vld [vmem:[%s5446] sm:$0xf]
        %v5822 = vld [vmem:[%s5446 + $0x8] sm:$0xf]
        %v5823 = vld [vmem:[%s5446 + $0x10] sm:$0xf]
        %v5824 = vld [vmem:[%s5446 + $0x18] sm:$0xf]
        %v5829 = vcombine.low %v5821, %v5822
        %v5830 = vcombine.low %v5823, %v5824
        %v5833 = vpack.c.bf16 %v5830, %v5829
        %v5834 = vld [vmem:[#allocation8 + $0xc0] sm:$0xf]
        %v5835 = vld [vmem:[#allocation8 + $0xc4] sm:$0xf]
        %v5836 = vld [vmem:[#allocation8 + $0xc8] sm:$0xf]
        %v5837 = vld [vmem:[#allocation8 + $0xcc] sm:$0xf]
        %v5838 = vld [vmem:[#allocation8 + $0xd0] sm:$0xf]
        %v5839 = vld [vmem:[#allocation8 + $0xd4] sm:$0xf]
        %v5840 = vld [vmem:[#allocation8 + $0xd8] sm:$0xf]
        %v5841 = vld [vmem:[#allocation8 + $0xdc] sm:$0xf]
        %v5842 = vld [vmem:[#allocation8 + $0xe0] sm:$0xf]
        %v5843 = vld [vmem:[#allocation8 + $0xe4] sm:$0xf]
        %v5844 = vld [vmem:[#allocation8 + $0xe8] sm:$0xf]
        %v5845 = vld [vmem:[#allocation8 + $0xec] sm:$0xf]
        %v5846 = vld [vmem:[#allocation8 + $0xf0] sm:$0xf]
        %v5847 = vld [vmem:[#allocation8 + $0xf4] sm:$0xf]
        %v5848 = vld [vmem:[#allocation8 + $0xf8] sm:$0xf]
        %v5849 = vld [vmem:[#allocation8 + $0xfc] sm:$0xf]
        %v5866 = vunpack.c.l.b16 %v5834
        %v5867 = vunpack.c.l.b16 %v5835
        %v5868 = vunpack.c.l.b16 %v5836
        %v5869 = vunpack.c.l.b16 %v5837
        %v5870 = vunpack.c.l.b16 %v5838
        %v5871 = vunpack.c.l.b16 %v5839
        %v5872 = vunpack.c.l.b16 %v5840
        %v5873 = vunpack.c.l.b16 %v5841
        %v5874 = vunpack.c.l.b16 %v5842
        %v5875 = vunpack.c.l.b16 %v5843
        %v5876 = vunpack.c.l.b16 %v5844
        %v5877 = vunpack.c.l.b16 %v5845
        %v5878 = vunpack.c.l.b16 %v5846
        %v5879 = vunpack.c.l.b16 %v5847
        %v5880 = vunpack.c.l.b16 %v5848
        %v5881 = vunpack.c.l.b16 %v5849
        %v5882 = vpack.c.b16 %v5867, %v5866
        %v5883 = vpack.c.b16 %v5869, %v5868
        %v5884 = vpack.c.b16 %v5871, %v5870
        %v5885 = vpack.c.b16 %v5873, %v5872
        %v5886 = vpack.c.b16 %v5875, %v5874
        %v5887 = vpack.c.b16 %v5877, %v5876
        %v5888 = vpack.c.b16 %v5879, %v5878
        %v5889 = vpack.c.b16 %v5881, %v5880
        %5898 = vmatprep.subr.bf16.mxu0 0
        %5899 = vmatpush1.bf16.msra.mxu0 %v5889
        %5900 = vmatprep.subr.bf16.mxu0 0
        %5901 = vmatpush1.bf16.msra.mxu0 %v5888
        %5902 = vmatprep.subr.bf16.mxu0 0
        %5903 = vmatpush1.bf16.msra.mxu0 %v5887
        %5904 = vmatprep.subr.bf16.mxu0 0
        %5905 = vmatpush1.bf16.msra.mxu0 %v5886
        %5906 = vmatprep.subr.bf16.mxu0 0
        %5907 = vmatpush1.bf16.msra.mxu0 %v5885
        %5908 = vmatprep.subr.bf16.mxu0 0
        %5909 = vmatpush1.bf16.msra.mxu0 %v5884
        %5910 = vmatprep.subr.bf16.mxu0 0
        %5911 = vmatpush1.bf16.msra.mxu0 %v5883
        %5912 = vmatprep.subr.bf16.mxu0 0
        %5913 = vmatpush1.bf16.msra.mxu0 %v5882
        %5914 = vmatprep.subr.bf16.mxu0 0
        %5915 = vmatpush2.bf16.msra.mxu0 0
        %5916 = vmatprep.subr.bf16.mxu0 0
        %5917 = vmatpush2.bf16.msra.mxu0 0
        %5918 = vmatprep.subr.bf16.mxu0 0
        %5919 = vmatpush2.bf16.msra.mxu0 0
        %5920 = vmatprep.subr.bf16.mxu0 0
        %5921 = vmatpush2.bf16.msra.mxu0 0
        %5922 = vmatprep.subr.bf16.mxu0 0
        %5923 = vmatpush2.bf16.msra.mxu0 0
        %5924 = vmatprep.subr.bf16.mxu0 0
        %5925 = vmatpush2.bf16.msra.mxu0 0
        %5926 = vmatprep.subr.bf16.mxu0 0
        %5927 = vmatpush2.bf16.msra.mxu0 0
        %5928 = vmatprep.subr.bf16.mxu0 0
        %5929 = vmatpush2.bf16.msra.mxu0 0
        %5930 = vmatprep.mubr.bf16.mxu0 0
        %5931 = vmatmul.mubr.bf16.gmra.mxu0 %v5833
        %v5932 = vpop.f32.mrf.mxu0
        %v5933 = vadd.f32 0.0, %v5932
        %v5934 = vpop.f32.mrf.mxu0
        %v5935 = vpop.f32.mrf.mxu0
        %v5936 = vadd.f32 0.0, %v5935
        %v5937 = vpop.f32.mrf.mxu0
        %5938 = vdwg.mxu0
        %v5939 = vadd.f32 %v5819, %v5933
        %v5940 = vadd.f32 %v5820, %v5936
        %v5941 = vld [vmem:[%s5446 + $0x1] sm:$0xf]
        %v5942 = vld [vmem:[%s5446 + $0x9] sm:$0xf]
        %v5943 = vld [vmem:[%s5446 + $0x11] sm:$0xf]
        %v5944 = vld [vmem:[%s5446 + $0x19] sm:$0xf]
        %v5949 = vcombine.low %v5941, %v5942
        %v5950 = vcombine.low %v5943, %v5944
        %v5953 = vpack.c.bf16 %v5950, %v5949
        %v5954 = vld [vmem:[#allocation8 + $0x100] sm:$0xf]
        %v5955 = vld [vmem:[#allocation8 + $0x104] sm:$0xf]
        %v5956 = vld [vmem:[#allocation8 + $0x108] sm:$0xf]
        %v5957 = vld [vmem:[#allocation8 + $0x10c] sm:$0xf]
        %v5958 = vld [vmem:[#allocation8 + $0x110] sm:$0xf]
        %v5959 = vld [vmem:[#allocation8 + $0x114] sm:$0xf]
        %v5960 = vld [vmem:[#allocation8 + $0x118] sm:$0xf]
        %v5961 = vld [vmem:[#allocation8 + $0x11c] sm:$0xf]
        %v5962 = vld [vmem:[#allocation8 + $0x120] sm:$0xf]
        %v5963 = vld [vmem:[#allocation8 + $0x124] sm:$0xf]
        %v5964 = vld [vmem:[#allocation8 + $0x128] sm:$0xf]
        %v5965 = vld [vmem:[#allocation8 + $0x12c] sm:$0xf]
        %v5966 = vld [vmem:[#allocation8 + $0x130] sm:$0xf]
        %v5967 = vld [vmem:[#allocation8 + $0x134] sm:$0xf]
        %v5968 = vld [vmem:[#allocation8 + $0x138] sm:$0xf]
        %v5969 = vld [vmem:[#allocation8 + $0x13c] sm:$0xf]
        %v5986 = vunpack.c.l.b16 %v5954
        %v5987 = vunpack.c.l.b16 %v5955
        %v5988 = vunpack.c.l.b16 %v5956
        %v5989 = vunpack.c.l.b16 %v5957
        %v5990 = vunpack.c.l.b16 %v5958
        %v5991 = vunpack.c.l.b16 %v5959
        %v5992 = vunpack.c.l.b16 %v5960
        %v5993 = vunpack.c.l.b16 %v5961
        %v5994 = vunpack.c.l.b16 %v5962
        %v5995 = vunpack.c.l.b16 %v5963
        %v5996 = vunpack.c.l.b16 %v5964
        %v5997 = vunpack.c.l.b16 %v5965
        %v5998 = vunpack.c.l.b16 %v5966
        %v5999 = vunpack.c.l.b16 %v5967
        %v6000 = vunpack.c.l.b16 %v5968
        %v6001 = vunpack.c.l.b16 %v5969
        %v6002 = vpack.c.b16 %v5987, %v5986
        %v6003 = vpack.c.b16 %v5989, %v5988
        %v6004 = vpack.c.b16 %v5991, %v5990
        %v6005 = vpack.c.b16 %v5993, %v5992
        %v6006 = vpack.c.b16 %v5995, %v5994
        %v6007 = vpack.c.b16 %v5997, %v5996
        %v6008 = vpack.c.b16 %v5999, %v5998
        %v6009 = vpack.c.b16 %v6001, %v6000
        %6018 = vmatprep.subr.bf16.mxu0 0
        %6019 = vmatpush1.bf16.msra.mxu0 %v6009
        %6020 = vmatprep.subr.bf16.mxu0 0
        %6021 = vmatpush1.bf16.msra.mxu0 %v6008
        %6022 = vmatprep.subr.bf16.mxu0 0
        %6023 = vmatpush1.bf16.msra.mxu0 %v6007
        %6024 = vmatprep.subr.bf16.mxu0 0
        %6025 = vmatpush1.bf16.msra.mxu0 %v6006
        %6026 = vmatprep.subr.bf16.mxu0 0
        %6027 = vmatpush1.bf16.msra.mxu0 %v6005
        %6028 = vmatprep.subr.bf16.mxu0 0
        %6029 = vmatpush1.bf16.msra.mxu0 %v6004
        %6030 = vmatprep.subr.bf16.mxu0 0
        %6031 = vmatpush1.bf16.msra.mxu0 %v6003
        %6032 = vmatprep.subr.bf16.mxu0 0
        %6033 = vmatpush1.bf16.msra.mxu0 %v6002
        %6034 = vmatprep.subr.bf16.mxu0 0
        %6035 = vmatpush2.bf16.msra.mxu0 0
        %6036 = vmatprep.subr.bf16.mxu0 0
        %6037 = vmatpush2.bf16.msra.mxu0 0
        %6038 = vmatprep.subr.bf16.mxu0 0
        %6039 = vmatpush2.bf16.msra.mxu0 0
        %6040 = vmatprep.subr.bf16.mxu0 0
        %6041 = vmatpush2.bf16.msra.mxu0 0
        %6042 = vmatprep.subr.bf16.mxu0 0
        %6043 = vmatpush2.bf16.msra.mxu0 0
        %6044 = vmatprep.subr.bf16.mxu0 0
        %6045 = vmatpush2.bf16.msra.mxu0 0
        %6046 = vmatprep.subr.bf16.mxu0 0
        %6047 = vmatpush2.bf16.msra.mxu0 0
        %6048 = vmatprep.subr.bf16.mxu0 0
        %6049 = vmatpush2.bf16.msra.mxu0 0
        %6050 = vmatprep.mubr.bf16.mxu0 0
        %6051 = vmatmul.mubr.bf16.gmra.mxu0 %v5953
        %v6052 = vpop.f32.mrf.mxu0
        %v6053 = vadd.f32 0.0, %v6052
        %v6054 = vpop.f32.mrf.mxu0
        %v6055 = vpop.f32.mrf.mxu0
        %v6056 = vadd.f32 0.0, %v6055
        %v6057 = vpop.f32.mrf.mxu0
        %6058 = vdwg.mxu0
        %v6059 = vadd.f32 %v5939, %v6053
        %v6060 = vadd.f32 %v5940, %v6056
        %v6061 = vld [vmem:[%s5446 + $0x2] sm:$0xf]
        %v6062 = vld [vmem:[%s5446 + $0xa] sm:$0xf]
        %v6063 = vld [vmem:[%s5446 + $0x12] sm:$0xf]
        %v6064 = vld [vmem:[%s5446 + $0x1a] sm:$0xf]
        %v6069 = vcombine.low %v6061, %v6062
        %v6070 = vcombine.low %v6063, %v6064
        %v6073 = vpack.c.bf16 %v6070, %v6069
        %v6074 = vld [vmem:[#allocation8 + $0x140] sm:$0xf]
        %v6075 = vld [vmem:[#allocation8 + $0x144] sm:$0xf]
        %v6076 = vld [vmem:[#allocation8 + $0x148] sm:$0xf]
        %v6077 = vld [vmem:[#allocation8 + $0x14c] sm:$0xf]
        %v6078 = vld [vmem:[#allocation8 + $0x150] sm:$0xf]
        %v6079 = vld [vmem:[#allocation8 + $0x154] sm:$0xf]
        %v6080 = vld [vmem:[#allocation8 + $0x158] sm:$0xf]
        %v6081 = vld [vmem:[#allocation8 + $0x15c] sm:$0xf]
        %v6082 = vld [vmem:[#allocation8 + $0x160] sm:$0xf]
        %v6083 = vld [vmem:[#allocation8 + $0x164] sm:$0xf]
        %v6084 = vld [vmem:[#allocation8 + $0x168] sm:$0xf]
        %v6085 = vld [vmem:[#allocation8 + $0x16c] sm:$0xf]
        %v6086 = vld [vmem:[#allocation8 + $0x170] sm:$0xf]
        %v6087 = vld [vmem:[#allocation8 + $0x174] sm:$0xf]
        %v6088 = vld [vmem:[#allocation8 + $0x178] sm:$0xf]
        %v6089 = vld [vmem:[#allocation8 + $0x17c] sm:$0xf]
        %v6106 = vunpack.c.l.b16 %v6074
        %v6107 = vunpack.c.l.b16 %v6075
        %v6108 = vunpack.c.l.b16 %v6076
        %v6109 = vunpack.c.l.b16 %v6077
        %v6110 = vunpack.c.l.b16 %v6078
        %v6111 = vunpack.c.l.b16 %v6079
        %v6112 = vunpack.c.l.b16 %v6080
        %v6113 = vunpack.c.l.b16 %v6081
        %v6114 = vunpack.c.l.b16 %v6082
        %v6115 = vunpack.c.l.b16 %v6083
        %v6116 = vunpack.c.l.b16 %v6084
        %v6117 = vunpack.c.l.b16 %v6085
        %v6118 = vunpack.c.l.b16 %v6086
        %v6119 = vunpack.c.l.b16 %v6087
        %v6120 = vunpack.c.l.b16 %v6088
        %v6121 = vunpack.c.l.b16 %v6089
        %v6122 = vpack.c.b16 %v6107, %v6106
        %v6123 = vpack.c.b16 %v6109, %v6108
        %v6124 = vpack.c.b16 %v6111, %v6110
        %v6125 = vpack.c.b16 %v6113, %v6112
        %v6126 = vpack.c.b16 %v6115, %v6114
        %v6127 = vpack.c.b16 %v6117, %v6116
        %v6128 = vpack.c.b16 %v6119, %v6118
        %v6129 = vpack.c.b16 %v6121, %v6120
        %6138 = vmatprep.subr.bf16.mxu0 0
        %6139 = vmatpush1.bf16.msra.mxu0 %v6129
        %6140 = vmatprep.subr.bf16.mxu0 0
        %6141 = vmatpush1.bf16.msra.mxu0 %v6128
        %6142 = vmatprep.subr.bf16.mxu0 0
        %6143 = vmatpush1.bf16.msra.mxu0 %v6127
        %6144 = vmatprep.subr.bf16.mxu0 0
        %6145 = vmatpush1.bf16.msra.mxu0 %v6126
        %6146 = vmatprep.subr.bf16.mxu0 0
        %6147 = vmatpush1.bf16.msra.mxu0 %v6125
        %6148 = vmatprep.subr.bf16.mxu0 0
        %6149 = vmatpush1.bf16.msra.mxu0 %v6124
        %6150 = vmatprep.subr.bf16.mxu0 0
        %6151 = vmatpush1.bf16.msra.mxu0 %v6123
        %6152 = vmatprep.subr.bf16.mxu0 0
        %6153 = vmatpush1.bf16.msra.mxu0 %v6122
        %6154 = vmatprep.subr.bf16.mxu0 0
        %6155 = vmatpush2.bf16.msra.mxu0 0
        %6156 = vmatprep.subr.bf16.mxu0 0
        %6157 = vmatpush2.bf16.msra.mxu0 0
        %6158 = vmatprep.subr.bf16.mxu0 0
        %6159 = vmatpush2.bf16.msra.mxu0 0
        %6160 = vmatprep.subr.bf16.mxu0 0
        %6161 = vmatpush2.bf16.msra.mxu0 0
        %6162 = vmatprep.subr.bf16.mxu0 0
        %6163 = vmatpush2.bf16.msra.mxu0 0
        %6164 = vmatprep.subr.bf16.mxu0 0
        %6165 = vmatpush2.bf16.msra.mxu0 0
        %6166 = vmatprep.subr.bf16.mxu0 0
        %6167 = vmatpush2.bf16.msra.mxu0 0
        %6168 = vmatprep.subr.bf16.mxu0 0
        %6169 = vmatpush2.bf16.msra.mxu0 0
        %6170 = vmatprep.mubr.bf16.mxu0 0
        %6171 = vmatmul.mubr.bf16.gmra.mxu0 %v6073
        %v6172 = vpop.f32.mrf.mxu0
        %v6173 = vadd.f32 0.0, %v6172
        %v6174 = vpop.f32.mrf.mxu0
        %v6175 = vpop.f32.mrf.mxu0
        %v6176 = vadd.f32 0.0, %v6175
        %v6177 = vpop.f32.mrf.mxu0
        %6178 = vdwg.mxu0
        %v6179 = vadd.f32 %v6059, %v6173
        %v6180 = vadd.f32 %v6060, %v6176
        %s6181 = scalar_lea.vmem [#allocation3], 16
        %v6182 = vld [vmem:[%s6181] sm:$0xf]
        %v6183 = vld [vmem:[%s6181 + $0x8] sm:$0xf]
        %v6184 = vld [vmem:[%s6181 + $0x10] sm:$0xf]
        %v6185 = vld [vmem:[%s6181 + $0x18] sm:$0xf]
        %v6190 = vcombine.low %v6182, %v6183
        %v6191 = vcombine.low %v6184, %v6185
        %v6194 = vpack.c.bf16 %v6191, %v6190
        %v6195 = vld [vmem:[#allocation8 + $0x180] sm:$0xf]
        %v6196 = vld [vmem:[#allocation8 + $0x184] sm:$0xf]
        %v6197 = vld [vmem:[#allocation8 + $0x188] sm:$0xf]
        %v6198 = vld [vmem:[#allocation8 + $0x18c] sm:$0xf]
        %v6199 = vld [vmem:[#allocation8 + $0x190] sm:$0xf]
        %v6200 = vld [vmem:[#allocation8 + $0x194] sm:$0xf]
        %v6201 = vld [vmem:[#allocation8 + $0x198] sm:$0xf]
        %v6202 = vld [vmem:[#allocation8 + $0x19c] sm:$0xf]
        %v6203 = vld [vmem:[#allocation8 + $0x1a0] sm:$0xf]
        %v6204 = vld [vmem:[#allocation8 + $0x1a4] sm:$0xf]
        %v6205 = vld [vmem:[#allocation8 + $0x1a8] sm:$0xf]
        %v6206 = vld [vmem:[#allocation8 + $0x1ac] sm:$0xf]
        %v6207 = vld [vmem:[#allocation8 + $0x1b0] sm:$0xf]
        %v6208 = vld [vmem:[#allocation8 + $0x1b4] sm:$0xf]
        %v6209 = vld [vmem:[#allocation8 + $0x1b8] sm:$0xf]
        %v6210 = vld [vmem:[#allocation8 + $0x1bc] sm:$0xf]
        %v6227 = vunpack.c.l.b16 %v6195
        %v6228 = vunpack.c.l.b16 %v6196
        %v6229 = vunpack.c.l.b16 %v6197
        %v6230 = vunpack.c.l.b16 %v6198
        %v6231 = vunpack.c.l.b16 %v6199
        %v6232 = vunpack.c.l.b16 %v6200
        %v6233 = vunpack.c.l.b16 %v6201
        %v6234 = vunpack.c.l.b16 %v6202
        %v6235 = vunpack.c.l.b16 %v6203
        %v6236 = vunpack.c.l.b16 %v6204
        %v6237 = vunpack.c.l.b16 %v6205
        %v6238 = vunpack.c.l.b16 %v6206
        %v6239 = vunpack.c.l.b16 %v6207
        %v6240 = vunpack.c.l.b16 %v6208
        %v6241 = vunpack.c.l.b16 %v6209
        %v6242 = vunpack.c.l.b16 %v6210
        %v6243 = vpack.c.b16 %v6228, %v6227
        %v6244 = vpack.c.b16 %v6230, %v6229
        %v6245 = vpack.c.b16 %v6232, %v6231
        %v6246 = vpack.c.b16 %v6234, %v6233
        %v6247 = vpack.c.b16 %v6236, %v6235
        %v6248 = vpack.c.b16 %v6238, %v6237
        %v6249 = vpack.c.b16 %v6240, %v6239
        %v6250 = vpack.c.b16 %v6242, %v6241
        %6259 = vmatprep.subr.bf16.mxu0 0
        %6260 = vmatpush1.bf16.msra.mxu0 %v6250
        %6261 = vmatprep.subr.bf16.mxu0 0
        %6262 = vmatpush1.bf16.msra.mxu0 %v6249
        %6263 = vmatprep.subr.bf16.mxu0 0
        %6264 = vmatpush1.bf16.msra.mxu0 %v6248
        %6265 = vmatprep.subr.bf16.mxu0 0
        %6266 = vmatpush1.bf16.msra.mxu0 %v6247
        %6267 = vmatprep.subr.bf16.mxu0 0
        %6268 = vmatpush1.bf16.msra.mxu0 %v6246
        %6269 = vmatprep.subr.bf16.mxu0 0
        %6270 = vmatpush1.bf16.msra.mxu0 %v6245
        %6271 = vmatprep.subr.bf16.mxu0 0
        %6272 = vmatpush1.bf16.msra.mxu0 %v6244
        %6273 = vmatprep.subr.bf16.mxu0 0
        %6274 = vmatpush1.bf16.msra.mxu0 %v6243
        %6275 = vmatprep.subr.bf16.mxu0 0
        %6276 = vmatpush2.bf16.msra.mxu0 0
        %6277 = vmatprep.subr.bf16.mxu0 0
        %6278 = vmatpush2.bf16.msra.mxu0 0
        %6279 = vmatprep.subr.bf16.mxu0 0
        %6280 = vmatpush2.bf16.msra.mxu0 0
        %6281 = vmatprep.subr.bf16.mxu0 0
        %6282 = vmatpush2.bf16.msra.mxu0 0
        %6283 = vmatprep.subr.bf16.mxu0 0
        %6284 = vmatpush2.bf16.msra.mxu0 0
        %6285 = vmatprep.subr.bf16.mxu0 0
        %6286 = vmatpush2.bf16.msra.mxu0 0
        %6287 = vmatprep.subr.bf16.mxu0 0
        %6288 = vmatpush2.bf16.msra.mxu0 0
        %6289 = vmatprep.subr.bf16.mxu0 0
        %6290 = vmatpush2.bf16.msra.mxu0 0
        %6291 = vmatprep.mubr.bf16.mxu0 0
        %6292 = vmatmul.mubr.bf16.gmra.mxu0 %v6194
        %v6293 = vpop.f32.mrf.mxu0
        %v6294 = vadd.f32 0.0, %v6293
        %v6295 = vpop.f32.mrf.mxu0
        %v6296 = vpop.f32.mrf.mxu0
        %v6297 = vadd.f32 0.0, %v6296
        %v6298 = vpop.f32.mrf.mxu0
        %6299 = vdwg.mxu0
        %v6300 = vadd.f32 %v6179, %v6294
        %v6301 = vadd.f32 %v6180, %v6297
        %v6302 = vld [vmem:[%s6181 + $0x1] sm:$0xf]
        %v6303 = vld [vmem:[%s6181 + $0x9] sm:$0xf]
        %v6304 = vld [vmem:[%s6181 + $0x11] sm:$0xf]
        %v6305 = vld [vmem:[%s6181 + $0x19] sm:$0xf]
        %v6310 = vcombine.low %v6302, %v6303
        %v6311 = vcombine.low %v6304, %v6305
        %v6314 = vpack.c.bf16 %v6311, %v6310
        %v6315 = vld [vmem:[#allocation8 + $0x1c0] sm:$0xf]
        %v6316 = vld [vmem:[#allocation8 + $0x1c4] sm:$0xf]
        %v6317 = vld [vmem:[#allocation8 + $0x1c8] sm:$0xf]
        %v6318 = vld [vmem:[#allocation8 + $0x1cc] sm:$0xf]
        %v6319 = vld [vmem:[#allocation8 + $0x1d0] sm:$0xf]
        %v6320 = vld [vmem:[#allocation8 + $0x1d4] sm:$0xf]
        %v6321 = vld [vmem:[#allocation8 + $0x1d8] sm:$0xf]
        %v6322 = vld [vmem:[#allocation8 + $0x1dc] sm:$0xf]
        %v6323 = vld [vmem:[#allocation8 + $0x1e0] sm:$0xf]
        %v6324 = vld [vmem:[#allocation8 + $0x1e4] sm:$0xf]
        %v6325 = vld [vmem:[#allocation8 + $0x1e8] sm:$0xf]
        %v6326 = vld [vmem:[#allocation8 + $0x1ec] sm:$0xf]
        %v6327 = vld [vmem:[#allocation8 + $0x1f0] sm:$0xf]
        %v6328 = vld [vmem:[#allocation8 + $0x1f4] sm:$0xf]
        %v6329 = vld [vmem:[#allocation8 + $0x1f8] sm:$0xf]
        %v6330 = vld [vmem:[#allocation8 + $0x1fc] sm:$0xf]
        %v6347 = vunpack.c.l.b16 %v6315
        %v6348 = vunpack.c.l.b16 %v6316
        %v6349 = vunpack.c.l.b16 %v6317
        %v6350 = vunpack.c.l.b16 %v6318
        %v6351 = vunpack.c.l.b16 %v6319
        %v6352 = vunpack.c.l.b16 %v6320
        %v6353 = vunpack.c.l.b16 %v6321
        %v6354 = vunpack.c.l.b16 %v6322
        %v6355 = vunpack.c.l.b16 %v6323
        %v6356 = vunpack.c.l.b16 %v6324
        %v6357 = vunpack.c.l.b16 %v6325
        %v6358 = vunpack.c.l.b16 %v6326
        %v6359 = vunpack.c.l.b16 %v6327
        %v6360 = vunpack.c.l.b16 %v6328
        %v6361 = vunpack.c.l.b16 %v6329
        %v6362 = vunpack.c.l.b16 %v6330
        %v6363 = vpack.c.b16 %v6348, %v6347
        %v6364 = vpack.c.b16 %v6350, %v6349
        %v6365 = vpack.c.b16 %v6352, %v6351
        %v6366 = vpack.c.b16 %v6354, %v6353
        %v6367 = vpack.c.b16 %v6356, %v6355
        %v6368 = vpack.c.b16 %v6358, %v6357
        %v6369 = vpack.c.b16 %v6360, %v6359
        %v6370 = vpack.c.b16 %v6362, %v6361
        %6379 = vmatprep.subr.bf16.mxu0 0
        %6380 = vmatpush1.bf16.msra.mxu0 %v6370
        %6381 = vmatprep.subr.bf16.mxu0 0
        %6382 = vmatpush1.bf16.msra.mxu0 %v6369
        %6383 = vmatprep.subr.bf16.mxu0 0
        %6384 = vmatpush1.bf16.msra.mxu0 %v6368
        %6385 = vmatprep.subr.bf16.mxu0 0
        %6386 = vmatpush1.bf16.msra.mxu0 %v6367
        %6387 = vmatprep.subr.bf16.mxu0 0
        %6388 = vmatpush1.bf16.msra.mxu0 %v6366
        %6389 = vmatprep.subr.bf16.mxu0 0
        %6390 = vmatpush1.bf16.msra.mxu0 %v6365
        %6391 = vmatprep.subr.bf16.mxu0 0
        %6392 = vmatpush1.bf16.msra.mxu0 %v6364
        %6393 = vmatprep.subr.bf16.mxu0 0
        %6394 = vmatpush1.bf16.msra.mxu0 %v6363
        %6395 = vmatprep.subr.bf16.mxu0 0
        %6396 = vmatpush2.bf16.msra.mxu0 0
        %6397 = vmatprep.subr.bf16.mxu0 0
        %6398 = vmatpush2.bf16.msra.mxu0 0
        %6399 = vmatprep.subr.bf16.mxu0 0
        %6400 = vmatpush2.bf16.msra.mxu0 0
        %6401 = vmatprep.subr.bf16.mxu0 0
        %6402 = vmatpush2.bf16.msra.mxu0 0
        %6403 = vmatprep.subr.bf16.mxu0 0
        %6404 = vmatpush2.bf16.msra.mxu0 0
        %6405 = vmatprep.subr.bf16.mxu0 0
        %6406 = vmatpush2.bf16.msra.mxu0 0
        %6407 = vmatprep.subr.bf16.mxu0 0
        %6408 = vmatpush2.bf16.msra.mxu0 0
        %6409 = vmatprep.subr.bf16.mxu0 0
        %6410 = vmatpush2.bf16.msra.mxu0 0
        %6411 = vmatprep.mubr.bf16.mxu0 0
        %6412 = vmatmul.mubr.bf16.gmra.mxu0 %v6314
        %v6413 = vpop.f32.mrf.mxu0
        %v6414 = vadd.f32 0.0, %v6413
        %v6415 = vpop.f32.mrf.mxu0
        %v6416 = vpop.f32.mrf.mxu0
        %v6417 = vadd.f32 0.0, %v6416
        %v6418 = vpop.f32.mrf.mxu0
        %6419 = vdwg.mxu0
        %v6420 = vadd.f32 %v6300, %v6414
        %v6421 = vadd.f32 %v6301, %v6417
        %v6422 = vld [vmem:[%s6181 + $0x2] sm:$0xf]
        %v6423 = vld [vmem:[%s6181 + $0xa] sm:$0xf]
        %v6424 = vld [vmem:[%s6181 + $0x12] sm:$0xf]
        %v6425 = vld [vmem:[%s6181 + $0x1a] sm:$0xf]
        %v6430 = vcombine.low %v6422, %v6423
        %v6431 = vcombine.low %v6424, %v6425
        %v6434 = vpack.c.bf16 %v6431, %v6430
        %v6435 = vld [vmem:[#allocation8 + $0x200] sm:$0xf]
        %v6436 = vld [vmem:[#allocation8 + $0x204] sm:$0xf]
        %v6437 = vld [vmem:[#allocation8 + $0x208] sm:$0xf]
        %v6438 = vld [vmem:[#allocation8 + $0x20c] sm:$0xf]
        %v6439 = vld [vmem:[#allocation8 + $0x210] sm:$0xf]
        %v6440 = vld [vmem:[#allocation8 + $0x214] sm:$0xf]
        %v6441 = vld [vmem:[#allocation8 + $0x218] sm:$0xf]
        %v6442 = vld [vmem:[#allocation8 + $0x21c] sm:$0xf]
        %v6443 = vld [vmem:[#allocation8 + $0x220] sm:$0xf]
        %v6444 = vld [vmem:[#allocation8 + $0x224] sm:$0xf]
        %v6445 = vld [vmem:[#allocation8 + $0x228] sm:$0xf]
        %v6446 = vld [vmem:[#allocation8 + $0x22c] sm:$0xf]
        %v6447 = vld [vmem:[#allocation8 + $0x230] sm:$0xf]
        %v6448 = vld [vmem:[#allocation8 + $0x234] sm:$0xf]
        %v6449 = vld [vmem:[#allocation8 + $0x238] sm:$0xf]
        %v6450 = vld [vmem:[#allocation8 + $0x23c] sm:$0xf]
        %v6467 = vunpack.c.l.b16 %v6435
        %v6468 = vunpack.c.l.b16 %v6436
        %v6469 = vunpack.c.l.b16 %v6437
        %v6470 = vunpack.c.l.b16 %v6438
        %v6471 = vunpack.c.l.b16 %v6439
        %v6472 = vunpack.c.l.b16 %v6440
        %v6473 = vunpack.c.l.b16 %v6441
        %v6474 = vunpack.c.l.b16 %v6442
        %v6475 = vunpack.c.l.b16 %v6443
        %v6476 = vunpack.c.l.b16 %v6444
        %v6477 = vunpack.c.l.b16 %v6445
        %v6478 = vunpack.c.l.b16 %v6446
        %v6479 = vunpack.c.l.b16 %v6447
        %v6480 = vunpack.c.l.b16 %v6448
        %v6481 = vunpack.c.l.b16 %v6449
        %v6482 = vunpack.c.l.b16 %v6450
        %v6483 = vpack.c.b16 %v6468, %v6467
        %v6484 = vpack.c.b16 %v6470, %v6469
        %v6485 = vpack.c.b16 %v6472, %v6471
        %v6486 = vpack.c.b16 %v6474, %v6473
        %v6487 = vpack.c.b16 %v6476, %v6475
        %v6488 = vpack.c.b16 %v6478, %v6477
        %v6489 = vpack.c.b16 %v6480, %v6479
        %v6490 = vpack.c.b16 %v6482, %v6481
        %6499 = vmatprep.subr.bf16.mxu0 0
        %6500 = vmatpush1.bf16.msra.mxu0 %v6490
        %6501 = vmatprep.subr.bf16.mxu0 0
        %6502 = vmatpush1.bf16.msra.mxu0 %v6489
        %6503 = vmatprep.subr.bf16.mxu0 0
        %6504 = vmatpush1.bf16.msra.mxu0 %v6488
        %6505 = vmatprep.subr.bf16.mxu0 0
        %6506 = vmatpush1.bf16.msra.mxu0 %v6487
        %6507 = vmatprep.subr.bf16.mxu0 0
        %6508 = vmatpush1.bf16.msra.mxu0 %v6486
        %6509 = vmatprep.subr.bf16.mxu0 0
        %6510 = vmatpush1.bf16.msra.mxu0 %v6485
        %6511 = vmatprep.subr.bf16.mxu0 0
        %6512 = vmatpush1.bf16.msra.mxu0 %v6484
        %6513 = vmatprep.subr.bf16.mxu0 0
        %6514 = vmatpush1.bf16.msra.mxu0 %v6483
        %6515 = vmatprep.subr.bf16.mxu0 0
        %6516 = vmatpush2.bf16.msra.mxu0 0
        %6517 = vmatprep.subr.bf16.mxu0 0
        %6518 = vmatpush2.bf16.msra.mxu0 0
        %6519 = vmatprep.subr.bf16.mxu0 0
        %6520 = vmatpush2.bf16.msra.mxu0 0
        %6521 = vmatprep.subr.bf16.mxu0 0
        %6522 = vmatpush2.bf16.msra.mxu0 0
        %6523 = vmatprep.subr.bf16.mxu0 0
        %6524 = vmatpush2.bf16.msra.mxu0 0
        %6525 = vmatprep.subr.bf16.mxu0 0
        %6526 = vmatpush2.bf16.msra.mxu0 0
        %6527 = vmatprep.subr.bf16.mxu0 0
        %6528 = vmatpush2.bf16.msra.mxu0 0
        %6529 = vmatprep.subr.bf16.mxu0 0
        %6530 = vmatpush2.bf16.msra.mxu0 0
        %6531 = vmatprep.mubr.bf16.mxu0 0
        %6532 = vmatmul.mubr.bf16.gmra.mxu0 %v6434
        %v6533 = vpop.f32.mrf.mxu0
        %v6534 = vadd.f32 0.0, %v6533
        %v6535 = vpop.f32.mrf.mxu0
        %v6536 = vpop.f32.mrf.mxu0
        %v6537 = vadd.f32 0.0, %v6536
        %v6538 = vpop.f32.mrf.mxu0
        %6539 = vdwg.mxu0
        %v6540 = vadd.f32 %v6420, %v6534
        %v6541 = vadd.f32 %v6421, %v6537
        %v6542 = vld [vmem:[%s8] sm:$0x1]
        %v6544 = vlaneseq
        %v6545 = vshrl.u32 %v6544, 7
        %v6546 = vsub.s32 0, %v6545
        %v6547 = vrot.slane %v6542, %v6546
        %v6549 = vadd.f32 %v6540, %v6547
        %v6550 = vadd.f32 %v6541, %v6547
        %v6551 = vmax.f32 %v6549, 0.0
        %v6552 = vmax.f32 %v6550, 0.0
        %v6555 = vrot.slane %v6551, 1
        %v6556 = vrot.slane %v6552, 1
        %v6557 = vsel %vm3648, %v6555, %v6556
        %v6560 = vmax.f32 %v6551, %v6557
        %v6561 = vmax.f32 %v6552, %v6556
        %v6564 = vrot.slane %v6560, 4
        %v6565 = vrot.slane %v6561, 4
        %v6566 = vsel %vm5396, %v6564, %v6565
        %v6569 = vmax.f32 %v6560, %v6566
        %v6570 = vmax.f32 %v6561, %v6565
        %v6571 = vld [vmem:[%s13] sm:$0x3]
        %v6572 = vpack.c.bf16 %v6570, %v6569
        %vm6573 = vcmask 89088
        %v6575 = vsel %vm6573, %v6571, 0
        %vm6577 = vcmask 1044480
        %vm6578 = vcmask 1045504
        %v6579 = vsel %vm6577, 4294967295, 65535
        %v6580 = vsel %vm6578, %v6579, 0
        %v6582 = vand.u32 %v6572, %v6580
        %6584 = vmatprep.subr.bf16.mxu0 0
        %6585 = vmatpush1.bf16.msra.mxu0 0
        %6586 = vmatprep.subr.bf16.mxu0 0
        %6587 = vmatpush1.bf16.msra.mxu0 0
        %6588 = vmatprep.subr.bf16.mxu0 0
        %6589 = vmatpush1.bf16.msra.mxu0 0
        %6590 = vmatprep.subr.bf16.mxu0 0
        %6591 = vmatpush1.bf16.msra.mxu0 0
        %6592 = vmatprep.subr.bf16.mxu0 0
        %6593 = vmatpush1.bf16.msra.mxu0 0
        %6594 = vmatprep.subr.bf16.mxu0 0
        %6595 = vmatpush1.bf16.msra.mxu0 0
        %6596 = vmatprep.subr.bf16.mxu0 0
        %6597 = vmatpush1.bf16.msra.mxu0 0
        %6598 = vmatprep.subr.bf16.mxu0 0
        %6599 = vmatpush1.bf16.msra.mxu0 %v6582
        %6600 = vmatprep.subr.bf16.mxu0 0
        %6601 = vmatpush2.bf16.msra.mxu0 0
        %6602 = vmatprep.subr.bf16.mxu0 0
        %6603 = vmatpush2.bf16.msra.mxu0 0
        %6604 = vmatprep.subr.bf16.mxu0 0
        %6605 = vmatpush2.bf16.msra.mxu0 0
        %6606 = vmatprep.subr.bf16.mxu0 0
        %6607 = vmatpush2.bf16.msra.mxu0 0
        %6608 = vmatprep.subr.bf16.mxu0 0
        %6609 = vmatpush2.bf16.msra.mxu0 0
        %6610 = vmatprep.subr.bf16.mxu0 0
        %6611 = vmatpush2.bf16.msra.mxu0 0
        %6612 = vmatprep.subr.bf16.mxu0 0
        %6613 = vmatpush2.bf16.msra.mxu0 0
        %6614 = vmatprep.subr.bf16.mxu0 0
        %6615 = vmatpush2.bf16.msra.mxu0 0
        %6616 = vmatprep.mubr.bf16.mxu0 0
        %6617 = vmatmul.mubr.bf16.gmra.mxu0 %v6575
        %v6618 = vpop.f32.mrf.mxu0
        %v6619 = vadd.f32 0.0, %v6618
        %v6620 = vpop.f32.mrf.mxu0
        %v6621 = vpop.f32.mrf.mxu0
        %v6622 = vpop.f32.mrf.mxu0
        %6623 = vdwg.mxu0
        %6624 = vst [vmem:[#allocation4] sm:$0xf] 0.0
        %s6625 = scalar_lea.vmem [#allocation4], 12
        %6626 = vst [vmem:[%s6625] sm:$0xf] 0.0
        %s6627 = scalar_lea.vmem [#allocation4], 4
        %6628 = vst [vmem:[%s6627] sm:$0x1] 0.0
        %6629 = vst [vmem:[%s6627 + $0x4] sm:$0x1] 0.0
        %6630 = vst [vmem:[%s6627 + $0x3] sm:$0x1] 0.0
        %6631 = vst [vmem:[%s6627 + $0x7] sm:$0x1] 0.0
        %v6634 = vunpack.c.l.s4 1983009808
        %v6635 = vunpack.c.0.s8 %v6634
        %v6636 = vlaneseq
        %v6637 = vshrl.u32 %v6636, 7
        %v6638 = vsub.s32 %v6635, %v6637
        %v6639 = vrot.slane %v6619, %v6638
        %v6640 = vcombine.high %v6639, %v6639
        %6643 = vst [vmem:[%s6627 + $0x1] sm:$0x3] %v6639
        %6644 = vst [vmem:[%s6627 + $0x5] sm:$0x3] %v6640
        %v6645 = vld [vmem:[#allocation4] sm:$0x3]
        %v6646 = vld [vmem:[#allocation4 + $0x4] sm:$0x3]
        %v6649 = vcombine.low %v6645, %v6646
        %v6651 = vunpack.c.l.s4 1983009808
        %v6652 = vunpack.c.0.s8 %v6651
        %v6653 = vlaneseq
        %v6654 = vshrl.u32 %v6653, 7
        %v6655 = vsub.s32 %v6652, %v6654
        %v6656 = vrot.slane %v6649, %v6655
        %v6658 = vpack.c.bf16 %v6656, %v6656
        %v6659 = vld [vmem:[#allocation10] sm:$0xf]
        %v6660 = vld [vmem:[#allocation10 + $0x4] sm:$0xf]
        %v6661 = vld [vmem:[#allocation10 + $0x8] sm:$0xf]
        %v6662 = vld [vmem:[#allocation10 + $0xc] sm:$0xf]
        %v6663 = vld [vmem:[#allocation10 + $0x10] sm:$0xf]
        %v6664 = vld [vmem:[#allocation10 + $0x14] sm:$0xf]
        %v6665 = vld [vmem:[#allocation10 + $0x18] sm:$0xf]
        %v6666 = vld [vmem:[#allocation10 + $0x1c] sm:$0xf]
        %v6667 = vld [vmem:[#allocation10 + $0x20] sm:$0xf]
        %v6668 = vld [vmem:[#allocation10 + $0x24] sm:$0xf]
        %v6669 = vld [vmem:[#allocation10 + $0x28] sm:$0xf]
        %v6670 = vld [vmem:[#allocation10 + $0x2c] sm:$0xf]
        %v6671 = vld [vmem:[#allocation10 + $0x30] sm:$0xf]
        %v6672 = vld [vmem:[#allocation10 + $0x34] sm:$0xf]
        %v6673 = vld [vmem:[#allocation10 + $0x38] sm:$0xf]
        %v6674 = vld [vmem:[#allocation10 + $0x3c] sm:$0xf]
        %v6675 = vld [vmem:[#allocation4 + $0x1] sm:$0x3]
        %v6676 = vld [vmem:[#allocation4 + $0x5] sm:$0x3]
        %v6679 = vcombine.low %v6675, %v6676
        %v6681 = vunpack.c.l.s4 1983009808
        %v6682 = vunpack.c.0.s8 %v6681
        %v6683 = vlaneseq
        %v6684 = vshrl.u32 %v6683, 7
        %v6685 = vsub.s32 %v6682, %v6684
        %v6686 = vrot.slane %v6679, %v6685
        %v6688 = vpack.c.bf16 %v6686, %v6686
        %v6689 = vld [vmem:[#allocation10 + $0x40] sm:$0xf]
        %v6690 = vld [vmem:[#allocation10 + $0x44] sm:$0xf]
        %v6691 = vld [vmem:[#allocation10 + $0x48] sm:$0xf]
        %v6692 = vld [vmem:[#allocation10 + $0x4c] sm:$0xf]
        %v6693 = vld [vmem:[#allocation10 + $0x50] sm:$0xf]
        %v6694 = vld [vmem:[#allocation10 + $0x54] sm:$0xf]
        %v6695 = vld [vmem:[#allocation10 + $0x58] sm:$0xf]
        %v6696 = vld [vmem:[#allocation10 + $0x5c] sm:$0xf]
        %v6697 = vld [vmem:[#allocation10 + $0x60] sm:$0xf]
        %v6698 = vld [vmem:[#allocation10 + $0x64] sm:$0xf]
        %v6699 = vld [vmem:[#allocation10 + $0x68] sm:$0xf]
        %v6700 = vld [vmem:[#allocation10 + $0x6c] sm:$0xf]
        %v6701 = vld [vmem:[#allocation10 + $0x70] sm:$0xf]
        %v6702 = vld [vmem:[#allocation10 + $0x74] sm:$0xf]
        %v6703 = vld [vmem:[#allocation10 + $0x78] sm:$0xf]
        %v6704 = vld [vmem:[#allocation10 + $0x7c] sm:$0xf]
        %v6721 = vunpack.c.l.b16 %v6689
        %v6722 = vunpack.c.l.b16 %v6690
        %v6723 = vunpack.c.l.b16 %v6691
        %v6724 = vunpack.c.l.b16 %v6692
        %v6725 = vunpack.c.l.b16 %v6693
        %v6726 = vunpack.c.l.b16 %v6694
        %v6727 = vunpack.c.l.b16 %v6695
        %v6728 = vunpack.c.l.b16 %v6696
        %v6729 = vunpack.c.l.b16 %v6697
        %v6730 = vunpack.c.l.b16 %v6698
        %v6731 = vunpack.c.l.b16 %v6699
        %v6732 = vunpack.c.l.b16 %v6700
        %v6733 = vunpack.c.l.b16 %v6701
        %v6734 = vunpack.c.l.b16 %v6702
        %v6735 = vunpack.c.l.b16 %v6703
        %v6736 = vunpack.c.l.b16 %v6704
        %v6737 = vpack.c.b16 %v6722, %v6721
        %v6738 = vpack.c.b16 %v6724, %v6723
        %v6739 = vpack.c.b16 %v6726, %v6725
        %v6740 = vpack.c.b16 %v6728, %v6727
        %v6741 = vpack.c.b16 %v6730, %v6729
        %v6742 = vpack.c.b16 %v6732, %v6731
        %v6743 = vpack.c.b16 %v6734, %v6733
        %v6744 = vpack.c.b16 %v6736, %v6735
        %6753 = vmatprep.subr.bf16.mxu0 0
        %6754 = vmatpush1.bf16.msra.mxu0 %v6744
        %6755 = vmatprep.subr.bf16.mxu0 0
        %6756 = vmatpush1.bf16.msra.mxu0 %v6743
        %6757 = vmatprep.subr.bf16.mxu0 0
        %6758 = vmatpush1.bf16.msra.mxu0 %v6742
        %6759 = vmatprep.subr.bf16.mxu0 0
        %6760 = vmatpush1.bf16.msra.mxu0 %v6741
        %6761 = vmatprep.subr.bf16.mxu0 0
        %6762 = vmatpush1.bf16.msra.mxu0 %v6740
        %6763 = vmatprep.subr.bf16.mxu0 0
        %6764 = vmatpush1.bf16.msra.mxu0 %v6739
        %6765 = vmatprep.subr.bf16.mxu0 0
        %6766 = vmatpush1.bf16.msra.mxu0 %v6738
        %6767 = vmatprep.subr.bf16.mxu0 0
        %6768 = vmatpush1.bf16.msra.mxu0 %v6737
        %6769 = vmatprep.subr.bf16.mxu0 0
        %6770 = vmatpush2.bf16.msra.mxu0 0
        %6771 = vmatprep.subr.bf16.mxu0 0
        %6772 = vmatpush2.bf16.msra.mxu0 0
        %6773 = vmatprep.subr.bf16.mxu0 0
        %6774 = vmatpush2.bf16.msra.mxu0 0
        %6775 = vmatprep.subr.bf16.mxu0 0
        %6776 = vmatpush2.bf16.msra.mxu0 0
        %6777 = vmatprep.subr.bf16.mxu0 0
        %6778 = vmatpush2.bf16.msra.mxu0 0
        %6779 = vmatprep.subr.bf16.mxu0 0
        %6780 = vmatpush2.bf16.msra.mxu0 0
        %6781 = vmatprep.subr.bf16.mxu0 0
        %6782 = vmatpush2.bf16.msra.mxu0 0
        %6783 = vmatprep.subr.bf16.mxu0 0
        %6784 = vmatpush2.bf16.msra.mxu0 0
        %6785 = vmatprep.mubr.bf16.mxu0 0
        %6786 = vmatmul.mubr.bf16.gmra.mxu0 %v6688
        %v6787 = vpop.f32.mrf.mxu0
        %v6788 = vadd.f32 0.0, %v6787
        %v6789 = vpop.f32.mrf.mxu0
        %v6790 = vpop.f32.mrf.mxu0
        %v6791 = vpop.f32.mrf.mxu0
        %6792 = vdwg.mxu0
        %v6809 = vunpack.c.l.b16 %v6659
        %v6810 = vunpack.c.l.b16 %v6660
        %v6811 = vunpack.c.l.b16 %v6661
        %v6812 = vunpack.c.l.b16 %v6662
        %v6813 = vunpack.c.l.b16 %v6663
        %v6814 = vunpack.c.l.b16 %v6664
        %v6815 = vunpack.c.l.b16 %v6665
        %v6816 = vunpack.c.l.b16 %v6666
        %v6817 = vunpack.c.l.b16 %v6667
        %v6818 = vunpack.c.l.b16 %v6668
        %v6819 = vunpack.c.l.b16 %v6669
        %v6820 = vunpack.c.l.b16 %v6670
        %v6821 = vunpack.c.l.b16 %v6671
        %v6822 = vunpack.c.l.b16 %v6672
        %v6823 = vunpack.c.l.b16 %v6673
        %v6824 = vunpack.c.l.b16 %v6674
        %v6825 = vpack.c.b16 %v6810, %v6809
        %v6826 = vpack.c.b16 %v6812, %v6811
        %v6827 = vpack.c.b16 %v6814, %v6813
        %v6828 = vpack.c.b16 %v6816, %v6815
        %v6829 = vpack.c.b16 %v6818, %v6817
        %v6830 = vpack.c.b16 %v6820, %v6819
        %v6831 = vpack.c.b16 %v6822, %v6821
        %v6832 = vpack.c.b16 %v6824, %v6823
        %6841 = vmatprep.subr.bf16.mxu0 0
        %6842 = vmatpush1.bf16.msra.mxu0 %v6832
        %6843 = vmatprep.subr.bf16.mxu0 0
        %6844 = vmatpush1.bf16.msra.mxu0 %v6831
        %6845 = vmatprep.subr.bf16.mxu0 0
        %6846 = vmatpush1.bf16.msra.mxu0 %v6830
        %6847 = vmatprep.subr.bf16.mxu0 0
        %6848 = vmatpush1.bf16.msra.mxu0 %v6829
        %6849 = vmatprep.subr.bf16.mxu0 0
        %6850 = vmatpush1.bf16.msra.mxu0 %v6828
        %6851 = vmatprep.subr.bf16.mxu0 0
        %6852 = vmatpush1.bf16.msra.mxu0 %v6827
        %6853 = vmatprep.subr.bf16.mxu0 0
        %6854 = vmatpush1.bf16.msra.mxu0 %v6826
        %6855 = vmatprep.subr.bf16.mxu0 0
        %6856 = vmatpush1.bf16.msra.mxu0 %v6825
        %6857 = vmatprep.subr.bf16.mxu0 0
        %6858 = vmatpush2.bf16.msra.mxu0 0
        %6859 = vmatprep.subr.bf16.mxu0 0
        %6860 = vmatpush2.bf16.msra.mxu0 0
        %6861 = vmatprep.subr.bf16.mxu0 0
        %6862 = vmatpush2.bf16.msra.mxu0 0
        %6863 = vmatprep.subr.bf16.mxu0 0
        %6864 = vmatpush2.bf16.msra.mxu0 0
        %6865 = vmatprep.subr.bf16.mxu0 0
        %6866 = vmatpush2.bf16.msra.mxu0 0
        %6867 = vmatprep.subr.bf16.mxu0 0
        %6868 = vmatpush2.bf16.msra.mxu0 0
        %6869 = vmatprep.subr.bf16.mxu0 0
        %6870 = vmatpush2.bf16.msra.mxu0 0
        %6871 = vmatprep.subr.bf16.mxu0 0
        %6872 = vmatpush2.bf16.msra.mxu0 0
        %6873 = vmatprep.mubr.bf16.mxu0 0
        %6874 = vmatmul.mubr.bf16.gmra.mxu0 %v6658
        %v6875 = vpop.f32.mrf.mxu0
        %v6876 = vadd.f32 %v6788, %v6875
        %v6877 = vpop.f32.mrf.mxu0
        %v6878 = vpop.f32.mrf.mxu0
        %v6879 = vpop.f32.mrf.mxu0
        %6880 = vdwg.mxu0
        %v6881 = vld [vmem:[#allocation4 + $0x2] sm:$0x3]
        %v6882 = vld [vmem:[#allocation4 + $0x6] sm:$0x3]
        %v6885 = vcombine.low %v6881, %v6882
        %v6887 = vunpack.c.l.s4 1983009808
        %v6888 = vunpack.c.0.s8 %v6887
        %v6889 = vlaneseq
        %v6890 = vshrl.u32 %v6889, 7
        %v6891 = vsub.s32 %v6888, %v6890
        %v6892 = vrot.slane %v6885, %v6891
        %v6894 = vpack.c.bf16 %v6892, %v6892
        %v6895 = vld [vmem:[#allocation10 + $0x80] sm:$0xf]
        %v6896 = vld [vmem:[#allocation10 + $0x84] sm:$0xf]
        %v6897 = vld [vmem:[#allocation10 + $0x88] sm:$0xf]
        %v6898 = vld [vmem:[#allocation10 + $0x8c] sm:$0xf]
        %v6899 = vld [vmem:[#allocation10 + $0x90] sm:$0xf]
        %v6900 = vld [vmem:[#allocation10 + $0x94] sm:$0xf]
        %v6901 = vld [vmem:[#allocation10 + $0x98] sm:$0xf]
        %v6902 = vld [vmem:[#allocation10 + $0x9c] sm:$0xf]
        %v6903 = vld [vmem:[#allocation10 + $0xa0] sm:$0xf]
        %v6904 = vld [vmem:[#allocation10 + $0xa4] sm:$0xf]
        %v6905 = vld [vmem:[#allocation10 + $0xa8] sm:$0xf]
        %v6906 = vld [vmem:[#allocation10 + $0xac] sm:$0xf]
        %v6907 = vld [vmem:[#allocation10 + $0xb0] sm:$0xf]
        %v6908 = vld [vmem:[#allocation10 + $0xb4] sm:$0xf]
        %v6909 = vld [vmem:[#allocation10 + $0xb8] sm:$0xf]
        %v6910 = vld [vmem:[#allocation10 + $0xbc] sm:$0xf]
        %v6927 = vunpack.c.l.b16 %v6895
        %v6928 = vunpack.c.l.b16 %v6896
        %v6929 = vunpack.c.l.b16 %v6897
        %v6930 = vunpack.c.l.b16 %v6898
        %v6931 = vunpack.c.l.b16 %v6899
        %v6932 = vunpack.c.l.b16 %v6900
        %v6933 = vunpack.c.l.b16 %v6901
        %v6934 = vunpack.c.l.b16 %v6902
        %v6935 = vunpack.c.l.b16 %v6903
        %v6936 = vunpack.c.l.b16 %v6904
        %v6937 = vunpack.c.l.b16 %v6905
        %v6938 = vunpack.c.l.b16 %v6906
        %v6939 = vunpack.c.l.b16 %v6907
        %v6940 = vunpack.c.l.b16 %v6908
        %v6941 = vunpack.c.l.b16 %v6909
        %v6942 = vunpack.c.l.b16 %v6910
        %v6943 = vpack.c.b16 %v6928, %v6927
        %v6944 = vpack.c.b16 %v6930, %v6929
        %v6945 = vpack.c.b16 %v6932, %v6931
        %v6946 = vpack.c.b16 %v6934, %v6933
        %v6947 = vpack.c.b16 %v6936, %v6935
        %v6948 = vpack.c.b16 %v6938, %v6937
        %v6949 = vpack.c.b16 %v6940, %v6939
        %v6950 = vpack.c.b16 %v6942, %v6941
        %6959 = vmatprep.subr.bf16.mxu0 0
        %6960 = vmatpush1.bf16.msra.mxu0 %v6950
        %6961 = vmatprep.subr.bf16.mxu0 0
        %6962 = vmatpush1.bf16.msra.mxu0 %v6949
        %6963 = vmatprep.subr.bf16.mxu0 0
        %6964 = vmatpush1.bf16.msra.mxu0 %v6948
        %6965 = vmatprep.subr.bf16.mxu0 0
        %6966 = vmatpush1.bf16.msra.mxu0 %v6947
        %6967 = vmatprep.subr.bf16.mxu0 0
        %6968 = vmatpush1.bf16.msra.mxu0 %v6946
        %6969 = vmatprep.subr.bf16.mxu0 0
        %6970 = vmatpush1.bf16.msra.mxu0 %v6945
        %6971 = vmatprep.subr.bf16.mxu0 0
        %6972 = vmatpush1.bf16.msra.mxu0 %v6944
        %6973 = vmatprep.subr.bf16.mxu0 0
        %6974 = vmatpush1.bf16.msra.mxu0 %v6943
        %6975 = vmatprep.subr.bf16.mxu0 0
        %6976 = vmatpush2.bf16.msra.mxu0 0
        %6977 = vmatprep.subr.bf16.mxu0 0
        %6978 = vmatpush2.bf16.msra.mxu0 0
        %6979 = vmatprep.subr.bf16.mxu0 0
        %6980 = vmatpush2.bf16.msra.mxu0 0
        %6981 = vmatprep.subr.bf16.mxu0 0
        %6982 = vmatpush2.bf16.msra.mxu0 0
        %6983 = vmatprep.subr.bf16.mxu0 0
        %6984 = vmatpush2.bf16.msra.mxu0 0
        %6985 = vmatprep.subr.bf16.mxu0 0
        %6986 = vmatpush2.bf16.msra.mxu0 0
        %6987 = vmatprep.subr.bf16.mxu0 0
        %6988 = vmatpush2.bf16.msra.mxu0 0
        %6989 = vmatprep.subr.bf16.mxu0 0
        %6990 = vmatpush2.bf16.msra.mxu0 0
        %6991 = vmatprep.mubr.bf16.mxu0 0
        %6992 = vmatmul.mubr.bf16.gmra.mxu0 %v6894
        %v6993 = vpop.f32.mrf.mxu0
        %v6994 = vadd.f32 0.0, %v6993
        %v6995 = vpop.f32.mrf.mxu0
        %v6996 = vpop.f32.mrf.mxu0
        %v6997 = vpop.f32.mrf.mxu0
        %6998 = vdwg.mxu0
        %v6999 = vadd.f32 %v6876, %v6994
        %v7000 = vld [vmem:[%s6627] sm:$0x3]
        %v7001 = vld [vmem:[%s6627 + $0x4] sm:$0x3]
        %v7004 = vcombine.low %v7000, %v7001
        %v7006 = vunpack.c.l.s4 1983009808
        %v7007 = vunpack.c.0.s8 %v7006
        %v7008 = vlaneseq
        %v7009 = vshrl.u32 %v7008, 7
        %v7010 = vsub.s32 %v7007, %v7009
        %v7011 = vrot.slane %v7004, %v7010
        %v7013 = vpack.c.bf16 %v7011, %v7011
        %v7014 = vld [vmem:[#allocation10 + $0xc0] sm:$0xf]
        %v7015 = vld [vmem:[#allocation10 + $0xc4] sm:$0xf]
        %v7016 = vld [vmem:[#allocation10 + $0xc8] sm:$0xf]
        %v7017 = vld [vmem:[#allocation10 + $0xcc] sm:$0xf]
        %v7018 = vld [vmem:[#allocation10 + $0xd0] sm:$0xf]
        %v7019 = vld [vmem:[#allocation10 + $0xd4] sm:$0xf]
        %v7020 = vld [vmem:[#allocation10 + $0xd8] sm:$0xf]
        %v7021 = vld [vmem:[#allocation10 + $0xdc] sm:$0xf]
        %v7022 = vld [vmem:[#allocation10 + $0xe0] sm:$0xf]
        %v7023 = vld [vmem:[#allocation10 + $0xe4] sm:$0xf]
        %v7024 = vld [vmem:[#allocation10 + $0xe8] sm:$0xf]
        %v7025 = vld [vmem:[#allocation10 + $0xec] sm:$0xf]
        %v7026 = vld [vmem:[#allocation10 + $0xf0] sm:$0xf]
        %v7027 = vld [vmem:[#allocation10 + $0xf4] sm:$0xf]
        %v7028 = vld [vmem:[#allocation10 + $0xf8] sm:$0xf]
        %v7029 = vld [vmem:[#allocation10 + $0xfc] sm:$0xf]
        %v7046 = vunpack.c.l.b16 %v7014
        %v7047 = vunpack.c.l.b16 %v7015
        %v7048 = vunpack.c.l.b16 %v7016
        %v7049 = vunpack.c.l.b16 %v7017
        %v7050 = vunpack.c.l.b16 %v7018
        %v7051 = vunpack.c.l.b16 %v7019
        %v7052 = vunpack.c.l.b16 %v7020
        %v7053 = vunpack.c.l.b16 %v7021
        %v7054 = vunpack.c.l.b16 %v7022
        %v7055 = vunpack.c.l.b16 %v7023
        %v7056 = vunpack.c.l.b16 %v7024
        %v7057 = vunpack.c.l.b16 %v7025
        %v7058 = vunpack.c.l.b16 %v7026
        %v7059 = vunpack.c.l.b16 %v7027
        %v7060 = vunpack.c.l.b16 %v7028
        %v7061 = vunpack.c.l.b16 %v7029
        %v7062 = vpack.c.b16 %v7047, %v7046
        %v7063 = vpack.c.b16 %v7049, %v7048
        %v7064 = vpack.c.b16 %v7051, %v7050
        %v7065 = vpack.c.b16 %v7053, %v7052
        %v7066 = vpack.c.b16 %v7055, %v7054
        %v7067 = vpack.c.b16 %v7057, %v7056
        %v7068 = vpack.c.b16 %v7059, %v7058
        %v7069 = vpack.c.b16 %v7061, %v7060
        %7078 = vmatprep.subr.bf16.mxu0 0
        %7079 = vmatpush1.bf16.msra.mxu0 %v7069
        %7080 = vmatprep.subr.bf16.mxu0 0
        %7081 = vmatpush1.bf16.msra.mxu0 %v7068
        %7082 = vmatprep.subr.bf16.mxu0 0
        %7083 = vmatpush1.bf16.msra.mxu0 %v7067
        %7084 = vmatprep.subr.bf16.mxu0 0
        %7085 = vmatpush1.bf16.msra.mxu0 %v7066
        %7086 = vmatprep.subr.bf16.mxu0 0
        %7087 = vmatpush1.bf16.msra.mxu0 %v7065
        %7088 = vmatprep.subr.bf16.mxu0 0
        %7089 = vmatpush1.bf16.msra.mxu0 %v7064
        %7090 = vmatprep.subr.bf16.mxu0 0
        %7091 = vmatpush1.bf16.msra.mxu0 %v7063
        %7092 = vmatprep.subr.bf16.mxu0 0
        %7093 = vmatpush1.bf16.msra.mxu0 %v7062
        %7094 = vmatprep.subr.bf16.mxu0 0
        %7095 = vmatpush2.bf16.msra.mxu0 0
        %7096 = vmatprep.subr.bf16.mxu0 0
        %7097 = vmatpush2.bf16.msra.mxu0 0
        %7098 = vmatprep.subr.bf16.mxu0 0
        %7099 = vmatpush2.bf16.msra.mxu0 0
        %7100 = vmatprep.subr.bf16.mxu0 0
        %7101 = vmatpush2.bf16.msra.mxu0 0
        %7102 = vmatprep.subr.bf16.mxu0 0
        %7103 = vmatpush2.bf16.msra.mxu0 0
        %7104 = vmatprep.subr.bf16.mxu0 0
        %7105 = vmatpush2.bf16.msra.mxu0 0
        %7106 = vmatprep.subr.bf16.mxu0 0
        %7107 = vmatpush2.bf16.msra.mxu0 0
        %7108 = vmatprep.subr.bf16.mxu0 0
        %7109 = vmatpush2.bf16.msra.mxu0 0
        %7110 = vmatprep.mubr.bf16.mxu0 0
        %7111 = vmatmul.mubr.bf16.gmra.mxu0 %v7013
        %v7112 = vpop.f32.mrf.mxu0
        %v7113 = vadd.f32 0.0, %v7112
        %v7114 = vpop.f32.mrf.mxu0
        %v7115 = vpop.f32.mrf.mxu0
        %v7116 = vpop.f32.mrf.mxu0
        %7117 = vdwg.mxu0
        %v7118 = vadd.f32 %v6999, %v7113
        %v7119 = vld [vmem:[%s6627 + $0x1] sm:$0x3]
        %v7120 = vld [vmem:[%s6627 + $0x5] sm:$0x3]
        %v7123 = vcombine.low %v7119, %v7120
        %v7125 = vunpack.c.l.s4 1983009808
        %v7126 = vunpack.c.0.s8 %v7125
        %v7127 = vlaneseq
        %v7128 = vshrl.u32 %v7127, 7
        %v7129 = vsub.s32 %v7126, %v7128
        %v7130 = vrot.slane %v7123, %v7129
        %v7132 = vpack.c.bf16 %v7130, %v7130
        %v7133 = vld [vmem:[#allocation10 + $0x100] sm:$0xf]
        %v7134 = vld [vmem:[#allocation10 + $0x104] sm:$0xf]
        %v7135 = vld [vmem:[#allocation10 + $0x108] sm:$0xf]
        %v7136 = vld [vmem:[#allocation10 + $0x10c] sm:$0xf]
        %v7137 = vld [vmem:[#allocation10 + $0x110] sm:$0xf]
        %v7138 = vld [vmem:[#allocation10 + $0x114] sm:$0xf]
        %v7139 = vld [vmem:[#allocation10 + $0x118] sm:$0xf]
        %v7140 = vld [vmem:[#allocation10 + $0x11c] sm:$0xf]
        %v7141 = vld [vmem:[#allocation10 + $0x120] sm:$0xf]
        %v7142 = vld [vmem:[#allocation10 + $0x124] sm:$0xf]
        %v7143 = vld [vmem:[#allocation10 + $0x128] sm:$0xf]
        %v7144 = vld [vmem:[#allocation10 + $0x12c] sm:$0xf]
        %v7145 = vld [vmem:[#allocation10 + $0x130] sm:$0xf]
        %v7146 = vld [vmem:[#allocation10 + $0x134] sm:$0xf]
        %v7147 = vld [vmem:[#allocation10 + $0x138] sm:$0xf]
        %v7148 = vld [vmem:[#allocation10 + $0x13c] sm:$0xf]
        %v7165 = vunpack.c.l.b16 %v7133
        %v7166 = vunpack.c.l.b16 %v7134
        %v7167 = vunpack.c.l.b16 %v7135
        %v7168 = vunpack.c.l.b16 %v7136
        %v7169 = vunpack.c.l.b16 %v7137
        %v7170 = vunpack.c.l.b16 %v7138
        %v7171 = vunpack.c.l.b16 %v7139
        %v7172 = vunpack.c.l.b16 %v7140
        %v7173 = vunpack.c.l.b16 %v7141
        %v7174 = vunpack.c.l.b16 %v7142
        %v7175 = vunpack.c.l.b16 %v7143
        %v7176 = vunpack.c.l.b16 %v7144
        %v7177 = vunpack.c.l.b16 %v7145
        %v7178 = vunpack.c.l.b16 %v7146
        %v7179 = vunpack.c.l.b16 %v7147
        %v7180 = vunpack.c.l.b16 %v7148
        %v7181 = vpack.c.b16 %v7166, %v7165
        %v7182 = vpack.c.b16 %v7168, %v7167
        %v7183 = vpack.c.b16 %v7170, %v7169
        %v7184 = vpack.c.b16 %v7172, %v7171
        %v7185 = vpack.c.b16 %v7174, %v7173
        %v7186 = vpack.c.b16 %v7176, %v7175
        %v7187 = vpack.c.b16 %v7178, %v7177
        %v7188 = vpack.c.b16 %v7180, %v7179
        %7197 = vmatprep.subr.bf16.mxu0 0
        %7198 = vmatpush1.bf16.msra.mxu0 %v7188
        %7199 = vmatprep.subr.bf16.mxu0 0
        %7200 = vmatpush1.bf16.msra.mxu0 %v7187
        %7201 = vmatprep.subr.bf16.mxu0 0
        %7202 = vmatpush1.bf16.msra.mxu0 %v7186
        %7203 = vmatprep.subr.bf16.mxu0 0
        %7204 = vmatpush1.bf16.msra.mxu0 %v7185
        %7205 = vmatprep.subr.bf16.mxu0 0
        %7206 = vmatpush1.bf16.msra.mxu0 %v7184
        %7207 = vmatprep.subr.bf16.mxu0 0
        %7208 = vmatpush1.bf16.msra.mxu0 %v7183
        %7209 = vmatprep.subr.bf16.mxu0 0
        %7210 = vmatpush1.bf16.msra.mxu0 %v7182
        %7211 = vmatprep.subr.bf16.mxu0 0
        %7212 = vmatpush1.bf16.msra.mxu0 %v7181
        %7213 = vmatprep.subr.bf16.mxu0 0
        %7214 = vmatpush2.bf16.msra.mxu0 0
        %7215 = vmatprep.subr.bf16.mxu0 0
        %7216 = vmatpush2.bf16.msra.mxu0 0
        %7217 = vmatprep.subr.bf16.mxu0 0
        %7218 = vmatpush2.bf16.msra.mxu0 0
        %7219 = vmatprep.subr.bf16.mxu0 0
        %7220 = vmatpush2.bf16.msra.mxu0 0
        %7221 = vmatprep.subr.bf16.mxu0 0
        %7222 = vmatpush2.bf16.msra.mxu0 0
        %7223 = vmatprep.subr.bf16.mxu0 0
        %7224 = vmatpush2.bf16.msra.mxu0 0
        %7225 = vmatprep.subr.bf16.mxu0 0
        %7226 = vmatpush2.bf16.msra.mxu0 0
        %7227 = vmatprep.subr.bf16.mxu0 0
        %7228 = vmatpush2.bf16.msra.mxu0 0
        %7229 = vmatprep.mubr.bf16.mxu0 0
        %7230 = vmatmul.mubr.bf16.gmra.mxu0 %v7132
        %v7231 = vpop.f32.mrf.mxu0
        %v7232 = vadd.f32 0.0, %v7231
        %v7233 = vpop.f32.mrf.mxu0
        %v7234 = vpop.f32.mrf.mxu0
        %v7235 = vpop.f32.mrf.mxu0
        %7236 = vdwg.mxu0
        %v7237 = vadd.f32 %v7118, %v7232
        %v7238 = vld [vmem:[%s6627 + $0x2] sm:$0x3]
        %v7239 = vld [vmem:[%s6627 + $0x6] sm:$0x3]
        %v7242 = vcombine.low %v7238, %v7239
        %v7244 = vunpack.c.l.s4 1983009808
        %v7245 = vunpack.c.0.s8 %v7244
        %v7246 = vlaneseq
        %v7247 = vshrl.u32 %v7246, 7
        %v7248 = vsub.s32 %v7245, %v7247
        %v7249 = vrot.slane %v7242, %v7248
        %v7251 = vpack.c.bf16 %v7249, %v7249
        %v7252 = vld [vmem:[#allocation10 + $0x140] sm:$0xf]
        %v7253 = vld [vmem:[#allocation10 + $0x144] sm:$0xf]
        %v7254 = vld [vmem:[#allocation10 + $0x148] sm:$0xf]
        %v7255 = vld [vmem:[#allocation10 + $0x14c] sm:$0xf]
        %v7256 = vld [vmem:[#allocation10 + $0x150] sm:$0xf]
        %v7257 = vld [vmem:[#allocation10 + $0x154] sm:$0xf]
        %v7258 = vld [vmem:[#allocation10 + $0x158] sm:$0xf]
        %v7259 = vld [vmem:[#allocation10 + $0x15c] sm:$0xf]
        %v7260 = vld [vmem:[#allocation10 + $0x160] sm:$0xf]
        %v7261 = vld [vmem:[#allocation10 + $0x164] sm:$0xf]
        %v7262 = vld [vmem:[#allocation10 + $0x168] sm:$0xf]
        %v7263 = vld [vmem:[#allocation10 + $0x16c] sm:$0xf]
        %v7264 = vld [vmem:[#allocation10 + $0x170] sm:$0xf]
        %v7265 = vld [vmem:[#allocation10 + $0x174] sm:$0xf]
        %v7266 = vld [vmem:[#allocation10 + $0x178] sm:$0xf]
        %v7267 = vld [vmem:[#allocation10 + $0x17c] sm:$0xf]
        %v7284 = vunpack.c.l.b16 %v7252
        %v7285 = vunpack.c.l.b16 %v7253
        %v7286 = vunpack.c.l.b16 %v7254
        %v7287 = vunpack.c.l.b16 %v7255
        %v7288 = vunpack.c.l.b16 %v7256
        %v7289 = vunpack.c.l.b16 %v7257
        %v7290 = vunpack.c.l.b16 %v7258
        %v7291 = vunpack.c.l.b16 %v7259
        %v7292 = vunpack.c.l.b16 %v7260
        %v7293 = vunpack.c.l.b16 %v7261
        %v7294 = vunpack.c.l.b16 %v7262
        %v7295 = vunpack.c.l.b16 %v7263
        %v7296 = vunpack.c.l.b16 %v7264
        %v7297 = vunpack.c.l.b16 %v7265
        %v7298 = vunpack.c.l.b16 %v7266
        %v7299 = vunpack.c.l.b16 %v7267
        %v7300 = vpack.c.b16 %v7285, %v7284
        %v7301 = vpack.c.b16 %v7287, %v7286
        %v7302 = vpack.c.b16 %v7289, %v7288
        %v7303 = vpack.c.b16 %v7291, %v7290
        %v7304 = vpack.c.b16 %v7293, %v7292
        %v7305 = vpack.c.b16 %v7295, %v7294
        %v7306 = vpack.c.b16 %v7297, %v7296
        %v7307 = vpack.c.b16 %v7299, %v7298
        %7316 = vmatprep.subr.bf16.mxu0 0
        %7317 = vmatpush1.bf16.msra.mxu0 %v7307
        %7318 = vmatprep.subr.bf16.mxu0 0
        %7319 = vmatpush1.bf16.msra.mxu0 %v7306
        %7320 = vmatprep.subr.bf16.mxu0 0
        %7321 = vmatpush1.bf16.msra.mxu0 %v7305
        %7322 = vmatprep.subr.bf16.mxu0 0
        %7323 = vmatpush1.bf16.msra.mxu0 %v7304
        %7324 = vmatprep.subr.bf16.mxu0 0
        %7325 = vmatpush1.bf16.msra.mxu0 %v7303
        %7326 = vmatprep.subr.bf16.mxu0 0
        %7327 = vmatpush1.bf16.msra.mxu0 %v7302
        %7328 = vmatprep.subr.bf16.mxu0 0
        %7329 = vmatpush1.bf16.msra.mxu0 %v7301
        %7330 = vmatprep.subr.bf16.mxu0 0
        %7331 = vmatpush1.bf16.msra.mxu0 %v7300
        %7332 = vmatprep.subr.bf16.mxu0 0
        %7333 = vmatpush2.bf16.msra.mxu0 0
        %7334 = vmatprep.subr.bf16.mxu0 0
        %7335 = vmatpush2.bf16.msra.mxu0 0
        %7336 = vmatprep.subr.bf16.mxu0 0
        %7337 = vmatpush2.bf16.msra.mxu0 0
        %7338 = vmatprep.subr.bf16.mxu0 0
        %7339 = vmatpush2.bf16.msra.mxu0 0
        %7340 = vmatprep.subr.bf16.mxu0 0
        %7341 = vmatpush2.bf16.msra.mxu0 0
        %7342 = vmatprep.subr.bf16.mxu0 0
        %7343 = vmatpush2.bf16.msra.mxu0 0
        %7344 = vmatprep.subr.bf16.mxu0 0
        %7345 = vmatpush2.bf16.msra.mxu0 0
        %7346 = vmatprep.subr.bf16.mxu0 0
        %7347 = vmatpush2.bf16.msra.mxu0 0
        %7348 = vmatprep.mubr.bf16.mxu0 0
        %7349 = vmatmul.mubr.bf16.gmra.mxu0 %v7251
        %v7350 = vpop.f32.mrf.mxu0
        %v7351 = vadd.f32 0.0, %v7350
        %v7352 = vpop.f32.mrf.mxu0
        %v7353 = vpop.f32.mrf.mxu0
        %v7354 = vpop.f32.mrf.mxu0
        %7355 = vdwg.mxu0
        %v7356 = vadd.f32 %v7237, %v7351
        %s7357 = scalar_lea.vmem [#allocation4], 8
        %v7358 = vld [vmem:[%s7357] sm:$0x3]
        %v7359 = vld [vmem:[%s7357 + $0x4] sm:$0x3]
        %v7362 = vcombine.low %v7358, %v7359
        %v7364 = vunpack.c.l.s4 1983009808
        %v7365 = vunpack.c.0.s8 %v7364
        %v7366 = vlaneseq
        %v7367 = vshrl.u32 %v7366, 7
        %v7368 = vsub.s32 %v7365, %v7367
        %v7369 = vrot.slane %v7362, %v7368
        %v7371 = vpack.c.bf16 %v7369, %v7369
        %v7372 = vld [vmem:[#allocation10 + $0x180] sm:$0xf]
        %v7373 = vld [vmem:[#allocation10 + $0x184] sm:$0xf]
        %v7374 = vld [vmem:[#allocation10 + $0x188] sm:$0xf]
        %v7375 = vld [vmem:[#allocation10 + $0x18c] sm:$0xf]
        %v7376 = vld [vmem:[#allocation10 + $0x190] sm:$0xf]
        %v7377 = vld [vmem:[#allocation10 + $0x194] sm:$0xf]
        %v7378 = vld [vmem:[#allocation10 + $0x198] sm:$0xf]
        %v7379 = vld [vmem:[#allocation10 + $0x19c] sm:$0xf]
        %v7380 = vld [vmem:[#allocation10 + $0x1a0] sm:$0xf]
        %v7381 = vld [vmem:[#allocation10 + $0x1a4] sm:$0xf]
        %v7382 = vld [vmem:[#allocation10 + $0x1a8] sm:$0xf]
        %v7383 = vld [vmem:[#allocation10 + $0x1ac] sm:$0xf]
        %v7384 = vld [vmem:[#allocation10 + $0x1b0] sm:$0xf]
        %v7385 = vld [vmem:[#allocation10 + $0x1b4] sm:$0xf]
        %v7386 = vld [vmem:[#allocation10 + $0x1b8] sm:$0xf]
        %v7387 = vld [vmem:[#allocation10 + $0x1bc] sm:$0xf]
        %v7404 = vunpack.c.l.b16 %v7372
        %v7405 = vunpack.c.l.b16 %v7373
        %v7406 = vunpack.c.l.b16 %v7374
        %v7407 = vunpack.c.l.b16 %v7375
        %v7408 = vunpack.c.l.b16 %v7376
        %v7409 = vunpack.c.l.b16 %v7377
        %v7410 = vunpack.c.l.b16 %v7378
        %v7411 = vunpack.c.l.b16 %v7379
        %v7412 = vunpack.c.l.b16 %v7380
        %v7413 = vunpack.c.l.b16 %v7381
        %v7414 = vunpack.c.l.b16 %v7382
        %v7415 = vunpack.c.l.b16 %v7383
        %v7416 = vunpack.c.l.b16 %v7384
        %v7417 = vunpack.c.l.b16 %v7385
        %v7418 = vunpack.c.l.b16 %v7386
        %v7419 = vunpack.c.l.b16 %v7387
        %v7420 = vpack.c.b16 %v7405, %v7404
        %v7421 = vpack.c.b16 %v7407, %v7406
        %v7422 = vpack.c.b16 %v7409, %v7408
        %v7423 = vpack.c.b16 %v7411, %v7410
        %v7424 = vpack.c.b16 %v7413, %v7412
        %v7425 = vpack.c.b16 %v7415, %v7414
        %v7426 = vpack.c.b16 %v7417, %v7416
        %v7427 = vpack.c.b16 %v7419, %v7418
        %7436 = vmatprep.subr.bf16.mxu0 0
        %7437 = vmatpush1.bf16.msra.mxu0 %v7427
        %7438 = vmatprep.subr.bf16.mxu0 0
        %7439 = vmatpush1.bf16.msra.mxu0 %v7426
        %7440 = vmatprep.subr.bf16.mxu0 0
        %7441 = vmatpush1.bf16.msra.mxu0 %v7425
        %7442 = vmatprep.subr.bf16.mxu0 0
        %7443 = vmatpush1.bf16.msra.mxu0 %v7424
        %7444 = vmatprep.subr.bf16.mxu0 0
        %7445 = vmatpush1.bf16.msra.mxu0 %v7423
        %7446 = vmatprep.subr.bf16.mxu0 0
        %7447 = vmatpush1.bf16.msra.mxu0 %v7422
        %7448 = vmatprep.subr.bf16.mxu0 0
        %7449 = vmatpush1.bf16.msra.mxu0 %v7421
        %7450 = vmatprep.subr.bf16.mxu0 0
        %7451 = vmatpush1.bf16.msra.mxu0 %v7420
        %7452 = vmatprep.subr.bf16.mxu0 0
        %7453 = vmatpush2.bf16.msra.mxu0 0
        %7454 = vmatprep.subr.bf16.mxu0 0
        %7455 = vmatpush2.bf16.msra.mxu0 0
        %7456 = vmatprep.subr.bf16.mxu0 0
        %7457 = vmatpush2.bf16.msra.mxu0 0
        %7458 = vmatprep.subr.bf16.mxu0 0
        %7459 = vmatpush2.bf16.msra.mxu0 0
        %7460 = vmatprep.subr.bf16.mxu0 0
        %7461 = vmatpush2.bf16.msra.mxu0 0
        %7462 = vmatprep.subr.bf16.mxu0 0
        %7463 = vmatpush2.bf16.msra.mxu0 0
        %7464 = vmatprep.subr.bf16.mxu0 0
        %7465 = vmatpush2.bf16.msra.mxu0 0
        %7466 = vmatprep.subr.bf16.mxu0 0
        %7467 = vmatpush2.bf16.msra.mxu0 0
        %7468 = vmatprep.mubr.bf16.mxu0 0
        %7469 = vmatmul.mubr.bf16.gmra.mxu0 %v7371
        %v7470 = vpop.f32.mrf.mxu0
        %v7471 = vadd.f32 0.0, %v7470
        %v7472 = vpop.f32.mrf.mxu0
        %v7473 = vpop.f32.mrf.mxu0
        %v7474 = vpop.f32.mrf.mxu0
        %7475 = vdwg.mxu0
        %v7476 = vadd.f32 %v7356, %v7471
        %v7477 = vld [vmem:[%s7357 + $0x1] sm:$0x3]
        %v7478 = vld [vmem:[%s7357 + $0x5] sm:$0x3]
        %v7481 = vcombine.low %v7477, %v7478
        %v7483 = vunpack.c.l.s4 1983009808
        %v7484 = vunpack.c.0.s8 %v7483
        %v7485 = vlaneseq
        %v7486 = vshrl.u32 %v7485, 7
        %v7487 = vsub.s32 %v7484, %v7486
        %v7488 = vrot.slane %v7481, %v7487
        %v7490 = vpack.c.bf16 %v7488, %v7488
        %v7491 = vld [vmem:[#allocation10 + $0x1c0] sm:$0xf]
        %v7492 = vld [vmem:[#allocation10 + $0x1c4] sm:$0xf]
        %v7493 = vld [vmem:[#allocation10 + $0x1c8] sm:$0xf]
        %v7494 = vld [vmem:[#allocation10 + $0x1cc] sm:$0xf]
        %v7495 = vld [vmem:[#allocation10 + $0x1d0] sm:$0xf]
        %v7496 = vld [vmem:[#allocation10 + $0x1d4] sm:$0xf]
        %v7497 = vld [vmem:[#allocation10 + $0x1d8] sm:$0xf]
        %v7498 = vld [vmem:[#allocation10 + $0x1dc] sm:$0xf]
        %v7499 = vld [vmem:[#allocation10 + $0x1e0] sm:$0xf]
        %v7500 = vld [vmem:[#allocation10 + $0x1e4] sm:$0xf]
        %v7501 = vld [vmem:[#allocation10 + $0x1e8] sm:$0xf]
        %v7502 = vld [vmem:[#allocation10 + $0x1ec] sm:$0xf]
        %v7503 = vld [vmem:[#allocation10 + $0x1f0] sm:$0xf]
        %v7504 = vld [vmem:[#allocation10 + $0x1f4] sm:$0xf]
        %v7505 = vld [vmem:[#allocation10 + $0x1f8] sm:$0xf]
        %v7506 = vld [vmem:[#allocation10 + $0x1fc] sm:$0xf]
        %v7523 = vunpack.c.l.b16 %v7491
        %v7524 = vunpack.c.l.b16 %v7492
        %v7525 = vunpack.c.l.b16 %v7493
        %v7526 = vunpack.c.l.b16 %v7494
        %v7527 = vunpack.c.l.b16 %v7495
        %v7528 = vunpack.c.l.b16 %v7496
        %v7529 = vunpack.c.l.b16 %v7497
        %v7530 = vunpack.c.l.b16 %v7498
        %v7531 = vunpack.c.l.b16 %v7499
        %v7532 = vunpack.c.l.b16 %v7500
        %v7533 = vunpack.c.l.b16 %v7501
        %v7534 = vunpack.c.l.b16 %v7502
        %v7535 = vunpack.c.l.b16 %v7503
        %v7536 = vunpack.c.l.b16 %v7504
        %v7537 = vunpack.c.l.b16 %v7505
        %v7538 = vunpack.c.l.b16 %v7506
        %v7539 = vpack.c.b16 %v7524, %v7523
        %v7540 = vpack.c.b16 %v7526, %v7525
        %v7541 = vpack.c.b16 %v7528, %v7527
        %v7542 = vpack.c.b16 %v7530, %v7529
        %v7543 = vpack.c.b16 %v7532, %v7531
        %v7544 = vpack.c.b16 %v7534, %v7533
        %v7545 = vpack.c.b16 %v7536, %v7535
        %v7546 = vpack.c.b16 %v7538, %v7537
        %7555 = vmatprep.subr.bf16.mxu0 0
        %7556 = vmatpush1.bf16.msra.mxu0 %v7546
        %7557 = vmatprep.subr.bf16.mxu0 0
        %7558 = vmatpush1.bf16.msra.mxu0 %v7545
        %7559 = vmatprep.subr.bf16.mxu0 0
        %7560 = vmatpush1.bf16.msra.mxu0 %v7544
        %7561 = vmatprep.subr.bf16.mxu0 0
        %7562 = vmatpush1.bf16.msra.mxu0 %v7543
        %7563 = vmatprep.subr.bf16.mxu0 0
        %7564 = vmatpush1.bf16.msra.mxu0 %v7542
        %7565 = vmatprep.subr.bf16.mxu0 0
        %7566 = vmatpush1.bf16.msra.mxu0 %v7541
        %7567 = vmatprep.subr.bf16.mxu0 0
        %7568 = vmatpush1.bf16.msra.mxu0 %v7540
        %7569 = vmatprep.subr.bf16.mxu0 0
        %7570 = vmatpush1.bf16.msra.mxu0 %v7539
        %7571 = vmatprep.subr.bf16.mxu0 0
        %7572 = vmatpush2.bf16.msra.mxu0 0
        %7573 = vmatprep.subr.bf16.mxu0 0
        %7574 = vmatpush2.bf16.msra.mxu0 0
        %7575 = vmatprep.subr.bf16.mxu0 0
        %7576 = vmatpush2.bf16.msra.mxu0 0
        %7577 = vmatprep.subr.bf16.mxu0 0
        %7578 = vmatpush2.bf16.msra.mxu0 0
        %7579 = vmatprep.subr.bf16.mxu0 0
        %7580 = vmatpush2.bf16.msra.mxu0 0
        %7581 = vmatprep.subr.bf16.mxu0 0
        %7582 = vmatpush2.bf16.msra.mxu0 0
        %7583 = vmatprep.subr.bf16.mxu0 0
        %7584 = vmatpush2.bf16.msra.mxu0 0
        %7585 = vmatprep.subr.bf16.mxu0 0
        %7586 = vmatpush2.bf16.msra.mxu0 0
        %7587 = vmatprep.mubr.bf16.mxu0 0
        %7588 = vmatmul.mubr.bf16.gmra.mxu0 %v7490
        %v7589 = vpop.f32.mrf.mxu0
        %v7590 = vadd.f32 0.0, %v7589
        %v7591 = vpop.f32.mrf.mxu0
        %v7592 = vpop.f32.mrf.mxu0
        %v7593 = vpop.f32.mrf.mxu0
        %7594 = vdwg.mxu0
        %v7595 = vadd.f32 %v7476, %v7590
        %v7596 = vld [vmem:[%s7357 + $0x2] sm:$0x3]
        %v7597 = vld [vmem:[%s7357 + $0x6] sm:$0x3]
        %v7600 = vcombine.low %v7596, %v7597
        %v7602 = vunpack.c.l.s4 1983009808
        %v7603 = vunpack.c.0.s8 %v7602
        %v7604 = vlaneseq
        %v7605 = vshrl.u32 %v7604, 7
        %v7606 = vsub.s32 %v7603, %v7605
        %v7607 = vrot.slane %v7600, %v7606
        %v7609 = vpack.c.bf16 %v7607, %v7607
        %v7610 = vld [vmem:[#allocation10 + $0x200] sm:$0xf]
        %v7611 = vld [vmem:[#allocation10 + $0x204] sm:$0xf]
        %v7612 = vld [vmem:[#allocation10 + $0x208] sm:$0xf]
        %v7613 = vld [vmem:[#allocation10 + $0x20c] sm:$0xf]
        %v7614 = vld [vmem:[#allocation10 + $0x210] sm:$0xf]
        %v7615 = vld [vmem:[#allocation10 + $0x214] sm:$0xf]
        %v7616 = vld [vmem:[#allocation10 + $0x218] sm:$0xf]
        %v7617 = vld [vmem:[#allocation10 + $0x21c] sm:$0xf]
        %v7618 = vld [vmem:[#allocation10 + $0x220] sm:$0xf]
        %v7619 = vld [vmem:[#allocation10 + $0x224] sm:$0xf]
        %v7620 = vld [vmem:[#allocation10 + $0x228] sm:$0xf]
        %v7621 = vld [vmem:[#allocation10 + $0x22c] sm:$0xf]
        %v7622 = vld [vmem:[#allocation10 + $0x230] sm:$0xf]
        %v7623 = vld [vmem:[#allocation10 + $0x234] sm:$0xf]
        %v7624 = vld [vmem:[#allocation10 + $0x238] sm:$0xf]
        %v7625 = vld [vmem:[#allocation10 + $0x23c] sm:$0xf]
        %v7642 = vunpack.c.l.b16 %v7610
        %v7643 = vunpack.c.l.b16 %v7611
        %v7644 = vunpack.c.l.b16 %v7612
        %v7645 = vunpack.c.l.b16 %v7613
        %v7646 = vunpack.c.l.b16 %v7614
        %v7647 = vunpack.c.l.b16 %v7615
        %v7648 = vunpack.c.l.b16 %v7616
        %v7649 = vunpack.c.l.b16 %v7617
        %v7650 = vunpack.c.l.b16 %v7618
        %v7651 = vunpack.c.l.b16 %v7619
        %v7652 = vunpack.c.l.b16 %v7620
        %v7653 = vunpack.c.l.b16 %v7621
        %v7654 = vunpack.c.l.b16 %v7622
        %v7655 = vunpack.c.l.b16 %v7623
        %v7656 = vunpack.c.l.b16 %v7624
        %v7657 = vunpack.c.l.b16 %v7625
        %v7658 = vpack.c.b16 %v7643, %v7642
        %v7659 = vpack.c.b16 %v7645, %v7644
        %v7660 = vpack.c.b16 %v7647, %v7646
        %v7661 = vpack.c.b16 %v7649, %v7648
        %v7662 = vpack.c.b16 %v7651, %v7650
        %v7663 = vpack.c.b16 %v7653, %v7652
        %v7664 = vpack.c.b16 %v7655, %v7654
        %v7665 = vpack.c.b16 %v7657, %v7656
        %7674 = vmatprep.subr.bf16.mxu0 0
        %7675 = vmatpush1.bf16.msra.mxu0 %v7665
        %7676 = vmatprep.subr.bf16.mxu0 0
        %7677 = vmatpush1.bf16.msra.mxu0 %v7664
        %7678 = vmatprep.subr.bf16.mxu0 0
        %7679 = vmatpush1.bf16.msra.mxu0 %v7663
        %7680 = vmatprep.subr.bf16.mxu0 0
        %7681 = vmatpush1.bf16.msra.mxu0 %v7662
        %7682 = vmatprep.subr.bf16.mxu0 0
        %7683 = vmatpush1.bf16.msra.mxu0 %v7661
        %7684 = vmatprep.subr.bf16.mxu0 0
        %7685 = vmatpush1.bf16.msra.mxu0 %v7660
        %7686 = vmatprep.subr.bf16.mxu0 0
        %7687 = vmatpush1.bf16.msra.mxu0 %v7659
        %7688 = vmatprep.subr.bf16.mxu0 0
        %7689 = vmatpush1.bf16.msra.mxu0 %v7658
        %7690 = vmatprep.subr.bf16.mxu0 0
        %7691 = vmatpush2.bf16.msra.mxu0 0
        %7692 = vmatprep.subr.bf16.mxu0 0
        %7693 = vmatpush2.bf16.msra.mxu0 0
        %7694 = vmatprep.subr.bf16.mxu0 0
        %7695 = vmatpush2.bf16.msra.mxu0 0
        %7696 = vmatprep.subr.bf16.mxu0 0
        %7697 = vmatpush2.bf16.msra.mxu0 0
        %7698 = vmatprep.subr.bf16.mxu0 0
        %7699 = vmatpush2.bf16.msra.mxu0 0
        %7700 = vmatprep.subr.bf16.mxu0 0
        %7701 = vmatpush2.bf16.msra.mxu0 0
        %7702 = vmatprep.subr.bf16.mxu0 0
        %7703 = vmatpush2.bf16.msra.mxu0 0
        %7704 = vmatprep.subr.bf16.mxu0 0
        %7705 = vmatpush2.bf16.msra.mxu0 0
        %7706 = vmatprep.mubr.bf16.mxu0 0
        %7707 = vmatmul.mubr.bf16.gmra.mxu0 %v7609
        %v7708 = vpop.f32.mrf.mxu0
        %v7709 = vadd.f32 0.0, %v7708
        %v7710 = vpop.f32.mrf.mxu0
        %v7711 = vpop.f32.mrf.mxu0
        %v7712 = vpop.f32.mrf.mxu0
        %7713 = vdwg.mxu0
        %v7714 = vadd.f32 %v7595, %v7709
        %v7715 = vld [vmem:[%s10] sm:$0x1]
        %v7717 = vlaneseq
        %v7718 = vshrl.u32 %v7717, 7
        %v7719 = vsub.s32 0, %v7718
        %v7720 = vrot.slane %v7715, %v7719
        %v7722 = vadd.f32 %v7714, %v7720
        %v7723 = vmax.f32 %v7722, 0.0
        %v7725 = vrot.slane %v7723, 1
        %v7727 = vrot.slane %v7723, 2
        %v7729 = vrot.slane %v7723, 3
        %v7731 = vcombine.low %v7723, %v7725
        %v7732 = vcombine.low %v7727, %v7729
        %v7734 = vunpack.c.l.s4 1966171168
        %v7735 = vunpack.c.0.s8 %v7734
        %v7736 = vlaneseq
        %v7737 = vshrl.u32 %v7736, 7
        %v7738 = vsub.s32 %v7735, %v7737
        %v7739 = vrot.slane %v7731, %v7738
        %v7741 = vunpack.c.l.s4 1966171168
        %v7742 = vunpack.c.0.s8 %v7741
        %v7743 = vlaneseq
        %v7744 = vshrl.u32 %v7743, 7
        %v7745 = vsub.s32 %v7742, %v7744
        %v7746 = vrot.slane %v7732, %v7745
        %v7747 = vcombine.low %v7739, %v7746
        %v7749 = vunpack.c.l.s4 1966171168
        %v7750 = vunpack.c.0.s8 %v7749
        %v7751 = vlaneseq
        %v7752 = vshrl.u32 %v7751, 7
        %v7753 = vsub.s32 %v7750, %v7752
        %v7754 = vrot.slane %v7747, %v7753
        %v7756 = vlaneseq
        %vm7757 = vcmp.ge.s32.totalorder %v7756, 0
        %vm7758 = vcmp.lt.s32.totalorder %v7756, 512
        %vm7759 = vmand %vm7757, %vm7758
        %7760 = vst.msk [vmem:[%s766] sm:$0xf] %vm7759, %v7754
        %v7761 = vpack.c.bf16 %v7723, %v7723
        %v7762 = vpack.c.bf16 %v7725, %v7725
        %v7763 = vpack.c.bf16 %v7727, %v7727
        %v7764 = vpack.c.bf16 %v7729, %v7729
        %v7765 = vld [vmem:[%s14] sm:$0xff]
        %v7766 = vld [vmem:[%s14 + $0x8] sm:$0xff]
        %v7767 = vld [vmem:[%s14 + $0x10] sm:$0xff]
        %v7768 = vld [vmem:[%s14 + $0x18] sm:$0xff]
        %v7769 = vld [vmem:[%s14 + $0x20] sm:$0xff]
        %v7770 = vld [vmem:[%s14 + $0x28] sm:$0xff]
        %v7771 = vld [vmem:[%s14 + $0x30] sm:$0xff]
        %v7772 = vld [vmem:[%s14 + $0x38] sm:$0xff]
        %v7773 = vld [vmem:[%s14 + $0x40] sm:$0xff]
        %v7774 = vld [vmem:[%s14 + $0x48] sm:$0xff]
        %v7775 = vld [vmem:[%s14 + $0x50] sm:$0xff]
        %v7776 = vld [vmem:[%s14 + $0x58] sm:$0xff]
        %v7777 = vld [vmem:[%s14 + $0x60] sm:$0xff]
        %v7778 = vld [vmem:[%s14 + $0x68] sm:$0xff]
        %v7779 = vld [vmem:[%s14 + $0x70] sm:$0xff]
        %v7780 = vld [vmem:[%s14 + $0x78] sm:$0xff]
        %v7781 = vld [vmem:[%s14 + $0x80] sm:$0xff]
        %v7782 = vld [vmem:[%s14 + $0x88] sm:$0xff]
        %v7783 = vld [vmem:[%s14 + $0x90] sm:$0xff]
        %v7784 = vld [vmem:[%s14 + $0x98] sm:$0xff]
        %v7785 = vld [vmem:[%s14 + $0xa0] sm:$0xff]
        %v7786 = vld [vmem:[%s14 + $0xa8] sm:$0xff]
        %v7787 = vld [vmem:[%s14 + $0xb0] sm:$0xff]
        %v7788 = vld [vmem:[%s14 + $0xb8] sm:$0xff]
        %v7789 = vld [vmem:[%s14 + $0xc0] sm:$0xff]
        %v7790 = vld [vmem:[%s14 + $0xc8] sm:$0xff]
        %v7791 = vld [vmem:[%s14 + $0xd0] sm:$0xff]
        %v7792 = vld [vmem:[%s14 + $0xd8] sm:$0xff]
        %v7793 = vld [vmem:[%s14 + $0xe0] sm:$0xff]
        %v7794 = vld [vmem:[%s14 + $0xe8] sm:$0xff]
        %v7795 = vld [vmem:[%s14 + $0xf0] sm:$0xff]
        %v7796 = vld [vmem:[%s14 + $0xf8] sm:$0xff]
        %v7797 = vld [vmem:[%s14 + $0x100] sm:$0xff]
        %v7798 = vld [vmem:[%s14 + $0x108] sm:$0xff]
        %v7799 = vld [vmem:[%s14 + $0x110] sm:$0xff]
        %v7800 = vld [vmem:[%s14 + $0x118] sm:$0xff]
        %v7801 = vld [vmem:[%s14 + $0x120] sm:$0xff]
        %v7802 = vld [vmem:[%s14 + $0x128] sm:$0xff]
        %v7803 = vld [vmem:[%s14 + $0x130] sm:$0xff]
        %v7804 = vld [vmem:[%s14 + $0x138] sm:$0xff]
        %v7805 = vld [vmem:[%s14 + $0x140] sm:$0xff]
        %v7806 = vld [vmem:[%s14 + $0x148] sm:$0xff]
        %v7807 = vld [vmem:[%s14 + $0x150] sm:$0xff]
        %v7808 = vld [vmem:[%s14 + $0x158] sm:$0xff]
        %v7809 = vld [vmem:[%s14 + $0x160] sm:$0xff]
        %v7810 = vld [vmem:[%s14 + $0x168] sm:$0xff]
        %v7811 = vld [vmem:[%s14 + $0x170] sm:$0xff]
        %v7812 = vld [vmem:[%s14 + $0x178] sm:$0xff]
        %v7813 = vld [vmem:[%s14 + $0x180] sm:$0xff]
        %v7814 = vld [vmem:[%s14 + $0x188] sm:$0xff]
        %v7815 = vld [vmem:[%s14 + $0x190] sm:$0xff]
        %v7816 = vld [vmem:[%s14 + $0x198] sm:$0xff]
        %v7817 = vld [vmem:[%s14 + $0x1a0] sm:$0xff]
        %v7818 = vld [vmem:[%s14 + $0x1a8] sm:$0xff]
        %v7819 = vld [vmem:[%s14 + $0x1b0] sm:$0xff]
        %v7820 = vld [vmem:[%s14 + $0x1b8] sm:$0xff]
        %v7821 = vld [vmem:[%s14 + $0x1c0] sm:$0xff]
        %v7822 = vld [vmem:[%s14 + $0x1c8] sm:$0xff]
        %v7823 = vld [vmem:[%s14 + $0x1d0] sm:$0xff]
        %v7824 = vld [vmem:[%s14 + $0x1d8] sm:$0xff]
        %v7825 = vld [vmem:[%s14 + $0x1e0] sm:$0xff]
        %v7826 = vld [vmem:[%s14 + $0x1e8] sm:$0xff]
        %v7827 = vld [vmem:[%s14 + $0x1f0] sm:$0xff]
        %v7828 = vld [vmem:[%s14 + $0x1f8] sm:$0xff]
        %v7829 = vld [vmem:[%s14 + $0x200] sm:$0xff]
        %v7830 = vld [vmem:[%s14 + $0x208] sm:$0xff]
        %v7831 = vld [vmem:[%s14 + $0x210] sm:$0xff]
        %v7832 = vld [vmem:[%s14 + $0x218] sm:$0xff]
        %v7833 = vld [vmem:[%s14 + $0x220] sm:$0xff]
        %v7834 = vld [vmem:[%s14 + $0x228] sm:$0xff]
        %v7835 = vld [vmem:[%s14 + $0x230] sm:$0xff]
        %v7836 = vld [vmem:[%s14 + $0x238] sm:$0xff]
        %v7837 = vld [vmem:[%s14 + $0x240] sm:$0xff]
        %v7838 = vld [vmem:[%s14 + $0x248] sm:$0xff]
        %v7839 = vld [vmem:[%s14 + $0x250] sm:$0xff]
        %v7840 = vld [vmem:[%s14 + $0x258] sm:$0xff]
        %v7841 = vld [vmem:[%s14 + $0x260] sm:$0xff]
        %v7842 = vld [vmem:[%s14 + $0x268] sm:$0xff]
        %v7843 = vld [vmem:[%s14 + $0x270] sm:$0xff]
        %v7844 = vld [vmem:[%s14 + $0x278] sm:$0xff]
        %v7845 = vld [vmem:[%s14 + $0x280] sm:$0xff]
        %v7846 = vld [vmem:[%s14 + $0x288] sm:$0xff]
        %v7847 = vld [vmem:[%s14 + $0x290] sm:$0xff]
        %v7848 = vld [vmem:[%s14 + $0x298] sm:$0xff]
        %v7849 = vld [vmem:[%s14 + $0x2a0] sm:$0xff]
        %v7850 = vld [vmem:[%s14 + $0x2a8] sm:$0xff]
        %v7851 = vld [vmem:[%s14 + $0x2b0] sm:$0xff]
        %v7852 = vld [vmem:[%s14 + $0x2b8] sm:$0xff]
        %v7853 = vld [vmem:[%s14 + $0x2c0] sm:$0xff]
        %v7854 = vld [vmem:[%s14 + $0x2c8] sm:$0xff]
        %v7855 = vld [vmem:[%s14 + $0x2d0] sm:$0xff]
        %v7856 = vld [vmem:[%s14 + $0x2d8] sm:$0xff]
        %v7857 = vld [vmem:[%s14 + $0x2e0] sm:$0xff]
        %v7858 = vld [vmem:[%s14 + $0x2e8] sm:$0xff]
        %v7859 = vld [vmem:[%s14 + $0x2f0] sm:$0xff]
        %v7860 = vld [vmem:[%s14 + $0x2f8] sm:$0xff]
        %v7861 = vld [vmem:[%s14 + $0x300] sm:$0xff]
        %v7862 = vld [vmem:[%s14 + $0x308] sm:$0xff]
        %v7863 = vld [vmem:[%s14 + $0x310] sm:$0xff]
        %v7864 = vld [vmem:[%s14 + $0x318] sm:$0xff]
        %v7865 = vld [vmem:[%s14 + $0x320] sm:$0xff]
        %v7866 = vld [vmem:[%s14 + $0x328] sm:$0xff]
        %v7867 = vld [vmem:[%s14 + $0x330] sm:$0xff]
        %v7868 = vld [vmem:[%s14 + $0x338] sm:$0xff]
        %v7869 = vld [vmem:[%s14 + $0x340] sm:$0xff]
        %v7870 = vld [vmem:[%s14 + $0x348] sm:$0xff]
        %v7871 = vld [vmem:[%s14 + $0x350] sm:$0xff]
        %v7872 = vld [vmem:[%s14 + $0x358] sm:$0xff]
        %v7873 = vld [vmem:[%s14 + $0x360] sm:$0xff]
        %v7874 = vld [vmem:[%s14 + $0x368] sm:$0xff]
        %v7875 = vld [vmem:[%s14 + $0x370] sm:$0xff]
        %v7876 = vld [vmem:[%s14 + $0x378] sm:$0xff]
        %v7877 = vld [vmem:[%s14 + $0x380] sm:$0xff]
        %v7878 = vld [vmem:[%s14 + $0x388] sm:$0xff]
        %v7879 = vld [vmem:[%s14 + $0x390] sm:$0xff]
        %v7880 = vld [vmem:[%s14 + $0x398] sm:$0xff]
        %v7881 = vld [vmem:[%s14 + $0x3a0] sm:$0xff]
        %v7882 = vld [vmem:[%s14 + $0x3a8] sm:$0xff]
        %v7883 = vld [vmem:[%s14 + $0x3b0] sm:$0xff]
        %v7884 = vld [vmem:[%s14 + $0x3b8] sm:$0xff]
        %v7885 = vld [vmem:[%s14 + $0x3c0] sm:$0xff]
        %v7886 = vld [vmem:[%s14 + $0x3c8] sm:$0xff]
        %v7887 = vld [vmem:[%s14 + $0x3d0] sm:$0xff]
        %v7888 = vld [vmem:[%s14 + $0x3d8] sm:$0xff]
        %v7889 = vld [vmem:[%s14 + $0x3e0] sm:$0xff]
        %v7890 = vld [vmem:[%s14 + $0x3e8] sm:$0xff]
        %v7891 = vld [vmem:[%s14 + $0x3f0] sm:$0xff]
        %v7892 = vld [vmem:[%s14 + $0x3f8] sm:$0xff]
        %v7893 = vld [vmem:[%s15] sm:$0xf]
        %v8022 = vunpack.c.l.b16 %v7765
        %v8023 = vunpack.c.h.b16 %v7765
        %v8024 = vunpack.c.l.b16 %v7766
        %v8025 = vunpack.c.h.b16 %v7766
        %v8026 = vunpack.c.l.b16 %v7767
        %v8027 = vunpack.c.h.b16 %v7767
        %v8028 = vunpack.c.l.b16 %v7768
        %v8029 = vunpack.c.h.b16 %v7768
        %v8030 = vunpack.c.l.b16 %v7769
        %v8031 = vunpack.c.h.b16 %v7769
        %v8032 = vunpack.c.l.b16 %v7770
        %v8033 = vunpack.c.h.b16 %v7770
        %v8034 = vunpack.c.l.b16 %v7771
        %v8035 = vunpack.c.h.b16 %v7771
        %v8036 = vunpack.c.l.b16 %v7772
        %v8037 = vunpack.c.h.b16 %v7772
        %v8038 = vunpack.c.l.b16 %v7773
        %v8039 = vunpack.c.h.b16 %v7773
        %v8040 = vunpack.c.l.b16 %v7774
        %v8041 = vunpack.c.h.b16 %v7774
        %v8042 = vunpack.c.l.b16 %v7775
        %v8043 = vunpack.c.h.b16 %v7775
        %v8044 = vunpack.c.l.b16 %v7776
        %v8045 = vunpack.c.h.b16 %v7776
        %v8046 = vunpack.c.l.b16 %v7777
        %v8047 = vunpack.c.h.b16 %v7777
        %v8048 = vunpack.c.l.b16 %v7778
        %v8049 = vunpack.c.h.b16 %v7778
        %v8050 = vunpack.c.l.b16 %v7779
        %v8051 = vunpack.c.h.b16 %v7779
        %v8052 = vunpack.c.l.b16 %v7780
        %v8053 = vunpack.c.h.b16 %v7780
        %v8054 = vunpack.c.l.b16 %v7781
        %v8055 = vunpack.c.h.b16 %v7781
        %v8056 = vunpack.c.l.b16 %v7782
        %v8057 = vunpack.c.h.b16 %v7782
        %v8058 = vunpack.c.l.b16 %v7783
        %v8059 = vunpack.c.h.b16 %v7783
        %v8060 = vunpack.c.l.b16 %v7784
        %v8061 = vunpack.c.h.b16 %v7784
        %v8062 = vunpack.c.l.b16 %v7785
        %v8063 = vunpack.c.h.b16 %v7785
        %v8064 = vunpack.c.l.b16 %v7786
        %v8065 = vunpack.c.h.b16 %v7786
        %v8066 = vunpack.c.l.b16 %v7787
        %v8067 = vunpack.c.h.b16 %v7787
        %v8068 = vunpack.c.l.b16 %v7788
        %v8069 = vunpack.c.h.b16 %v7788
        %v8070 = vunpack.c.l.b16 %v7789
        %v8071 = vunpack.c.h.b16 %v7789
        %v8072 = vunpack.c.l.b16 %v7790
        %v8073 = vunpack.c.h.b16 %v7790
        %v8074 = vunpack.c.l.b16 %v7791
        %v8075 = vunpack.c.h.b16 %v7791
        %v8076 = vunpack.c.l.b16 %v7792
        %v8077 = vunpack.c.h.b16 %v7792
        %v8078 = vunpack.c.l.b16 %v7793
        %v8079 = vunpack.c.h.b16 %v7793
        %v8080 = vunpack.c.l.b16 %v7794
        %v8081 = vunpack.c.h.b16 %v7794
        %v8082 = vunpack.c.l.b16 %v7795
        %v8083 = vunpack.c.h.b16 %v7795
        %v8084 = vunpack.c.l.b16 %v7796
        %v8085 = vunpack.c.h.b16 %v7796
        %v8086 = vunpack.c.l.b16 %v7797
        %v8087 = vunpack.c.h.b16 %v7797
        %v8088 = vunpack.c.l.b16 %v7798
        %v8089 = vunpack.c.h.b16 %v7798
        %v8090 = vunpack.c.l.b16 %v7799
        %v8091 = vunpack.c.h.b16 %v7799
        %v8092 = vunpack.c.l.b16 %v7800
        %v8093 = vunpack.c.h.b16 %v7800
        %v8094 = vunpack.c.l.b16 %v7801
        %v8095 = vunpack.c.h.b16 %v7801
        %v8096 = vunpack.c.l.b16 %v7802
        %v8097 = vunpack.c.h.b16 %v7802
        %v8098 = vunpack.c.l.b16 %v7803
        %v8099 = vunpack.c.h.b16 %v7803
        %v8100 = vunpack.c.l.b16 %v7804
        %v8101 = vunpack.c.h.b16 %v7804
        %v8102 = vunpack.c.l.b16 %v7805
        %v8103 = vunpack.c.h.b16 %v7805
        %v8104 = vunpack.c.l.b16 %v7806
        %v8105 = vunpack.c.h.b16 %v7806
        %v8106 = vunpack.c.l.b16 %v7807
        %v8107 = vunpack.c.h.b16 %v7807
        %v8108 = vunpack.c.l.b16 %v7808
        %v8109 = vunpack.c.h.b16 %v7808
        %v8110 = vunpack.c.l.b16 %v7809
        %v8111 = vunpack.c.h.b16 %v7809
        %v8112 = vunpack.c.l.b16 %v7810
        %v8113 = vunpack.c.h.b16 %v7810
        %v8114 = vunpack.c.l.b16 %v7811
        %v8115 = vunpack.c.h.b16 %v7811
        %v8116 = vunpack.c.l.b16 %v7812
        %v8117 = vunpack.c.h.b16 %v7812
        %v8118 = vunpack.c.l.b16 %v7813
        %v8119 = vunpack.c.h.b16 %v7813
        %v8120 = vunpack.c.l.b16 %v7814
        %v8121 = vunpack.c.h.b16 %v7814
        %v8122 = vunpack.c.l.b16 %v7815
        %v8123 = vunpack.c.h.b16 %v7815
        %v8124 = vunpack.c.l.b16 %v7816
        %v8125 = vunpack.c.h.b16 %v7816
        %v8126 = vunpack.c.l.b16 %v7817
        %v8127 = vunpack.c.h.b16 %v7817
        %v8128 = vunpack.c.l.b16 %v7818
        %v8129 = vunpack.c.h.b16 %v7818
        %v8130 = vunpack.c.l.b16 %v7819
        %v8131 = vunpack.c.h.b16 %v7819
        %v8132 = vunpack.c.l.b16 %v7820
        %v8133 = vunpack.c.h.b16 %v7820
        %v8134 = vunpack.c.l.b16 %v7821
        %v8135 = vunpack.c.h.b16 %v7821
        %v8136 = vunpack.c.l.b16 %v7822
        %v8137 = vunpack.c.h.b16 %v7822
        %v8138 = vunpack.c.l.b16 %v7823
        %v8139 = vunpack.c.h.b16 %v7823
        %v8140 = vunpack.c.l.b16 %v7824
        %v8141 = vunpack.c.h.b16 %v7824
        %v8142 = vunpack.c.l.b16 %v7825
        %v8143 = vunpack.c.h.b16 %v7825
        %v8144 = vunpack.c.l.b16 %v7826
        %v8145 = vunpack.c.h.b16 %v7826
        %v8146 = vunpack.c.l.b16 %v7827
        %v8147 = vunpack.c.h.b16 %v7827
        %v8148 = vunpack.c.l.b16 %v7828
        %v8149 = vunpack.c.h.b16 %v7828
        %v8150 = vunpack.c.l.b16 %v7829
        %v8151 = vunpack.c.h.b16 %v7829
        %v8152 = vunpack.c.l.b16 %v7830
        %v8153 = vunpack.c.h.b16 %v7830
        %v8154 = vunpack.c.l.b16 %v7831
        %v8155 = vunpack.c.h.b16 %v7831
        %v8156 = vunpack.c.l.b16 %v7832
        %v8157 = vunpack.c.h.b16 %v7832
        %v8158 = vunpack.c.l.b16 %v7833
        %v8159 = vunpack.c.h.b16 %v7833
        %v8160 = vunpack.c.l.b16 %v7834
        %v8161 = vunpack.c.h.b16 %v7834
        %v8162 = vunpack.c.l.b16 %v7835
        %v8163 = vunpack.c.h.b16 %v7835
        %v8164 = vunpack.c.l.b16 %v7836
        %v8165 = vunpack.c.h.b16 %v7836
        %v8166 = vunpack.c.l.b16 %v7837
        %v8167 = vunpack.c.h.b16 %v7837
        %v8168 = vunpack.c.l.b16 %v7838
        %v8169 = vunpack.c.h.b16 %v7838
        %v8170 = vunpack.c.l.b16 %v7839
        %v8171 = vunpack.c.h.b16 %v7839
        %v8172 = vunpack.c.l.b16 %v7840
        %v8173 = vunpack.c.h.b16 %v7840
        %v8174 = vunpack.c.l.b16 %v7841
        %v8175 = vunpack.c.h.b16 %v7841
        %v8176 = vunpack.c.l.b16 %v7842
        %v8177 = vunpack.c.h.b16 %v7842
        %v8178 = vunpack.c.l.b16 %v7843
        %v8179 = vunpack.c.h.b16 %v7843
        %v8180 = vunpack.c.l.b16 %v7844
        %v8181 = vunpack.c.h.b16 %v7844
        %v8182 = vunpack.c.l.b16 %v7845
        %v8183 = vunpack.c.h.b16 %v7845
        %v8184 = vunpack.c.l.b16 %v7846
        %v8185 = vunpack.c.h.b16 %v7846
        %v8186 = vunpack.c.l.b16 %v7847
        %v8187 = vunpack.c.h.b16 %v7847
        %v8188 = vunpack.c.l.b16 %v7848
        %v8189 = vunpack.c.h.b16 %v7848
        %v8190 = vunpack.c.l.b16 %v7849
        %v8191 = vunpack.c.h.b16 %v7849
        %v8192 = vunpack.c.l.b16 %v7850
        %v8193 = vunpack.c.h.b16 %v7850
        %v8194 = vunpack.c.l.b16 %v7851
        %v8195 = vunpack.c.h.b16 %v7851
        %v8196 = vunpack.c.l.b16 %v7852
        %v8197 = vunpack.c.h.b16 %v7852
        %v8198 = vunpack.c.l.b16 %v7853
        %v8199 = vunpack.c.h.b16 %v7853
        %v8200 = vunpack.c.l.b16 %v7854
        %v8201 = vunpack.c.h.b16 %v7854
        %v8202 = vunpack.c.l.b16 %v7855
        %v8203 = vunpack.c.h.b16 %v7855
        %v8204 = vunpack.c.l.b16 %v7856
        %v8205 = vunpack.c.h.b16 %v7856
        %v8206 = vunpack.c.l.b16 %v7857
        %v8207 = vunpack.c.h.b16 %v7857
        %v8208 = vunpack.c.l.b16 %v7858
        %v8209 = vunpack.c.h.b16 %v7858
        %v8210 = vunpack.c.l.b16 %v7859
        %v8211 = vunpack.c.h.b16 %v7859
        %v8212 = vunpack.c.l.b16 %v7860
        %v8213 = vunpack.c.h.b16 %v7860
        %v8214 = vunpack.c.l.b16 %v7861
        %v8215 = vunpack.c.h.b16 %v7861
        %v8216 = vunpack.c.l.b16 %v7862
        %v8217 = vunpack.c.h.b16 %v7862
        %v8218 = vunpack.c.l.b16 %v7863
        %v8219 = vunpack.c.h.b16 %v7863
        %v8220 = vunpack.c.l.b16 %v7864
        %v8221 = vunpack.c.h.b16 %v7864
        %v8222 = vunpack.c.l.b16 %v7865
        %v8223 = vunpack.c.h.b16 %v7865
        %v8224 = vunpack.c.l.b16 %v7866
        %v8225 = vunpack.c.h.b16 %v7866
        %v8226 = vunpack.c.l.b16 %v7867
        %v8227 = vunpack.c.h.b16 %v7867
        %v8228 = vunpack.c.l.b16 %v7868
        %v8229 = vunpack.c.h.b16 %v7868
        %v8230 = vunpack.c.l.b16 %v7869
        %v8231 = vunpack.c.h.b16 %v7869
        %v8232 = vunpack.c.l.b16 %v7870
        %v8233 = vunpack.c.h.b16 %v7870
        %v8234 = vunpack.c.l.b16 %v7871
        %v8235 = vunpack.c.h.b16 %v7871
        %v8236 = vunpack.c.l.b16 %v7872
        %v8237 = vunpack.c.h.b16 %v7872
        %v8238 = vunpack.c.l.b16 %v7873
        %v8239 = vunpack.c.h.b16 %v7873
        %v8240 = vunpack.c.l.b16 %v7874
        %v8241 = vunpack.c.h.b16 %v7874
        %v8242 = vunpack.c.l.b16 %v7875
        %v8243 = vunpack.c.h.b16 %v7875
        %v8244 = vunpack.c.l.b16 %v7876
        %v8245 = vunpack.c.h.b16 %v7876
        %v8246 = vunpack.c.l.b16 %v7877
        %v8247 = vunpack.c.h.b16 %v7877
        %v8248 = vunpack.c.l.b16 %v7878
        %v8249 = vunpack.c.h.b16 %v7878
        %v8250 = vunpack.c.l.b16 %v7879
        %v8251 = vunpack.c.h.b16 %v7879
        %v8252 = vunpack.c.l.b16 %v7880
        %v8253 = vunpack.c.h.b16 %v7880
        %v8254 = vunpack.c.l.b16 %v7881
        %v8255 = vunpack.c.h.b16 %v7881
        %v8256 = vunpack.c.l.b16 %v7882
        %v8257 = vunpack.c.h.b16 %v7882
        %v8258 = vunpack.c.l.b16 %v7883
        %v8259 = vunpack.c.h.b16 %v7883
        %v8260 = vunpack.c.l.b16 %v7884
        %v8261 = vunpack.c.h.b16 %v7884
        %v8262 = vunpack.c.l.b16 %v7885
        %v8263 = vunpack.c.h.b16 %v7885
        %v8264 = vunpack.c.l.b16 %v7886
        %v8265 = vunpack.c.h.b16 %v7886
        %v8266 = vunpack.c.l.b16 %v7887
        %v8267 = vunpack.c.h.b16 %v7887
        %v8268 = vunpack.c.l.b16 %v7888
        %v8269 = vunpack.c.h.b16 %v7888
        %v8270 = vunpack.c.l.b16 %v7889
        %v8271 = vunpack.c.h.b16 %v7889
        %v8272 = vunpack.c.l.b16 %v7890
        %v8273 = vunpack.c.h.b16 %v7890
        %v8274 = vunpack.c.l.b16 %v7891
        %v8275 = vunpack.c.h.b16 %v7891
        %v8276 = vunpack.c.l.b16 %v7892
        %v8277 = vunpack.c.h.b16 %v7892
        %v8278 = vpack.c.b16 %v8026, %v8022
        %v8279 = vpack.c.b16 %v8027, %v8023
        %v8280 = vpack.c.b16 %v8028, %v8024
        %v8281 = vpack.c.b16 %v8029, %v8025
        %v8282 = vpack.c.b16 %v8034, %v8030
        %v8283 = vpack.c.b16 %v8035, %v8031
        %v8284 = vpack.c.b16 %v8036, %v8032
        %v8285 = vpack.c.b16 %v8037, %v8033
        %v8286 = vpack.c.b16 %v8042, %v8038
        %v8287 = vpack.c.b16 %v8043, %v8039
        %v8288 = vpack.c.b16 %v8044, %v8040
        %v8289 = vpack.c.b16 %v8045, %v8041
        %v8290 = vpack.c.b16 %v8050, %v8046
        %v8291 = vpack.c.b16 %v8051, %v8047
        %v8292 = vpack.c.b16 %v8052, %v8048
        %v8293 = vpack.c.b16 %v8053, %v8049
        %v8294 = vpack.c.b16 %v8058, %v8054
        %v8295 = vpack.c.b16 %v8059, %v8055
        %v8296 = vpack.c.b16 %v8060, %v8056
        %v8297 = vpack.c.b16 %v8061, %v8057
        %v8298 = vpack.c.b16 %v8066, %v8062
        %v8299 = vpack.c.b16 %v8067, %v8063
        %v8300 = vpack.c.b16 %v8068, %v8064
        %v8301 = vpack.c.b16 %v8069, %v8065
        %v8302 = vpack.c.b16 %v8074, %v8070
        %v8303 = vpack.c.b16 %v8075, %v8071
        %v8304 = vpack.c.b16 %v8076, %v8072
        %v8305 = vpack.c.b16 %v8077, %v8073
        %v8306 = vpack.c.b16 %v8082, %v8078
        %v8307 = vpack.c.b16 %v8083, %v8079
        %v8308 = vpack.c.b16 %v8084, %v8080
        %v8309 = vpack.c.b16 %v8085, %v8081
        %v8310 = vpack.c.b16 %v8090, %v8086
        %v8311 = vpack.c.b16 %v8091, %v8087
        %v8312 = vpack.c.b16 %v8092, %v8088
        %v8313 = vpack.c.b16 %v8093, %v8089
        %v8314 = vpack.c.b16 %v8098, %v8094
        %v8315 = vpack.c.b16 %v8099, %v8095
        %v8316 = vpack.c.b16 %v8100, %v8096
        %v8317 = vpack.c.b16 %v8101, %v8097
        %v8318 = vpack.c.b16 %v8106, %v8102
        %v8319 = vpack.c.b16 %v8107, %v8103
        %v8320 = vpack.c.b16 %v8108, %v8104
        %v8321 = vpack.c.b16 %v8109, %v8105
        %v8322 = vpack.c.b16 %v8114, %v8110
        %v8323 = vpack.c.b16 %v8115, %v8111
        %v8324 = vpack.c.b16 %v8116, %v8112
        %v8325 = vpack.c.b16 %v8117, %v8113
        %v8326 = vpack.c.b16 %v8122, %v8118
        %v8327 = vpack.c.b16 %v8123, %v8119
        %v8328 = vpack.c.b16 %v8124, %v8120
        %v8329 = vpack.c.b16 %v8125, %v8121
        %v8330 = vpack.c.b16 %v8130, %v8126
        %v8331 = vpack.c.b16 %v8131, %v8127
        %v8332 = vpack.c.b16 %v8132, %v8128
        %v8333 = vpack.c.b16 %v8133, %v8129
        %v8334 = vpack.c.b16 %v8138, %v8134
        %v8335 = vpack.c.b16 %v8139, %v8135
        %v8336 = vpack.c.b16 %v8140, %v8136
        %v8337 = vpack.c.b16 %v8141, %v8137
        %v8338 = vpack.c.b16 %v8146, %v8142
        %v8339 = vpack.c.b16 %v8147, %v8143
        %v8340 = vpack.c.b16 %v8148, %v8144
        %v8341 = vpack.c.b16 %v8149, %v8145
        %v8342 = vpack.c.b16 %v8154, %v8150
        %v8343 = vpack.c.b16 %v8155, %v8151
        %v8344 = vpack.c.b16 %v8156, %v8152
        %v8345 = vpack.c.b16 %v8157, %v8153
        %v8346 = vpack.c.b16 %v8162, %v8158
        %v8347 = vpack.c.b16 %v8163, %v8159
        %v8348 = vpack.c.b16 %v8164, %v8160
        %v8349 = vpack.c.b16 %v8165, %v8161
        %v8350 = vpack.c.b16 %v8170, %v8166
        %v8351 = vpack.c.b16 %v8171, %v8167
        %v8352 = vpack.c.b16 %v8172, %v8168
        %v8353 = vpack.c.b16 %v8173, %v8169
        %v8354 = vpack.c.b16 %v8178, %v8174
        %v8355 = vpack.c.b16 %v8179, %v8175
        %v8356 = vpack.c.b16 %v8180, %v8176
        %v8357 = vpack.c.b16 %v8181, %v8177
        %v8358 = vpack.c.b16 %v8186, %v8182
        %v8359 = vpack.c.b16 %v8187, %v8183
        %v8360 = vpack.c.b16 %v8188, %v8184
        %v8361 = vpack.c.b16 %v8189, %v8185
        %v8362 = vpack.c.b16 %v8194, %v8190
        %v8363 = vpack.c.b16 %v8195, %v8191
        %v8364 = vpack.c.b16 %v8196, %v8192
        %v8365 = vpack.c.b16 %v8197, %v8193
        %v8366 = vpack.c.b16 %v8202, %v8198
        %v8367 = vpack.c.b16 %v8203, %v8199
        %v8368 = vpack.c.b16 %v8204, %v8200
        %v8369 = vpack.c.b16 %v8205, %v8201
        %v8370 = vpack.c.b16 %v8210, %v8206
        %v8371 = vpack.c.b16 %v8211, %v8207
        %v8372 = vpack.c.b16 %v8212, %v8208
        %v8373 = vpack.c.b16 %v8213, %v8209
        %v8374 = vpack.c.b16 %v8218, %v8214
        %v8375 = vpack.c.b16 %v8219, %v8215
        %v8376 = vpack.c.b16 %v8220, %v8216
        %v8377 = vpack.c.b16 %v8221, %v8217
        %v8378 = vpack.c.b16 %v8226, %v8222
        %v8379 = vpack.c.b16 %v8227, %v8223
        %v8380 = vpack.c.b16 %v8228, %v8224
        %v8381 = vpack.c.b16 %v8229, %v8225
        %v8382 = vpack.c.b16 %v8234, %v8230
        %v8383 = vpack.c.b16 %v8235, %v8231
        %v8384 = vpack.c.b16 %v8236, %v8232
        %v8385 = vpack.c.b16 %v8237, %v8233
        %v8386 = vpack.c.b16 %v8242, %v8238
        %v8387 = vpack.c.b16 %v8243, %v8239
        %v8388 = vpack.c.b16 %v8244, %v8240
        %v8389 = vpack.c.b16 %v8245, %v8241
        %v8390 = vpack.c.b16 %v8250, %v8246
        %v8391 = vpack.c.b16 %v8251, %v8247
        %v8392 = vpack.c.b16 %v8252, %v8248
        %v8393 = vpack.c.b16 %v8253, %v8249
        %v8394 = vpack.c.b16 %v8258, %v8254
        %v8395 = vpack.c.b16 %v8259, %v8255
        %v8396 = vpack.c.b16 %v8260, %v8256
        %v8397 = vpack.c.b16 %v8261, %v8257
        %v8398 = vpack.c.b16 %v8266, %v8262
        %v8399 = vpack.c.b16 %v8267, %v8263
        %v8400 = vpack.c.b16 %v8268, %v8264
        %v8401 = vpack.c.b16 %v8269, %v8265
        %v8402 = vpack.c.b16 %v8274, %v8270
        %v8403 = vpack.c.b16 %v8275, %v8271
        %v8404 = vpack.c.b16 %v8276, %v8272
        %v8405 = vpack.c.b16 %v8277, %v8273
        %v8535 = vlaneseq
        %v8536 = vshrl.u32 %v8535, 7
        %v8537 = vsub.s32 0, %v8536
        %v8538 = vrot.slane %v7893, %v8537
        %v8539 = vlaneseq
        %v8540 = vshrl.u32 %v8539, 7
        %v8541 = vsub.s32 1, %v8540
        %v8542 = vrot.slane %v7893, %v8541
        %v8543 = vlaneseq
        %v8544 = vshrl.u32 %v8543, 7
        %v8545 = vsub.s32 2, %v8544
        %v8546 = vrot.slane %v7893, %v8545
        %v8547 = vlaneseq
        %v8548 = vshrl.u32 %v8547, 7
        %v8549 = vsub.s32 3, %v8548
        %v8550 = vrot.slane %v7893, %v8549
        %8555 = vmatprep.subr.bf16.mxu0 %v8307
        %8556 = vmatpush1.bf16.msra.mxu0 %v8306
        %8557 = vmatprep.subr.bf16.mxu0 %v8303
        %8558 = vmatpush1.bf16.msra.mxu0 %v8302
        %8559 = vmatprep.subr.bf16.mxu0 %v8299
        %8560 = vmatpush1.bf16.msra.mxu0 %v8298
        %8561 = vmatprep.subr.bf16.mxu0 %v8295
        %8562 = vmatpush1.bf16.msra.mxu0 %v8294
        %8563 = vmatprep.subr.bf16.mxu0 %v8291
        %8564 = vmatpush1.bf16.msra.mxu0 %v8290
        %8565 = vmatprep.subr.bf16.mxu0 %v8287
        %8566 = vmatpush1.bf16.msra.mxu0 %v8286
        %8567 = vmatprep.subr.bf16.mxu0 %v8283
        %8568 = vmatpush1.bf16.msra.mxu0 %v8282
        %8569 = vmatprep.subr.bf16.mxu0 %v8279
        %8570 = vmatpush1.bf16.msra.mxu0 %v8278
        %8571 = vmatprep.subr.bf16.mxu0 %v8339
        %8572 = vmatpush2.bf16.msra.mxu0 %v8338
        %8573 = vmatprep.subr.bf16.mxu0 %v8335
        %8574 = vmatpush2.bf16.msra.mxu0 %v8334
        %8575 = vmatprep.subr.bf16.mxu0 %v8331
        %8576 = vmatpush2.bf16.msra.mxu0 %v8330
        %8577 = vmatprep.subr.bf16.mxu0 %v8327
        %8578 = vmatpush2.bf16.msra.mxu0 %v8326
        %8579 = vmatprep.subr.bf16.mxu0 %v8323
        %8580 = vmatpush2.bf16.msra.mxu0 %v8322
        %8581 = vmatprep.subr.bf16.mxu0 %v8319
        %8582 = vmatpush2.bf16.msra.mxu0 %v8318
        %8583 = vmatprep.subr.bf16.mxu0 %v8315
        %8584 = vmatpush2.bf16.msra.mxu0 %v8314
        %8585 = vmatprep.subr.bf16.mxu0 %v8311
        %8586 = vmatpush2.bf16.msra.mxu0 %v8310
        %8587 = vmatprep.mubr.bf16.mxu0 %v7762
        %8588 = vmatmul.mubr.bf16.gmra.mxu0 %v7761
        %v8589 = vpop.f32.mrf.mxu0
        %v8590 = vadd.f32 %v8538, %v8589
        %v8591 = vpop.f32.mrf.mxu0
        %v8592 = vadd.f32 %v8542, %v8591
        %v8593 = vpop.f32.mrf.mxu0
        %v8594 = vpop.f32.mrf.mxu0
        %8595 = vdwg.mxu0
        %8596 = vmatprep.subr.bf16.mxu0 %v8371
        %8597 = vmatpush1.bf16.msra.mxu0 %v8370
        %8598 = vmatprep.subr.bf16.mxu0 %v8367
        %8599 = vmatpush1.bf16.msra.mxu0 %v8366
        %8600 = vmatprep.subr.bf16.mxu0 %v8363
        %8601 = vmatpush1.bf16.msra.mxu0 %v8362
        %8602 = vmatprep.subr.bf16.mxu0 %v8359
        %8603 = vmatpush1.bf16.msra.mxu0 %v8358
        %8604 = vmatprep.subr.bf16.mxu0 %v8355
        %8605 = vmatpush1.bf16.msra.mxu0 %v8354
        %8606 = vmatprep.subr.bf16.mxu0 %v8351
        %8607 = vmatpush1.bf16.msra.mxu0 %v8350
        %8608 = vmatprep.subr.bf16.mxu0 %v8347
        %8609 = vmatpush1.bf16.msra.mxu0 %v8346
        %8610 = vmatprep.subr.bf16.mxu0 %v8343
        %8611 = vmatpush1.bf16.msra.mxu0 %v8342
        %8612 = vmatprep.subr.bf16.mxu0 %v8403
        %8613 = vmatpush2.bf16.msra.mxu0 %v8402
        %8614 = vmatprep.subr.bf16.mxu0 %v8399
        %8615 = vmatpush2.bf16.msra.mxu0 %v8398
        %8616 = vmatprep.subr.bf16.mxu0 %v8395
        %8617 = vmatpush2.bf16.msra.mxu0 %v8394
        %8618 = vmatprep.subr.bf16.mxu0 %v8391
        %8619 = vmatpush2.bf16.msra.mxu0 %v8390
        %8620 = vmatprep.subr.bf16.mxu0 %v8387
        %8621 = vmatpush2.bf16.msra.mxu0 %v8386
        %8622 = vmatprep.subr.bf16.mxu0 %v8383
        %8623 = vmatpush2.bf16.msra.mxu0 %v8382
        %8624 = vmatprep.subr.bf16.mxu0 %v8379
        %8625 = vmatpush2.bf16.msra.mxu0 %v8378
        %8626 = vmatprep.subr.bf16.mxu0 %v8375
        %8627 = vmatpush2.bf16.msra.mxu0 %v8374
        %8628 = vmatprep.mubr.bf16.mxu0 %v7764
        %8629 = vmatmul.mubr.bf16.gmra.mxu0 %v7763
        %v8630 = vpop.f32.mrf.mxu0
        %v8631 = vadd.f32 %v8590, %v8630
        %v8632 = vpop.f32.mrf.mxu0
        %v8633 = vadd.f32 %v8592, %v8632
        %v8634 = vpop.f32.mrf.mxu0
        %v8635 = vpop.f32.mrf.mxu0
        %8636 = vdwg.mxu0
        %8637 = vmatprep.subr.bf16.mxu0 %v8309
        %8638 = vmatpush1.bf16.msra.mxu0 %v8308
        %8639 = vmatprep.subr.bf16.mxu0 %v8305
        %8640 = vmatpush1.bf16.msra.mxu0 %v8304
        %8641 = vmatprep.subr.bf16.mxu0 %v8301
        %8642 = vmatpush1.bf16.msra.mxu0 %v8300
        %8643 = vmatprep.subr.bf16.mxu0 %v8297
        %8644 = vmatpush1.bf16.msra.mxu0 %v8296
        %8645 = vmatprep.subr.bf16.mxu0 %v8293
        %8646 = vmatpush1.bf16.msra.mxu0 %v8292
        %8647 = vmatprep.subr.bf16.mxu0 %v8289
        %8648 = vmatpush1.bf16.msra.mxu0 %v8288
        %8649 = vmatprep.subr.bf16.mxu0 %v8285
        %8650 = vmatpush1.bf16.msra.mxu0 %v8284
        %8651 = vmatprep.subr.bf16.mxu0 %v8281
        %8652 = vmatpush1.bf16.msra.mxu0 %v8280
        %8653 = vmatprep.subr.bf16.mxu0 %v8341
        %8654 = vmatpush2.bf16.msra.mxu0 %v8340
        %8655 = vmatprep.subr.bf16.mxu0 %v8337
        %8656 = vmatpush2.bf16.msra.mxu0 %v8336
        %8657 = vmatprep.subr.bf16.mxu0 %v8333
        %8658 = vmatpush2.bf16.msra.mxu0 %v8332
        %8659 = vmatprep.subr.bf16.mxu0 %v8329
        %8660 = vmatpush2.bf16.msra.mxu0 %v8328
        %8661 = vmatprep.subr.bf16.mxu0 %v8325
        %8662 = vmatpush2.bf16.msra.mxu0 %v8324
        %8663 = vmatprep.subr.bf16.mxu0 %v8321
        %8664 = vmatpush2.bf16.msra.mxu0 %v8320
        %8665 = vmatprep.subr.bf16.mxu0 %v8317
        %8666 = vmatpush2.bf16.msra.mxu0 %v8316
        %8667 = vmatprep.subr.bf16.mxu0 %v8313
        %8668 = vmatpush2.bf16.msra.mxu0 %v8312
        %8669 = vmatprep.mubr.bf16.mxu0 %v7762
        %8670 = vmatmul.mubr.bf16.gmra.mxu0 %v7761
        %v8671 = vpop.f32.mrf.mxu0
        %v8672 = vadd.f32 %v8546, %v8671
        %v8673 = vpop.f32.mrf.mxu0
        %v8674 = vadd.f32 %v8550, %v8673
        %v8675 = vpop.f32.mrf.mxu0
        %v8676 = vpop.f32.mrf.mxu0
        %8677 = vdwg.mxu0
        %8678 = vmatprep.subr.bf16.mxu0 %v8373
        %8679 = vmatpush1.bf16.msra.mxu0 %v8372
        %8680 = vmatprep.subr.bf16.mxu0 %v8369
        %8681 = vmatpush1.bf16.msra.mxu0 %v8368
        %8682 = vmatprep.subr.bf16.mxu0 %v8365
        %8683 = vmatpush1.bf16.msra.mxu0 %v8364
        %8684 = vmatprep.subr.bf16.mxu0 %v8361
        %8685 = vmatpush1.bf16.msra.mxu0 %v8360
        %8686 = vmatprep.subr.bf16.mxu0 %v8357
        %8687 = vmatpush1.bf16.msra.mxu0 %v8356
        %8688 = vmatprep.subr.bf16.mxu0 %v8353
        %8689 = vmatpush1.bf16.msra.mxu0 %v8352
        %8690 = vmatprep.subr.bf16.mxu0 %v8349
        %8691 = vmatpush1.bf16.msra.mxu0 %v8348
        %8692 = vmatprep.subr.bf16.mxu0 %v8345
        %8693 = vmatpush1.bf16.msra.mxu0 %v8344
        %8694 = vmatprep.subr.bf16.mxu0 %v8405
        %8695 = vmatpush2.bf16.msra.mxu0 %v8404
        %8696 = vmatprep.subr.bf16.mxu0 %v8401
        %8697 = vmatpush2.bf16.msra.mxu0 %v8400
        %8698 = vmatprep.subr.bf16.mxu0 %v8397
        %8699 = vmatpush2.bf16.msra.mxu0 %v8396
        %8700 = vmatprep.subr.bf16.mxu0 %v8393
        %8701 = vmatpush2.bf16.msra.mxu0 %v8392
        %8702 = vmatprep.subr.bf16.mxu0 %v8389
        %8703 = vmatpush2.bf16.msra.mxu0 %v8388
        %8704 = vmatprep.subr.bf16.mxu0 %v8385
        %8705 = vmatpush2.bf16.msra.mxu0 %v8384
        %8706 = vmatprep.subr.bf16.mxu0 %v8381
        %8707 = vmatpush2.bf16.msra.mxu0 %v8380
        %8708 = vmatprep.subr.bf16.mxu0 %v8377
        %8709 = vmatpush2.bf16.msra.mxu0 %v8376
        %8710 = vmatprep.mubr.bf16.mxu0 %v7764
        %8711 = vmatmul.mubr.bf16.gmra.mxu0 %v7763
        %v8712 = vpop.f32.mrf.mxu0
        %v8713 = vadd.f32 %v8672, %v8712
        %v8714 = vpop.f32.mrf.mxu0
        %v8715 = vadd.f32 %v8674, %v8714
        %v8716 = vpop.f32.mrf.mxu0
        %v8717 = vpop.f32.mrf.mxu0
        %8718 = vdwg.mxu0
        %v8719 = vmax.f32 %v8631, 0.0
        %v8720 = vmax.f32 %v8633, 0.0
        %v8721 = vmax.f32 %v8713, 0.0
        %v8722 = vmax.f32 %v8715, 0.0
        %v8723 = vld [vmem:[%s16] sm:$0xf]
        %v8728 = vcombine.low %v8719, %v8720
        %v8729 = vcombine.low %v8721, %v8722
        %v8731 = vunpack.c.l.s4 1966171168
        %v8732 = vunpack.c.0.s8 %v8731
        %v8733 = vlaneseq
        %v8734 = vshrl.u32 %v8733, 7
        %v8735 = vsub.s32 %v8732, %v8734
        %v8736 = vrot.slane %v8728, %v8735
        %v8738 = vunpack.c.l.s4 1966171168
        %v8739 = vunpack.c.0.s8 %v8738
        %v8740 = vlaneseq
        %v8741 = vshrl.u32 %v8740, 7
        %v8742 = vsub.s32 %v8739, %v8741
        %v8743 = vrot.slane %v8729, %v8742
        %v8744 = vcombine.low %v8736, %v8743
        %v8746 = vunpack.c.l.s4 1966171168
        %v8747 = vunpack.c.0.s8 %v8746
        %v8748 = vlaneseq
        %v8749 = vshrl.u32 %v8748, 7
        %v8750 = vsub.s32 %v8747, %v8749
        %v8751 = vrot.slane %v8744, %v8750
        %v8753 = vmul.f32 %v8723, %v8751
        %v8754 = vxor.u32 %v8753, 2147483648
        %v8755 = vmul.f32 %v8754, 1.442695
        %v8756 = vpow.pop %v8755
        %v8757 = vadd.f32 %v8756, 1.0
        %v8758 = vrcp.pop %v8757
        %v8759 = vmul.f32 1.0, %v8758
        %v8760 = vmul.f32 %v8759, %v7754
        %8761 = vst.msk [vmem:[%s773] sm:$0xf] %vm7759, %v8760
        %v8763 = vlaneseq
        %v8764 = vshrl.u32 %v8763, 7
        %v8765 = vsub.s32 0, %v8764
        %v8766 = vrot.slane %v8760, %v8765
        %v8767 = vlaneseq
        %v8768 = vshrl.u32 %v8767, 7
        %v8769 = vsub.s32 1, %v8768
        %v8770 = vrot.slane %v8760, %v8769
        %v8771 = vlaneseq
        %v8772 = vshrl.u32 %v8771, 7
        %v8773 = vsub.s32 2, %v8772
        %v8774 = vrot.slane %v8760, %v8773
        %v8775 = vlaneseq
        %v8776 = vshrl.u32 %v8775, 7
        %v8777 = vsub.s32 3, %v8776
        %v8778 = vrot.slane %v8760, %v8777
        %v8783 = vpack.c.bf16 %v8766, %v8766
        %v8784 = vpack.c.bf16 %v8770, %v8770
        %v8785 = vpack.c.bf16 %v8774, %v8774
        %v8786 = vpack.c.bf16 %v8778, %v8778
        %v8787 = vld [vmem:[#allocation11] sm:$0xff]
        %v8788 = vld [vmem:[#allocation11 + $0x8] sm:$0xff]
        %v8789 = vld [vmem:[#allocation11 + $0x10] sm:$0xff]
        %v8790 = vld [vmem:[#allocation11 + $0x18] sm:$0xff]
        %v8791 = vld [vmem:[#allocation11 + $0x20] sm:$0xff]
        %v8792 = vld [vmem:[#allocation11 + $0x28] sm:$0xff]
        %v8793 = vld [vmem:[#allocation11 + $0x30] sm:$0xff]
        %v8794 = vld [vmem:[#allocation11 + $0x38] sm:$0xff]
        %v8795 = vld [vmem:[#allocation11 + $0x40] sm:$0xff]
        %v8796 = vld [vmem:[#allocation11 + $0x48] sm:$0xff]
        %v8797 = vld [vmem:[#allocation11 + $0x50] sm:$0xff]
        %v8798 = vld [vmem:[#allocation11 + $0x58] sm:$0xff]
        %v8799 = vld [vmem:[#allocation11 + $0x60] sm:$0xff]
        %v8800 = vld [vmem:[#allocation11 + $0x68] sm:$0xff]
        %v8801 = vld [vmem:[#allocation11 + $0x70] sm:$0xff]
        %v8802 = vld [vmem:[#allocation11 + $0x78] sm:$0xff]
        %v8803 = vld [vmem:[#allocation11 + $0x80] sm:$0xff]
        %v8804 = vld [vmem:[#allocation11 + $0x88] sm:$0xff]
        %v8805 = vld [vmem:[#allocation11 + $0x90] sm:$0xff]
        %v8806 = vld [vmem:[#allocation11 + $0x98] sm:$0xff]
        %v8807 = vld [vmem:[#allocation11 + $0xa0] sm:$0xff]
        %v8808 = vld [vmem:[#allocation11 + $0xa8] sm:$0xff]
        %v8809 = vld [vmem:[#allocation11 + $0xb0] sm:$0xff]
        %v8810 = vld [vmem:[#allocation11 + $0xb8] sm:$0xff]
        %v8811 = vld [vmem:[#allocation11 + $0xc0] sm:$0xff]
        %v8812 = vld [vmem:[#allocation11 + $0xc8] sm:$0xff]
        %v8813 = vld [vmem:[#allocation11 + $0xd0] sm:$0xff]
        %v8814 = vld [vmem:[#allocation11 + $0xd8] sm:$0xff]
        %v8815 = vld [vmem:[#allocation11 + $0xe0] sm:$0xff]
        %v8816 = vld [vmem:[#allocation11 + $0xe8] sm:$0xff]
        %v8817 = vld [vmem:[#allocation11 + $0xf0] sm:$0xff]
        %v8818 = vld [vmem:[#allocation11 + $0xf8] sm:$0xff]
        %v8819 = vld [vmem:[#allocation11 + $0x100] sm:$0xff]
        %v8820 = vld [vmem:[#allocation11 + $0x108] sm:$0xff]
        %v8821 = vld [vmem:[#allocation11 + $0x110] sm:$0xff]
        %v8822 = vld [vmem:[#allocation11 + $0x118] sm:$0xff]
        %v8823 = vld [vmem:[#allocation11 + $0x120] sm:$0xff]
        %v8824 = vld [vmem:[#allocation11 + $0x128] sm:$0xff]
        %v8825 = vld [vmem:[#allocation11 + $0x130] sm:$0xff]
        %v8826 = vld [vmem:[#allocation11 + $0x138] sm:$0xff]
        %v8827 = vld [vmem:[#allocation11 + $0x140] sm:$0xff]
        %v8828 = vld [vmem:[#allocation11 + $0x148] sm:$0xff]
        %v8829 = vld [vmem:[#allocation11 + $0x150] sm:$0xff]
        %v8830 = vld [vmem:[#allocation11 + $0x158] sm:$0xff]
        %v8831 = vld [vmem:[#allocation11 + $0x160] sm:$0xff]
        %v8832 = vld [vmem:[#allocation11 + $0x168] sm:$0xff]
        %v8833 = vld [vmem:[#allocation11 + $0x170] sm:$0xff]
        %v8834 = vld [vmem:[#allocation11 + $0x178] sm:$0xff]
        %v8835 = vld [vmem:[#allocation11 + $0x180] sm:$0xff]
        %v8836 = vld [vmem:[#allocation11 + $0x188] sm:$0xff]
        %v8837 = vld [vmem:[#allocation11 + $0x190] sm:$0xff]
        %v8838 = vld [vmem:[#allocation11 + $0x198] sm:$0xff]
        %v8839 = vld [vmem:[#allocation11 + $0x1a0] sm:$0xff]
        %v8840 = vld [vmem:[#allocation11 + $0x1a8] sm:$0xff]
        %v8841 = vld [vmem:[#allocation11 + $0x1b0] sm:$0xff]
        %v8842 = vld [vmem:[#allocation11 + $0x1b8] sm:$0xff]
        %v8843 = vld [vmem:[#allocation11 + $0x1c0] sm:$0xff]
        %v8844 = vld [vmem:[#allocation11 + $0x1c8] sm:$0xff]
        %v8845 = vld [vmem:[#allocation11 + $0x1d0] sm:$0xff]
        %v8846 = vld [vmem:[#allocation11 + $0x1d8] sm:$0xff]
        %v8847 = vld [vmem:[#allocation11 + $0x1e0] sm:$0xff]
        %v8848 = vld [vmem:[#allocation11 + $0x1e8] sm:$0xff]
        %v8849 = vld [vmem:[#allocation11 + $0x1f0] sm:$0xff]
        %v8850 = vld [vmem:[#allocation11 + $0x1f8] sm:$0xff]
        %v8851 = vld [vmem:[%s18] sm:$0x3]
        %v8916 = vunpack.c.l.b16 %v8787
        %v8917 = vunpack.c.h.b16 %v8787
        %v8918 = vunpack.c.l.b16 %v8788
        %v8919 = vunpack.c.h.b16 %v8788
        %v8920 = vunpack.c.l.b16 %v8789
        %v8921 = vunpack.c.h.b16 %v8789
        %v8922 = vunpack.c.l.b16 %v8790
        %v8923 = vunpack.c.h.b16 %v8790
        %v8924 = vunpack.c.l.b16 %v8791
        %v8925 = vunpack.c.h.b16 %v8791
        %v8926 = vunpack.c.l.b16 %v8792
        %v8927 = vunpack.c.h.b16 %v8792
        %v8928 = vunpack.c.l.b16 %v8793
        %v8929 = vunpack.c.h.b16 %v8793
        %v8930 = vunpack.c.l.b16 %v8794
        %v8931 = vunpack.c.h.b16 %v8794
        %v8932 = vunpack.c.l.b16 %v8795
        %v8933 = vunpack.c.h.b16 %v8795
        %v8934 = vunpack.c.l.b16 %v8796
        %v8935 = vunpack.c.h.b16 %v8796
        %v8936 = vunpack.c.l.b16 %v8797
        %v8937 = vunpack.c.h.b16 %v8797
        %v8938 = vunpack.c.l.b16 %v8798
        %v8939 = vunpack.c.h.b16 %v8798
        %v8940 = vunpack.c.l.b16 %v8799
        %v8941 = vunpack.c.h.b16 %v8799
        %v8942 = vunpack.c.l.b16 %v8800
        %v8943 = vunpack.c.h.b16 %v8800
        %v8944 = vunpack.c.l.b16 %v8801
        %v8945 = vunpack.c.h.b16 %v8801
        %v8946 = vunpack.c.l.b16 %v8802
        %v8947 = vunpack.c.h.b16 %v8802
        %v8948 = vunpack.c.l.b16 %v8803
        %v8949 = vunpack.c.h.b16 %v8803
        %v8950 = vunpack.c.l.b16 %v8804
        %v8951 = vunpack.c.h.b16 %v8804
        %v8952 = vunpack.c.l.b16 %v8805
        %v8953 = vunpack.c.h.b16 %v8805
        %v8954 = vunpack.c.l.b16 %v8806
        %v8955 = vunpack.c.h.b16 %v8806
        %v8956 = vunpack.c.l.b16 %v8807
        %v8957 = vunpack.c.h.b16 %v8807
        %v8958 = vunpack.c.l.b16 %v8808
        %v8959 = vunpack.c.h.b16 %v8808
        %v8960 = vunpack.c.l.b16 %v8809
        %v8961 = vunpack.c.h.b16 %v8809
        %v8962 = vunpack.c.l.b16 %v8810
        %v8963 = vunpack.c.h.b16 %v8810
        %v8964 = vunpack.c.l.b16 %v8811
        %v8965 = vunpack.c.h.b16 %v8811
        %v8966 = vunpack.c.l.b16 %v8812
        %v8967 = vunpack.c.h.b16 %v8812
        %v8968 = vunpack.c.l.b16 %v8813
        %v8969 = vunpack.c.h.b16 %v8813
        %v8970 = vunpack.c.l.b16 %v8814
        %v8971 = vunpack.c.h.b16 %v8814
        %v8972 = vunpack.c.l.b16 %v8815
        %v8973 = vunpack.c.h.b16 %v8815
        %v8974 = vunpack.c.l.b16 %v8816
        %v8975 = vunpack.c.h.b16 %v8816
        %v8976 = vunpack.c.l.b16 %v8817
        %v8977 = vunpack.c.h.b16 %v8817
        %v8978 = vunpack.c.l.b16 %v8818
        %v8979 = vunpack.c.h.b16 %v8818
        %v8980 = vunpack.c.l.b16 %v8819
        %v8981 = vunpack.c.h.b16 %v8819
        %v8982 = vunpack.c.l.b16 %v8820
        %v8983 = vunpack.c.h.b16 %v8820
        %v8984 = vunpack.c.l.b16 %v8821
        %v8985 = vunpack.c.h.b16 %v8821
        %v8986 = vunpack.c.l.b16 %v8822
        %v8987 = vunpack.c.h.b16 %v8822
        %v8988 = vunpack.c.l.b16 %v8823
        %v8989 = vunpack.c.h.b16 %v8823
        %v8990 = vunpack.c.l.b16 %v8824
        %v8991 = vunpack.c.h.b16 %v8824
        %v8992 = vunpack.c.l.b16 %v8825
        %v8993 = vunpack.c.h.b16 %v8825
        %v8994 = vunpack.c.l.b16 %v8826
        %v8995 = vunpack.c.h.b16 %v8826
        %v8996 = vunpack.c.l.b16 %v8827
        %v8997 = vunpack.c.h.b16 %v8827
        %v8998 = vunpack.c.l.b16 %v8828
        %v8999 = vunpack.c.h.b16 %v8828
        %v9000 = vunpack.c.l.b16 %v8829
        %v9001 = vunpack.c.h.b16 %v8829
        %v9002 = vunpack.c.l.b16 %v8830
        %v9003 = vunpack.c.h.b16 %v8830
        %v9004 = vunpack.c.l.b16 %v8831
        %v9005 = vunpack.c.h.b16 %v8831
        %v9006 = vunpack.c.l.b16 %v8832
        %v9007 = vunpack.c.h.b16 %v8832
        %v9008 = vunpack.c.l.b16 %v8833
        %v9009 = vunpack.c.h.b16 %v8833
        %v9010 = vunpack.c.l.b16 %v8834
        %v9011 = vunpack.c.h.b16 %v8834
        %v9012 = vunpack.c.l.b16 %v8835
        %v9013 = vunpack.c.h.b16 %v8835
        %v9014 = vunpack.c.l.b16 %v8836
        %v9015 = vunpack.c.h.b16 %v8836
        %v9016 = vunpack.c.l.b16 %v8837
        %v9017 = vunpack.c.h.b16 %v8837
        %v9018 = vunpack.c.l.b16 %v8838
        %v9019 = vunpack.c.h.b16 %v8838
        %v9020 = vunpack.c.l.b16 %v8839
        %v9021 = vunpack.c.h.b16 %v8839
        %v9022 = vunpack.c.l.b16 %v8840
        %v9023 = vunpack.c.h.b16 %v8840
        %v9024 = vunpack.c.l.b16 %v8841
        %v9025 = vunpack.c.h.b16 %v8841
        %v9026 = vunpack.c.l.b16 %v8842
        %v9027 = vunpack.c.h.b16 %v8842
        %v9028 = vunpack.c.l.b16 %v8843
        %v9029 = vunpack.c.h.b16 %v8843
        %v9030 = vunpack.c.l.b16 %v8844
        %v9031 = vunpack.c.h.b16 %v8844
        %v9032 = vunpack.c.l.b16 %v8845
        %v9033 = vunpack.c.h.b16 %v8845
        %v9034 = vunpack.c.l.b16 %v8846
        %v9035 = vunpack.c.h.b16 %v8846
        %v9036 = vunpack.c.l.b16 %v8847
        %v9037 = vunpack.c.h.b16 %v8847
        %v9038 = vunpack.c.l.b16 %v8848
        %v9039 = vunpack.c.h.b16 %v8848
        %v9040 = vunpack.c.l.b16 %v8849
        %v9041 = vunpack.c.h.b16 %v8849
        %v9042 = vunpack.c.l.b16 %v8850
        %v9043 = vunpack.c.h.b16 %v8850
        %v9044 = vpack.c.b16 %v8918, %v8916
        %v9045 = vpack.c.b16 %v8919, %v8917
        %v9046 = vpack.c.b16 %v8922, %v8920
        %v9047 = vpack.c.b16 %v8923, %v8921
        %v9048 = vpack.c.b16 %v8926, %v8924
        %v9049 = vpack.c.b16 %v8927, %v8925
        %v9050 = vpack.c.b16 %v8930, %v8928
        %v9051 = vpack.c.b16 %v8931, %v8929
        %v9052 = vpack.c.b16 %v8934, %v8932
        %v9053 = vpack.c.b16 %v8935, %v8933
        %v9054 = vpack.c.b16 %v8938, %v8936
        %v9055 = vpack.c.b16 %v8939, %v8937
        %v9056 = vpack.c.b16 %v8942, %v8940
        %v9057 = vpack.c.b16 %v8943, %v8941
        %v9058 = vpack.c.b16 %v8946, %v8944
        %v9059 = vpack.c.b16 %v8947, %v8945
        %v9060 = vpack.c.b16 %v8950, %v8948
        %v9061 = vpack.c.b16 %v8951, %v8949
        %v9062 = vpack.c.b16 %v8954, %v8952
        %v9063 = vpack.c.b16 %v8955, %v8953
        %v9064 = vpack.c.b16 %v8958, %v8956
        %v9065 = vpack.c.b16 %v8959, %v8957
        %v9066 = vpack.c.b16 %v8962, %v8960
        %v9067 = vpack.c.b16 %v8963, %v8961
        %v9068 = vpack.c.b16 %v8966, %v8964
        %v9069 = vpack.c.b16 %v8967, %v8965
        %v9070 = vpack.c.b16 %v8970, %v8968
        %v9071 = vpack.c.b16 %v8971, %v8969
        %v9072 = vpack.c.b16 %v8974, %v8972
        %v9073 = vpack.c.b16 %v8975, %v8973
        %v9074 = vpack.c.b16 %v8978, %v8976
        %v9075 = vpack.c.b16 %v8979, %v8977
        %v9076 = vpack.c.b16 %v8982, %v8980
        %v9077 = vpack.c.b16 %v8983, %v8981
        %v9078 = vpack.c.b16 %v8986, %v8984
        %v9079 = vpack.c.b16 %v8987, %v8985
        %v9080 = vpack.c.b16 %v8990, %v8988
        %v9081 = vpack.c.b16 %v8991, %v8989
        %v9082 = vpack.c.b16 %v8994, %v8992
        %v9083 = vpack.c.b16 %v8995, %v8993
        %v9084 = vpack.c.b16 %v8998, %v8996
        %v9085 = vpack.c.b16 %v8999, %v8997
        %v9086 = vpack.c.b16 %v9002, %v9000
        %v9087 = vpack.c.b16 %v9003, %v9001
        %v9088 = vpack.c.b16 %v9006, %v9004
        %v9089 = vpack.c.b16 %v9007, %v9005
        %v9090 = vpack.c.b16 %v9010, %v9008
        %v9091 = vpack.c.b16 %v9011, %v9009
        %v9092 = vpack.c.b16 %v9014, %v9012
        %v9093 = vpack.c.b16 %v9015, %v9013
        %v9094 = vpack.c.b16 %v9018, %v9016
        %v9095 = vpack.c.b16 %v9019, %v9017
        %v9096 = vpack.c.b16 %v9022, %v9020
        %v9097 = vpack.c.b16 %v9023, %v9021
        %v9098 = vpack.c.b16 %v9026, %v9024
        %v9099 = vpack.c.b16 %v9027, %v9025
        %v9100 = vpack.c.b16 %v9030, %v9028
        %v9101 = vpack.c.b16 %v9031, %v9029
        %v9102 = vpack.c.b16 %v9034, %v9032
        %v9103 = vpack.c.b16 %v9035, %v9033
        %v9104 = vpack.c.b16 %v9038, %v9036
        %v9105 = vpack.c.b16 %v9039, %v9037
        %v9106 = vpack.c.b16 %v9042, %v9040
        %v9107 = vpack.c.b16 %v9043, %v9041
        %v9173 = vlaneseq
        %v9174 = vshrl.u32 %v9173, 7
        %v9175 = vsub.s32 0, %v9174
        %v9176 = vrot.slane %v8851, %v9175
        %v9177 = vlaneseq
        %v9178 = vshrl.u32 %v9177, 7
        %v9179 = vsub.s32 1, %v9178
        %v9180 = vrot.slane %v8851, %v9179
        %9183 = vmatprep.subr.bf16.mxu0 %v9059
        %9184 = vmatpush1.bf16.msra.mxu0 %v9058
        %9185 = vmatprep.subr.bf16.mxu0 %v9057
        %9186 = vmatpush1.bf16.msra.mxu0 %v9056
        %9187 = vmatprep.subr.bf16.mxu0 %v9055
        %9188 = vmatpush1.bf16.msra.mxu0 %v9054
        %9189 = vmatprep.subr.bf16.mxu0 %v9053
        %9190 = vmatpush1.bf16.msra.mxu0 %v9052
        %9191 = vmatprep.subr.bf16.mxu0 %v9051
        %9192 = vmatpush1.bf16.msra.mxu0 %v9050
        %9193 = vmatprep.subr.bf16.mxu0 %v9049
        %9194 = vmatpush1.bf16.msra.mxu0 %v9048
        %9195 = vmatprep.subr.bf16.mxu0 %v9047
        %9196 = vmatpush1.bf16.msra.mxu0 %v9046
        %9197 = vmatprep.subr.bf16.mxu0 %v9045
        %9198 = vmatpush1.bf16.msra.mxu0 %v9044
        %9199 = vmatprep.subr.bf16.mxu0 %v9075
        %9200 = vmatpush2.bf16.msra.mxu0 %v9074
        %9201 = vmatprep.subr.bf16.mxu0 %v9073
        %9202 = vmatpush2.bf16.msra.mxu0 %v9072
        %9203 = vmatprep.subr.bf16.mxu0 %v9071
        %9204 = vmatpush2.bf16.msra.mxu0 %v9070
        %9205 = vmatprep.subr.bf16.mxu0 %v9069
        %9206 = vmatpush2.bf16.msra.mxu0 %v9068
        %9207 = vmatprep.subr.bf16.mxu0 %v9067
        %9208 = vmatpush2.bf16.msra.mxu0 %v9066
        %9209 = vmatprep.subr.bf16.mxu0 %v9065
        %9210 = vmatpush2.bf16.msra.mxu0 %v9064
        %9211 = vmatprep.subr.bf16.mxu0 %v9063
        %9212 = vmatpush2.bf16.msra.mxu0 %v9062
        %9213 = vmatprep.subr.bf16.mxu0 %v9061
        %9214 = vmatpush2.bf16.msra.mxu0 %v9060
        %9215 = vmatprep.mubr.bf16.mxu0 %v8784
        %9216 = vmatmul.mubr.bf16.gmra.mxu0 %v8783
        %v9217 = vpop.f32.mrf.mxu0
        %v9218 = vadd.f32 %v9176, %v9217
        %v9219 = vpop.f32.mrf.mxu0
        %v9220 = vadd.f32 %v9180, %v9219
        %v9221 = vpop.f32.mrf.mxu0
        %v9222 = vpop.f32.mrf.mxu0
        %9223 = vdwg.mxu0
        %9224 = vmatprep.subr.bf16.mxu0 %v9091
        %9225 = vmatpush1.bf16.msra.mxu0 %v9090
        %9226 = vmatprep.subr.bf16.mxu0 %v9089
        %9227 = vmatpush1.bf16.msra.mxu0 %v9088
        %9228 = vmatprep.subr.bf16.mxu0 %v9087
        %9229 = vmatpush1.bf16.msra.mxu0 %v9086
        %9230 = vmatprep.subr.bf16.mxu0 %v9085
        %9231 = vmatpush1.bf16.msra.mxu0 %v9084
        %9232 = vmatprep.subr.bf16.mxu0 %v9083
        %9233 = vmatpush1.bf16.msra.mxu0 %v9082
        %9234 = vmatprep.subr.bf16.mxu0 %v9081
        %9235 = vmatpush1.bf16.msra.mxu0 %v9080
        %9236 = vmatprep.subr.bf16.mxu0 %v9079
        %9237 = vmatpush1.bf16.msra.mxu0 %v9078
        %9238 = vmatprep.subr.bf16.mxu0 %v9077
        %9239 = vmatpush1.bf16.msra.mxu0 %v9076
        %9240 = vmatprep.subr.bf16.mxu0 %v9107
        %9241 = vmatpush2.bf16.msra.mxu0 %v9106
        %9242 = vmatprep.subr.bf16.mxu0 %v9105
        %9243 = vmatpush2.bf16.msra.mxu0 %v9104
        %9244 = vmatprep.subr.bf16.mxu0 %v9103
        %9245 = vmatpush2.bf16.msra.mxu0 %v9102
        %9246 = vmatprep.subr.bf16.mxu0 %v9101
        %9247 = vmatpush2.bf16.msra.mxu0 %v9100
        %9248 = vmatprep.subr.bf16.mxu0 %v9099
        %9249 = vmatpush2.bf16.msra.mxu0 %v9098
        %9250 = vmatprep.subr.bf16.mxu0 %v9097
        %9251 = vmatpush2.bf16.msra.mxu0 %v9096
        %9252 = vmatprep.subr.bf16.mxu0 %v9095
        %9253 = vmatpush2.bf16.msra.mxu0 %v9094
        %9254 = vmatprep.subr.bf16.mxu0 %v9093
        %9255 = vmatpush2.bf16.msra.mxu0 %v9092
        %9256 = vmatprep.mubr.bf16.mxu0 %v8786
        %9257 = vmatmul.mubr.bf16.gmra.mxu0 %v8785
        %v9258 = vpop.f32.mrf.mxu0
        %v9259 = vadd.f32 %v9218, %v9258
        %v9260 = vpop.f32.mrf.mxu0
        %v9261 = vadd.f32 %v9220, %v9260
        %v9262 = vpop.f32.mrf.mxu0
        %v9263 = vpop.f32.mrf.mxu0
        %9264 = vdwg.mxu0
        %v9265 = vmax.f32 %v9259, 0.0
        %v9266 = vmax.f32 %v9261, 0.0
        %v9267 = vpack.c.bf16 %v9265, %v9265
        %v9268 = vpack.c.bf16 %v9266, %v9266
        %v9269 = vld [vmem:[%s19] sm:$0xf]
        %v9270 = vld [vmem:[%s19 + $0x4] sm:$0xf]
        %v9271 = vld [vmem:[%s19 + $0x8] sm:$0xf]
        %v9272 = vld [vmem:[%s19 + $0xc] sm:$0xf]
        %v9273 = vld [vmem:[%s19 + $0x10] sm:$0xf]
        %v9274 = vld [vmem:[%s19 + $0x14] sm:$0xf]
        %v9275 = vld [vmem:[%s19 + $0x18] sm:$0xf]
        %v9276 = vld [vmem:[%s19 + $0x1c] sm:$0xf]
        %v9277 = vld [vmem:[%s19 + $0x20] sm:$0xf]
        %v9278 = vld [vmem:[%s19 + $0x24] sm:$0xf]
        %v9279 = vld [vmem:[%s19 + $0x28] sm:$0xf]
        %v9280 = vld [vmem:[%s19 + $0x2c] sm:$0xf]
        %v9281 = vld [vmem:[%s19 + $0x30] sm:$0xf]
        %v9282 = vld [vmem:[%s19 + $0x34] sm:$0xf]
        %v9283 = vld [vmem:[%s19 + $0x38] sm:$0xf]
        %v9284 = vld [vmem:[%s19 + $0x3c] sm:$0xf]
        %v9285 = vld [vmem:[%s19 + $0x40] sm:$0xf]
        %v9286 = vld [vmem:[%s19 + $0x44] sm:$0xf]
        %v9287 = vld [vmem:[%s19 + $0x48] sm:$0xf]
        %v9288 = vld [vmem:[%s19 + $0x4c] sm:$0xf]
        %v9289 = vld [vmem:[%s19 + $0x50] sm:$0xf]
        %v9290 = vld [vmem:[%s19 + $0x54] sm:$0xf]
        %v9291 = vld [vmem:[%s19 + $0x58] sm:$0xf]
        %v9292 = vld [vmem:[%s19 + $0x5c] sm:$0xf]
        %v9293 = vld [vmem:[%s19 + $0x60] sm:$0xf]
        %v9294 = vld [vmem:[%s19 + $0x64] sm:$0xf]
        %v9295 = vld [vmem:[%s19 + $0x68] sm:$0xf]
        %v9296 = vld [vmem:[%s19 + $0x6c] sm:$0xf]
        %v9297 = vld [vmem:[%s19 + $0x70] sm:$0xf]
        %v9298 = vld [vmem:[%s19 + $0x74] sm:$0xf]
        %v9299 = vld [vmem:[%s19 + $0x78] sm:$0xf]
        %v9300 = vld [vmem:[%s19 + $0x7c] sm:$0xf]
        %v9301 = vld [vmem:[%s20] sm:$0x1]
        %v9334 = vunpack.c.l.b16 %v9269
        %v9335 = vunpack.c.l.b16 %v9270
        %v9336 = vunpack.c.l.b16 %v9271
        %v9337 = vunpack.c.l.b16 %v9272
        %v9338 = vunpack.c.l.b16 %v9273
        %v9339 = vunpack.c.l.b16 %v9274
        %v9340 = vunpack.c.l.b16 %v9275
        %v9341 = vunpack.c.l.b16 %v9276
        %v9342 = vunpack.c.l.b16 %v9277
        %v9343 = vunpack.c.l.b16 %v9278
        %v9344 = vunpack.c.l.b16 %v9279
        %v9345 = vunpack.c.l.b16 %v9280
        %v9346 = vunpack.c.l.b16 %v9281
        %v9347 = vunpack.c.l.b16 %v9282
        %v9348 = vunpack.c.l.b16 %v9283
        %v9349 = vunpack.c.l.b16 %v9284
        %v9350 = vunpack.c.l.b16 %v9285
        %v9351 = vunpack.c.l.b16 %v9286
        %v9352 = vunpack.c.l.b16 %v9287
        %v9353 = vunpack.c.l.b16 %v9288
        %v9354 = vunpack.c.l.b16 %v9289
        %v9355 = vunpack.c.l.b16 %v9290
        %v9356 = vunpack.c.l.b16 %v9291
        %v9357 = vunpack.c.l.b16 %v9292
        %v9358 = vunpack.c.l.b16 %v9293
        %v9359 = vunpack.c.l.b16 %v9294
        %v9360 = vunpack.c.l.b16 %v9295
        %v9361 = vunpack.c.l.b16 %v9296
        %v9362 = vunpack.c.l.b16 %v9297
        %v9363 = vunpack.c.l.b16 %v9298
        %v9364 = vunpack.c.l.b16 %v9299
        %v9365 = vunpack.c.l.b16 %v9300
        %v9366 = vpack.c.b16 %v9335, %v9334
        %v9367 = vpack.c.b16 %v9337, %v9336
        %v9368 = vpack.c.b16 %v9339, %v9338
        %v9369 = vpack.c.b16 %v9341, %v9340
        %v9370 = vpack.c.b16 %v9343, %v9342
        %v9371 = vpack.c.b16 %v9345, %v9344
        %v9372 = vpack.c.b16 %v9347, %v9346
        %v9373 = vpack.c.b16 %v9349, %v9348
        %v9374 = vpack.c.b16 %v9351, %v9350
        %v9375 = vpack.c.b16 %v9353, %v9352
        %v9376 = vpack.c.b16 %v9355, %v9354
        %v9377 = vpack.c.b16 %v9357, %v9356
        %v9378 = vpack.c.b16 %v9359, %v9358
        %v9379 = vpack.c.b16 %v9361, %v9360
        %v9380 = vpack.c.b16 %v9363, %v9362
        %v9381 = vpack.c.b16 %v9365, %v9364
        %9398 = vmatprep.subr.bf16.mxu0 0
        %9399 = vmatpush1.bf16.msra.mxu0 %v9373
        %9400 = vmatprep.subr.bf16.mxu0 0
        %9401 = vmatpush1.bf16.msra.mxu0 %v9372
        %9402 = vmatprep.subr.bf16.mxu0 0
        %9403 = vmatpush1.bf16.msra.mxu0 %v9371
        %9404 = vmatprep.subr.bf16.mxu0 0
        %9405 = vmatpush1.bf16.msra.mxu0 %v9370
        %9406 = vmatprep.subr.bf16.mxu0 0
        %9407 = vmatpush1.bf16.msra.mxu0 %v9369
        %9408 = vmatprep.subr.bf16.mxu0 0
        %9409 = vmatpush1.bf16.msra.mxu0 %v9368
        %9410 = vmatprep.subr.bf16.mxu0 0
        %9411 = vmatpush1.bf16.msra.mxu0 %v9367
        %9412 = vmatprep.subr.bf16.mxu0 0
        %9413 = vmatpush1.bf16.msra.mxu0 %v9366
        %9414 = vmatprep.subr.bf16.mxu0 0
        %9415 = vmatpush2.bf16.msra.mxu0 %v9381
        %9416 = vmatprep.subr.bf16.mxu0 0
        %9417 = vmatpush2.bf16.msra.mxu0 %v9380
        %9418 = vmatprep.subr.bf16.mxu0 0
        %9419 = vmatpush2.bf16.msra.mxu0 %v9379
        %9420 = vmatprep.subr.bf16.mxu0 0
        %9421 = vmatpush2.bf16.msra.mxu0 %v9378
        %9422 = vmatprep.subr.bf16.mxu0 0
        %9423 = vmatpush2.bf16.msra.mxu0 %v9377
        %9424 = vmatprep.subr.bf16.mxu0 0
        %9425 = vmatpush2.bf16.msra.mxu0 %v9376
        %9426 = vmatprep.subr.bf16.mxu0 0
        %9427 = vmatpush2.bf16.msra.mxu0 %v9375
        %9428 = vmatprep.subr.bf16.mxu0 0
        %9429 = vmatpush2.bf16.msra.mxu0 %v9374
        %9430 = vmatprep.mubr.bf16.mxu0 %v9268
        %9431 = vmatmul.mubr.bf16.gmra.mxu0 %v9267
        %v9432 = vpop.f32.mrf.mxu0
        %v9433 = vadd.f32 %v9301, %v9432
        %v9434 = vpop.f32.mrf.mxu0
        %v9435 = vpop.f32.mrf.mxu0
        %v9436 = vpop.f32.mrf.mxu0
        %9437 = vdwg.mxu0
        %9438 = vst [vmem:[%s779] sm:$0x1] %v9433
        %s9439 = sand.u32 %s498, 1
        %s9440 = scalar_lea.sflag [#allocation7], %s9439
        %s9441 = sand.u32 %s498, 1
        %s9442 = smul.addr %s9441, 4
        %s9443 = scalar_lea.vmem [#allocation13], %s9442
        %s9444 = sand.u32 %s44, 1
        %s9445 = scalar_lea.sflag [#allocation15], %s9444
        %s9446 = sand.u32 %s524, 1
        %s9447 = smul.addr %s9446, 4
        %s9448 = scalar_lea.vmem [#allocation14], %s9447
        %s9449 = sand.u32 %s44, 1
        %s9450 = scalar_lea.sflag [#allocation15], %s9449
        %s9451 = sand.u32 %s550, 1
        %s9452 = scalar_lea.vmem [#allocation16], %s9451
        // Predicated region
        $region121: #{attention_cnn_forward.1} parent=103 // pred_check
          %p9453 = pneg %p508
        $region122: #{attention_cnn_forward.1} parent=103 // pred_check_branch
          %9455 = sbr.rel (%p9453) target = $region124
        $region123: #{attention_cnn_forward.1} parent=103 // pred_region
          %s9457 = ssub.s32 64, 64
          %9458 = vsyncadd %s9440, %s9457
          %s9459 = smul.addr %s44, 4
          %s9460 = smul.addr %s9459, 16
          %s9461 = scalar_lea.hbm %s21, %s9460
          %s9463 = sshll.u32 %s9443, 4
          %s9464 = int_to_ptr.vmem [resolvable:$true] %s9463
          %9466 = dma.vmem_to_hbm [thread:$0]  %s9464, 64, %s9461, %s9440
        $region124: #{attention_cnn_forward.1} parent=103 // pred_fallthru
          _
        // Predicated region
        $region125: #{attention_cnn_forward.1} parent=103 // pred_check
          %p9467 = pneg %p534
        $region126: #{attention_cnn_forward.1} parent=103 // pred_check_branch
          %9469 = sbr.rel (%p9467) target = $region128
        $region127: #{attention_cnn_forward.1} parent=103 // pred_region
          %s9471 = ssub.s32 64, 64
          %9472 = vsyncadd %s9445, %s9471
          %s9473 = smul.addr %s44, 4
          %s9474 = smul.addr %s9473, 16
          %s9475 = scalar_lea.hbm %s22, %s9474
          %s9477 = sshll.u32 %s9448, 4
          %s9478 = int_to_ptr.vmem [resolvable:$true] %s9477
          %9480 = dma.vmem_to_hbm [thread:$0]  %s9478, 64, %s9475, %s9445
        $region128: #{attention_cnn_forward.1} parent=103 // pred_fallthru
          _
        // Predicated region
        $region129: #{attention_cnn_forward.1} parent=103 // pred_check
          %p9481 = pneg %p560
        $region130: #{attention_cnn_forward.1} parent=103 // pred_check_branch
          %9483 = sbr.rel (%p9481) target = $region132
        $region131: #{attention_cnn_forward.1} parent=103 // pred_region
          %s9485 = ssub.s32 16, 16
          %9486 = vsyncadd %s9450, %s9485
          %s9487 = smul.addr %s44, 16
          %s9488 = scalar_lea.hbm %s23, %s9487
          %s9490 = sshll.u32 %s9452, 4
          %s9491 = int_to_ptr.vmem [resolvable:$true] %s9490
          %9493 = dma.vmem_to_hbm [thread:$0]  %s9491, 16, %s9488, %s9450
        $region132: #{attention_cnn_forward.1} parent=103 // pred_fallthru
          _
      $region104: #{attention_cnn_forward.1} parent=5 // pred_fallthru
        _
      %p9494 = scmp.le.s32.totalorder 2, %s39
      // Predicated region
      $region133: #{attention_cnn_forward.1} parent=5 // pred_check
        %p9495 = pneg %p9494
      $region134: #{attention_cnn_forward.1} parent=5 // pred_check_branch
        %9497 = sbr.rel (%p9495) target = $region136
      $region135: #{attention_cnn_forward.1} parent=5 // pred_region
        %s9498 = ssub.s32 %s39, 2
        // Predicated region
        $region137: #{attention_cnn_forward.1} parent=135 // pred_check
          %p9499 = pneg %p514
        $region138: #{attention_cnn_forward.1} parent=135 // pred_check_branch
          %9501 = sbr.rel (%p9499) target = $region140
        $region139: #{attention_cnn_forward.1} parent=135 // pred_region
          %s9502 = sand.u32 %s499, 1
          %s9503 = scalar_lea.sflag [#allocation7], %s9502
          %s9504 = sand.u32 %s499, 1
          %s9505 = smul.addr %s9504, 4
          %s9506 = scalar_lea.vmem [#allocation13], %s9505
          %9507 = dma.done %s9503, 64
        $region140: #{attention_cnn_forward.1} parent=135 // pred_fallthru
          _
        // Predicated region
        $region141: #{attention_cnn_forward.1} parent=135 // pred_check
          %p9508 = pneg %p540
        $region142: #{attention_cnn_forward.1} parent=135 // pred_check_branch
          %9510 = sbr.rel (%p9508) target = $region144
        $region143: #{attention_cnn_forward.1} parent=135 // pred_region
          %s9511 = sand.u32 %s45, 1
          %s9512 = scalar_lea.sflag [#allocation15], %s9511
          %s9513 = sand.u32 %s525, 1
          %s9514 = smul.addr %s9513, 4
          %s9515 = scalar_lea.vmem [#allocation14], %s9514
          %9516 = dma.done %s9512, 64
        $region144: #{attention_cnn_forward.1} parent=135 // pred_fallthru
          _
        // Predicated region
        $region145: #{attention_cnn_forward.1} parent=135 // pred_check
          %p9517 = pneg %p566
        $region146: #{attention_cnn_forward.1} parent=135 // pred_check_branch
          %9519 = sbr.rel (%p9517) target = $region148
        $region147: #{attention_cnn_forward.1} parent=135 // pred_region
          %s9520 = sand.u32 %s45, 1
          %s9521 = scalar_lea.sflag [#allocation15], %s9520
          %s9522 = sand.u32 %s551, 1
          %s9523 = scalar_lea.vmem [#allocation16], %s9522
          %9524 = dma.done %s9521, 16
        $region148: #{attention_cnn_forward.1} parent=135 // pred_fallthru
          _
      $region136: #{attention_cnn_forward.1} parent=5 // pred_fallthru
        _
    $region6: #{attention_cnn_forward.1} parent=1 // loop_footer
      %s43 = sadd.s32 1, %s39
    $region7: #{attention_cnn_forward.1} parent=1 // loop_footer_branch
      %38 = sbr.rel target = $region3
    $region8: #{attention_cnn_forward.1} parent=1 // loop_exit
      _
    %9525 = vsyncpa [#allocation6], 1
    %s9526 = scalar_lea.sflag [#allocation6], 1
    %9527 = vsyncpa %s9526, 1
    %9528 = vsyncpa [#allocation9], 1
    %9529 = vsyncpa [#allocation12], 1
    %9530 = vsyncpa [#allocation7], 1
    %s9531 = scalar_lea.sflag [#allocation7], 1
    %9532 = vsyncpa %s9531, 1
    %9533 = vsyncpa [#allocation15], 1
    %s9534 = scalar_lea.sflag [#allocation15], 1
    %9535 = vsyncpa %s9534, 1

</llo_original>
